<compile_context>
chip_gen: v5e
topology: v5e:2x2
jax: 0.10.0
libtpu: 0.0.40
codegen_flags: <defaults>
</compile_context>

<pallas_src>
import functools

import jax
import jax.numpy as jnp
from jax.experimental import pallas as pl
from jax.experimental.pallas import tpu as pltpu

EPS = 1e-5
LANE = 128  # TPU lane width; channel axes are padded up to a multiple of this


# ------------------------------ small helpers ------------------------------ #

def _round_up(n, m):
    return ((n + m - 1) // m) * m


def _pad_last(a, target):
    pad = target - a.shape[-1]
    if pad == 0:
        return a
    return jnp.pad(a, [(0, 0)] * (a.ndim - 1) + [(0, pad)])


def _pick_tile_m(m):
    # largest power-of-two row tile that divides M and gives >= 2 grid steps
    for t in (1024, 512, 256, 128, 64, 32, 16, 8):
        if m % t == 0 and m // t >= 2:
            return t
    return m


# ------------------------------ fused kernel ------------------------------- #

def _fused_block_kernel(x_ref, w1_ref, g1_ref, b1_ref, w2_ref, g2_ref, b2_ref,
                        mask_ref, id_ref, o_ref, a1_ref, s_ref,
                        *, tile_m, pad_rows, wo, m_total):
    i = pl.program_id(0)
    last = pl.num_programs(0) - 1

    @pl.when(i == 0)
    def _init():
        a1_ref[...] = jnp.zeros_like(a1_ref)   # also zeros the halo rows used by the taps
        s_ref[...] = jnp.zeros_like(s_ref)

    # -------- stage 1 (every grid step): conv1 (1x1 conv == matmul) on this row tile ----
    y = jnp.dot(x_ref[...], w1_ref[...], preferred_element_type=jnp.float32)
    row0 = pl.multiple_of(pad_rows + i * tile_m, 8)
    a1_ref[pl.ds(row0, tile_m), :] = y
    # cross-tile BN1 statistics: sum and sum-of-squares (finalized on the last step)
    s_ref[0:1, :] += jnp.sum(y, axis=0, keepdims=True)
    s_ref[1:2, :] += jnp.sum(y * y, axis=0, keepdims=True)

    # -------- stage 2 (last grid step): BN1+ReLU, 3x3 conv, BN2+ReLU, residual, ReLU ----
    @pl.when(i == last)
    def _finalize():
        inv_m = 1.0 / m_total
        mean1 = s_ref[0:1, :] * inv_m
        var1 = jnp.maximum(s_ref[1:2, :] * inv_m - mean1 * mean1, 0.0)  # biased variance
        scale1 = g1_ref[...] * jax.lax.rsqrt(var1 + EPS)
        shift1 = b1_ref[...] - mean1 * scale1

        y1 = a1_ref[pad_rows:pad_rows + m_total, :]
        a1 = jnp.maximum(y1 * scale1 + shift1, 0.0)
        a1_ref[pad_rows:pad_rows + m_total, :] = a1   # normalized activation, zero halo

        # 3x3 / pad=1 conv as 9 row-shifted matmuls on the haloed VMEM scratch.
        # Tap (dy, dx) reads rows shifted by s = (dy-1)*Wo + (dx-1); positions whose
        # source pixel is outside the image are zeroed by the precomputed mask column.
        acc = jnp.zeros((m_total, a1.shape[-1]), jnp.float32)
        for dy in range(3):
            for dx in range(3):
                t = dy * 3 + dx
                s = (dy - 1) * wo + (dx - 1)
                src = a1_ref[pad_rows + s:pad_rows + s + m_total, :]
                contrib = jnp.dot(src, w2_ref[t], preferred_element_type=jnp.float32)
                acc += mask_ref[:, t:t + 1] * contrib

        # BN2 (train-mode batch stats) + ReLU, residual add, final ReLU
        mean2 = jnp.mean(acc, axis=0, keepdims=True)
        xc = acc - mean2
        var2 = jnp.mean(xc * xc, axis=0, keepdims=True)
        out = jnp.maximum(xc * (g2_ref[...] * jax.lax.rsqrt(var2 + EPS)) + b2_ref[...], 0.0)
        out = jnp.maximum(out + id_ref[...], 0.0)
        o_ref[...] = out


def _fused_basic_block(x_nhwc, p1, p2, identity_nhwc, stride):
    """conv1(1x1,stride)+BN+ReLU -> conv2(3x3,pad1)+BN+ReLU -> +identity -> ReLU."""
    xs = x_nhwc[:, ::stride, ::stride, :]          # 1x1 / pad=0 conv with stride == subsample
    N, Ho, Wo, Cin = xs.shape
    Cout = p1["w"].shape[0]                        # = planes (conv2 is planes -> planes)
    Cin_p = _round_up(Cin, LANE)
    C_p = _round_up(Cout, LANE)
    M = N * Ho * Wo
    TILE_M = _pick_tile_m(M)
    n_tiles = M // TILE_M
    PAD = _round_up(Wo + 1, 8)                     # halo rows for the 9 shifted taps

    if identity_nhwc.shape != (N, Ho, Wo, Cout):
        # TODO(synk): mirrors the reference module's bug — the residual add requires
        # matching shapes (the downsample path emits planes*expansion channels).
        raise ValueError(
            f"residual shape mismatch: {identity_nhwc.shape} vs {(N, Ho, Wo, Cout)}")

    f32 = jnp.float32
    # lane-dense, channel-padded operands
    x2 = _pad_last(xs.reshape(M, Cin).astype(f32), Cin_p)
    w1p = jnp.pad(jnp.transpose(p1["w"][:, :, 0, 0]).astype(f32),
                  ((0, Cin_p - Cin), (0, C_p - Cout)))                      # (Cin_p, C_p)
    w2_taps = jnp.stack(
        [jnp.pad(jnp.transpose(p2["w"][:, :, dy, dx]).astype(f32),
                 ((0, C_p - Cout), (0, C_p - Cout)))
         for dy in range(3) for dx in range(3)], axis=0)                    # (9, C_p, C_p)
    g1 = jnp.pad(p1["gamma"].astype(f32), (0, C_p - Cout)).reshape(1, C_p)
    b1 = jnp.pad(p1["beta"].astype(f32), (0, C_p - Cout)).reshape(1, C_p)
    g2 = jnp.pad(p2["gamma"].astype(f32), (0, C_p - Cout)).reshape(1, C_p)
    b2 = jnp.pad(p2["beta"].astype(f32), (0, C_p - Cout)).reshape(1, C_p)
    idf = _pad_last(identity_nhwc.reshape(M, Cout).astype(f32), C_p)        # (M, C_p)

    # per-tap validity mask (shape-only constant, folded at trace time): tap (dy,dx) is
    # valid at flattened row r=(n,y,x) iff 0<=y+dy-1<Ho and 0<=x+dx-1<Wo
    r = jnp.arange(M, dtype=jnp.int32)
    yy = (r // Wo) % Ho
    xx = r % Wo
    cols = []
    for dy in range(3):
        for dx in range(3):
            oy, ox = dy - 1, dx - 1
            cols.append((yy + oy >= 0) & (yy + oy < Ho) & (xx + ox >= 0) & (xx + ox < Wo))
    tap_mask = jnp.stack(cols, axis=1).astype(f32)                          # (M, 9)

    kernel = functools.partial(_fused_block_kernel, tile_m=TILE_M, pad_rows=PAD,
                               wo=Wo, m_total=M)
    out2 = pl.pallas_call(
        kernel,
        out_shape=jax.ShapeDtypeStruct((M, C_p), f32),
        grid=(n_tiles,),
        in_specs=[
            pl.BlockSpec((TILE_M, Cin_p), lambda i: (i, 0)),     # x rows: streamed tiles
            pl.BlockSpec((Cin_p, C_p), lambda i: (0, 0)),        # conv1 weight (resident)
            pl.BlockSpec((1, C_p), lambda i: (0, 0)),            # gamma1
            pl.BlockSpec((1, C_p), lambda i: (0, 0)),            # beta1
            pl.BlockSpec((9, C_p, C_p), lambda i: (0, 0, 0)),    # conv2 tap weights
            pl.BlockSpec((1, C_p), lambda i: (0, 0)),            # gamma2
            pl.BlockSpec((1, C_p), lambda i: (0, 0)),            # beta2
            pl.BlockSpec((M, 9), lambda i: (0, 0)),              # tap validity mask
            pl.BlockSpec((M, C_p), lambda i: (0, 0)),            # identity (resident)
        ],
        out_specs=pl.BlockSpec((M, C_p), lambda i: (0, 0)),      # written on last step
        scratch_shapes=[
            pltpu.VMEM((M + 2 * PAD, C_p), f32),                 # conv1 out -> BN1+ReLU (haloed)
            pltpu.VMEM((2, C_p), f32),                           # BN1 sum / sum-of-squares
        ],
        compiler_params=pltpu.CompilerParams(
            dimension_semantics=("arbitrary",),                  # BN reduction crosses tiles
        ),
    )(x2, w1p, g1, b1, w2_taps, g2, b2, tap_mask, idf)

    return out2[:, :Cout].reshape(N, Ho, Wo, Cout)


# ------------------- downsample path (1x1 conv + BN + ReLU) ------------------ #
# Only used when stride != 1 or first == True.  In the reference module that path
# produces planes*expansion channels and the residual add then shape-mismatches, so it
# cannot run to completion; kept for structural parity only.

def _conv1x1_bn_relu_kernel(x_ref, w_ref, g_ref, b_ref, o_ref):
    y = jnp.dot(x_ref[...], w_ref[...], preferred_element_type=jnp.float32)
    mean = jnp.mean(y, axis=0, keepdims=True)
    var = jnp.mean(jnp.square(y - mean), axis=0, keepdims=True)
    yn = (y - mean) * jax.lax.rsqrt(var + EPS) * g_ref[...] + b_ref[...]
    o_ref[...] = jnp.maximum(yn, 0.0)


def _conv1x1_bn_relu(x_nhwc, w_oi11, gamma, beta, stride):
    xs = x_nhwc[:, ::stride, ::stride, :]
    N, Ho, Wo, Cin = xs.shape
    Cout = w_oi11.shape[0]
    Cin_p, C_p = _round_up(Cin, LANE), _round_up(Cout, LANE)
    M = N * Ho * Wo
    f32 = jnp.float32
    x2 = _pad_last(xs.reshape(M, Cin).astype(f32), Cin_p)
    w2 = jnp.pad(jnp.transpose(w_oi11[:, :, 0, 0]).astype(f32),
                 ((0, Cin_p - Cin), (0, C_p - Cout)))
    g = jnp.pad(gamma.astype(f32), (0, C_p - Cout)).reshape(1, C_p)
    b = jnp.pad(beta.astype(f32), (0, C_p - Cout)).reshape(1, C_p)
    out2 = pl.pallas_call(
        _conv1x1_bn_relu_kernel,
        out_shape=jax.ShapeDtypeStruct((M, C_p), f32),
        in_specs=[pl.BlockSpec(memory_space=pltpu.MemorySpace.VMEM)] * 4,
        out_specs=pl.BlockSpec(memory_space=pltpu.MemorySpace.VMEM),
    )(x2, w2, g, b)
    return out2[:, :Cout].reshape(N, Ho, Wo, Cout)


# ------------------------------ module wrapper ------------------------------ #

def init_basic_block_params(key, inplanes, planes, stride=1, first=False):
    expansion = 4

    def conv_params(k, cout, cin, ksize):
        # Conv2d default weight init.  Conv bias is omitted: the following train-mode BN
        # subtracts the per-channel batch mean, which cancels a bias exactly.
        fan_in = cin * ksize * ksize
        bound = 1.0 / (fan_in ** 0.5)
        return {
            "w": jax.random.uniform(k, (cout, cin, ksize, ksize), jnp.float32, -bound, bound),
            "gamma": jnp.ones((cout,), jnp.float32),   # BatchNorm2d default init
            "beta": jnp.zeros((cout,), jnp.float32),
        }

    k1, k2, k3 = jax.random.split(key, 3)
    params = {
        "conv1": conv_params(k1, planes, inplanes, 1),
        "conv2": conv_params(k2, planes, planes, 3),
    }
    if stride != 1 or first:
        params["downsample"] = conv_params(k3, planes * expansion, inplanes, 1)
    return params


def basic_block_bn_forward(x_nchw, params, stride=1, first=False):
    x = jnp.transpose(x_nchw, (0, 2, 3, 1)).astype(jnp.float32)    # NCHW -> NHWC

    if stride != 1 or first:
        pd = params["downsample"]
        identity = _conv1x1_bn_relu(x, pd["w"], pd["gamma"], pd["beta"], stride)
    else:
        identity = x

    out = _fused_basic_block(x, params["conv1"], params["conv2"], identity, stride)
    return jnp.transpose(out, (0, 3, 1, 2))                        # NHWC -> NCHW


# ------------------------------ plain-JAX reference ------------------------------ #

def _reference_forward(x_nchw, params, stride=1, first=False):
    def conv2d(x, w, st, pad):
        return jax.lax.conv_general_dilated(
            x, w, window_strides=(st, st), padding=[(pad, pad), (pad, pad)],
            dimension_numbers=("NCHW", "OIHW", "NCHW"))

    def bn_relu(y, gamma, beta):
        mean = jnp.mean(y, axis=(0, 2, 3), keepdims=True)
        var = jnp.mean(jnp.square(y - mean), axis=(0, 2, 3), keepdims=True)
        y = (y - mean) * jax.lax.rsqrt(var + EPS)
        y = y * gamma.reshape(1, -1, 1, 1) + beta.reshape(1, -1, 1, 1)
        return jnp.maximum(y, 0.0)

    p1, p2 = params["conv1"], params["conv2"]
    out = bn_relu(conv2d(x_nchw, p1["w"], stride, 0), p1["gamma"], p1["beta"])
    out = bn_relu(conv2d(out, p2["w"], 1, 1), p2["gamma"], p2["beta"])
    if stride != 1 or first:
        pd = params["downsample"]
        identity = bn_relu(conv2d(x_nchw, pd["w"], stride, 0), pd["gamma"], pd["beta"])
    else:
        identity = x_nchw
    return jnp.maximum(out + identity, 0.0)


if __name__ == "__main__":
    key = jax.random.PRNGKey(0)
    kx, kp = jax.random.split(key)

    N, C, H, W = 2, 4, 16, 16
    inplanes = planes = 4          # stride=1, first=False -> identity = x (shapes match)
    stride, first = 1, False

    x = jax.random.normal(kx, (N, C, H, W), jnp.float32)
    params = init_basic_block_params(kp, inplanes, planes, stride=stride, first=first)

    fwd = jax.jit(functools.partial(basic_block_bn_forward, stride=stride, first=first))
    out = fwd(x, params)
    jax.block_until_ready(out)

    ref = _reference_forward(x, params, stride=stride, first=first)
    err = float(jnp.max(jnp.abs(out - ref)))

    assert out.shape == (N, planes, H, W)
    assert bool(jnp.all(out >= 0.0))                # final ReLU
    assert err < 5e-2, f"kernel/reference mismatch: max abs err = {err}"
    print("KERNEL_OK")
</pallas_src>

<mosaic_0001>
module attributes {stable_mosaic.version = 11 : i64} {
  func.func @_fused_block_kernel(%arg0: i32, %arg1: memref<256x128xf32, #tpu.memory_space<vmem>>, %arg2: memref<128x128xf32, #tpu.memory_space<vmem>>, %arg3: memref<1x128xf32, #tpu.memory_space<vmem>>, %arg4: memref<1x128xf32, #tpu.memory_space<vmem>>, %arg5: memref<9x128x128xf32, #tpu.memory_space<vmem>>, %arg6: memref<1x128xf32, #tpu.memory_space<vmem>>, %arg7: memref<1x128xf32, #tpu.memory_space<vmem>>, %arg8: memref<512x9xf32, #tpu.memory_space<vmem>>, %arg9: memref<512x128xf32, #tpu.memory_space<vmem>>, %arg10: memref<512x128xf32, #tpu.memory_space<vmem>>, %arg11: memref<560x128xf32, #tpu.memory_space<vmem>>, %arg12: memref<2x128xf32, #tpu.memory_space<vmem>>) attributes {dimension_semantics = [#tpu.dimension_semantics<arbitrary>], iteration_bounds = array<i64: 2>, scalar_prefetch = 0 : i64, scratch_operands = 2 : i64, tpu.core_type = #tpu.core_type<tc>, window_params = [{transform_indices = @transform_0, window_bounds = array<i64: 256, 128>}, {pipeline_mode = #tpu.pipeline_mode<synchronous>, transform_indices = @transform_1, window_bounds = array<i64: 128, 128>}, {pipeline_mode = #tpu.pipeline_mode<synchronous>, transform_indices = @transform_2, window_bounds = array<i64: 1, 128>}, {pipeline_mode = #tpu.pipeline_mode<synchronous>, transform_indices = @transform_3, window_bounds = array<i64: 1, 128>}, {pipeline_mode = #tpu.pipeline_mode<synchronous>, transform_indices = @transform_4, window_bounds = array<i64: 9, 128, 128>}, {pipeline_mode = #tpu.pipeline_mode<synchronous>, transform_indices = @transform_5, window_bounds = array<i64: 1, 128>}, {pipeline_mode = #tpu.pipeline_mode<synchronous>, transform_indices = @transform_6, window_bounds = array<i64: 1, 128>}, {pipeline_mode = #tpu.pipeline_mode<synchronous>, transform_indices = @transform_7, window_bounds = array<i64: 512, 9>}, {pipeline_mode = #tpu.pipeline_mode<synchronous>, transform_indices = @transform_8, window_bounds = array<i64: 512, 128>}, {pipeline_mode = #tpu.pipeline_mode<synchronous>, transform_indices = @transform_9, window_bounds = array<i64: 512, 128>}]} {
    %c0_i32 = arith.constant 0 : i32
    %0 = arith.cmpi eq, %arg0, %c0_i32 : i32
    %1 = arith.extui %0 : i1 to i32
    %c0_i32_0 = arith.constant 0 : i32
    %2 = arith.cmpi ne, %1, %c0_i32_0 : i32
    scf.if %2 {
      %cst_15 = arith.constant 0.000000e+00 : f32
      %25 = vector.broadcast %cst_15 : f32 to vector<560x128xf32>
      %c0_16 = arith.constant 0 : index
      %c0_17 = arith.constant 0 : index
      %26 = vector.load %arg11[%c0_16, %c0_17] : memref<560x128xf32, #tpu.memory_space<vmem>>, vector<560x128xf32>
      tpu.vector_store %arg11[%c0_16, %c0_17], %25 {strides = array<i32>} : memref<560x128xf32, #tpu.memory_space<vmem>>, vector<560x128xf32>,
      %cst_18 = arith.constant 0.000000e+00 : f32
      %27 = vector.broadcast %cst_18 : f32 to vector<2x128xf32>
      %c0_19 = arith.constant 0 : index
      %c0_20 = arith.constant 0 : index
      %28 = vector.load %arg12[%c0_19, %c0_20] : memref<2x128xf32, #tpu.memory_space<vmem>>, vector<2x128xf32>
      tpu.vector_store %arg12[%c0_19, %c0_20], %27 {strides = array<i32>} : memref<2x128xf32, #tpu.memory_space<vmem>>, vector<2x128xf32>,
    } else {
    }
    %c0 = arith.constant 0 : index
    %c0_1 = arith.constant 0 : index
    %3 = vector.load %arg1[%c0, %c0_1] : memref<256x128xf32, #tpu.memory_space<vmem>>, vector<256x128xf32>
    %c0_2 = arith.constant 0 : index
    %c0_3 = arith.constant 0 : index
    %4 = vector.load %arg2[%c0_2, %c0_3] : memref<128x128xf32, #tpu.memory_space<vmem>>, vector<128x128xf32>
    %cst = arith.constant dense<0.000000e+00> : vector<256x128xf32>
    %5 = tpu.matmul %3, %4, %cst {dimension_numbers = #tpu.dot_dimension_numbers<[1], [0], [0], [1], [0, 0, 1, 1], [], []>} : vector<256x128xf32>, vector<128x128xf32>, vector<256x128xf32> -> vector<256x128xf32>
    %c256_i32 = arith.constant 256 : i32
    %6 = arith.muli %arg0, %c256_i32 : i32
    %c24_i32 = arith.constant 24 : i32
    %7 = arith.addi %c24_i32, %6 : i32
    %8 = tpu.assume_multiple %7, 8 : i32
    %9 = arith.index_cast %8 : i32 to index
    %c0_4 = arith.constant 0 : index
    %10 = vector.load %arg11[%9, %c0_4] : memref<560x128xf32, #tpu.memory_space<vmem>>, vector<256x128xf32>
    tpu.vector_store %arg11[%9, %c0_4], %5 {strides = array<i32>} : memref<560x128xf32, #tpu.memory_space<vmem>>, vector<256x128xf32>,
    %c0_5 = arith.constant 0 : index
    %c0_6 = arith.constant 0 : index
    %11 = vector.load %arg12[%c0_5, %c0_6] : memref<2x128xf32, #tpu.memory_space<vmem>>, vector<1x128xf32>
    %cst_7 = arith.constant dense<0.000000e+00> : vector<128xf32>
    %12 = vector.multi_reduction <add>, %5, %cst_7 [0] : vector<256x128xf32> to vector<128xf32>
    %13 = vector.shape_cast %12 : vector<128xf32> to vector<1x128xf32>
    %14 = arith.addf %11, %13 : vector<1x128xf32>
    %c0_8 = arith.constant 0 : index
    %c0_9 = arith.constant 0 : index
    %15 = vector.load %arg12[%c0_8, %c0_9] : memref<2x128xf32, #tpu.memory_space<vmem>>, vector<1x128xf32>
    tpu.vector_store %arg12[%c0_8, %c0_9], %14 {strides = array<i32>} : memref<2x128xf32, #tpu.memory_space<vmem>>, vector<1x128xf32>,
    %c1 = arith.constant 1 : index
    %c0_10 = arith.constant 0 : index
    %16 = vector.load %arg12[%c1, %c0_10] : memref<2x128xf32, #tpu.memory_space<vmem>>, vector<1x128xf32>
    %17 = arith.mulf %5, %5 : vector<256x128xf32>
    %cst_11 = arith.constant dense<0.000000e+00> : vector<128xf32>
    %18 = vector.multi_reduction <add>, %17, %cst_11 [0] : vector<256x128xf32> to vector<128xf32>
    %19 = vector.shape_cast %18 : vector<128xf32> to vector<1x128xf32>
    %20 = arith.addf %16, %19 : vector<1x128xf32>
    %c1_12 = arith.constant 1 : index
    %c0_13 = arith.constant 0 : index
    %21 = vector.load %arg12[%c1_12, %c0_13] : memref<2x128xf32, #tpu.memory_space<vmem>>, vector<1x128xf32>
    tpu.vector_store %arg12[%c1_12, %c0_13], %20 {strides = array<i32>} : memref<2x128xf32, #tpu.memory_space<vmem>>, vector<1x128xf32>,
    %c1_i32 = arith.constant 1 : i32
    %22 = arith.cmpi eq, %arg0, %c1_i32 : i32
    %23 = arith.extui %22 : i1 to i32
    %c0_i32_14 = arith.constant 0 : i32
    %24 = arith.cmpi ne, %23, %c0_i32_14 : i32
    scf.if %24 {
      %c0_15 = arith.constant 0 : index
      %c0_16 = arith.constant 0 : index
      %25 = vector.load %arg12[%c0_15, %c0_16] : memref<2x128xf32, #tpu.memory_space<vmem>>, vector<1x128xf32>
      %cst_17 = arith.constant 0.001953125 : f32
      %26 = vector.broadcast %cst_17 : f32 to vector<1x128xf32>
      %27 = arith.mulf %25, %26 : vector<1x128xf32>
      %c1_18 = arith.constant 1 : index
      %c0_19 = arith.constant 0 : index
      %28 = vector.load %arg12[%c1_18, %c0_19] : memref<2x128xf32, #tpu.memory_space<vmem>>, vector<1x128xf32>
      %cst_20 = arith.constant 0.001953125 : f32
      %29 = vector.broadcast %cst_20 : f32 to vector<1x128xf32>
      %30 = arith.mulf %28, %29 : vector<1x128xf32>
      %31 = arith.mulf %27, %27 : vector<1x128xf32>
      %32 = arith.subf %30, %31 : vector<1x128xf32>
      %cst_21 = arith.constant 0.000000e+00 : f32
      %33 = vector.broadcast %cst_21 : f32 to vector<1x128xf32>
      %34 = arith.maximumf %32, %33 : vector<1x128xf32>
      %c0_22 = arith.constant 0 : index
      %c0_23 = arith.constant 0 : index
      %35 = vector.load %arg3[%c0_22, %c0_23] : memref<1x128xf32, #tpu.memory_space<vmem>>, vector<1x128xf32>
      %cst_24 = arith.constant 9.99999974E-6 : f32
      %36 = vector.broadcast %cst_24 : f32 to vector<1x128xf32>
      %37 = arith.addf %34, %36 : vector<1x128xf32>
      %38 = math.rsqrt %37 : vector<1x128xf32>
      %39 = arith.mulf %35, %38 : vector<1x128xf32>
      %c0_25 = arith.constant 0 : index
      %c0_26 = arith.constant 0 : index
      %40 = vector.load %arg4[%c0_25, %c0_26] : memref<1x128xf32, #tpu.memory_space<vmem>>, vector<1x128xf32>
      %41 = arith.mulf %27, %39 : vector<1x128xf32>
      %42 = arith.subf %40, %41 : vector<1x128xf32>
      %c24 = arith.constant 24 : index
      %c0_27 = arith.constant 0 : index
      %43 = vector.load %arg11[%c24, %c0_27] : memref<560x128xf32, #tpu.memory_space<vmem>>, vector<512x128xf32>
      %44 = vector.broadcast %39 : vector<1x128xf32> to vector<512x128xf32>
      %45 = arith.mulf %43, %44 : vector<512x128xf32>
      %46 = vector.broadcast %42 : vector<1x128xf32> to vector<512x128xf32>
      %47 = arith.addf %45, %46 : vector<512x128xf32>
      %cst_28 = arith.constant 0.000000e+00 : f32
      %48 = vector.broadcast %cst_28 : f32 to vector<512x128xf32>
      %49 = arith.maximumf %47, %48 : vector<512x128xf32>
      %c24_29 = arith.constant 24 : index
      %c0_30 = arith.constant 0 : index
      %50 = vector.load %arg11[%c24_29, %c0_30] : memref<560x128xf32, #tpu.memory_space<vmem>>, vector<512x128xf32>
      tpu.vector_store %arg11[%c24_29, %c0_30], %49 {strides = array<i32>} : memref<560x128xf32, #tpu.memory_space<vmem>>, vector<512x128xf32>,
      %cst_31 = arith.constant 0.000000e+00 : f32
      %51 = vector.broadcast %cst_31 : f32 to vector<512x128xf32>
      %c7 = arith.constant 7 : index
      %c0_32 = arith.constant 0 : index
      %52 = vector.load %arg11[%c7, %c0_32] : memref<560x128xf32, #tpu.memory_space<vmem>>, vector<512x128xf32>
      %c0_33 = arith.constant 0 : index
      %c0_34 = arith.constant 0 : index
      %c0_35 = arith.constant 0 : index
      %53 = vector.load %arg5[%c0_33, %c0_34, %c0_35] : memref<9x128x128xf32, #tpu.memory_space<vmem>>, vector<1x128x128xf32>
      %54 = vector.shape_cast %53 : vector<1x128x128xf32> to vector<128x128xf32>
      %cst_36 = arith.constant dense<0.000000e+00> : vector<512x128xf32>
      %55 = tpu.matmul %52, %54, %cst_36 {dimension_numbers = #tpu.dot_dimension_numbers<[1], [0], [0], [1], [0, 0, 1, 1], [], []>} : vector<512x128xf32>, vector<128x128xf32>, vector<512x128xf32> -> vector<512x128xf32>
      %c0_37 = arith.constant 0 : index
      %c0_38 = arith.constant 0 : index
      %56 = vector.load %arg8[%c0_37, %c0_38] : memref<512x9xf32, #tpu.memory_space<vmem>>, vector<512x1xf32>
      %57 = vector.broadcast %56 : vector<512x1xf32> to vector<512x128xf32>
      %58 = arith.mulf %57, %55 : vector<512x128xf32>
      %59 = arith.addf %51, %58 : vector<512x128xf32>
      %c8 = arith.constant 8 : index
      %c0_39 = arith.constant 0 : index
      %60 = vector.load %arg11[%c8, %c0_39] : memref<560x128xf32, #tpu.memory_space<vmem>>, vector<512x128xf32>
      %c1_40 = arith.constant 1 : index
      %c0_41 = arith.constant 0 : index
      %c0_42 = arith.constant 0 : index
      %61 = vector.load %arg5[%c1_40, %c0_41, %c0_42] : memref<9x128x128xf32, #tpu.memory_space<vmem>>, vector<1x128x128xf32>
      %62 = vector.shape_cast %61 : vector<1x128x128xf32> to vector<128x128xf32>
      %cst_43 = arith.constant dense<0.000000e+00> : vector<512x128xf32>
      %63 = tpu.matmul %60, %62, %cst_43 {dimension_numbers = #tpu.dot_dimension_numbers<[1], [0], [0], [1], [0, 0, 1, 1], [], []>} : vector<512x128xf32>, vector<128x128xf32>, vector<512x128xf32> -> vector<512x128xf32>
      %c0_44 = arith.constant 0 : index
      %c1_45 = arith.constant 1 : index
      %64 = vector.load %arg8[%c0_44, %c1_45] : memref<512x9xf32, #tpu.memory_space<vmem>>, vector<512x1xf32>
      %65 = vector.broadcast %64 : vector<512x1xf32> to vector<512x128xf32>
      %66 = arith.mulf %65, %63 : vector<512x128xf32>
      %67 = arith.addf %59, %66 : vector<512x128xf32>
      %c9 = arith.constant 9 : index
      %c0_46 = arith.constant 0 : index
      %68 = vector.load %arg11[%c9, %c0_46] : memref<560x128xf32, #tpu.memory_space<vmem>>, vector<512x128xf32>
      %c2 = arith.constant 2 : index
      %c0_47 = arith.constant 0 : index
      %c0_48 = arith.constant 0 : index
      %69 = vector.load %arg5[%c2, %c0_47, %c0_48] : memref<9x128x128xf32, #tpu.memory_space<vmem>>, vector<1x128x128xf32>
      %70 = vector.shape_cast %69 : vector<1x128x128xf32> to vector<128x128xf32>
      %cst_49 = arith.constant dense<0.000000e+00> : vector<512x128xf32>
      %71 = tpu.matmul %68, %70, %cst_49 {dimension_numbers = #tpu.dot_dimension_numbers<[1], [0], [0], [1], [0, 0, 1, 1], [], []>} : vector<512x128xf32>, vector<128x128xf32>, vector<512x128xf32> -> vector<512x128xf32>
      %c0_50 = arith.constant 0 : index
      %c2_51 = arith.constant 2 : index
      %72 = vector.load %arg8[%c0_50, %c2_51] : memref<512x9xf32, #tpu.memory_space<vmem>>, vector<512x1xf32>
      %73 = vector.broadcast %72 : vector<512x1xf32> to vector<512x128xf32>
      %74 = arith.mulf %73, %71 : vector<512x128xf32>
      %75 = arith.addf %67, %74 : vector<512x128xf32>
      %c23 = arith.constant 23 : index
      %c0_52 = arith.constant 0 : index
      %76 = vector.load %arg11[%c23, %c0_52] : memref<560x128xf32, #tpu.memory_space<vmem>>, vector<512x128xf32>
      %c3 = arith.constant 3 : index
      %c0_53 = arith.constant 0 : index
      %c0_54 = arith.constant 0 : index
      %77 = vector.load %arg5[%c3, %c0_53, %c0_54] : memref<9x128x128xf32, #tpu.memory_space<vmem>>, vector<1x128x128xf32>
      %78 = vector.shape_cast %77 : vector<1x128x128xf32> to vector<128x128xf32>
      %cst_55 = arith.constant dense<0.000000e+00> : vector<512x128xf32>
      %79 = tpu.matmul %76, %78, %cst_55 {dimension_numbers = #tpu.dot_dimension_numbers<[1], [0], [0], [1], [0, 0, 1, 1], [], []>} : vector<512x128xf32>, vector<128x128xf32>, vector<512x128xf32> -> vector<512x128xf32>
      %c0_56 = arith.constant 0 : index
      %c3_57 = arith.constant 3 : index
      %80 = vector.load %arg8[%c0_56, %c3_57] : memref<512x9xf32, #tpu.memory_space<vmem>>, vector<512x1xf32>
      %81 = vector.broadcast %80 : vector<512x1xf32> to vector<512x128xf32>
      %82 = arith.mulf %81, %79 : vector<512x128xf32>
      %83 = arith.addf %75, %82 : vector<512x128xf32>
      %c24_58 = arith.constant 24 : index
      %c0_59 = arith.constant 0 : index
      %84 = vector.load %arg11[%c24_58, %c0_59] : memref<560x128xf32, #tpu.memory_space<vmem>>, vector<512x128xf32>
      %c4 = arith.constant 4 : index
      %c0_60 = arith.constant 0 : index
      %c0_61 = arith.constant 0 : index
      %85 = vector.load %arg5[%c4, %c0_60, %c0_61] : memref<9x128x128xf32, #tpu.memory_space<vmem>>, vector<1x128x128xf32>
      %86 = vector.shape_cast %85 : vector<1x128x128xf32> to vector<128x128xf32>
      %cst_62 = arith.constant dense<0.000000e+00> : vector<512x128xf32>
      %87 = tpu.matmul %84, %86, %cst_62 {dimension_numbers = #tpu.dot_dimension_numbers<[1], [0], [0], [1], [0, 0, 1, 1], [], []>} : vector<512x128xf32>, vector<128x128xf32>, vector<512x128xf32> -> vector<512x128xf32>
      %c0_63 = arith.constant 0 : index
      %c4_64 = arith.constant 4 : index
      %88 = vector.load %arg8[%c0_63, %c4_64] : memref<512x9xf32, #tpu.memory_space<vmem>>, vector<512x1xf32>
      %89 = vector.broadcast %88 : vector<512x1xf32> to vector<512x128xf32>
      %90 = arith.mulf %89, %87 : vector<512x128xf32>
      %91 = arith.addf %83, %90 : vector<512x128xf32>
      %c25 = arith.constant 25 : index
      %c0_65 = arith.constant 0 : index
      %92 = vector.load %arg11[%c25, %c0_65] : memref<560x128xf32, #tpu.memory_space<vmem>>, vector<512x128xf32>
      %c5 = arith.constant 5 : index
      %c0_66 = arith.constant 0 : index
      %c0_67 = arith.constant 0 : index
      %93 = vector.load %arg5[%c5, %c0_66, %c0_67] : memref<9x128x128xf32, #tpu.memory_space<vmem>>, vector<1x128x128xf32>
      %94 = vector.shape_cast %93 : vector<1x128x128xf32> to vector<128x128xf32>
      %cst_68 = arith.constant dense<0.000000e+00> : vector<512x128xf32>
      %95 = tpu.matmul %92, %94, %cst_68 {dimension_numbers = #tpu.dot_dimension_numbers<[1], [0], [0], [1], [0, 0, 1, 1], [], []>} : vector<512x128xf32>, vector<128x128xf32>, vector<512x128xf32> -> vector<512x128xf32>
      %c0_69 = arith.constant 0 : index
      %c5_70 = arith.constant 5 : index
      %96 = vector.load %arg8[%c0_69, %c5_70] : memref<512x9xf32, #tpu.memory_space<vmem>>, vector<512x1xf32>
      %97 = vector.broadcast %96 : vector<512x1xf32> to vector<512x128xf32>
      %98 = arith.mulf %97, %95 : vector<512x128xf32>
      %99 = arith.addf %91, %98 : vector<512x128xf32>
      %c39 = arith.constant 39 : index
      %c0_71 = arith.constant 0 : index
      %100 = vector.load %arg11[%c39, %c0_71] : memref<560x128xf32, #tpu.memory_space<vmem>>, vector<512x128xf32>
      %c6 = arith.constant 6 : index
      %c0_72 = arith.constant 0 : index
      %c0_73 = arith.constant 0 : index
      %101 = vector.load %arg5[%c6, %c0_72, %c0_73] : memref<9x128x128xf32, #tpu.memory_space<vmem>>, vector<1x128x128xf32>
      %102 = vector.shape_cast %101 : vector<1x128x128xf32> to vector<128x128xf32>
      %cst_74 = arith.constant dense<0.000000e+00> : vector<512x128xf32>
      %103 = tpu.matmul %100, %102, %cst_74 {dimension_numbers = #tpu.dot_dimension_numbers<[1], [0], [0], [1], [0, 0, 1, 1], [], []>} : vector<512x128xf32>, vector<128x128xf32>, vector<512x128xf32> -> vector<512x128xf32>
      %c0_75 = arith.constant 0 : index
      %c6_76 = arith.constant 6 : index
      %104 = vector.load %arg8[%c0_75, %c6_76] : memref<512x9xf32, #tpu.memory_space<vmem>>, vector<512x1xf32>
      %105 = vector.broadcast %104 : vector<512x1xf32> to vector<512x128xf32>
      %106 = arith.mulf %105, %103 : vector<512x128xf32>
      %107 = arith.addf %99, %106 : vector<512x128xf32>
      %c40 = arith.constant 40 : index
      %c0_77 = arith.constant 0 : index
      %108 = vector.load %arg11[%c40, %c0_77] : memref<560x128xf32, #tpu.memory_space<vmem>>, vector<512x128xf32>
      %c7_78 = arith.constant 7 : index
      %c0_79 = arith.constant 0 : index
      %c0_80 = arith.constant 0 : index
      %109 = vector.load %arg5[%c7_78, %c0_79, %c0_80] : memref<9x128x128xf32, #tpu.memory_space<vmem>>, vector<1x128x128xf32>
      %110 = vector.shape_cast %109 : vector<1x128x128xf32> to vector<128x128xf32>
      %cst_81 = arith.constant dense<0.000000e+00> : vector<512x128xf32>
      %111 = tpu.matmul %108, %110, %cst_81 {dimension_numbers = #tpu.dot_dimension_numbers<[1], [0], [0], [1], [0, 0, 1, 1], [], []>} : vector<512x128xf32>, vector<128x128xf32>, vector<512x128xf32> -> vector<512x128xf32>
      %c0_82 = arith.constant 0 : index
      %c7_83 = arith.constant 7 : index
      %112 = vector.load %arg8[%c0_82, %c7_83] : memref<512x9xf32, #tpu.memory_space<vmem>>, vector<512x1xf32>
      %113 = vector.broadcast %112 : vector<512x1xf32> to vector<512x128xf32>
      %114 = arith.mulf %113, %111 : vector<512x128xf32>
      %115 = arith.addf %107, %114 : vector<512x128xf32>
      %c41 = arith.constant 41 : index
      %c0_84 = arith.constant 0 : index
      %116 = vector.load %arg11[%c41, %c0_84] : memref<560x128xf32, #tpu.memory_space<vmem>>, vector<512x128xf32>
      %c8_85 = arith.constant 8 : index
      %c0_86 = arith.constant 0 : index
      %c0_87 = arith.constant 0 : index
      %117 = vector.load %arg5[%c8_85, %c0_86, %c0_87] : memref<9x128x128xf32, #tpu.memory_space<vmem>>, vector<1x128x128xf32>
      %118 = vector.shape_cast %117 : vector<1x128x128xf32> to vector<128x128xf32>
      %cst_88 = arith.constant dense<0.000000e+00> : vector<512x128xf32>
      %119 = tpu.matmul %116, %118, %cst_88 {dimension_numbers = #tpu.dot_dimension_numbers<[1], [0], [0], [1], [0, 0, 1, 1], [], []>} : vector<512x128xf32>, vector<128x128xf32>, vector<512x128xf32> -> vector<512x128xf32>
      %c0_89 = arith.constant 0 : index
      %c8_90 = arith.constant 8 : index
      %120 = vector.load %arg8[%c0_89, %c8_90] : memref<512x9xf32, #tpu.memory_space<vmem>>, vector<512x1xf32>
      %121 = vector.broadcast %120 : vector<512x1xf32> to vector<512x128xf32>
      %122 = arith.mulf %121, %119 : vector<512x128xf32>
      %123 = arith.addf %115, %122 : vector<512x128xf32>
      %cst_91 = arith.constant dense<0.000000e+00> : vector<128xf32>
      %124 = vector.multi_reduction <add>, %123, %cst_91 [0] : vector<512x128xf32> to vector<128xf32>
      %125 = vector.shape_cast %124 : vector<128xf32> to vector<1x128xf32>
      %cst_92 = arith.constant 5.120000e+02 : f32
      %126 = vector.broadcast %cst_92 : f32 to vector<1x128xf32>
      %127 = arith.divf %125, %126 : vector<1x128xf32>
      %128 = vector.broadcast %127 : vector<1x128xf32> to vector<512x128xf32>
      %129 = arith.subf %123, %128 : vector<512x128xf32>
      %130 = arith.mulf %129, %129 : vector<512x128xf32>
      %cst_93 = arith.constant dense<0.000000e+00> : vector<128xf32>
      %131 = vector.multi_reduction <add>, %130, %cst_93 [0] : vector<512x128xf32> to vector<128xf32>
      %132 = vector.shape_cast %131 : vector<128xf32> to vector<1x128xf32>
      %cst_94 = arith.constant 5.120000e+02 : f32
      %133 = vector.broadcast %cst_94 : f32 to vector<1x128xf32>
      %134 = arith.divf %132, %133 : vector<1x128xf32>
      %c0_95 = arith.constant 0 : index
      %c0_96 = arith.constant 0 : index
      %135 = vector.load %arg6[%c0_95, %c0_96] : memref<1x128xf32, #tpu.memory_space<vmem>>, vector<1x128xf32>
      %cst_97 = arith.constant 9.99999974E-6 : f32
      %136 = vector.broadcast %cst_97 : f32 to vector<1x128xf32>
      %137 = arith.addf %134, %136 : vector<1x128xf32>
      %138 = math.rsqrt %137 : vector<1x128xf32>
      %139 = arith.mulf %135, %138 : vector<1x128xf32>
      %140 = vector.broadcast %139 : vector<1x128xf32> to vector<512x128xf32>
      %141 = arith.mulf %129, %140 : vector<512x128xf32>
      %c0_98 = arith.constant 0 : index
      %c0_99 = arith.constant 0 : index
      %142 = vector.load %arg7[%c0_98, %c0_99] : memref<1x128xf32, #tpu.memory_space<vmem>>, vector<1x128xf32>
      %143 = vector.broadcast %142 : vector<1x128xf32> to vector<512x128xf32>
      %144 = arith.addf %141, %143 : vector<512x128xf32>
      %cst_100 = arith.constant 0.000000e+00 : f32
      %145 = vector.broadcast %cst_100 : f32 to vector<512x128xf32>
      %146 = arith.maximumf %144, %145 : vector<512x128xf32>
      %c0_101 = arith.constant 0 : index
      %c0_102 = arith.constant 0 : index
      %147 = vector.load %arg9[%c0_101, %c0_102] : memref<512x128xf32, #tpu.memory_space<vmem>>, vector<512x128xf32>
      %148 = arith.addf %146, %147 : vector<512x128xf32>
      %cst_103 = arith.constant 0.000000e+00 : f32
      %149 = vector.broadcast %cst_103 : f32 to vector<512x128xf32>
      %150 = arith.maximumf %148, %149 : vector<512x128xf32>
      %c0_104 = arith.constant 0 : index
      %c0_105 = arith.constant 0 : index
      %151 = vector.load %arg10[%c0_104, %c0_105] : memref<512x128xf32, #tpu.memory_space<vmem>>, vector<512x128xf32>
      tpu.vector_store %arg10[%c0_104, %c0_105], %150 {strides = array<i32>} : memref<512x128xf32, #tpu.memory_space<vmem>>, vector<512x128xf32>,
    } else {
    }
    return
  }
  func.func @transform_0(%arg0: i32) -> (i32, i32) {
    %c0_i32 = arith.constant 0 : i32
    %c0_i32_0 = arith.constant 0 : i32
    return %arg0, %c0_i32 : i32, i32
  }
  func.func @transform_1(%arg0: i32) -> (i32, i32) {
    %c0_i32 = arith.constant 0 : i32
    %c0_i32_0 = arith.constant 0 : i32
    %c0_i32_1 = arith.constant 0 : i32
    return %c0_i32, %c0_i32_0 : i32, i32
  }
  func.func @transform_2(%arg0: i32) -> (i32, i32) {
    %c0_i32 = arith.constant 0 : i32
    %c0_i32_0 = arith.constant 0 : i32
    %c0_i32_1 = arith.constant 0 : i32
    return %c0_i32, %c0_i32_0 : i32, i32
  }
  func.func @transform_3(%arg0: i32) -> (i32, i32) {
    %c0_i32 = arith.constant 0 : i32
    %c0_i32_0 = arith.constant 0 : i32
    %c0_i32_1 = arith.constant 0 : i32
    return %c0_i32, %c0_i32_0 : i32, i32
  }
  func.func @transform_4(%arg0: i32) -> (i32, i32, i32) {
    %c0_i32 = arith.constant 0 : i32
    %c0_i32_0 = arith.constant 0 : i32
    %c0_i32_1 = arith.constant 0 : i32
    %c0_i32_2 = arith.constant 0 : i32
    return %c0_i32, %c0_i32_0, %c0_i32_1 : i32, i32, i32
  }
  func.func @transform_5(%arg0: i32) -> (i32, i32) {
    %c0_i32 = arith.constant 0 : i32
    %c0_i32_0 = arith.constant 0 : i32
    %c0_i32_1 = arith.constant 0 : i32
    return %c0_i32, %c0_i32_0 : i32, i32
  }
  func.func @transform_6(%arg0: i32) -> (i32, i32) {
    %c0_i32 = arith.constant 0 : i32
    %c0_i32_0 = arith.constant 0 : i32
    %c0_i32_1 = arith.constant 0 : i32
    return %c0_i32, %c0_i32_0 : i32, i32
  }
  func.func @transform_7(%arg0: i32) -> (i32, i32) {
    %c0_i32 = arith.constant 0 : i32
    %c0_i32_0 = arith.constant 0 : i32
    %c0_i32_1 = arith.constant 0 : i32
    return %c0_i32, %c0_i32_0 : i32, i32
  }
  func.func @transform_8(%arg0: i32) -> (i32, i32) {
    %c0_i32 = arith.constant 0 : i32
    %c0_i32_0 = arith.constant 0 : i32
    %c0_i32_1 = arith.constant 0 : i32
    return %c0_i32, %c0_i32_0 : i32, i32
  }
  func.func @transform_9(%arg0: i32) -> (i32, i32) {
    %c0_i32 = arith.constant 0 : i32
    %c0_i32_0 = arith.constant 0 : i32
    %c0_i32_1 = arith.constant 0 : i32
    return %c0_i32, %c0_i32_0 : i32, i32
  }
}

</mosaic_0001>

<llo_original>
// kernel: basic_block_bn_forward.1
$region0: #{basic_block_bn_forward.1}
  #allocation0 [shape = 'u32[]', space=smem, size = 0x4, offset = 0x4, fixed_abs, tag = 'smem constant byte address 0x4 - core index']
  #allocation1 [shape = 'u32[72,128]{1,0:T(1,128)}', space=vmem, size = 0x9000, scoped, tag = 'internal scratch']
  #allocation2 [shape = 'f32[560,128]{1,0:T(8,128)}', space=vmem, size = 0x46000, scoped, tag = 'scratch operand']
  #allocation3 [shape = 'f32[2,128]{1,0:T(2,128)}', space=vmem, size = 0x400, scoped, tag = 'scratch operand']
  %s0 = inlined_call_operand.vmem [shape: f32[512,128], index: 0, kind: input, shape index: {}, may-alias: {0,8}]
  %s1 = inlined_call_operand.vmem [shape: f32[128,128], index: 1, kind: input, shape index: {}]
  %s2 = inlined_call_operand.vmem [shape: f32[1,128], index: 2, kind: input, shape index: {}]
  %s3 = inlined_call_operand.vmem [shape: f32[1,128], index: 3, kind: input, shape index: {}]
  %s4 = inlined_call_operand.vmem [shape: f32[9,128,128], index: 4, kind: input, shape index: {}]
  %s5 = inlined_call_operand.vmem [shape: f32[1,128], index: 5, kind: input, shape index: {}]
  %s6 = inlined_call_operand.vmem [shape: f32[1,128], index: 6, kind: input, shape index: {}]
  %s7 = inlined_call_operand.vmem [shape: f32[512,9], index: 7, kind: input, shape index: {}]
  %s8 = inlined_call_operand.vmem [shape: f32[512,128], index: 8, kind: input, shape index: {}, may-alias: {0,8}]
  %s9 = inlined_call_operand.vmem [shape: f32[512,128], index: 9, kind: output, shape index: {}]
  %s10 = sld [smem:[#allocation0]]
  $region77: #{basic_block_bn_forward.1} parent=0
    _
  %s12 = ssub.s32 1, %s10
  %s13 = scalar_select 0, %s12, %s10
  loop: start=0, step=1, limit=4
  $region2: #{basic_block_bn_forward.1} parent=0 // loop_pre_header
    _
  $region3: #{basic_block_bn_forward.1} parent=0 // loop_header
    %s15 = sphi 0, %s19
    %p16 = scmp.ge.s32.totalorder %s15, 4
    %s25 = sphi 0, %s27
    %s28 = sphi 0, %s25
    %s29 = sphi 0, %s28
    %s45 = sphi 0, %s29
    %s49 = sphi 0, %s49
    %s51 = sphi 0, %s49
    %s52 = sphi 0, %s51
    %s66 = sphi 0, %s52
    %s70 = sphi 0, %s70
    %s72 = sphi 0, %s70
    %s73 = sphi 0, %s72
    %s87 = sphi 0, %s73
    %s91 = sphi 0, %s91
    %s93 = sphi 0, %s91
    %s94 = sphi 0, %s93
    %s108 = sphi 0, %s94
    %s112 = sphi 0, %s112
    %s114 = sphi 0, %s112
    %s115 = sphi 0, %s114
    %s129 = sphi 0, %s115
    %s133 = sphi 0, %s133
    %s135 = sphi 0, %s133
    %s136 = sphi 0, %s135
    %s150 = sphi 0, %s136
    %s154 = sphi 0, %s154
    %s156 = sphi 0, %s154
    %s157 = sphi 0, %s156
    %s171 = sphi 0, %s157
    %s175 = sphi 0, %s175
    %s177 = sphi 0, %s175
    %s178 = sphi 0, %s177
    %s192 = sphi 0, %s178
    %s196 = sphi 0, %s196
    %s198 = sphi 0, %s196
    %s199 = sphi 0, %s198
    %s213 = sphi 0, %s199
    %s217 = sphi 0, %s217
    %s219 = sphi 0, %s217
    %s220 = sphi 0, %s219
    %s234 = sphi 0, %s220
  $region4: #{basic_block_bn_forward.1} parent=0 // loop_header_branch
    %18 = sbr.rel (%p16) target = $region8
  $region5: #{basic_block_bn_forward.1} parent=0 // loop_body
    %s20 = ssub.s32 %s15, 1
    %s21 = ssub.s32 %s15, 2
    %s22 = sadd.s32 %s15, 1
    %s23 = ssub.s32 %s15, %s22
    %p24 = scmp.eq.s32.totalorder %s23, 0
    %s26 = sadd.s32 %s25, 1
    %s27 = scalar_select %p24, %s25, %s26
    %p30 = pneg %p24
    %p31 = scmp.eq.s32.totalorder %s15, 1
    %p32 = por %p30, %p31
    %p33 = scmp.ne.s32.totalorder %s25, %s28
    %p34 = scmp.eq.s32.totalorder %s15, 0
    %p35 = por %p33, %p34
    %p36 = scmp.ne.s32.totalorder %s25, %s28
    %p37 = scmp.eq.s32.totalorder %s20, 1
    %p38 = por %p36, %p37
    %p39 = scmp.ne.s32.totalorder %s28, %s29
    %p40 = scmp.eq.s32.totalorder %s20, 0
    %p41 = por %p39, %p40
    %p42 = scmp.ne.s32.totalorder %s28, %s29
    %p43 = scmp.eq.s32.totalorder %s21, 1
    %p44 = por %p42, %p43
    %p46 = scmp.ne.s32.totalorder %s29, %s45
    %p47 = scmp.eq.s32.totalorder %s21, 0
    %p48 = por %p46, %p47
    %s50 = sadd.s32 %s49, 1
    %p53 = scmp.eq.s32.totalorder %s15, 1
    %p54 = scmp.ne.s32.totalorder %s49, %s51
    %p55 = scmp.eq.s32.totalorder %s15, 0
    %p56 = por %p54, %p55
    %p57 = scmp.ne.s32.totalorder %s49, %s51
    %p58 = scmp.eq.s32.totalorder %s20, 1
    %p59 = por %p57, %p58
    %p60 = scmp.ne.s32.totalorder %s51, %s52
    %p61 = scmp.eq.s32.totalorder %s20, 0
    %p62 = por %p60, %p61
    %p63 = scmp.ne.s32.totalorder %s51, %s52
    %p64 = scmp.eq.s32.totalorder %s21, 1
    %p65 = por %p63, %p64
    %p67 = scmp.ne.s32.totalorder %s52, %s66
    %p68 = scmp.eq.s32.totalorder %s21, 0
    %p69 = por %p67, %p68
    %s71 = sadd.s32 %s70, 1
    %p74 = scmp.eq.s32.totalorder %s15, 1
    %p75 = scmp.ne.s32.totalorder %s70, %s72
    %p76 = scmp.eq.s32.totalorder %s15, 0
    %p77 = por %p75, %p76
    %p78 = scmp.ne.s32.totalorder %s70, %s72
    %p79 = scmp.eq.s32.totalorder %s20, 1
    %p80 = por %p78, %p79
    %p81 = scmp.ne.s32.totalorder %s72, %s73
    %p82 = scmp.eq.s32.totalorder %s20, 0
    %p83 = por %p81, %p82
    %p84 = scmp.ne.s32.totalorder %s72, %s73
    %p85 = scmp.eq.s32.totalorder %s21, 1
    %p86 = por %p84, %p85
    %p88 = scmp.ne.s32.totalorder %s73, %s87
    %p89 = scmp.eq.s32.totalorder %s21, 0
    %p90 = por %p88, %p89
    %s92 = sadd.s32 %s91, 1
    %p95 = scmp.eq.s32.totalorder %s15, 1
    %p96 = scmp.ne.s32.totalorder %s91, %s93
    %p97 = scmp.eq.s32.totalorder %s15, 0
    %p98 = por %p96, %p97
    %p99 = scmp.ne.s32.totalorder %s91, %s93
    %p100 = scmp.eq.s32.totalorder %s20, 1
    %p101 = por %p99, %p100
    %p102 = scmp.ne.s32.totalorder %s93, %s94
    %p103 = scmp.eq.s32.totalorder %s20, 0
    %p104 = por %p102, %p103
    %p105 = scmp.ne.s32.totalorder %s93, %s94
    %p106 = scmp.eq.s32.totalorder %s21, 1
    %p107 = por %p105, %p106
    %p109 = scmp.ne.s32.totalorder %s94, %s108
    %p110 = scmp.eq.s32.totalorder %s21, 0
    %p111 = por %p109, %p110
    %s113 = sadd.s32 %s112, 1
    %p116 = scmp.eq.s32.totalorder %s15, 1
    %p117 = scmp.ne.s32.totalorder %s112, %s114
    %p118 = scmp.eq.s32.totalorder %s15, 0
    %p119 = por %p117, %p118
    %p120 = scmp.ne.s32.totalorder %s112, %s114
    %p121 = scmp.eq.s32.totalorder %s20, 1
    %p122 = por %p120, %p121
    %p123 = scmp.ne.s32.totalorder %s114, %s115
    %p124 = scmp.eq.s32.totalorder %s20, 0
    %p125 = por %p123, %p124
    %p126 = scmp.ne.s32.totalorder %s114, %s115
    %p127 = scmp.eq.s32.totalorder %s21, 1
    %p128 = por %p126, %p127
    %p130 = scmp.ne.s32.totalorder %s115, %s129
    %p131 = scmp.eq.s32.totalorder %s21, 0
    %p132 = por %p130, %p131
    %s134 = sadd.s32 %s133, 1
    %p137 = scmp.eq.s32.totalorder %s15, 1
    %p138 = scmp.ne.s32.totalorder %s133, %s135
    %p139 = scmp.eq.s32.totalorder %s15, 0
    %p140 = por %p138, %p139
    %p141 = scmp.ne.s32.totalorder %s133, %s135
    %p142 = scmp.eq.s32.totalorder %s20, 1
    %p143 = por %p141, %p142
    %p144 = scmp.ne.s32.totalorder %s135, %s136
    %p145 = scmp.eq.s32.totalorder %s20, 0
    %p146 = por %p144, %p145
    %p147 = scmp.ne.s32.totalorder %s135, %s136
    %p148 = scmp.eq.s32.totalorder %s21, 1
    %p149 = por %p147, %p148
    %p151 = scmp.ne.s32.totalorder %s136, %s150
    %p152 = scmp.eq.s32.totalorder %s21, 0
    %p153 = por %p151, %p152
    %s155 = sadd.s32 %s154, 1
    %p158 = scmp.eq.s32.totalorder %s15, 1
    %p159 = scmp.ne.s32.totalorder %s154, %s156
    %p160 = scmp.eq.s32.totalorder %s15, 0
    %p161 = por %p159, %p160
    %p162 = scmp.ne.s32.totalorder %s154, %s156
    %p163 = scmp.eq.s32.totalorder %s20, 1
    %p164 = por %p162, %p163
    %p165 = scmp.ne.s32.totalorder %s156, %s157
    %p166 = scmp.eq.s32.totalorder %s20, 0
    %p167 = por %p165, %p166
    %p168 = scmp.ne.s32.totalorder %s156, %s157
    %p169 = scmp.eq.s32.totalorder %s21, 1
    %p170 = por %p168, %p169
    %p172 = scmp.ne.s32.totalorder %s157, %s171
    %p173 = scmp.eq.s32.totalorder %s21, 0
    %p174 = por %p172, %p173
    %s176 = sadd.s32 %s175, 1
    %p179 = scmp.eq.s32.totalorder %s15, 1
    %p180 = scmp.ne.s32.totalorder %s175, %s177
    %p181 = scmp.eq.s32.totalorder %s15, 0
    %p182 = por %p180, %p181
    %p183 = scmp.ne.s32.totalorder %s175, %s177
    %p184 = scmp.eq.s32.totalorder %s20, 1
    %p185 = por %p183, %p184
    %p186 = scmp.ne.s32.totalorder %s177, %s178
    %p187 = scmp.eq.s32.totalorder %s20, 0
    %p188 = por %p186, %p187
    %p189 = scmp.ne.s32.totalorder %s177, %s178
    %p190 = scmp.eq.s32.totalorder %s21, 1
    %p191 = por %p189, %p190
    %p193 = scmp.ne.s32.totalorder %s178, %s192
    %p194 = scmp.eq.s32.totalorder %s21, 0
    %p195 = por %p193, %p194
    %s197 = sadd.s32 %s196, 1
    %p200 = scmp.eq.s32.totalorder %s15, 1
    %p201 = scmp.ne.s32.totalorder %s196, %s198
    %p202 = scmp.eq.s32.totalorder %s15, 0
    %p203 = por %p201, %p202
    %p204 = scmp.ne.s32.totalorder %s196, %s198
    %p205 = scmp.eq.s32.totalorder %s20, 1
    %p206 = por %p204, %p205
    %p207 = scmp.ne.s32.totalorder %s198, %s199
    %p208 = scmp.eq.s32.totalorder %s20, 0
    %p209 = por %p207, %p208
    %p210 = scmp.ne.s32.totalorder %s198, %s199
    %p211 = scmp.eq.s32.totalorder %s21, 1
    %p212 = por %p210, %p211
    %p214 = scmp.ne.s32.totalorder %s199, %s213
    %p215 = scmp.eq.s32.totalorder %s21, 0
    %p216 = por %p214, %p215
    %s218 = sadd.s32 %s217, 1
    %p221 = scmp.eq.s32.totalorder %s15, 1
    %p222 = scmp.ne.s32.totalorder %s217, %s219
    %p223 = scmp.eq.s32.totalorder %s15, 0
    %p224 = por %p222, %p223
    %p225 = scmp.ne.s32.totalorder %s217, %s219
    %p226 = scmp.eq.s32.totalorder %s20, 1
    %p227 = por %p225, %p226
    %p228 = scmp.ne.s32.totalorder %s219, %s220
    %p229 = scmp.eq.s32.totalorder %s20, 0
    %p230 = por %p228, %p229
    %p231 = scmp.ne.s32.totalorder %s219, %s220
    %p232 = scmp.eq.s32.totalorder %s21, 1
    %p233 = por %p231, %p232
    %p235 = scmp.ne.s32.totalorder %s220, %s234
    %p236 = scmp.eq.s32.totalorder %s21, 0
    %p237 = por %p235, %p236
    %p238 = scmp.le.s32.totalorder 1, %s15
    %p239 = scmp.lt.s32.totalorder %s15, 3
    %p240 = pnand %p238, %p239
    %p241 = pneg %p240
    // Predicated region
    $region9: #{basic_block_bn_forward.1} parent=5 // pred_check
      _
    $region10: #{basic_block_bn_forward.1} parent=5 // pred_check_branch
      %243 = sbr.rel (%p240) target = $region12
    $region11: #{basic_block_bn_forward.1} parent=5 // pred_region
      %s244 = ssub.s32 %s15, 1
      // Predicated region
      $region13: #{basic_block_bn_forward.1} parent=11 // pred_check
        %p245 = pneg %p62
      $region14: #{basic_block_bn_forward.1} parent=11 // pred_check_branch
        %247 = sbr.rel (%p245) target = $region16
      $region15: #{basic_block_bn_forward.1} parent=11 // pred_region
        _
      $region16: #{basic_block_bn_forward.1} parent=11 // pred_fallthru
        _
      // Predicated region
      $region17: #{basic_block_bn_forward.1} parent=11 // pred_check
        %p248 = pneg %p83
      $region18: #{basic_block_bn_forward.1} parent=11 // pred_check_branch
        %250 = sbr.rel (%p248) target = $region20
      $region19: #{basic_block_bn_forward.1} parent=11 // pred_region
        _
      $region20: #{basic_block_bn_forward.1} parent=11 // pred_fallthru
        _
      // Predicated region
      $region21: #{basic_block_bn_forward.1} parent=11 // pred_check
        %p251 = pneg %p104
      $region22: #{basic_block_bn_forward.1} parent=11 // pred_check_branch
        %253 = sbr.rel (%p251) target = $region24
      $region23: #{basic_block_bn_forward.1} parent=11 // pred_region
        _
      $region24: #{basic_block_bn_forward.1} parent=11 // pred_fallthru
        _
      // Predicated region
      $region25: #{basic_block_bn_forward.1} parent=11 // pred_check
        %p254 = pneg %p125
      $region26: #{basic_block_bn_forward.1} parent=11 // pred_check_branch
        %256 = sbr.rel (%p254) target = $region28
      $region27: #{basic_block_bn_forward.1} parent=11 // pred_region
        _
      $region28: #{basic_block_bn_forward.1} parent=11 // pred_fallthru
        _
      // Predicated region
      $region29: #{basic_block_bn_forward.1} parent=11 // pred_check
        %p257 = pneg %p146
      $region30: #{basic_block_bn_forward.1} parent=11 // pred_check_branch
        %259 = sbr.rel (%p257) target = $region32
      $region31: #{basic_block_bn_forward.1} parent=11 // pred_region
        _
      $region32: #{basic_block_bn_forward.1} parent=11 // pred_fallthru
        _
      // Predicated region
      $region33: #{basic_block_bn_forward.1} parent=11 // pred_check
        %p260 = pneg %p167
      $region34: #{basic_block_bn_forward.1} parent=11 // pred_check_branch
        %262 = sbr.rel (%p260) target = $region36
      $region35: #{basic_block_bn_forward.1} parent=11 // pred_region
        _
      $region36: #{basic_block_bn_forward.1} parent=11 // pred_fallthru
        _
      // Predicated region
      $region37: #{basic_block_bn_forward.1} parent=11 // pred_check
        %p263 = pneg %p188
      $region38: #{basic_block_bn_forward.1} parent=11 // pred_check_branch
        %265 = sbr.rel (%p263) target = $region40
      $region39: #{basic_block_bn_forward.1} parent=11 // pred_region
        _
      $region40: #{basic_block_bn_forward.1} parent=11 // pred_fallthru
        _
      // Predicated region
      $region41: #{basic_block_bn_forward.1} parent=11 // pred_check
        %p266 = pneg %p209
      $region42: #{basic_block_bn_forward.1} parent=11 // pred_check_branch
        %268 = sbr.rel (%p266) target = $region44
      $region43: #{basic_block_bn_forward.1} parent=11 // pred_region
        _
      $region44: #{basic_block_bn_forward.1} parent=11 // pred_fallthru
        _
    $region12: #{basic_block_bn_forward.1} parent=5 // pred_fallthru
      _
    %p269 = scmp.lt.s32.totalorder %s15, 2
    // Predicated region
    $region45: #{basic_block_bn_forward.1} parent=5 // pred_check
      %p270 = pneg %p269
    $region46: #{basic_block_bn_forward.1} parent=5 // pred_check_branch
      %272 = sbr.rel (%p270) target = $region48
    $region47: #{basic_block_bn_forward.1} parent=5 // pred_region
      // Predicated region
      $region49: #{basic_block_bn_forward.1} parent=47 // pred_check
        %p273 = pneg %p35
      $region50: #{basic_block_bn_forward.1} parent=47 // pred_check_branch
        %275 = sbr.rel (%p273) target = $region52
      $region51: #{basic_block_bn_forward.1} parent=47 // pred_region
        %s276 = smul.u32 32, %s15
        %p277 = scmp.lt.s32.totalorder %s276, 63
        %s278 = scalar_select %p277, %s276, 63
        %s279 = smul.addr %s278, 8
        %s280 = scalar_lea.vmem %s0, %s279
        %s281 = smul.u32 32, %s15
      $region52: #{basic_block_bn_forward.1} parent=47 // pred_fallthru
        _
    $region48: #{basic_block_bn_forward.1} parent=5 // pred_fallthru
      _
    %p282 = scmp.le.s32.totalorder 1, %s15
    %p283 = scmp.lt.s32.totalorder %s15, 3
    %p284 = pnand %p282, %p283
    %p285 = pneg %p284
    // Predicated region
    $region53: #{basic_block_bn_forward.1} parent=5 // pred_check
      _
    $region54: #{basic_block_bn_forward.1} parent=5 // pred_check_branch
      %287 = sbr.rel (%p284) target = $region56
    $region55: #{basic_block_bn_forward.1} parent=5 // pred_region
      %s288 = ssub.s32 %s15, 1
      %s289 = smul.u32 32, %s20
      %p290 = scmp.lt.s32.totalorder %s289, 63
      %s291 = scalar_select %p290, %s289, 63
      %s292 = smul.addr %s291, 8
      %s293 = scalar_lea.vmem %s0, %s292
      %p294 = pneg %p41
      %p295 = pneg %p38
      %p296 = pneg %p62
      %p297 = pneg %p59
      %p298 = pneg %p83
      %p299 = pneg %p80
      %p300 = pneg %p104
      %p301 = pneg %p101
      %p302 = pneg %p125
      %p303 = pneg %p122
      %p304 = pneg %p146
      %p305 = pneg %p143
      %p306 = pneg %p167
      %p307 = pneg %p164
      %p308 = pneg %p188
      %p309 = pneg %p185
      %p310 = pneg %p209
      %p311 = pneg %p206
      %p312 = pneg %p230
      %p313 = pneg %p227
      %s314 = smul.u32 32, %s20
      %p315 = scmp.lt.s32.totalorder %s314, 63
      %s316 = scalar_select %p315, %s314, 63
      %s317 = smul.addr %s316, 8
      %s318 = scalar_lea.vmem %s0, %s317
      %s319 = smul.u32 32, %s20
      %p320 = scmp.eq.s32.totalorder %s20, 0
      // Predicated region
      $region57: #{basic_block_bn_forward.1} parent=55 // pred_check
        %p321 = pneg %p320
      $region58: #{basic_block_bn_forward.1} parent=55 // pred_check_branch
        %323 = sbr.rel (%p321) target = $region60
      $region59: #{basic_block_bn_forward.1} parent=55 // pred_region
        %324 = vst [vmem:[#allocation2] sm:$0xff] 0.0
        %325 = vst [vmem:[#allocation2 + $0x8] sm:$0xff] 0.0
        %326 = vst [vmem:[#allocation2 + $0x10] sm:$0xff] 0.0
        %327 = vst [vmem:[#allocation2 + $0x18] sm:$0xff] 0.0
        %328 = vst [vmem:[#allocation2 + $0x20] sm:$0xff] 0.0
        %329 = vst [vmem:[#allocation2 + $0x28] sm:$0xff] 0.0
        %330 = vst [vmem:[#allocation2 + $0x30] sm:$0xff] 0.0
        %331 = vst [vmem:[#allocation2 + $0x38] sm:$0xff] 0.0
        %332 = vst [vmem:[#allocation2 + $0x40] sm:$0xff] 0.0
        %333 = vst [vmem:[#allocation2 + $0x48] sm:$0xff] 0.0
        %334 = vst [vmem:[#allocation2 + $0x50] sm:$0xff] 0.0
        %335 = vst [vmem:[#allocation2 + $0x58] sm:$0xff] 0.0
        %336 = vst [vmem:[#allocation2 + $0x60] sm:$0xff] 0.0
        %337 = vst [vmem:[#allocation2 + $0x68] sm:$0xff] 0.0
        %338 = vst [vmem:[#allocation2 + $0x70] sm:$0xff] 0.0
        %339 = vst [vmem:[#allocation2 + $0x78] sm:$0xff] 0.0
        %340 = vst [vmem:[#allocation2 + $0x80] sm:$0xff] 0.0
        %341 = vst [vmem:[#allocation2 + $0x88] sm:$0xff] 0.0
        %342 = vst [vmem:[#allocation2 + $0x90] sm:$0xff] 0.0
        %343 = vst [vmem:[#allocation2 + $0x98] sm:$0xff] 0.0
        %344 = vst [vmem:[#allocation2 + $0xa0] sm:$0xff] 0.0
        %345 = vst [vmem:[#allocation2 + $0xa8] sm:$0xff] 0.0
        %346 = vst [vmem:[#allocation2 + $0xb0] sm:$0xff] 0.0
        %347 = vst [vmem:[#allocation2 + $0xb8] sm:$0xff] 0.0
        %348 = vst [vmem:[#allocation2 + $0xc0] sm:$0xff] 0.0
        %349 = vst [vmem:[#allocation2 + $0xc8] sm:$0xff] 0.0
        %350 = vst [vmem:[#allocation2 + $0xd0] sm:$0xff] 0.0
        %351 = vst [vmem:[#allocation2 + $0xd8] sm:$0xff] 0.0
        %352 = vst [vmem:[#allocation2 + $0xe0] sm:$0xff] 0.0
        %353 = vst [vmem:[#allocation2 + $0xe8] sm:$0xff] 0.0
        %354 = vst [vmem:[#allocation2 + $0xf0] sm:$0xff] 0.0
        %355 = vst [vmem:[#allocation2 + $0xf8] sm:$0xff] 0.0
        %356 = vst [vmem:[#allocation2 + $0x100] sm:$0xff] 0.0
        %357 = vst [vmem:[#allocation2 + $0x108] sm:$0xff] 0.0
        %358 = vst [vmem:[#allocation2 + $0x110] sm:$0xff] 0.0
        %359 = vst [vmem:[#allocation2 + $0x118] sm:$0xff] 0.0
        %360 = vst [vmem:[#allocation2 + $0x120] sm:$0xff] 0.0
        %361 = vst [vmem:[#allocation2 + $0x128] sm:$0xff] 0.0
        %362 = vst [vmem:[#allocation2 + $0x130] sm:$0xff] 0.0
        %363 = vst [vmem:[#allocation2 + $0x138] sm:$0xff] 0.0
        %364 = vst [vmem:[#allocation2 + $0x140] sm:$0xff] 0.0
        %365 = vst [vmem:[#allocation2 + $0x148] sm:$0xff] 0.0
        %366 = vst [vmem:[#allocation2 + $0x150] sm:$0xff] 0.0
        %367 = vst [vmem:[#allocation2 + $0x158] sm:$0xff] 0.0
        %368 = vst [vmem:[#allocation2 + $0x160] sm:$0xff] 0.0
        %369 = vst [vmem:[#allocation2 + $0x168] sm:$0xff] 0.0
        %370 = vst [vmem:[#allocation2 + $0x170] sm:$0xff] 0.0
        %371 = vst [vmem:[#allocation2 + $0x178] sm:$0xff] 0.0
        %372 = vst [vmem:[#allocation2 + $0x180] sm:$0xff] 0.0
        %373 = vst [vmem:[#allocation2 + $0x188] sm:$0xff] 0.0
        %374 = vst [vmem:[#allocation2 + $0x190] sm:$0xff] 0.0
        %375 = vst [vmem:[#allocation2 + $0x198] sm:$0xff] 0.0
        %376 = vst [vmem:[#allocation2 + $0x1a0] sm:$0xff] 0.0
        %377 = vst [vmem:[#allocation2 + $0x1a8] sm:$0xff] 0.0
        %378 = vst [vmem:[#allocation2 + $0x1b0] sm:$0xff] 0.0
        %379 = vst [vmem:[#allocation2 + $0x1b8] sm:$0xff] 0.0
        %380 = vst [vmem:[#allocation2 + $0x1c0] sm:$0xff] 0.0
        %381 = vst [vmem:[#allocation2 + $0x1c8] sm:$0xff] 0.0
        %382 = vst [vmem:[#allocation2 + $0x1d0] sm:$0xff] 0.0
        %383 = vst [vmem:[#allocation2 + $0x1d8] sm:$0xff] 0.0
        %384 = vst [vmem:[#allocation2 + $0x1e0] sm:$0xff] 0.0
        %385 = vst [vmem:[#allocation2 + $0x1e8] sm:$0xff] 0.0
        %386 = vst [vmem:[#allocation2 + $0x1f0] sm:$0xff] 0.0
        %387 = vst [vmem:[#allocation2 + $0x1f8] sm:$0xff] 0.0
        %388 = vst [vmem:[#allocation2 + $0x200] sm:$0xff] 0.0
        %389 = vst [vmem:[#allocation2 + $0x208] sm:$0xff] 0.0
        %390 = vst [vmem:[#allocation2 + $0x210] sm:$0xff] 0.0
        %391 = vst [vmem:[#allocation2 + $0x218] sm:$0xff] 0.0
        %392 = vst [vmem:[#allocation2 + $0x220] sm:$0xff] 0.0
        %393 = vst [vmem:[#allocation2 + $0x228] sm:$0xff] 0.0
        %394 = vst [vmem:[#allocation3] sm:$0x3] 0.0
      $region60: #{basic_block_bn_forward.1} parent=55 // pred_fallthru
        _
      %v395 = vld [vmem:[%s318] sm:$0xff]
      %v396 = vld [vmem:[%s318 + $0x8] sm:$0xff]
      %v397 = vld [vmem:[%s318 + $0x10] sm:$0xff]
      %v398 = vld [vmem:[%s318 + $0x18] sm:$0xff]
      %v399 = vld [vmem:[%s318 + $0x20] sm:$0xff]
      %v400 = vld [vmem:[%s318 + $0x28] sm:$0xff]
      %v401 = vld [vmem:[%s318 + $0x30] sm:$0xff]
      %v402 = vld [vmem:[%s318 + $0x38] sm:$0xff]
      %v403 = vld [vmem:[%s318 + $0x40] sm:$0xff]
      %v404 = vld [vmem:[%s318 + $0x48] sm:$0xff]
      %v405 = vld [vmem:[%s318 + $0x50] sm:$0xff]
      %v406 = vld [vmem:[%s318 + $0x58] sm:$0xff]
      %v407 = vld [vmem:[%s318 + $0x60] sm:$0xff]
      %v408 = vld [vmem:[%s318 + $0x68] sm:$0xff]
      %v409 = vld [vmem:[%s318 + $0x70] sm:$0xff]
      %v410 = vld [vmem:[%s318 + $0x78] sm:$0xff]
      %v411 = vld [vmem:[%s318 + $0x80] sm:$0xff]
      %v412 = vld [vmem:[%s318 + $0x88] sm:$0xff]
      %v413 = vld [vmem:[%s318 + $0x90] sm:$0xff]
      %v414 = vld [vmem:[%s318 + $0x98] sm:$0xff]
      %v415 = vld [vmem:[%s318 + $0xa0] sm:$0xff]
      %v416 = vld [vmem:[%s318 + $0xa8] sm:$0xff]
      %v417 = vld [vmem:[%s318 + $0xb0] sm:$0xff]
      %v418 = vld [vmem:[%s318 + $0xb8] sm:$0xff]
      %v419 = vld [vmem:[%s318 + $0xc0] sm:$0xff]
      %v420 = vld [vmem:[%s318 + $0xc8] sm:$0xff]
      %v421 = vld [vmem:[%s318 + $0xd0] sm:$0xff]
      %v422 = vld [vmem:[%s318 + $0xd8] sm:$0xff]
      %v423 = vld [vmem:[%s318 + $0xe0] sm:$0xff]
      %v424 = vld [vmem:[%s318 + $0xe8] sm:$0xff]
      %v425 = vld [vmem:[%s318 + $0xf0] sm:$0xff]
      %v426 = vld [vmem:[%s318 + $0xf8] sm:$0xff]
      %v427 = vld [vmem:[%s1] sm:$0xff]
      %v428 = vld [vmem:[%s1 + $0x8] sm:$0xff]
      %v429 = vld [vmem:[%s1 + $0x10] sm:$0xff]
      %v430 = vld [vmem:[%s1 + $0x18] sm:$0xff]
      %v431 = vld [vmem:[%s1 + $0x20] sm:$0xff]
      %v432 = vld [vmem:[%s1 + $0x28] sm:$0xff]
      %v433 = vld [vmem:[%s1 + $0x30] sm:$0xff]
      %v434 = vld [vmem:[%s1 + $0x38] sm:$0xff]
      %v435 = vld [vmem:[%s1 + $0x40] sm:$0xff]
      %v436 = vld [vmem:[%s1 + $0x48] sm:$0xff]
      %v437 = vld [vmem:[%s1 + $0x50] sm:$0xff]
      %v438 = vld [vmem:[%s1 + $0x58] sm:$0xff]
      %v439 = vld [vmem:[%s1 + $0x60] sm:$0xff]
      %v440 = vld [vmem:[%s1 + $0x68] sm:$0xff]
      %v441 = vld [vmem:[%s1 + $0x70] sm:$0xff]
      %v442 = vld [vmem:[%s1 + $0x78] sm:$0xff]
      %443 = vmatpush.msra.mxu0 %v442
      %444 = vmatpush.msra.mxu0 %v441
      %445 = vmatpush.msra.mxu0 %v440
      %446 = vmatpush.msra.mxu0 %v439
      %447 = vmatpush.msra.mxu0 %v438
      %448 = vmatpush.msra.mxu0 %v437
      %449 = vmatpush.msra.mxu0 %v436
      %450 = vmatpush.msra.mxu0 %v435
      %451 = vmatpush.msra.mxu0 %v434
      %452 = vmatpush.msra.mxu0 %v433
      %453 = vmatpush.msra.mxu0 %v432
      %454 = vmatpush.msra.mxu0 %v431
      %455 = vmatpush.msra.mxu0 %v430
      %456 = vmatpush.msra.mxu0 %v429
      %457 = vmatpush.msra.mxu0 %v428
      %458 = vmatpush.msra.mxu0 %v427
      %459 = vmatmul.f32.gmra.mxu0 %v395
      %v460 = vpop.f32.mrf.mxu0
      %v461 = vadd.f32 0.0, %v460
      %462 = vmatmul.f32.gmra.mxu0 %v396
      %v463 = vpop.f32.mrf.mxu0
      %v464 = vadd.f32 0.0, %v463
      %465 = vmatmul.f32.gmra.mxu0 %v397
      %v466 = vpop.f32.mrf.mxu0
      %v467 = vadd.f32 0.0, %v466
      %468 = vmatmul.f32.gmra.mxu0 %v398
      %v469 = vpop.f32.mrf.mxu0
      %v470 = vadd.f32 0.0, %v469
      %471 = vmatmul.f32.gmra.mxu0 %v399
      %v472 = vpop.f32.mrf.mxu0
      %v473 = vadd.f32 0.0, %v472
      %474 = vmatmul.f32.gmra.mxu0 %v400
      %v475 = vpop.f32.mrf.mxu0
      %v476 = vadd.f32 0.0, %v475
      %477 = vmatmul.f32.gmra.mxu0 %v401
      %v478 = vpop.f32.mrf.mxu0
      %v479 = vadd.f32 0.0, %v478
      %480 = vmatmul.f32.gmra.mxu0 %v402
      %v481 = vpop.f32.mrf.mxu0
      %v482 = vadd.f32 0.0, %v481
      %483 = vmatmul.f32.gmra.mxu0 %v403
      %v484 = vpop.f32.mrf.mxu0
      %v485 = vadd.f32 0.0, %v484
      %486 = vmatmul.f32.gmra.mxu0 %v404
      %v487 = vpop.f32.mrf.mxu0
      %v488 = vadd.f32 0.0, %v487
      %489 = vmatmul.f32.gmra.mxu0 %v405
      %v490 = vpop.f32.mrf.mxu0
      %v491 = vadd.f32 0.0, %v490
      %492 = vmatmul.f32.gmra.mxu0 %v406
      %v493 = vpop.f32.mrf.mxu0
      %v494 = vadd.f32 0.0, %v493
      %495 = vmatmul.f32.gmra.mxu0 %v407
      %v496 = vpop.f32.mrf.mxu0
      %v497 = vadd.f32 0.0, %v496
      %498 = vmatmul.f32.gmra.mxu0 %v408
      %v499 = vpop.f32.mrf.mxu0
      %v500 = vadd.f32 0.0, %v499
      %501 = vmatmul.f32.gmra.mxu0 %v409
      %v502 = vpop.f32.mrf.mxu0
      %v503 = vadd.f32 0.0, %v502
      %504 = vmatmul.f32.gmra.mxu0 %v410
      %v505 = vpop.f32.mrf.mxu0
      %v506 = vadd.f32 0.0, %v505
      %507 = vmatmul.f32.gmra.mxu0 %v411
      %v508 = vpop.f32.mrf.mxu0
      %v509 = vadd.f32 0.0, %v508
      %510 = vmatmul.f32.gmra.mxu0 %v412
      %v511 = vpop.f32.mrf.mxu0
      %v512 = vadd.f32 0.0, %v511
      %513 = vmatmul.f32.gmra.mxu0 %v413
      %v514 = vpop.f32.mrf.mxu0
      %v515 = vadd.f32 0.0, %v514
      %516 = vmatmul.f32.gmra.mxu0 %v414
      %v517 = vpop.f32.mrf.mxu0
      %v518 = vadd.f32 0.0, %v517
      %519 = vmatmul.f32.gmra.mxu0 %v415
      %v520 = vpop.f32.mrf.mxu0
      %v521 = vadd.f32 0.0, %v520
      %522 = vmatmul.f32.gmra.mxu0 %v416
      %v523 = vpop.f32.mrf.mxu0
      %v524 = vadd.f32 0.0, %v523
      %525 = vmatmul.f32.gmra.mxu0 %v417
      %v526 = vpop.f32.mrf.mxu0
      %v527 = vadd.f32 0.0, %v526
      %528 = vmatmul.f32.gmra.mxu0 %v418
      %v529 = vpop.f32.mrf.mxu0
      %v530 = vadd.f32 0.0, %v529
      %531 = vmatmul.f32.gmra.mxu0 %v419
      %v532 = vpop.f32.mrf.mxu0
      %v533 = vadd.f32 0.0, %v532
      %534 = vmatmul.f32.gmra.mxu0 %v420
      %v535 = vpop.f32.mrf.mxu0
      %v536 = vadd.f32 0.0, %v535
      %537 = vmatmul.f32.gmra.mxu0 %v421
      %v538 = vpop.f32.mrf.mxu0
      %v539 = vadd.f32 0.0, %v538
      %540 = vmatmul.f32.gmra.mxu0 %v422
      %v541 = vpop.f32.mrf.mxu0
      %v542 = vadd.f32 0.0, %v541
      %543 = vmatmul.f32.gmra.mxu0 %v423
      %v544 = vpop.f32.mrf.mxu0
      %v545 = vadd.f32 0.0, %v544
      %546 = vmatmul.f32.gmra.mxu0 %v424
      %v547 = vpop.f32.mrf.mxu0
      %v548 = vadd.f32 0.0, %v547
      %549 = vmatmul.f32.gmra.mxu0 %v425
      %v550 = vpop.f32.mrf.mxu0
      %v551 = vadd.f32 0.0, %v550
      %552 = vmatmul.f32.gmra.mxu0 %v426
      %v553 = vpop.f32.mrf.mxu0
      %v554 = vadd.f32 0.0, %v553
      %555 = vdwg.mxu0
      %s556 = smul.u32 %s20, 256
      %s557 = sadd.s32 %s556, 24
      %s558 = scalar_lea.vmem [#allocation2], %s557
      %559 = vst [vmem:[%s558] sm:$0xff] %v461
      %560 = vst [vmem:[%s558 + $0x8] sm:$0xff] %v464
      %561 = vst [vmem:[%s558 + $0x10] sm:$0xff] %v467
      %562 = vst [vmem:[%s558 + $0x18] sm:$0xff] %v470
      %563 = vst [vmem:[%s558 + $0x20] sm:$0xff] %v473
      %564 = vst [vmem:[%s558 + $0x28] sm:$0xff] %v476
      %565 = vst [vmem:[%s558 + $0x30] sm:$0xff] %v479
      %566 = vst [vmem:[%s558 + $0x38] sm:$0xff] %v482
      %567 = vst [vmem:[%s558 + $0x40] sm:$0xff] %v485
      %568 = vst [vmem:[%s558 + $0x48] sm:$0xff] %v488
      %569 = vst [vmem:[%s558 + $0x50] sm:$0xff] %v491
      %570 = vst [vmem:[%s558 + $0x58] sm:$0xff] %v494
      %571 = vst [vmem:[%s558 + $0x60] sm:$0xff] %v497
      %572 = vst [vmem:[%s558 + $0x68] sm:$0xff] %v500
      %573 = vst [vmem:[%s558 + $0x70] sm:$0xff] %v503
      %574 = vst [vmem:[%s558 + $0x78] sm:$0xff] %v506
      %575 = vst [vmem:[%s558 + $0x80] sm:$0xff] %v509
      %576 = vst [vmem:[%s558 + $0x88] sm:$0xff] %v512
      %577 = vst [vmem:[%s558 + $0x90] sm:$0xff] %v515
      %578 = vst [vmem:[%s558 + $0x98] sm:$0xff] %v518
      %579 = vst [vmem:[%s558 + $0xa0] sm:$0xff] %v521
      %580 = vst [vmem:[%s558 + $0xa8] sm:$0xff] %v524
      %581 = vst [vmem:[%s558 + $0xb0] sm:$0xff] %v527
      %582 = vst [vmem:[%s558 + $0xb8] sm:$0xff] %v530
      %583 = vst [vmem:[%s558 + $0xc0] sm:$0xff] %v533
      %584 = vst [vmem:[%s558 + $0xc8] sm:$0xff] %v536
      %585 = vst [vmem:[%s558 + $0xd0] sm:$0xff] %v539
      %586 = vst [vmem:[%s558 + $0xd8] sm:$0xff] %v542
      %587 = vst [vmem:[%s558 + $0xe0] sm:$0xff] %v545
      %588 = vst [vmem:[%s558 + $0xe8] sm:$0xff] %v548
      %589 = vst [vmem:[%s558 + $0xf0] sm:$0xff] %v551
      %590 = vst [vmem:[%s558 + $0xf8] sm:$0xff] %v554
      %v591 = vld [vmem:[#allocation3] sm:$0x1]
      %v592 = vadd.f32 %v461, %v464
      %v593 = vadd.f32 %v592, %v467
      %v594 = vadd.f32 %v593, %v470
      %v595 = vadd.f32 %v594, %v473
      %v596 = vadd.f32 %v595, %v476
      %v597 = vadd.f32 %v596, %v479
      %v598 = vadd.f32 %v597, %v482
      %v599 = vadd.f32 %v598, %v485
      %v600 = vadd.f32 %v599, %v488
      %v601 = vadd.f32 %v600, %v491
      %v602 = vadd.f32 %v601, %v494
      %v603 = vadd.f32 %v602, %v497
      %v604 = vadd.f32 %v603, %v500
      %v605 = vadd.f32 %v604, %v503
      %v606 = vadd.f32 %v605, %v506
      %v607 = vadd.f32 %v606, %v509
      %v608 = vadd.f32 %v607, %v512
      %v609 = vadd.f32 %v608, %v515
      %v610 = vadd.f32 %v609, %v518
      %v611 = vadd.f32 %v610, %v521
      %v612 = vadd.f32 %v611, %v524
      %v613 = vadd.f32 %v612, %v527
      %v614 = vadd.f32 %v613, %v530
      %v615 = vadd.f32 %v614, %v533
      %v616 = vadd.f32 %v615, %v536
      %v617 = vadd.f32 %v616, %v539
      %v618 = vadd.f32 %v617, %v542
      %v619 = vadd.f32 %v618, %v545
      %v620 = vadd.f32 %v619, %v548
      %v621 = vadd.f32 %v620, %v551
      %v622 = vadd.f32 %v621, %v554
      %v623 = vrot.slane %v622, 4
      %v624 = vadd.f32 %v622, %v623
      %v625 = vrot.slane %v624, 2
      %v626 = vadd.f32 %v624, %v625
      %v627 = vrot.slane %v626, 1
      %v628 = vadd.f32 %v626, %v627
      %v629 = vadd.f32 %v591, %v628
      %630 = vst [vmem:[#allocation3] sm:$0x1] %v629
      %v631 = vld [vmem:[#allocation3 + $0x1] sm:$0x1]
      %v632 = vmul.f32 %v461, %v461
      %v633 = vmul.f32 %v464, %v464
      %v634 = vmul.f32 %v467, %v467
      %v635 = vmul.f32 %v470, %v470
      %v636 = vmul.f32 %v473, %v473
      %v637 = vmul.f32 %v476, %v476
      %v638 = vmul.f32 %v479, %v479
      %v639 = vmul.f32 %v482, %v482
      %v640 = vmul.f32 %v485, %v485
      %v641 = vmul.f32 %v488, %v488
      %v642 = vmul.f32 %v491, %v491
      %v643 = vmul.f32 %v494, %v494
      %v644 = vmul.f32 %v497, %v497
      %v645 = vmul.f32 %v500, %v500
      %v646 = vmul.f32 %v503, %v503
      %v647 = vmul.f32 %v506, %v506
      %v648 = vmul.f32 %v509, %v509
      %v649 = vmul.f32 %v512, %v512
      %v650 = vmul.f32 %v515, %v515
      %v651 = vmul.f32 %v518, %v518
      %v652 = vmul.f32 %v521, %v521
      %v653 = vmul.f32 %v524, %v524
      %v654 = vmul.f32 %v527, %v527
      %v655 = vmul.f32 %v530, %v530
      %v656 = vmul.f32 %v533, %v533
      %v657 = vmul.f32 %v536, %v536
      %v658 = vmul.f32 %v539, %v539
      %v659 = vmul.f32 %v542, %v542
      %v660 = vmul.f32 %v545, %v545
      %v661 = vmul.f32 %v548, %v548
      %v662 = vmul.f32 %v551, %v551
      %v663 = vmul.f32 %v554, %v554
      %v664 = vadd.f32 %v632, %v633
      %v665 = vadd.f32 %v664, %v634
      %v666 = vadd.f32 %v665, %v635
      %v667 = vadd.f32 %v666, %v636
      %v668 = vadd.f32 %v667, %v637
      %v669 = vadd.f32 %v668, %v638
      %v670 = vadd.f32 %v669, %v639
      %v671 = vadd.f32 %v670, %v640
      %v672 = vadd.f32 %v671, %v641
      %v673 = vadd.f32 %v672, %v642
      %v674 = vadd.f32 %v673, %v643
      %v675 = vadd.f32 %v674, %v644
      %v676 = vadd.f32 %v675, %v645
      %v677 = vadd.f32 %v676, %v646
      %v678 = vadd.f32 %v677, %v647
      %v679 = vadd.f32 %v678, %v648
      %v680 = vadd.f32 %v679, %v649
      %v681 = vadd.f32 %v680, %v650
      %v682 = vadd.f32 %v681, %v651
      %v683 = vadd.f32 %v682, %v652
      %v684 = vadd.f32 %v683, %v653
      %v685 = vadd.f32 %v684, %v654
      %v686 = vadd.f32 %v685, %v655
      %v687 = vadd.f32 %v686, %v656
      %v688 = vadd.f32 %v687, %v657
      %v689 = vadd.f32 %v688, %v658
      %v690 = vadd.f32 %v689, %v659
      %v691 = vadd.f32 %v690, %v660
      %v692 = vadd.f32 %v691, %v661
      %v693 = vadd.f32 %v692, %v662
      %v694 = vadd.f32 %v693, %v663
      %v695 = vrot.slane %v694, 4
      %v696 = vadd.f32 %v694, %v695
      %v697 = vrot.slane %v696, 2
      %v698 = vadd.f32 %v696, %v697
      %v699 = vrot.slane %v698, 1
      %v700 = vadd.f32 %v698, %v699
      %v701 = vadd.f32 %v631, %v700
      %702 = vst [vmem:[#allocation3 + $0x1] sm:$0x1] %v701
      %p703 = scmp.eq.s32.totalorder %s20, 1
      // Predicated region
      $region61: #{basic_block_bn_forward.1} parent=55 // pred_check
        %p704 = pneg %p703
      $region62: #{basic_block_bn_forward.1} parent=55 // pred_check_branch
        %706 = sbr.rel (%p704) target = $region64
      $region63: #{basic_block_bn_forward.1} parent=55 // pred_region
        %v707 = vld [vmem:[#allocation3] sm:$0x1]
        %v708 = vmul.f32 %v707, 0.001953125
        %v709 = vld [vmem:[#allocation3 + $0x1] sm:$0x1]
        %v710 = vmul.f32 %v709, 0.001953125
        %v711 = vmul.f32 %v708, %v708
        %v712 = vsub.f32 %v710, %v711
        %v713 = vmax.f32 %v712, 0.0
        %v714 = vld [vmem:[%s2] sm:$0x1]
        %v715 = vadd.f32 %v713, 1e-05
        %v716 = vrsqrt.pop %v715
        %v717 = vmul.f32 %v716, %v715
        %v718 = vmul.f32 %v717, %v716
        %v719 = vmul.f32 0.5, %v718
        %v720 = vsub.f32 1.5, %v719
        %v721 = vmul.f32 %v716, %v720
        %vm722 = vweird.f32 %v715
        %vm723 = vweird.f32 %v716
        %vm724 = vmor %vm722, %vm723
        %v725 = vsel %vm724, %v716, %v721
        %v726 = vmul.f32 %v714, %v725
        %v727 = vld [vmem:[%s3] sm:$0x1]
        %v728 = vmul.f32 %v708, %v726
        %v729 = vsub.f32 %v727, %v728
        %v730 = vld [vmem:[#allocation2 + $0x18] sm:$0xff]
        %v731 = vld [vmem:[#allocation2 + $0x20] sm:$0xff]
        %v732 = vld [vmem:[#allocation2 + $0x28] sm:$0xff]
        %v733 = vld [vmem:[#allocation2 + $0x30] sm:$0xff]
        %v734 = vld [vmem:[#allocation2 + $0x38] sm:$0xff]
        %v735 = vld [vmem:[#allocation2 + $0x40] sm:$0xff]
        %v736 = vld [vmem:[#allocation2 + $0x48] sm:$0xff]
        %v737 = vld [vmem:[#allocation2 + $0x50] sm:$0xff]
        %v738 = vld [vmem:[#allocation2 + $0x58] sm:$0xff]
        %v739 = vld [vmem:[#allocation2 + $0x60] sm:$0xff]
        %v740 = vld [vmem:[#allocation2 + $0x68] sm:$0xff]
        %v741 = vld [vmem:[#allocation2 + $0x70] sm:$0xff]
        %v742 = vld [vmem:[#allocation2 + $0x78] sm:$0xff]
        %v743 = vld [vmem:[#allocation2 + $0x80] sm:$0xff]
        %v744 = vld [vmem:[#allocation2 + $0x88] sm:$0xff]
        %v745 = vld [vmem:[#allocation2 + $0x90] sm:$0xff]
        %v746 = vld [vmem:[#allocation2 + $0x98] sm:$0xff]
        %v747 = vld [vmem:[#allocation2 + $0xa0] sm:$0xff]
        %v748 = vld [vmem:[#allocation2 + $0xa8] sm:$0xff]
        %v749 = vld [vmem:[#allocation2 + $0xb0] sm:$0xff]
        %v750 = vld [vmem:[#allocation2 + $0xb8] sm:$0xff]
        %v751 = vld [vmem:[#allocation2 + $0xc0] sm:$0xff]
        %v752 = vld [vmem:[#allocation2 + $0xc8] sm:$0xff]
        %v753 = vld [vmem:[#allocation2 + $0xd0] sm:$0xff]
        %v754 = vld [vmem:[#allocation2 + $0xd8] sm:$0xff]
        %v755 = vld [vmem:[#allocation2 + $0xe0] sm:$0xff]
        %v756 = vld [vmem:[#allocation2 + $0xe8] sm:$0xff]
        %v757 = vld [vmem:[#allocation2 + $0xf0] sm:$0xff]
        %v758 = vld [vmem:[#allocation2 + $0xf8] sm:$0xff]
        %v759 = vld [vmem:[#allocation2 + $0x100] sm:$0xff]
        %v760 = vld [vmem:[#allocation2 + $0x108] sm:$0xff]
        %v761 = vld [vmem:[#allocation2 + $0x110] sm:$0xff]
        %v762 = vld [vmem:[#allocation2 + $0x118] sm:$0xff]
        %v763 = vld [vmem:[#allocation2 + $0x120] sm:$0xff]
        %v764 = vld [vmem:[#allocation2 + $0x128] sm:$0xff]
        %v765 = vld [vmem:[#allocation2 + $0x130] sm:$0xff]
        %v766 = vld [vmem:[#allocation2 + $0x138] sm:$0xff]
        %v767 = vld [vmem:[#allocation2 + $0x140] sm:$0xff]
        %v768 = vld [vmem:[#allocation2 + $0x148] sm:$0xff]
        %v769 = vld [vmem:[#allocation2 + $0x150] sm:$0xff]
        %v770 = vld [vmem:[#allocation2 + $0x158] sm:$0xff]
        %v771 = vld [vmem:[#allocation2 + $0x160] sm:$0xff]
        %v772 = vld [vmem:[#allocation2 + $0x168] sm:$0xff]
        %v773 = vld [vmem:[#allocation2 + $0x170] sm:$0xff]
        %v774 = vld [vmem:[#allocation2 + $0x178] sm:$0xff]
        %v775 = vld [vmem:[#allocation2 + $0x180] sm:$0xff]
        %v776 = vld [vmem:[#allocation2 + $0x188] sm:$0xff]
        %v777 = vld [vmem:[#allocation2 + $0x190] sm:$0xff]
        %v778 = vld [vmem:[#allocation2 + $0x198] sm:$0xff]
        %v779 = vld [vmem:[#allocation2 + $0x1a0] sm:$0xff]
        %v780 = vld [vmem:[#allocation2 + $0x1a8] sm:$0xff]
        %v781 = vld [vmem:[#allocation2 + $0x1b0] sm:$0xff]
        %v782 = vld [vmem:[#allocation2 + $0x1b8] sm:$0xff]
        %v783 = vld [vmem:[#allocation2 + $0x1c0] sm:$0xff]
        %v784 = vld [vmem:[#allocation2 + $0x1c8] sm:$0xff]
        %v785 = vld [vmem:[#allocation2 + $0x1d0] sm:$0xff]
        %v786 = vld [vmem:[#allocation2 + $0x1d8] sm:$0xff]
        %v787 = vld [vmem:[#allocation2 + $0x1e0] sm:$0xff]
        %v788 = vld [vmem:[#allocation2 + $0x1e8] sm:$0xff]
        %v789 = vld [vmem:[#allocation2 + $0x1f0] sm:$0xff]
        %v790 = vld [vmem:[#allocation2 + $0x1f8] sm:$0xff]
        %v791 = vld [vmem:[#allocation2 + $0x200] sm:$0xff]
        %v792 = vld [vmem:[#allocation2 + $0x208] sm:$0xff]
        %v793 = vld [vmem:[#allocation2 + $0x210] sm:$0xff]
        %v795 = vperm.slane %v726, 0
        %v797 = vmul.f32 %v730, %v795
        %v798 = vmul.f32 %v731, %v795
        %v799 = vmul.f32 %v732, %v795
        %v800 = vmul.f32 %v733, %v795
        %v801 = vmul.f32 %v734, %v795
        %v802 = vmul.f32 %v735, %v795
        %v803 = vmul.f32 %v736, %v795
        %v804 = vmul.f32 %v737, %v795
        %v805 = vmul.f32 %v738, %v795
        %v806 = vmul.f32 %v739, %v795
        %v807 = vmul.f32 %v740, %v795
        %v808 = vmul.f32 %v741, %v795
        %v809 = vmul.f32 %v742, %v795
        %v810 = vmul.f32 %v743, %v795
        %v811 = vmul.f32 %v744, %v795
        %v812 = vmul.f32 %v745, %v795
        %v813 = vmul.f32 %v746, %v795
        %v814 = vmul.f32 %v747, %v795
        %v815 = vmul.f32 %v748, %v795
        %v816 = vmul.f32 %v749, %v795
        %v817 = vmul.f32 %v750, %v795
        %v818 = vmul.f32 %v751, %v795
        %v819 = vmul.f32 %v752, %v795
        %v820 = vmul.f32 %v753, %v795
        %v821 = vmul.f32 %v754, %v795
        %v822 = vmul.f32 %v755, %v795
        %v823 = vmul.f32 %v756, %v795
        %v824 = vmul.f32 %v757, %v795
        %v825 = vmul.f32 %v758, %v795
        %v826 = vmul.f32 %v759, %v795
        %v827 = vmul.f32 %v760, %v795
        %v828 = vmul.f32 %v761, %v795
        %v829 = vmul.f32 %v762, %v795
        %v830 = vmul.f32 %v763, %v795
        %v831 = vmul.f32 %v764, %v795
        %v832 = vmul.f32 %v765, %v795
        %v833 = vmul.f32 %v766, %v795
        %v834 = vmul.f32 %v767, %v795
        %v835 = vmul.f32 %v768, %v795
        %v836 = vmul.f32 %v769, %v795
        %v837 = vmul.f32 %v770, %v795
        %v838 = vmul.f32 %v771, %v795
        %v839 = vmul.f32 %v772, %v795
        %v840 = vmul.f32 %v773, %v795
        %v841 = vmul.f32 %v774, %v795
        %v842 = vmul.f32 %v775, %v795
        %v843 = vmul.f32 %v776, %v795
        %v844 = vmul.f32 %v777, %v795
        %v845 = vmul.f32 %v778, %v795
        %v846 = vmul.f32 %v779, %v795
        %v847 = vmul.f32 %v780, %v795
        %v848 = vmul.f32 %v781, %v795
        %v849 = vmul.f32 %v782, %v795
        %v850 = vmul.f32 %v783, %v795
        %v851 = vmul.f32 %v784, %v795
        %v852 = vmul.f32 %v785, %v795
        %v853 = vmul.f32 %v786, %v795
        %v854 = vmul.f32 %v787, %v795
        %v855 = vmul.f32 %v788, %v795
        %v856 = vmul.f32 %v789, %v795
        %v857 = vmul.f32 %v790, %v795
        %v858 = vmul.f32 %v791, %v795
        %v859 = vmul.f32 %v792, %v795
        %v860 = vmul.f32 %v793, %v795
        %v862 = vperm.slane %v729, 0
        %v864 = vadd.f32 %v797, %v862
        %v865 = vadd.f32 %v798, %v862
        %v866 = vadd.f32 %v799, %v862
        %v867 = vadd.f32 %v800, %v862
        %v868 = vadd.f32 %v801, %v862
        %v869 = vadd.f32 %v802, %v862
        %v870 = vadd.f32 %v803, %v862
        %v871 = vadd.f32 %v804, %v862
        %v872 = vadd.f32 %v805, %v862
        %v873 = vadd.f32 %v806, %v862
        %v874 = vadd.f32 %v807, %v862
        %v875 = vadd.f32 %v808, %v862
        %v876 = vadd.f32 %v809, %v862
        %v877 = vadd.f32 %v810, %v862
        %v878 = vadd.f32 %v811, %v862
        %v879 = vadd.f32 %v812, %v862
        %v880 = vadd.f32 %v813, %v862
        %v881 = vadd.f32 %v814, %v862
        %v882 = vadd.f32 %v815, %v862
        %v883 = vadd.f32 %v816, %v862
        %v884 = vadd.f32 %v817, %v862
        %v885 = vadd.f32 %v818, %v862
        %v886 = vadd.f32 %v819, %v862
        %v887 = vadd.f32 %v820, %v862
        %v888 = vadd.f32 %v821, %v862
        %v889 = vadd.f32 %v822, %v862
        %v890 = vadd.f32 %v823, %v862
        %v891 = vadd.f32 %v824, %v862
        %v892 = vadd.f32 %v825, %v862
        %v893 = vadd.f32 %v826, %v862
        %v894 = vadd.f32 %v827, %v862
        %v895 = vadd.f32 %v828, %v862
        %v896 = vadd.f32 %v829, %v862
        %v897 = vadd.f32 %v830, %v862
        %v898 = vadd.f32 %v831, %v862
        %v899 = vadd.f32 %v832, %v862
        %v900 = vadd.f32 %v833, %v862
        %v901 = vadd.f32 %v834, %v862
        %v902 = vadd.f32 %v835, %v862
        %v903 = vadd.f32 %v836, %v862
        %v904 = vadd.f32 %v837, %v862
        %v905 = vadd.f32 %v838, %v862
        %v906 = vadd.f32 %v839, %v862
        %v907 = vadd.f32 %v840, %v862
        %v908 = vadd.f32 %v841, %v862
        %v909 = vadd.f32 %v842, %v862
        %v910 = vadd.f32 %v843, %v862
        %v911 = vadd.f32 %v844, %v862
        %v912 = vadd.f32 %v845, %v862
        %v913 = vadd.f32 %v846, %v862
        %v914 = vadd.f32 %v847, %v862
        %v915 = vadd.f32 %v848, %v862
        %v916 = vadd.f32 %v849, %v862
        %v917 = vadd.f32 %v850, %v862
        %v918 = vadd.f32 %v851, %v862
        %v919 = vadd.f32 %v852, %v862
        %v920 = vadd.f32 %v853, %v862
        %v921 = vadd.f32 %v854, %v862
        %v922 = vadd.f32 %v855, %v862
        %v923 = vadd.f32 %v856, %v862
        %v924 = vadd.f32 %v857, %v862
        %v925 = vadd.f32 %v858, %v862
        %v926 = vadd.f32 %v859, %v862
        %v927 = vadd.f32 %v860, %v862
        %v928 = vmax.f32 %v864, 0.0
        %v929 = vmax.f32 %v865, 0.0
        %v930 = vmax.f32 %v866, 0.0
        %v931 = vmax.f32 %v867, 0.0
        %v932 = vmax.f32 %v868, 0.0
        %v933 = vmax.f32 %v869, 0.0
        %v934 = vmax.f32 %v870, 0.0
        %v935 = vmax.f32 %v871, 0.0
        %v936 = vmax.f32 %v872, 0.0
        %v937 = vmax.f32 %v873, 0.0
        %v938 = vmax.f32 %v874, 0.0
        %v939 = vmax.f32 %v875, 0.0
        %v940 = vmax.f32 %v876, 0.0
        %v941 = vmax.f32 %v877, 0.0
        %v942 = vmax.f32 %v878, 0.0
        %v943 = vmax.f32 %v879, 0.0
        %v944 = vmax.f32 %v880, 0.0
        %v945 = vmax.f32 %v881, 0.0
        %v946 = vmax.f32 %v882, 0.0
        %v947 = vmax.f32 %v883, 0.0
        %v948 = vmax.f32 %v884, 0.0
        %v949 = vmax.f32 %v885, 0.0
        %v950 = vmax.f32 %v886, 0.0
        %v951 = vmax.f32 %v887, 0.0
        %v952 = vmax.f32 %v888, 0.0
        %v953 = vmax.f32 %v889, 0.0
        %v954 = vmax.f32 %v890, 0.0
        %v955 = vmax.f32 %v891, 0.0
        %v956 = vmax.f32 %v892, 0.0
        %v957 = vmax.f32 %v893, 0.0
        %v958 = vmax.f32 %v894, 0.0
        %v959 = vmax.f32 %v895, 0.0
        %v960 = vmax.f32 %v896, 0.0
        %v961 = vmax.f32 %v897, 0.0
        %v962 = vmax.f32 %v898, 0.0
        %v963 = vmax.f32 %v899, 0.0
        %v964 = vmax.f32 %v900, 0.0
        %v965 = vmax.f32 %v901, 0.0
        %v966 = vmax.f32 %v902, 0.0
        %v967 = vmax.f32 %v903, 0.0
        %v968 = vmax.f32 %v904, 0.0
        %v969 = vmax.f32 %v905, 0.0
        %v970 = vmax.f32 %v906, 0.0
        %v971 = vmax.f32 %v907, 0.0
        %v972 = vmax.f32 %v908, 0.0
        %v973 = vmax.f32 %v909, 0.0
        %v974 = vmax.f32 %v910, 0.0
        %v975 = vmax.f32 %v911, 0.0
        %v976 = vmax.f32 %v912, 0.0
        %v977 = vmax.f32 %v913, 0.0
        %v978 = vmax.f32 %v914, 0.0
        %v979 = vmax.f32 %v915, 0.0
        %v980 = vmax.f32 %v916, 0.0
        %v981 = vmax.f32 %v917, 0.0
        %v982 = vmax.f32 %v918, 0.0
        %v983 = vmax.f32 %v919, 0.0
        %v984 = vmax.f32 %v920, 0.0
        %v985 = vmax.f32 %v921, 0.0
        %v986 = vmax.f32 %v922, 0.0
        %v987 = vmax.f32 %v923, 0.0
        %v988 = vmax.f32 %v924, 0.0
        %v989 = vmax.f32 %v925, 0.0
        %v990 = vmax.f32 %v926, 0.0
        %v991 = vmax.f32 %v927, 0.0
        %992 = vst [vmem:[#allocation2 + $0x18] sm:$0xff] %v928
        %993 = vst [vmem:[#allocation2 + $0x20] sm:$0xff] %v929
        %994 = vst [vmem:[#allocation2 + $0x28] sm:$0xff] %v930
        %995 = vst [vmem:[#allocation2 + $0x30] sm:$0xff] %v931
        %996 = vst [vmem:[#allocation2 + $0x38] sm:$0xff] %v932
        %997 = vst [vmem:[#allocation2 + $0x40] sm:$0xff] %v933
        %998 = vst [vmem:[#allocation2 + $0x48] sm:$0xff] %v934
        %999 = vst [vmem:[#allocation2 + $0x50] sm:$0xff] %v935
        %1000 = vst [vmem:[#allocation2 + $0x58] sm:$0xff] %v936
        %1001 = vst [vmem:[#allocation2 + $0x60] sm:$0xff] %v937
        %1002 = vst [vmem:[#allocation2 + $0x68] sm:$0xff] %v938
        %1003 = vst [vmem:[#allocation2 + $0x70] sm:$0xff] %v939
        %1004 = vst [vmem:[#allocation2 + $0x78] sm:$0xff] %v940
        %1005 = vst [vmem:[#allocation2 + $0x80] sm:$0xff] %v941
        %1006 = vst [vmem:[#allocation2 + $0x88] sm:$0xff] %v942
        %1007 = vst [vmem:[#allocation2 + $0x90] sm:$0xff] %v943
        %1008 = vst [vmem:[#allocation2 + $0x98] sm:$0xff] %v944
        %1009 = vst [vmem:[#allocation2 + $0xa0] sm:$0xff] %v945
        %1010 = vst [vmem:[#allocation2 + $0xa8] sm:$0xff] %v946
        %1011 = vst [vmem:[#allocation2 + $0xb0] sm:$0xff] %v947
        %1012 = vst [vmem:[#allocation2 + $0xb8] sm:$0xff] %v948
        %1013 = vst [vmem:[#allocation2 + $0xc0] sm:$0xff] %v949
        %1014 = vst [vmem:[#allocation2 + $0xc8] sm:$0xff] %v950
        %1015 = vst [vmem:[#allocation2 + $0xd0] sm:$0xff] %v951
        %1016 = vst [vmem:[#allocation2 + $0xd8] sm:$0xff] %v952
        %1017 = vst [vmem:[#allocation2 + $0xe0] sm:$0xff] %v953
        %1018 = vst [vmem:[#allocation2 + $0xe8] sm:$0xff] %v954
        %1019 = vst [vmem:[#allocation2 + $0xf0] sm:$0xff] %v955
        %1020 = vst [vmem:[#allocation2 + $0xf8] sm:$0xff] %v956
        %1021 = vst [vmem:[#allocation2 + $0x100] sm:$0xff] %v957
        %1022 = vst [vmem:[#allocation2 + $0x108] sm:$0xff] %v958
        %1023 = vst [vmem:[#allocation2 + $0x110] sm:$0xff] %v959
        %1024 = vst [vmem:[#allocation2 + $0x118] sm:$0xff] %v960
        %1025 = vst [vmem:[#allocation2 + $0x120] sm:$0xff] %v961
        %1026 = vst [vmem:[#allocation2 + $0x128] sm:$0xff] %v962
        %1027 = vst [vmem:[#allocation2 + $0x130] sm:$0xff] %v963
        %1028 = vst [vmem:[#allocation2 + $0x138] sm:$0xff] %v964
        %1029 = vst [vmem:[#allocation2 + $0x140] sm:$0xff] %v965
        %1030 = vst [vmem:[#allocation2 + $0x148] sm:$0xff] %v966
        %1031 = vst [vmem:[#allocation2 + $0x150] sm:$0xff] %v967
        %1032 = vst [vmem:[#allocation2 + $0x158] sm:$0xff] %v968
        %1033 = vst [vmem:[#allocation2 + $0x160] sm:$0xff] %v969
        %1034 = vst [vmem:[#allocation2 + $0x168] sm:$0xff] %v970
        %1035 = vst [vmem:[#allocation2 + $0x170] sm:$0xff] %v971
        %1036 = vst [vmem:[#allocation2 + $0x178] sm:$0xff] %v972
        %1037 = vst [vmem:[#allocation2 + $0x180] sm:$0xff] %v973
        %1038 = vst [vmem:[#allocation2 + $0x188] sm:$0xff] %v974
        %1039 = vst [vmem:[#allocation2 + $0x190] sm:$0xff] %v975
        %1040 = vst [vmem:[#allocation2 + $0x198] sm:$0xff] %v976
        %1041 = vst [vmem:[#allocation2 + $0x1a0] sm:$0xff] %v977
        %1042 = vst [vmem:[#allocation2 + $0x1a8] sm:$0xff] %v978
        %1043 = vst [vmem:[#allocation2 + $0x1b0] sm:$0xff] %v979
        %1044 = vst [vmem:[#allocation2 + $0x1b8] sm:$0xff] %v980
        %1045 = vst [vmem:[#allocation2 + $0x1c0] sm:$0xff] %v981
        %1046 = vst [vmem:[#allocation2 + $0x1c8] sm:$0xff] %v982
        %1047 = vst [vmem:[#allocation2 + $0x1d0] sm:$0xff] %v983
        %1048 = vst [vmem:[#allocation2 + $0x1d8] sm:$0xff] %v984
        %1049 = vst [vmem:[#allocation2 + $0x1e0] sm:$0xff] %v985
        %1050 = vst [vmem:[#allocation2 + $0x1e8] sm:$0xff] %v986
        %1051 = vst [vmem:[#allocation2 + $0x1f0] sm:$0xff] %v987
        %1052 = vst [vmem:[#allocation2 + $0x1f8] sm:$0xff] %v988
        %1053 = vst [vmem:[#allocation2 + $0x200] sm:$0xff] %v989
        %1054 = vst [vmem:[#allocation2 + $0x208] sm:$0xff] %v990
        %1055 = vst [vmem:[#allocation2 + $0x210] sm:$0xff] %v991
        %v1056 = vld [vmem:[#allocation2 + $0x7] sm:$0xff]
        %v1057 = vld [vmem:[#allocation2 + $0xf] sm:$0xff]
        %v1058 = vld [vmem:[#allocation2 + $0x17] sm:$0xff]
        %v1059 = vld [vmem:[#allocation2 + $0x1f] sm:$0xff]
        %v1060 = vld [vmem:[#allocation2 + $0x27] sm:$0xff]
        %v1061 = vld [vmem:[#allocation2 + $0x2f] sm:$0xff]
        %v1062 = vld [vmem:[#allocation2 + $0x37] sm:$0xff]
        %v1063 = vld [vmem:[#allocation2 + $0x3f] sm:$0xff]
        %v1064 = vld [vmem:[#allocation2 + $0x47] sm:$0xff]
        %v1065 = vld [vmem:[#allocation2 + $0x4f] sm:$0xff]
        %v1066 = vld [vmem:[#allocation2 + $0x57] sm:$0xff]
        %v1067 = vld [vmem:[#allocation2 + $0x5f] sm:$0xff]
        %v1068 = vld [vmem:[#allocation2 + $0x67] sm:$0xff]
        %v1069 = vld [vmem:[#allocation2 + $0x6f] sm:$0xff]
        %v1070 = vld [vmem:[#allocation2 + $0x77] sm:$0xff]
        %v1071 = vld [vmem:[#allocation2 + $0x7f] sm:$0xff]
        %v1072 = vld [vmem:[#allocation2 + $0x87] sm:$0xff]
        %v1073 = vld [vmem:[#allocation2 + $0x8f] sm:$0xff]
        %v1074 = vld [vmem:[#allocation2 + $0x97] sm:$0xff]
        %v1075 = vld [vmem:[#allocation2 + $0x9f] sm:$0xff]
        %v1076 = vld [vmem:[#allocation2 + $0xa7] sm:$0xff]
        %v1077 = vld [vmem:[#allocation2 + $0xaf] sm:$0xff]
        %v1078 = vld [vmem:[#allocation2 + $0xb7] sm:$0xff]
        %v1079 = vld [vmem:[#allocation2 + $0xbf] sm:$0xff]
        %v1080 = vld [vmem:[#allocation2 + $0xc7] sm:$0xff]
        %v1081 = vld [vmem:[#allocation2 + $0xcf] sm:$0xff]
        %v1082 = vld [vmem:[#allocation2 + $0xd7] sm:$0xff]
        %v1083 = vld [vmem:[#allocation2 + $0xdf] sm:$0xff]
        %v1084 = vld [vmem:[#allocation2 + $0xe7] sm:$0xff]
        %v1085 = vld [vmem:[#allocation2 + $0xef] sm:$0xff]
        %v1086 = vld [vmem:[#allocation2 + $0xf7] sm:$0xff]
        %v1087 = vld [vmem:[#allocation2 + $0xff] sm:$0xff]
        %v1088 = vld [vmem:[#allocation2 + $0x107] sm:$0xff]
        %v1089 = vld [vmem:[#allocation2 + $0x10f] sm:$0xff]
        %v1090 = vld [vmem:[#allocation2 + $0x117] sm:$0xff]
        %v1091 = vld [vmem:[#allocation2 + $0x11f] sm:$0xff]
        %v1092 = vld [vmem:[#allocation2 + $0x127] sm:$0xff]
        %v1093 = vld [vmem:[#allocation2 + $0x12f] sm:$0xff]
        %v1094 = vld [vmem:[#allocation2 + $0x137] sm:$0xff]
        %v1095 = vld [vmem:[#allocation2 + $0x13f] sm:$0xff]
        %v1096 = vld [vmem:[#allocation2 + $0x147] sm:$0xff]
        %v1097 = vld [vmem:[#allocation2 + $0x14f] sm:$0xff]
        %v1098 = vld [vmem:[#allocation2 + $0x157] sm:$0xff]
        %v1099 = vld [vmem:[#allocation2 + $0x15f] sm:$0xff]
        %v1100 = vld [vmem:[#allocation2 + $0x167] sm:$0xff]
        %v1101 = vld [vmem:[#allocation2 + $0x16f] sm:$0xff]
        %v1102 = vld [vmem:[#allocation2 + $0x177] sm:$0xff]
        %v1103 = vld [vmem:[#allocation2 + $0x17f] sm:$0xff]
        %v1104 = vld [vmem:[#allocation2 + $0x187] sm:$0xff]
        %v1105 = vld [vmem:[#allocation2 + $0x18f] sm:$0xff]
        %v1106 = vld [vmem:[#allocation2 + $0x197] sm:$0xff]
        %v1107 = vld [vmem:[#allocation2 + $0x19f] sm:$0xff]
        %v1108 = vld [vmem:[#allocation2 + $0x1a7] sm:$0xff]
        %v1109 = vld [vmem:[#allocation2 + $0x1af] sm:$0xff]
        %v1110 = vld [vmem:[#allocation2 + $0x1b7] sm:$0xff]
        %v1111 = vld [vmem:[#allocation2 + $0x1bf] sm:$0xff]
        %v1112 = vld [vmem:[#allocation2 + $0x1c7] sm:$0xff]
        %v1113 = vld [vmem:[#allocation2 + $0x1cf] sm:$0xff]
        %v1114 = vld [vmem:[#allocation2 + $0x1d7] sm:$0xff]
        %v1115 = vld [vmem:[#allocation2 + $0x1df] sm:$0xff]
        %v1116 = vld [vmem:[#allocation2 + $0x1e7] sm:$0xff]
        %v1117 = vld [vmem:[#allocation2 + $0x1ef] sm:$0xff]
        %v1118 = vld [vmem:[#allocation2 + $0x1f7] sm:$0xff]
        %v1119 = vld [vmem:[#allocation2 + $0x1ff] sm:$0xff]
        %v1120 = vld [vmem:[%s4] sm:$0xff]
        %v1121 = vld [vmem:[%s4 + $0x8] sm:$0xff]
        %v1122 = vld [vmem:[%s4 + $0x10] sm:$0xff]
        %v1123 = vld [vmem:[%s4 + $0x18] sm:$0xff]
        %v1124 = vld [vmem:[%s4 + $0x20] sm:$0xff]
        %v1125 = vld [vmem:[%s4 + $0x28] sm:$0xff]
        %v1126 = vld [vmem:[%s4 + $0x30] sm:$0xff]
        %v1127 = vld [vmem:[%s4 + $0x38] sm:$0xff]
        %v1128 = vld [vmem:[%s4 + $0x40] sm:$0xff]
        %v1129 = vld [vmem:[%s4 + $0x48] sm:$0xff]
        %v1130 = vld [vmem:[%s4 + $0x50] sm:$0xff]
        %v1131 = vld [vmem:[%s4 + $0x58] sm:$0xff]
        %v1132 = vld [vmem:[%s4 + $0x60] sm:$0xff]
        %v1133 = vld [vmem:[%s4 + $0x68] sm:$0xff]
        %v1134 = vld [vmem:[%s4 + $0x70] sm:$0xff]
        %v1135 = vld [vmem:[%s4 + $0x78] sm:$0xff]
        %1136 = vmatpush.msra.mxu0 %v1135
        %1137 = vmatpush.msra.mxu0 %v1134
        %1138 = vmatpush.msra.mxu0 %v1133
        %1139 = vmatpush.msra.mxu0 %v1132
        %1140 = vmatpush.msra.mxu0 %v1131
        %1141 = vmatpush.msra.mxu0 %v1130
        %1142 = vmatpush.msra.mxu0 %v1129
        %1143 = vmatpush.msra.mxu0 %v1128
        %1144 = vmatpush.msra.mxu0 %v1127
        %1145 = vmatpush.msra.mxu0 %v1126
        %1146 = vmatpush.msra.mxu0 %v1125
        %1147 = vmatpush.msra.mxu0 %v1124
        %1148 = vmatpush.msra.mxu0 %v1123
        %1149 = vmatpush.msra.mxu0 %v1122
        %1150 = vmatpush.msra.mxu0 %v1121
        %1151 = vmatpush.msra.mxu0 %v1120
        %1152 = vmatmul.f32.gmra.mxu0 %v1056
        %v1153 = vpop.f32.mrf.mxu0
        %v1154 = vadd.f32 0.0, %v1153
        %1155 = vmatmul.f32.gmra.mxu0 %v1057
        %v1156 = vpop.f32.mrf.mxu0
        %v1157 = vadd.f32 0.0, %v1156
        %1158 = vmatmul.f32.gmra.mxu0 %v1058
        %v1159 = vpop.f32.mrf.mxu0
        %v1160 = vadd.f32 0.0, %v1159
        %1161 = vmatmul.f32.gmra.mxu0 %v1059
        %v1162 = vpop.f32.mrf.mxu0
        %v1163 = vadd.f32 0.0, %v1162
        %1164 = vmatmul.f32.gmra.mxu0 %v1060
        %v1165 = vpop.f32.mrf.mxu0
        %v1166 = vadd.f32 0.0, %v1165
        %1167 = vmatmul.f32.gmra.mxu0 %v1061
        %v1168 = vpop.f32.mrf.mxu0
        %v1169 = vadd.f32 0.0, %v1168
        %1170 = vmatmul.f32.gmra.mxu0 %v1062
        %v1171 = vpop.f32.mrf.mxu0
        %v1172 = vadd.f32 0.0, %v1171
        %1173 = vmatmul.f32.gmra.mxu0 %v1063
        %v1174 = vpop.f32.mrf.mxu0
        %v1175 = vadd.f32 0.0, %v1174
        %1176 = vmatmul.f32.gmra.mxu0 %v1064
        %v1177 = vpop.f32.mrf.mxu0
        %v1178 = vadd.f32 0.0, %v1177
        %1179 = vmatmul.f32.gmra.mxu0 %v1065
        %v1180 = vpop.f32.mrf.mxu0
        %v1181 = vadd.f32 0.0, %v1180
        %1182 = vmatmul.f32.gmra.mxu0 %v1066
        %v1183 = vpop.f32.mrf.mxu0
        %v1184 = vadd.f32 0.0, %v1183
        %1185 = vmatmul.f32.gmra.mxu0 %v1067
        %v1186 = vpop.f32.mrf.mxu0
        %v1187 = vadd.f32 0.0, %v1186
        %1188 = vmatmul.f32.gmra.mxu0 %v1068
        %v1189 = vpop.f32.mrf.mxu0
        %v1190 = vadd.f32 0.0, %v1189
        %1191 = vmatmul.f32.gmra.mxu0 %v1069
        %v1192 = vpop.f32.mrf.mxu0
        %v1193 = vadd.f32 0.0, %v1192
        %1194 = vmatmul.f32.gmra.mxu0 %v1070
        %v1195 = vpop.f32.mrf.mxu0
        %v1196 = vadd.f32 0.0, %v1195
        %1197 = vmatmul.f32.gmra.mxu0 %v1071
        %v1198 = vpop.f32.mrf.mxu0
        %v1199 = vadd.f32 0.0, %v1198
        %1200 = vmatmul.f32.gmra.mxu0 %v1072
        %v1201 = vpop.f32.mrf.mxu0
        %v1202 = vadd.f32 0.0, %v1201
        %1203 = vmatmul.f32.gmra.mxu0 %v1073
        %v1204 = vpop.f32.mrf.mxu0
        %v1205 = vadd.f32 0.0, %v1204
        %1206 = vmatmul.f32.gmra.mxu0 %v1074
        %v1207 = vpop.f32.mrf.mxu0
        %v1208 = vadd.f32 0.0, %v1207
        %1209 = vmatmul.f32.gmra.mxu0 %v1075
        %v1210 = vpop.f32.mrf.mxu0
        %v1211 = vadd.f32 0.0, %v1210
        %1212 = vmatmul.f32.gmra.mxu0 %v1076
        %v1213 = vpop.f32.mrf.mxu0
        %v1214 = vadd.f32 0.0, %v1213
        %1215 = vmatmul.f32.gmra.mxu0 %v1077
        %v1216 = vpop.f32.mrf.mxu0
        %v1217 = vadd.f32 0.0, %v1216
        %1218 = vmatmul.f32.gmra.mxu0 %v1078
        %v1219 = vpop.f32.mrf.mxu0
        %v1220 = vadd.f32 0.0, %v1219
        %1221 = vmatmul.f32.gmra.mxu0 %v1079
        %v1222 = vpop.f32.mrf.mxu0
        %v1223 = vadd.f32 0.0, %v1222
        %1224 = vmatmul.f32.gmra.mxu0 %v1080
        %v1225 = vpop.f32.mrf.mxu0
        %v1226 = vadd.f32 0.0, %v1225
        %1227 = vmatmul.f32.gmra.mxu0 %v1081
        %v1228 = vpop.f32.mrf.mxu0
        %v1229 = vadd.f32 0.0, %v1228
        %1230 = vmatmul.f32.gmra.mxu0 %v1082
        %v1231 = vpop.f32.mrf.mxu0
        %v1232 = vadd.f32 0.0, %v1231
        %1233 = vmatmul.f32.gmra.mxu0 %v1083
        %v1234 = vpop.f32.mrf.mxu0
        %v1235 = vadd.f32 0.0, %v1234
        %1236 = vmatmul.f32.gmra.mxu0 %v1084
        %v1237 = vpop.f32.mrf.mxu0
        %v1238 = vadd.f32 0.0, %v1237
        %1239 = vmatmul.f32.gmra.mxu0 %v1085
        %v1240 = vpop.f32.mrf.mxu0
        %v1241 = vadd.f32 0.0, %v1240
        %1242 = vmatmul.f32.gmra.mxu0 %v1086
        %v1243 = vpop.f32.mrf.mxu0
        %v1244 = vadd.f32 0.0, %v1243
        %1245 = vmatmul.f32.gmra.mxu0 %v1087
        %v1246 = vpop.f32.mrf.mxu0
        %v1247 = vadd.f32 0.0, %v1246
        %1248 = vmatmul.f32.gmra.mxu0 %v1088
        %v1249 = vpop.f32.mrf.mxu0
        %v1250 = vadd.f32 0.0, %v1249
        %1251 = vmatmul.f32.gmra.mxu0 %v1089
        %v1252 = vpop.f32.mrf.mxu0
        %v1253 = vadd.f32 0.0, %v1252
        %1254 = vmatmul.f32.gmra.mxu0 %v1090
        %v1255 = vpop.f32.mrf.mxu0
        %v1256 = vadd.f32 0.0, %v1255
        %1257 = vmatmul.f32.gmra.mxu0 %v1091
        %v1258 = vpop.f32.mrf.mxu0
        %v1259 = vadd.f32 0.0, %v1258
        %1260 = vmatmul.f32.gmra.mxu0 %v1092
        %v1261 = vpop.f32.mrf.mxu0
        %v1262 = vadd.f32 0.0, %v1261
        %1263 = vmatmul.f32.gmra.mxu0 %v1093
        %v1264 = vpop.f32.mrf.mxu0
        %v1265 = vadd.f32 0.0, %v1264
        %1266 = vmatmul.f32.gmra.mxu0 %v1094
        %v1267 = vpop.f32.mrf.mxu0
        %v1268 = vadd.f32 0.0, %v1267
        %1269 = vmatmul.f32.gmra.mxu0 %v1095
        %v1270 = vpop.f32.mrf.mxu0
        %v1271 = vadd.f32 0.0, %v1270
        %1272 = vmatmul.f32.gmra.mxu0 %v1096
        %v1273 = vpop.f32.mrf.mxu0
        %v1274 = vadd.f32 0.0, %v1273
        %1275 = vmatmul.f32.gmra.mxu0 %v1097
        %v1276 = vpop.f32.mrf.mxu0
        %v1277 = vadd.f32 0.0, %v1276
        %1278 = vmatmul.f32.gmra.mxu0 %v1098
        %v1279 = vpop.f32.mrf.mxu0
        %v1280 = vadd.f32 0.0, %v1279
        %1281 = vmatmul.f32.gmra.mxu0 %v1099
        %v1282 = vpop.f32.mrf.mxu0
        %v1283 = vadd.f32 0.0, %v1282
        %1284 = vmatmul.f32.gmra.mxu0 %v1100
        %v1285 = vpop.f32.mrf.mxu0
        %v1286 = vadd.f32 0.0, %v1285
        %1287 = vmatmul.f32.gmra.mxu0 %v1101
        %v1288 = vpop.f32.mrf.mxu0
        %v1289 = vadd.f32 0.0, %v1288
        %1290 = vmatmul.f32.gmra.mxu0 %v1102
        %v1291 = vpop.f32.mrf.mxu0
        %v1292 = vadd.f32 0.0, %v1291
        %1293 = vmatmul.f32.gmra.mxu0 %v1103
        %v1294 = vpop.f32.mrf.mxu0
        %v1295 = vadd.f32 0.0, %v1294
        %1296 = vmatmul.f32.gmra.mxu0 %v1104
        %v1297 = vpop.f32.mrf.mxu0
        %v1298 = vadd.f32 0.0, %v1297
        %1299 = vmatmul.f32.gmra.mxu0 %v1105
        %v1300 = vpop.f32.mrf.mxu0
        %v1301 = vadd.f32 0.0, %v1300
        %1302 = vmatmul.f32.gmra.mxu0 %v1106
        %v1303 = vpop.f32.mrf.mxu0
        %v1304 = vadd.f32 0.0, %v1303
        %1305 = vmatmul.f32.gmra.mxu0 %v1107
        %v1306 = vpop.f32.mrf.mxu0
        %v1307 = vadd.f32 0.0, %v1306
        %1308 = vmatmul.f32.gmra.mxu0 %v1108
        %v1309 = vpop.f32.mrf.mxu0
        %v1310 = vadd.f32 0.0, %v1309
        %1311 = vmatmul.f32.gmra.mxu0 %v1109
        %v1312 = vpop.f32.mrf.mxu0
        %v1313 = vadd.f32 0.0, %v1312
        %1314 = vmatmul.f32.gmra.mxu0 %v1110
        %v1315 = vpop.f32.mrf.mxu0
        %v1316 = vadd.f32 0.0, %v1315
        %1317 = vmatmul.f32.gmra.mxu0 %v1111
        %v1318 = vpop.f32.mrf.mxu0
        %v1319 = vadd.f32 0.0, %v1318
        %1320 = vmatmul.f32.gmra.mxu0 %v1112
        %v1321 = vpop.f32.mrf.mxu0
        %v1322 = vadd.f32 0.0, %v1321
        %1323 = vmatmul.f32.gmra.mxu0 %v1113
        %v1324 = vpop.f32.mrf.mxu0
        %v1325 = vadd.f32 0.0, %v1324
        %1326 = vmatmul.f32.gmra.mxu0 %v1114
        %v1327 = vpop.f32.mrf.mxu0
        %v1328 = vadd.f32 0.0, %v1327
        %1329 = vmatmul.f32.gmra.mxu0 %v1115
        %v1330 = vpop.f32.mrf.mxu0
        %v1331 = vadd.f32 0.0, %v1330
        %1332 = vmatmul.f32.gmra.mxu0 %v1116
        %v1333 = vpop.f32.mrf.mxu0
        %v1334 = vadd.f32 0.0, %v1333
        %1335 = vmatmul.f32.gmra.mxu0 %v1117
        %v1336 = vpop.f32.mrf.mxu0
        %v1337 = vadd.f32 0.0, %v1336
        %1338 = vmatmul.f32.gmra.mxu0 %v1118
        %v1339 = vpop.f32.mrf.mxu0
        %v1340 = vadd.f32 0.0, %v1339
        %1341 = vmatmul.f32.gmra.mxu0 %v1119
        %v1342 = vpop.f32.mrf.mxu0
        %v1343 = vadd.f32 0.0, %v1342
        %1344 = vdwg.mxu0
        %v1345 = vld [vmem:[%s7] sm:$0xff]
        %v1346 = vld [vmem:[%s7 + $0x8] sm:$0xff]
        %v1347 = vld [vmem:[%s7 + $0x10] sm:$0xff]
        %v1348 = vld [vmem:[%s7 + $0x18] sm:$0xff]
        %v1349 = vld [vmem:[%s7 + $0x20] sm:$0xff]
        %v1350 = vld [vmem:[%s7 + $0x28] sm:$0xff]
        %v1351 = vld [vmem:[%s7 + $0x30] sm:$0xff]
        %v1352 = vld [vmem:[%s7 + $0x38] sm:$0xff]
        %v1353 = vld [vmem:[%s7 + $0x40] sm:$0xff]
        %v1354 = vld [vmem:[%s7 + $0x48] sm:$0xff]
        %v1355 = vld [vmem:[%s7 + $0x50] sm:$0xff]
        %v1356 = vld [vmem:[%s7 + $0x58] sm:$0xff]
        %v1357 = vld [vmem:[%s7 + $0x60] sm:$0xff]
        %v1358 = vld [vmem:[%s7 + $0x68] sm:$0xff]
        %v1359 = vld [vmem:[%s7 + $0x70] sm:$0xff]
        %v1360 = vld [vmem:[%s7 + $0x78] sm:$0xff]
        %v1361 = vld [vmem:[%s7 + $0x80] sm:$0xff]
        %v1362 = vld [vmem:[%s7 + $0x88] sm:$0xff]
        %v1363 = vld [vmem:[%s7 + $0x90] sm:$0xff]
        %v1364 = vld [vmem:[%s7 + $0x98] sm:$0xff]
        %v1365 = vld [vmem:[%s7 + $0xa0] sm:$0xff]
        %v1366 = vld [vmem:[%s7 + $0xa8] sm:$0xff]
        %v1367 = vld [vmem:[%s7 + $0xb0] sm:$0xff]
        %v1368 = vld [vmem:[%s7 + $0xb8] sm:$0xff]
        %v1369 = vld [vmem:[%s7 + $0xc0] sm:$0xff]
        %v1370 = vld [vmem:[%s7 + $0xc8] sm:$0xff]
        %v1371 = vld [vmem:[%s7 + $0xd0] sm:$0xff]
        %v1372 = vld [vmem:[%s7 + $0xd8] sm:$0xff]
        %v1373 = vld [vmem:[%s7 + $0xe0] sm:$0xff]
        %v1374 = vld [vmem:[%s7 + $0xe8] sm:$0xff]
        %v1375 = vld [vmem:[%s7 + $0xf0] sm:$0xff]
        %v1376 = vld [vmem:[%s7 + $0xf8] sm:$0xff]
        %v1377 = vld [vmem:[%s7 + $0x100] sm:$0xff]
        %v1378 = vld [vmem:[%s7 + $0x108] sm:$0xff]
        %v1379 = vld [vmem:[%s7 + $0x110] sm:$0xff]
        %v1380 = vld [vmem:[%s7 + $0x118] sm:$0xff]
        %v1381 = vld [vmem:[%s7 + $0x120] sm:$0xff]
        %v1382 = vld [vmem:[%s7 + $0x128] sm:$0xff]
        %v1383 = vld [vmem:[%s7 + $0x130] sm:$0xff]
        %v1384 = vld [vmem:[%s7 + $0x138] sm:$0xff]
        %v1385 = vld [vmem:[%s7 + $0x140] sm:$0xff]
        %v1386 = vld [vmem:[%s7 + $0x148] sm:$0xff]
        %v1387 = vld [vmem:[%s7 + $0x150] sm:$0xff]
        %v1388 = vld [vmem:[%s7 + $0x158] sm:$0xff]
        %v1389 = vld [vmem:[%s7 + $0x160] sm:$0xff]
        %v1390 = vld [vmem:[%s7 + $0x168] sm:$0xff]
        %v1391 = vld [vmem:[%s7 + $0x170] sm:$0xff]
        %v1392 = vld [vmem:[%s7 + $0x178] sm:$0xff]
        %v1393 = vld [vmem:[%s7 + $0x180] sm:$0xff]
        %v1394 = vld [vmem:[%s7 + $0x188] sm:$0xff]
        %v1395 = vld [vmem:[%s7 + $0x190] sm:$0xff]
        %v1396 = vld [vmem:[%s7 + $0x198] sm:$0xff]
        %v1397 = vld [vmem:[%s7 + $0x1a0] sm:$0xff]
        %v1398 = vld [vmem:[%s7 + $0x1a8] sm:$0xff]
        %v1399 = vld [vmem:[%s7 + $0x1b0] sm:$0xff]
        %v1400 = vld [vmem:[%s7 + $0x1b8] sm:$0xff]
        %v1401 = vld [vmem:[%s7 + $0x1c0] sm:$0xff]
        %v1402 = vld [vmem:[%s7 + $0x1c8] sm:$0xff]
        %v1403 = vld [vmem:[%s7 + $0x1d0] sm:$0xff]
        %v1404 = vld [vmem:[%s7 + $0x1d8] sm:$0xff]
        %v1405 = vld [vmem:[%s7 + $0x1e0] sm:$0xff]
        %v1406 = vld [vmem:[%s7 + $0x1e8] sm:$0xff]
        %v1407 = vld [vmem:[%s7 + $0x1f0] sm:$0xff]
        %v1408 = vld [vmem:[%s7 + $0x1f8] sm:$0xff]
        %1410 = vset.pattern.permute.xlu0 0
        %1411 = vperm.xlu0 %1410, %v1345
        %v1412 = vpop.permute.xlu0 %1411
        %1415 = vset.pattern.permute.xlu0 0
        %1416 = vperm.xlu0 %1415, %v1346
        %v1417 = vpop.permute.xlu0 %1416
        %1420 = vset.pattern.permute.xlu0 0
        %1421 = vperm.xlu0 %1420, %v1347
        %v1422 = vpop.permute.xlu0 %1421
        %1425 = vset.pattern.permute.xlu0 0
        %1426 = vperm.xlu0 %1425, %v1348
        %v1427 = vpop.permute.xlu0 %1426
        %1430 = vset.pattern.permute.xlu0 0
        %1431 = vperm.xlu0 %1430, %v1349
        %v1432 = vpop.permute.xlu0 %1431
        %1435 = vset.pattern.permute.xlu0 0
        %1436 = vperm.xlu0 %1435, %v1350
        %v1437 = vpop.permute.xlu0 %1436
        %1440 = vset.pattern.permute.xlu0 0
        %1441 = vperm.xlu0 %1440, %v1351
        %v1442 = vpop.permute.xlu0 %1441
        %1445 = vset.pattern.permute.xlu0 0
        %1446 = vperm.xlu0 %1445, %v1352
        %v1447 = vpop.permute.xlu0 %1446
        %1450 = vset.pattern.permute.xlu0 0
        %1451 = vperm.xlu0 %1450, %v1353
        %v1452 = vpop.permute.xlu0 %1451
        %1455 = vset.pattern.permute.xlu0 0
        %1456 = vperm.xlu0 %1455, %v1354
        %v1457 = vpop.permute.xlu0 %1456
        %1460 = vset.pattern.permute.xlu0 0
        %1461 = vperm.xlu0 %1460, %v1355
        %v1462 = vpop.permute.xlu0 %1461
        %1465 = vset.pattern.permute.xlu0 0
        %1466 = vperm.xlu0 %1465, %v1356
        %v1467 = vpop.permute.xlu0 %1466
        %1470 = vset.pattern.permute.xlu0 0
        %1471 = vperm.xlu0 %1470, %v1357
        %v1472 = vpop.permute.xlu0 %1471
        %1475 = vset.pattern.permute.xlu0 0
        %1476 = vperm.xlu0 %1475, %v1358
        %v1477 = vpop.permute.xlu0 %1476
        %1480 = vset.pattern.permute.xlu0 0
        %1481 = vperm.xlu0 %1480, %v1359
        %v1482 = vpop.permute.xlu0 %1481
        %1485 = vset.pattern.permute.xlu0 0
        %1486 = vperm.xlu0 %1485, %v1360
        %v1487 = vpop.permute.xlu0 %1486
        %1490 = vset.pattern.permute.xlu0 0
        %1491 = vperm.xlu0 %1490, %v1361
        %v1492 = vpop.permute.xlu0 %1491
        %1495 = vset.pattern.permute.xlu0 0
        %1496 = vperm.xlu0 %1495, %v1362
        %v1497 = vpop.permute.xlu0 %1496
        %1500 = vset.pattern.permute.xlu0 0
        %1501 = vperm.xlu0 %1500, %v1363
        %v1502 = vpop.permute.xlu0 %1501
        %1505 = vset.pattern.permute.xlu0 0
        %1506 = vperm.xlu0 %1505, %v1364
        %v1507 = vpop.permute.xlu0 %1506
        %1510 = vset.pattern.permute.xlu0 0
        %1511 = vperm.xlu0 %1510, %v1365
        %v1512 = vpop.permute.xlu0 %1511
        %1515 = vset.pattern.permute.xlu0 0
        %1516 = vperm.xlu0 %1515, %v1366
        %v1517 = vpop.permute.xlu0 %1516
        %1520 = vset.pattern.permute.xlu0 0
        %1521 = vperm.xlu0 %1520, %v1367
        %v1522 = vpop.permute.xlu0 %1521
        %1525 = vset.pattern.permute.xlu0 0
        %1526 = vperm.xlu0 %1525, %v1368
        %v1527 = vpop.permute.xlu0 %1526
        %1530 = vset.pattern.permute.xlu0 0
        %1531 = vperm.xlu0 %1530, %v1369
        %v1532 = vpop.permute.xlu0 %1531
        %1535 = vset.pattern.permute.xlu0 0
        %1536 = vperm.xlu0 %1535, %v1370
        %v1537 = vpop.permute.xlu0 %1536
        %1540 = vset.pattern.permute.xlu0 0
        %1541 = vperm.xlu0 %1540, %v1371
        %v1542 = vpop.permute.xlu0 %1541
        %1545 = vset.pattern.permute.xlu0 0
        %1546 = vperm.xlu0 %1545, %v1372
        %v1547 = vpop.permute.xlu0 %1546
        %1550 = vset.pattern.permute.xlu0 0
        %1551 = vperm.xlu0 %1550, %v1373
        %v1552 = vpop.permute.xlu0 %1551
        %1555 = vset.pattern.permute.xlu0 0
        %1556 = vperm.xlu0 %1555, %v1374
        %v1557 = vpop.permute.xlu0 %1556
        %1560 = vset.pattern.permute.xlu0 0
        %1561 = vperm.xlu0 %1560, %v1375
        %v1562 = vpop.permute.xlu0 %1561
        %1565 = vset.pattern.permute.xlu0 0
        %1566 = vperm.xlu0 %1565, %v1376
        %v1567 = vpop.permute.xlu0 %1566
        %1570 = vset.pattern.permute.xlu0 0
        %1571 = vperm.xlu0 %1570, %v1377
        %v1572 = vpop.permute.xlu0 %1571
        %1575 = vset.pattern.permute.xlu0 0
        %1576 = vperm.xlu0 %1575, %v1378
        %v1577 = vpop.permute.xlu0 %1576
        %1580 = vset.pattern.permute.xlu0 0
        %1581 = vperm.xlu0 %1580, %v1379
        %v1582 = vpop.permute.xlu0 %1581
        %1585 = vset.pattern.permute.xlu0 0
        %1586 = vperm.xlu0 %1585, %v1380
        %v1587 = vpop.permute.xlu0 %1586
        %1590 = vset.pattern.permute.xlu0 0
        %1591 = vperm.xlu0 %1590, %v1381
        %v1592 = vpop.permute.xlu0 %1591
        %1595 = vset.pattern.permute.xlu0 0
        %1596 = vperm.xlu0 %1595, %v1382
        %v1597 = vpop.permute.xlu0 %1596
        %1600 = vset.pattern.permute.xlu0 0
        %1601 = vperm.xlu0 %1600, %v1383
        %v1602 = vpop.permute.xlu0 %1601
        %1605 = vset.pattern.permute.xlu0 0
        %1606 = vperm.xlu0 %1605, %v1384
        %v1607 = vpop.permute.xlu0 %1606
        %1610 = vset.pattern.permute.xlu0 0
        %1611 = vperm.xlu0 %1610, %v1385
        %v1612 = vpop.permute.xlu0 %1611
        %1615 = vset.pattern.permute.xlu0 0
        %1616 = vperm.xlu0 %1615, %v1386
        %v1617 = vpop.permute.xlu0 %1616
        %1620 = vset.pattern.permute.xlu0 0
        %1621 = vperm.xlu0 %1620, %v1387
        %v1622 = vpop.permute.xlu0 %1621
        %1625 = vset.pattern.permute.xlu0 0
        %1626 = vperm.xlu0 %1625, %v1388
        %v1627 = vpop.permute.xlu0 %1626
        %1630 = vset.pattern.permute.xlu0 0
        %1631 = vperm.xlu0 %1630, %v1389
        %v1632 = vpop.permute.xlu0 %1631
        %1635 = vset.pattern.permute.xlu0 0
        %1636 = vperm.xlu0 %1635, %v1390
        %v1637 = vpop.permute.xlu0 %1636
        %1640 = vset.pattern.permute.xlu0 0
        %1641 = vperm.xlu0 %1640, %v1391
        %v1642 = vpop.permute.xlu0 %1641
        %1645 = vset.pattern.permute.xlu0 0
        %1646 = vperm.xlu0 %1645, %v1392
        %v1647 = vpop.permute.xlu0 %1646
        %1650 = vset.pattern.permute.xlu0 0
        %1651 = vperm.xlu0 %1650, %v1393
        %v1652 = vpop.permute.xlu0 %1651
        %1655 = vset.pattern.permute.xlu0 0
        %1656 = vperm.xlu0 %1655, %v1394
        %v1657 = vpop.permute.xlu0 %1656
        %1660 = vset.pattern.permute.xlu0 0
        %1661 = vperm.xlu0 %1660, %v1395
        %v1662 = vpop.permute.xlu0 %1661
        %1665 = vset.pattern.permute.xlu0 0
        %1666 = vperm.xlu0 %1665, %v1396
        %v1667 = vpop.permute.xlu0 %1666
        %1670 = vset.pattern.permute.xlu0 0
        %1671 = vperm.xlu0 %1670, %v1397
        %v1672 = vpop.permute.xlu0 %1671
        %1675 = vset.pattern.permute.xlu0 0
        %1676 = vperm.xlu0 %1675, %v1398
        %v1677 = vpop.permute.xlu0 %1676
        %1680 = vset.pattern.permute.xlu0 0
        %1681 = vperm.xlu0 %1680, %v1399
        %v1682 = vpop.permute.xlu0 %1681
        %1685 = vset.pattern.permute.xlu0 0
        %1686 = vperm.xlu0 %1685, %v1400
        %v1687 = vpop.permute.xlu0 %1686
        %1690 = vset.pattern.permute.xlu0 0
        %1691 = vperm.xlu0 %1690, %v1401
        %v1692 = vpop.permute.xlu0 %1691
        %1695 = vset.pattern.permute.xlu0 0
        %1696 = vperm.xlu0 %1695, %v1402
        %v1697 = vpop.permute.xlu0 %1696
        %1700 = vset.pattern.permute.xlu0 0
        %1701 = vperm.xlu0 %1700, %v1403
        %v1702 = vpop.permute.xlu0 %1701
        %1705 = vset.pattern.permute.xlu0 0
        %1706 = vperm.xlu0 %1705, %v1404
        %v1707 = vpop.permute.xlu0 %1706
        %1710 = vset.pattern.permute.xlu0 0
        %1711 = vperm.xlu0 %1710, %v1405
        %v1712 = vpop.permute.xlu0 %1711
        %1715 = vset.pattern.permute.xlu0 0
        %1716 = vperm.xlu0 %1715, %v1406
        %v1717 = vpop.permute.xlu0 %1716
        %1720 = vset.pattern.permute.xlu0 0
        %1721 = vperm.xlu0 %1720, %v1407
        %v1722 = vpop.permute.xlu0 %1721
        %1725 = vset.pattern.permute.xlu0 0
        %1726 = vperm.xlu0 %1725, %v1408
        %v1727 = vpop.permute.xlu0 %1726
        %v1729 = vmul.f32 %v1412, %v1154
        %v1730 = vmul.f32 %v1417, %v1157
        %v1731 = vmul.f32 %v1422, %v1160
        %v1732 = vmul.f32 %v1427, %v1163
        %v1733 = vmul.f32 %v1432, %v1166
        %v1734 = vmul.f32 %v1437, %v1169
        %v1735 = vmul.f32 %v1442, %v1172
        %v1736 = vmul.f32 %v1447, %v1175
        %v1737 = vmul.f32 %v1452, %v1178
        %v1738 = vmul.f32 %v1457, %v1181
        %v1739 = vmul.f32 %v1462, %v1184
        %v1740 = vmul.f32 %v1467, %v1187
        %v1741 = vmul.f32 %v1472, %v1190
        %v1742 = vmul.f32 %v1477, %v1193
        %v1743 = vmul.f32 %v1482, %v1196
        %v1744 = vmul.f32 %v1487, %v1199
        %v1745 = vmul.f32 %v1492, %v1202
        %v1746 = vmul.f32 %v1497, %v1205
        %v1747 = vmul.f32 %v1502, %v1208
        %v1748 = vmul.f32 %v1507, %v1211
        %v1749 = vmul.f32 %v1512, %v1214
        %v1750 = vmul.f32 %v1517, %v1217
        %v1751 = vmul.f32 %v1522, %v1220
        %v1752 = vmul.f32 %v1527, %v1223
        %v1753 = vmul.f32 %v1532, %v1226
        %v1754 = vmul.f32 %v1537, %v1229
        %v1755 = vmul.f32 %v1542, %v1232
        %v1756 = vmul.f32 %v1547, %v1235
        %v1757 = vmul.f32 %v1552, %v1238
        %v1758 = vmul.f32 %v1557, %v1241
        %v1759 = vmul.f32 %v1562, %v1244
        %v1760 = vmul.f32 %v1567, %v1247
        %v1761 = vmul.f32 %v1572, %v1250
        %v1762 = vmul.f32 %v1577, %v1253
        %v1763 = vmul.f32 %v1582, %v1256
        %v1764 = vmul.f32 %v1587, %v1259
        %v1765 = vmul.f32 %v1592, %v1262
        %v1766 = vmul.f32 %v1597, %v1265
        %v1767 = vmul.f32 %v1602, %v1268
        %v1768 = vmul.f32 %v1607, %v1271
        %v1769 = vmul.f32 %v1612, %v1274
        %v1770 = vmul.f32 %v1617, %v1277
        %v1771 = vmul.f32 %v1622, %v1280
        %v1772 = vmul.f32 %v1627, %v1283
        %v1773 = vmul.f32 %v1632, %v1286
        %v1774 = vmul.f32 %v1637, %v1289
        %v1775 = vmul.f32 %v1642, %v1292
        %v1776 = vmul.f32 %v1647, %v1295
        %v1777 = vmul.f32 %v1652, %v1298
        %v1778 = vmul.f32 %v1657, %v1301
        %v1779 = vmul.f32 %v1662, %v1304
        %v1780 = vmul.f32 %v1667, %v1307
        %v1781 = vmul.f32 %v1672, %v1310
        %v1782 = vmul.f32 %v1677, %v1313
        %v1783 = vmul.f32 %v1682, %v1316
        %v1784 = vmul.f32 %v1687, %v1319
        %v1785 = vmul.f32 %v1692, %v1322
        %v1786 = vmul.f32 %v1697, %v1325
        %v1787 = vmul.f32 %v1702, %v1328
        %v1788 = vmul.f32 %v1707, %v1331
        %v1789 = vmul.f32 %v1712, %v1334
        %v1790 = vmul.f32 %v1717, %v1337
        %v1791 = vmul.f32 %v1722, %v1340
        %v1792 = vmul.f32 %v1727, %v1343
        %v1793 = vadd.f32 %v1729, 0.0
        %v1794 = vadd.f32 %v1730, 0.0
        %v1795 = vadd.f32 %v1731, 0.0
        %v1796 = vadd.f32 %v1732, 0.0
        %v1797 = vadd.f32 %v1733, 0.0
        %v1798 = vadd.f32 %v1734, 0.0
        %v1799 = vadd.f32 %v1735, 0.0
        %v1800 = vadd.f32 %v1736, 0.0
        %v1801 = vadd.f32 %v1737, 0.0
        %v1802 = vadd.f32 %v1738, 0.0
        %v1803 = vadd.f32 %v1739, 0.0
        %v1804 = vadd.f32 %v1740, 0.0
        %v1805 = vadd.f32 %v1741, 0.0
        %v1806 = vadd.f32 %v1742, 0.0
        %v1807 = vadd.f32 %v1743, 0.0
        %v1808 = vadd.f32 %v1744, 0.0
        %v1809 = vadd.f32 %v1745, 0.0
        %v1810 = vadd.f32 %v1746, 0.0
        %v1811 = vadd.f32 %v1747, 0.0
        %v1812 = vadd.f32 %v1748, 0.0
        %v1813 = vadd.f32 %v1749, 0.0
        %v1814 = vadd.f32 %v1750, 0.0
        %v1815 = vadd.f32 %v1751, 0.0
        %v1816 = vadd.f32 %v1752, 0.0
        %v1817 = vadd.f32 %v1753, 0.0
        %v1818 = vadd.f32 %v1754, 0.0
        %v1819 = vadd.f32 %v1755, 0.0
        %v1820 = vadd.f32 %v1756, 0.0
        %v1821 = vadd.f32 %v1757, 0.0
        %v1822 = vadd.f32 %v1758, 0.0
        %v1823 = vadd.f32 %v1759, 0.0
        %v1824 = vadd.f32 %v1760, 0.0
        %v1825 = vadd.f32 %v1761, 0.0
        %v1826 = vadd.f32 %v1762, 0.0
        %v1827 = vadd.f32 %v1763, 0.0
        %v1828 = vadd.f32 %v1764, 0.0
        %v1829 = vadd.f32 %v1765, 0.0
        %v1830 = vadd.f32 %v1766, 0.0
        %v1831 = vadd.f32 %v1767, 0.0
        %v1832 = vadd.f32 %v1768, 0.0
        %v1833 = vadd.f32 %v1769, 0.0
        %v1834 = vadd.f32 %v1770, 0.0
        %v1835 = vadd.f32 %v1771, 0.0
        %v1836 = vadd.f32 %v1772, 0.0
        %v1837 = vadd.f32 %v1773, 0.0
        %v1838 = vadd.f32 %v1774, 0.0
        %v1839 = vadd.f32 %v1775, 0.0
        %v1840 = vadd.f32 %v1776, 0.0
        %v1841 = vadd.f32 %v1777, 0.0
        %v1842 = vadd.f32 %v1778, 0.0
        %v1843 = vadd.f32 %v1779, 0.0
        %v1844 = vadd.f32 %v1780, 0.0
        %v1845 = vadd.f32 %v1781, 0.0
        %v1846 = vadd.f32 %v1782, 0.0
        %v1847 = vadd.f32 %v1783, 0.0
        %v1848 = vadd.f32 %v1784, 0.0
        %v1849 = vadd.f32 %v1785, 0.0
        %v1850 = vadd.f32 %v1786, 0.0
        %v1851 = vadd.f32 %v1787, 0.0
        %v1852 = vadd.f32 %v1788, 0.0
        %v1853 = vadd.f32 %v1789, 0.0
        %v1854 = vadd.f32 %v1790, 0.0
        %v1855 = vadd.f32 %v1791, 0.0
        %v1856 = vadd.f32 %v1792, 0.0
        %v1857 = vld [vmem:[#allocation2 + $0x8] sm:$0xff]
        %v1858 = vld [vmem:[#allocation2 + $0x10] sm:$0xff]
        %v1859 = vld [vmem:[#allocation2 + $0x18] sm:$0xff]
        %v1860 = vld [vmem:[#allocation2 + $0x20] sm:$0xff]
        %v1861 = vld [vmem:[#allocation2 + $0x28] sm:$0xff]
        %v1862 = vld [vmem:[#allocation2 + $0x30] sm:$0xff]
        %v1863 = vld [vmem:[#allocation2 + $0x38] sm:$0xff]
        %v1864 = vld [vmem:[#allocation2 + $0x40] sm:$0xff]
        %v1865 = vld [vmem:[#allocation2 + $0x48] sm:$0xff]
        %v1866 = vld [vmem:[#allocation2 + $0x50] sm:$0xff]
        %v1867 = vld [vmem:[#allocation2 + $0x58] sm:$0xff]
        %v1868 = vld [vmem:[#allocation2 + $0x60] sm:$0xff]
        %v1869 = vld [vmem:[#allocation2 + $0x68] sm:$0xff]
        %v1870 = vld [vmem:[#allocation2 + $0x70] sm:$0xff]
        %v1871 = vld [vmem:[#allocation2 + $0x78] sm:$0xff]
        %v1872 = vld [vmem:[#allocation2 + $0x80] sm:$0xff]
        %v1873 = vld [vmem:[#allocation2 + $0x88] sm:$0xff]
        %v1874 = vld [vmem:[#allocation2 + $0x90] sm:$0xff]
        %v1875 = vld [vmem:[#allocation2 + $0x98] sm:$0xff]
        %v1876 = vld [vmem:[#allocation2 + $0xa0] sm:$0xff]
        %v1877 = vld [vmem:[#allocation2 + $0xa8] sm:$0xff]
        %v1878 = vld [vmem:[#allocation2 + $0xb0] sm:$0xff]
        %v1879 = vld [vmem:[#allocation2 + $0xb8] sm:$0xff]
        %v1880 = vld [vmem:[#allocation2 + $0xc0] sm:$0xff]
        %v1881 = vld [vmem:[#allocation2 + $0xc8] sm:$0xff]
        %v1882 = vld [vmem:[#allocation2 + $0xd0] sm:$0xff]
        %v1883 = vld [vmem:[#allocation2 + $0xd8] sm:$0xff]
        %v1884 = vld [vmem:[#allocation2 + $0xe0] sm:$0xff]
        %v1885 = vld [vmem:[#allocation2 + $0xe8] sm:$0xff]
        %v1886 = vld [vmem:[#allocation2 + $0xf0] sm:$0xff]
        %v1887 = vld [vmem:[#allocation2 + $0xf8] sm:$0xff]
        %v1888 = vld [vmem:[#allocation2 + $0x100] sm:$0xff]
        %v1889 = vld [vmem:[#allocation2 + $0x108] sm:$0xff]
        %v1890 = vld [vmem:[#allocation2 + $0x110] sm:$0xff]
        %v1891 = vld [vmem:[#allocation2 + $0x118] sm:$0xff]
        %v1892 = vld [vmem:[#allocation2 + $0x120] sm:$0xff]
        %v1893 = vld [vmem:[#allocation2 + $0x128] sm:$0xff]
        %v1894 = vld [vmem:[#allocation2 + $0x130] sm:$0xff]
        %v1895 = vld [vmem:[#allocation2 + $0x138] sm:$0xff]
        %v1896 = vld [vmem:[#allocation2 + $0x140] sm:$0xff]
        %v1897 = vld [vmem:[#allocation2 + $0x148] sm:$0xff]
        %v1898 = vld [vmem:[#allocation2 + $0x150] sm:$0xff]
        %v1899 = vld [vmem:[#allocation2 + $0x158] sm:$0xff]
        %v1900 = vld [vmem:[#allocation2 + $0x160] sm:$0xff]
        %v1901 = vld [vmem:[#allocation2 + $0x168] sm:$0xff]
        %v1902 = vld [vmem:[#allocation2 + $0x170] sm:$0xff]
        %v1903 = vld [vmem:[#allocation2 + $0x178] sm:$0xff]
        %v1904 = vld [vmem:[#allocation2 + $0x180] sm:$0xff]
        %v1905 = vld [vmem:[#allocation2 + $0x188] sm:$0xff]
        %v1906 = vld [vmem:[#allocation2 + $0x190] sm:$0xff]
        %v1907 = vld [vmem:[#allocation2 + $0x198] sm:$0xff]
        %v1908 = vld [vmem:[#allocation2 + $0x1a0] sm:$0xff]
        %v1909 = vld [vmem:[#allocation2 + $0x1a8] sm:$0xff]
        %v1910 = vld [vmem:[#allocation2 + $0x1b0] sm:$0xff]
        %v1911 = vld [vmem:[#allocation2 + $0x1b8] sm:$0xff]
        %v1912 = vld [vmem:[#allocation2 + $0x1c0] sm:$0xff]
        %v1913 = vld [vmem:[#allocation2 + $0x1c8] sm:$0xff]
        %v1914 = vld [vmem:[#allocation2 + $0x1d0] sm:$0xff]
        %v1915 = vld [vmem:[#allocation2 + $0x1d8] sm:$0xff]
        %v1916 = vld [vmem:[#allocation2 + $0x1e0] sm:$0xff]
        %v1917 = vld [vmem:[#allocation2 + $0x1e8] sm:$0xff]
        %v1918 = vld [vmem:[#allocation2 + $0x1f0] sm:$0xff]
        %v1919 = vld [vmem:[#allocation2 + $0x1f8] sm:$0xff]
        %v1920 = vld [vmem:[#allocation2 + $0x200] sm:$0xff]
        %s1921 = scalar_lea.vmem %s4, 128
        %v1922 = vld [vmem:[%s1921] sm:$0xff]
        %v1923 = vld [vmem:[%s1921 + $0x8] sm:$0xff]
        %v1924 = vld [vmem:[%s1921 + $0x10] sm:$0xff]
        %v1925 = vld [vmem:[%s1921 + $0x18] sm:$0xff]
        %v1926 = vld [vmem:[%s1921 + $0x20] sm:$0xff]
        %v1927 = vld [vmem:[%s1921 + $0x28] sm:$0xff]
        %v1928 = vld [vmem:[%s1921 + $0x30] sm:$0xff]
        %v1929 = vld [vmem:[%s1921 + $0x38] sm:$0xff]
        %v1930 = vld [vmem:[%s1921 + $0x40] sm:$0xff]
        %v1931 = vld [vmem:[%s1921 + $0x48] sm:$0xff]
        %v1932 = vld [vmem:[%s1921 + $0x50] sm:$0xff]
        %v1933 = vld [vmem:[%s1921 + $0x58] sm:$0xff]
        %v1934 = vld [vmem:[%s1921 + $0x60] sm:$0xff]
        %v1935 = vld [vmem:[%s1921 + $0x68] sm:$0xff]
        %v1936 = vld [vmem:[%s1921 + $0x70] sm:$0xff]
        %v1937 = vld [vmem:[%s1921 + $0x78] sm:$0xff]
        %1938 = vmatpush.msra.mxu0 %v1937
        %1939 = vmatpush.msra.mxu0 %v1936
        %1940 = vmatpush.msra.mxu0 %v1935
        %1941 = vmatpush.msra.mxu0 %v1934
        %1942 = vmatpush.msra.mxu0 %v1933
        %1943 = vmatpush.msra.mxu0 %v1932
        %1944 = vmatpush.msra.mxu0 %v1931
        %1945 = vmatpush.msra.mxu0 %v1930
        %1946 = vmatpush.msra.mxu0 %v1929
        %1947 = vmatpush.msra.mxu0 %v1928
        %1948 = vmatpush.msra.mxu0 %v1927
        %1949 = vmatpush.msra.mxu0 %v1926
        %1950 = vmatpush.msra.mxu0 %v1925
        %1951 = vmatpush.msra.mxu0 %v1924
        %1952 = vmatpush.msra.mxu0 %v1923
        %1953 = vmatpush.msra.mxu0 %v1922
        %1954 = vmatmul.f32.gmra.mxu0 %v1857
        %v1955 = vpop.f32.mrf.mxu0
        %v1956 = vadd.f32 0.0, %v1955
        %1957 = vmatmul.f32.gmra.mxu0 %v1858
        %v1958 = vpop.f32.mrf.mxu0
        %v1959 = vadd.f32 0.0, %v1958
        %1960 = vmatmul.f32.gmra.mxu0 %v1859
        %v1961 = vpop.f32.mrf.mxu0
        %v1962 = vadd.f32 0.0, %v1961
        %1963 = vmatmul.f32.gmra.mxu0 %v1860
        %v1964 = vpop.f32.mrf.mxu0
        %v1965 = vadd.f32 0.0, %v1964
        %1966 = vmatmul.f32.gmra.mxu0 %v1861
        %v1967 = vpop.f32.mrf.mxu0
        %v1968 = vadd.f32 0.0, %v1967
        %1969 = vmatmul.f32.gmra.mxu0 %v1862
        %v1970 = vpop.f32.mrf.mxu0
        %v1971 = vadd.f32 0.0, %v1970
        %1972 = vmatmul.f32.gmra.mxu0 %v1863
        %v1973 = vpop.f32.mrf.mxu0
        %v1974 = vadd.f32 0.0, %v1973
        %1975 = vmatmul.f32.gmra.mxu0 %v1864
        %v1976 = vpop.f32.mrf.mxu0
        %v1977 = vadd.f32 0.0, %v1976
        %1978 = vmatmul.f32.gmra.mxu0 %v1865
        %v1979 = vpop.f32.mrf.mxu0
        %v1980 = vadd.f32 0.0, %v1979
        %1981 = vmatmul.f32.gmra.mxu0 %v1866
        %v1982 = vpop.f32.mrf.mxu0
        %v1983 = vadd.f32 0.0, %v1982
        %1984 = vmatmul.f32.gmra.mxu0 %v1867
        %v1985 = vpop.f32.mrf.mxu0
        %v1986 = vadd.f32 0.0, %v1985
        %1987 = vmatmul.f32.gmra.mxu0 %v1868
        %v1988 = vpop.f32.mrf.mxu0
        %v1989 = vadd.f32 0.0, %v1988
        %1990 = vmatmul.f32.gmra.mxu0 %v1869
        %v1991 = vpop.f32.mrf.mxu0
        %v1992 = vadd.f32 0.0, %v1991
        %1993 = vmatmul.f32.gmra.mxu0 %v1870
        %v1994 = vpop.f32.mrf.mxu0
        %v1995 = vadd.f32 0.0, %v1994
        %1996 = vmatmul.f32.gmra.mxu0 %v1871
        %v1997 = vpop.f32.mrf.mxu0
        %v1998 = vadd.f32 0.0, %v1997
        %1999 = vmatmul.f32.gmra.mxu0 %v1872
        %v2000 = vpop.f32.mrf.mxu0
        %v2001 = vadd.f32 0.0, %v2000
        %2002 = vmatmul.f32.gmra.mxu0 %v1873
        %v2003 = vpop.f32.mrf.mxu0
        %v2004 = vadd.f32 0.0, %v2003
        %2005 = vmatmul.f32.gmra.mxu0 %v1874
        %v2006 = vpop.f32.mrf.mxu0
        %v2007 = vadd.f32 0.0, %v2006
        %2008 = vmatmul.f32.gmra.mxu0 %v1875
        %v2009 = vpop.f32.mrf.mxu0
        %v2010 = vadd.f32 0.0, %v2009
        %2011 = vmatmul.f32.gmra.mxu0 %v1876
        %v2012 = vpop.f32.mrf.mxu0
        %v2013 = vadd.f32 0.0, %v2012
        %2014 = vmatmul.f32.gmra.mxu0 %v1877
        %v2015 = vpop.f32.mrf.mxu0
        %v2016 = vadd.f32 0.0, %v2015
        %2017 = vmatmul.f32.gmra.mxu0 %v1878
        %v2018 = vpop.f32.mrf.mxu0
        %v2019 = vadd.f32 0.0, %v2018
        %2020 = vmatmul.f32.gmra.mxu0 %v1879
        %v2021 = vpop.f32.mrf.mxu0
        %v2022 = vadd.f32 0.0, %v2021
        %2023 = vmatmul.f32.gmra.mxu0 %v1880
        %v2024 = vpop.f32.mrf.mxu0
        %v2025 = vadd.f32 0.0, %v2024
        %2026 = vmatmul.f32.gmra.mxu0 %v1881
        %v2027 = vpop.f32.mrf.mxu0
        %v2028 = vadd.f32 0.0, %v2027
        %2029 = vmatmul.f32.gmra.mxu0 %v1882
        %v2030 = vpop.f32.mrf.mxu0
        %v2031 = vadd.f32 0.0, %v2030
        %2032 = vmatmul.f32.gmra.mxu0 %v1883
        %v2033 = vpop.f32.mrf.mxu0
        %v2034 = vadd.f32 0.0, %v2033
        %2035 = vmatmul.f32.gmra.mxu0 %v1884
        %v2036 = vpop.f32.mrf.mxu0
        %v2037 = vadd.f32 0.0, %v2036
        %2038 = vmatmul.f32.gmra.mxu0 %v1885
        %v2039 = vpop.f32.mrf.mxu0
        %v2040 = vadd.f32 0.0, %v2039
        %2041 = vmatmul.f32.gmra.mxu0 %v1886
        %v2042 = vpop.f32.mrf.mxu0
        %v2043 = vadd.f32 0.0, %v2042
        %2044 = vmatmul.f32.gmra.mxu0 %v1887
        %v2045 = vpop.f32.mrf.mxu0
        %v2046 = vadd.f32 0.0, %v2045
        %2047 = vmatmul.f32.gmra.mxu0 %v1888
        %v2048 = vpop.f32.mrf.mxu0
        %v2049 = vadd.f32 0.0, %v2048
        %2050 = vmatmul.f32.gmra.mxu0 %v1889
        %v2051 = vpop.f32.mrf.mxu0
        %v2052 = vadd.f32 0.0, %v2051
        %2053 = vmatmul.f32.gmra.mxu0 %v1890
        %v2054 = vpop.f32.mrf.mxu0
        %v2055 = vadd.f32 0.0, %v2054
        %2056 = vmatmul.f32.gmra.mxu0 %v1891
        %v2057 = vpop.f32.mrf.mxu0
        %v2058 = vadd.f32 0.0, %v2057
        %2059 = vmatmul.f32.gmra.mxu0 %v1892
        %v2060 = vpop.f32.mrf.mxu0
        %v2061 = vadd.f32 0.0, %v2060
        %2062 = vmatmul.f32.gmra.mxu0 %v1893
        %v2063 = vpop.f32.mrf.mxu0
        %v2064 = vadd.f32 0.0, %v2063
        %2065 = vmatmul.f32.gmra.mxu0 %v1894
        %v2066 = vpop.f32.mrf.mxu0
        %v2067 = vadd.f32 0.0, %v2066
        %2068 = vmatmul.f32.gmra.mxu0 %v1895
        %v2069 = vpop.f32.mrf.mxu0
        %v2070 = vadd.f32 0.0, %v2069
        %2071 = vmatmul.f32.gmra.mxu0 %v1896
        %v2072 = vpop.f32.mrf.mxu0
        %v2073 = vadd.f32 0.0, %v2072
        %2074 = vmatmul.f32.gmra.mxu0 %v1897
        %v2075 = vpop.f32.mrf.mxu0
        %v2076 = vadd.f32 0.0, %v2075
        %2077 = vmatmul.f32.gmra.mxu0 %v1898
        %v2078 = vpop.f32.mrf.mxu0
        %v2079 = vadd.f32 0.0, %v2078
        %2080 = vmatmul.f32.gmra.mxu0 %v1899
        %v2081 = vpop.f32.mrf.mxu0
        %v2082 = vadd.f32 0.0, %v2081
        %2083 = vmatmul.f32.gmra.mxu0 %v1900
        %v2084 = vpop.f32.mrf.mxu0
        %v2085 = vadd.f32 0.0, %v2084
        %2086 = vmatmul.f32.gmra.mxu0 %v1901
        %v2087 = vpop.f32.mrf.mxu0
        %v2088 = vadd.f32 0.0, %v2087
        %2089 = vmatmul.f32.gmra.mxu0 %v1902
        %v2090 = vpop.f32.mrf.mxu0
        %v2091 = vadd.f32 0.0, %v2090
        %2092 = vmatmul.f32.gmra.mxu0 %v1903
        %v2093 = vpop.f32.mrf.mxu0
        %v2094 = vadd.f32 0.0, %v2093
        %2095 = vmatmul.f32.gmra.mxu0 %v1904
        %v2096 = vpop.f32.mrf.mxu0
        %v2097 = vadd.f32 0.0, %v2096
        %2098 = vmatmul.f32.gmra.mxu0 %v1905
        %v2099 = vpop.f32.mrf.mxu0
        %v2100 = vadd.f32 0.0, %v2099
        %2101 = vmatmul.f32.gmra.mxu0 %v1906
        %v2102 = vpop.f32.mrf.mxu0
        %v2103 = vadd.f32 0.0, %v2102
        %2104 = vmatmul.f32.gmra.mxu0 %v1907
        %v2105 = vpop.f32.mrf.mxu0
        %v2106 = vadd.f32 0.0, %v2105
        %2107 = vmatmul.f32.gmra.mxu0 %v1908
        %v2108 = vpop.f32.mrf.mxu0
        %v2109 = vadd.f32 0.0, %v2108
        %2110 = vmatmul.f32.gmra.mxu0 %v1909
        %v2111 = vpop.f32.mrf.mxu0
        %v2112 = vadd.f32 0.0, %v2111
        %2113 = vmatmul.f32.gmra.mxu0 %v1910
        %v2114 = vpop.f32.mrf.mxu0
        %v2115 = vadd.f32 0.0, %v2114
        %2116 = vmatmul.f32.gmra.mxu0 %v1911
        %v2117 = vpop.f32.mrf.mxu0
        %v2118 = vadd.f32 0.0, %v2117
        %2119 = vmatmul.f32.gmra.mxu0 %v1912
        %v2120 = vpop.f32.mrf.mxu0
        %v2121 = vadd.f32 0.0, %v2120
        %2122 = vmatmul.f32.gmra.mxu0 %v1913
        %v2123 = vpop.f32.mrf.mxu0
        %v2124 = vadd.f32 0.0, %v2123
        %2125 = vmatmul.f32.gmra.mxu0 %v1914
        %v2126 = vpop.f32.mrf.mxu0
        %v2127 = vadd.f32 0.0, %v2126
        %2128 = vmatmul.f32.gmra.mxu0 %v1915
        %v2129 = vpop.f32.mrf.mxu0
        %v2130 = vadd.f32 0.0, %v2129
        %2131 = vmatmul.f32.gmra.mxu0 %v1916
        %v2132 = vpop.f32.mrf.mxu0
        %v2133 = vadd.f32 0.0, %v2132
        %2134 = vmatmul.f32.gmra.mxu0 %v1917
        %v2135 = vpop.f32.mrf.mxu0
        %v2136 = vadd.f32 0.0, %v2135
        %2137 = vmatmul.f32.gmra.mxu0 %v1918
        %v2138 = vpop.f32.mrf.mxu0
        %v2139 = vadd.f32 0.0, %v2138
        %2140 = vmatmul.f32.gmra.mxu0 %v1919
        %v2141 = vpop.f32.mrf.mxu0
        %v2142 = vadd.f32 0.0, %v2141
        %2143 = vmatmul.f32.gmra.mxu0 %v1920
        %v2144 = vpop.f32.mrf.mxu0
        %v2145 = vadd.f32 0.0, %v2144
        %2146 = vdwg.mxu0
        %2147 = vset.pattern.permute.xlu0 1
        %2148 = vperm.xlu0 %2147, %v1345
        %v2149 = vpop.permute.xlu0 %2148
        %2151 = vset.pattern.permute.xlu0 1
        %2152 = vperm.xlu0 %2151, %v1346
        %v2153 = vpop.permute.xlu0 %2152
        %2155 = vset.pattern.permute.xlu0 1
        %2156 = vperm.xlu0 %2155, %v1347
        %v2157 = vpop.permute.xlu0 %2156
        %2159 = vset.pattern.permute.xlu0 1
        %2160 = vperm.xlu0 %2159, %v1348
        %v2161 = vpop.permute.xlu0 %2160
        %2163 = vset.pattern.permute.xlu0 1
        %2164 = vperm.xlu0 %2163, %v1349
        %v2165 = vpop.permute.xlu0 %2164
        %2167 = vset.pattern.permute.xlu0 1
        %2168 = vperm.xlu0 %2167, %v1350
        %v2169 = vpop.permute.xlu0 %2168
        %2171 = vset.pattern.permute.xlu0 1
        %2172 = vperm.xlu0 %2171, %v1351
        %v2173 = vpop.permute.xlu0 %2172
        %2175 = vset.pattern.permute.xlu0 1
        %2176 = vperm.xlu0 %2175, %v1352
        %v2177 = vpop.permute.xlu0 %2176
        %2179 = vset.pattern.permute.xlu0 1
        %2180 = vperm.xlu0 %2179, %v1353
        %v2181 = vpop.permute.xlu0 %2180
        %2183 = vset.pattern.permute.xlu0 1
        %2184 = vperm.xlu0 %2183, %v1354
        %v2185 = vpop.permute.xlu0 %2184
        %2187 = vset.pattern.permute.xlu0 1
        %2188 = vperm.xlu0 %2187, %v1355
        %v2189 = vpop.permute.xlu0 %2188
        %2191 = vset.pattern.permute.xlu0 1
        %2192 = vperm.xlu0 %2191, %v1356
        %v2193 = vpop.permute.xlu0 %2192
        %2195 = vset.pattern.permute.xlu0 1
        %2196 = vperm.xlu0 %2195, %v1357
        %v2197 = vpop.permute.xlu0 %2196
        %2199 = vset.pattern.permute.xlu0 1
        %2200 = vperm.xlu0 %2199, %v1358
        %v2201 = vpop.permute.xlu0 %2200
        %2203 = vset.pattern.permute.xlu0 1
        %2204 = vperm.xlu0 %2203, %v1359
        %v2205 = vpop.permute.xlu0 %2204
        %2207 = vset.pattern.permute.xlu0 1
        %2208 = vperm.xlu0 %2207, %v1360
        %v2209 = vpop.permute.xlu0 %2208
        %2211 = vset.pattern.permute.xlu0 1
        %2212 = vperm.xlu0 %2211, %v1361
        %v2213 = vpop.permute.xlu0 %2212
        %2215 = vset.pattern.permute.xlu0 1
        %2216 = vperm.xlu0 %2215, %v1362
        %v2217 = vpop.permute.xlu0 %2216
        %2219 = vset.pattern.permute.xlu0 1
        %2220 = vperm.xlu0 %2219, %v1363
        %v2221 = vpop.permute.xlu0 %2220
        %2223 = vset.pattern.permute.xlu0 1
        %2224 = vperm.xlu0 %2223, %v1364
        %v2225 = vpop.permute.xlu0 %2224
        %2227 = vset.pattern.permute.xlu0 1
        %2228 = vperm.xlu0 %2227, %v1365
        %v2229 = vpop.permute.xlu0 %2228
        %2231 = vset.pattern.permute.xlu0 1
        %2232 = vperm.xlu0 %2231, %v1366
        %v2233 = vpop.permute.xlu0 %2232
        %2235 = vset.pattern.permute.xlu0 1
        %2236 = vperm.xlu0 %2235, %v1367
        %v2237 = vpop.permute.xlu0 %2236
        %2239 = vset.pattern.permute.xlu0 1
        %2240 = vperm.xlu0 %2239, %v1368
        %v2241 = vpop.permute.xlu0 %2240
        %2243 = vset.pattern.permute.xlu0 1
        %2244 = vperm.xlu0 %2243, %v1369
        %v2245 = vpop.permute.xlu0 %2244
        %2247 = vset.pattern.permute.xlu0 1
        %2248 = vperm.xlu0 %2247, %v1370
        %v2249 = vpop.permute.xlu0 %2248
        %2251 = vset.pattern.permute.xlu0 1
        %2252 = vperm.xlu0 %2251, %v1371
        %v2253 = vpop.permute.xlu0 %2252
        %2255 = vset.pattern.permute.xlu0 1
        %2256 = vperm.xlu0 %2255, %v1372
        %v2257 = vpop.permute.xlu0 %2256
        %2259 = vset.pattern.permute.xlu0 1
        %2260 = vperm.xlu0 %2259, %v1373
        %v2261 = vpop.permute.xlu0 %2260
        %2263 = vset.pattern.permute.xlu0 1
        %2264 = vperm.xlu0 %2263, %v1374
        %v2265 = vpop.permute.xlu0 %2264
        %2267 = vset.pattern.permute.xlu0 1
        %2268 = vperm.xlu0 %2267, %v1375
        %v2269 = vpop.permute.xlu0 %2268
        %2271 = vset.pattern.permute.xlu0 1
        %2272 = vperm.xlu0 %2271, %v1376
        %v2273 = vpop.permute.xlu0 %2272
        %2275 = vset.pattern.permute.xlu0 1
        %2276 = vperm.xlu0 %2275, %v1377
        %v2277 = vpop.permute.xlu0 %2276
        %2279 = vset.pattern.permute.xlu0 1
        %2280 = vperm.xlu0 %2279, %v1378
        %v2281 = vpop.permute.xlu0 %2280
        %2283 = vset.pattern.permute.xlu0 1
        %2284 = vperm.xlu0 %2283, %v1379
        %v2285 = vpop.permute.xlu0 %2284
        %2287 = vset.pattern.permute.xlu0 1
        %2288 = vperm.xlu0 %2287, %v1380
        %v2289 = vpop.permute.xlu0 %2288
        %2291 = vset.pattern.permute.xlu0 1
        %2292 = vperm.xlu0 %2291, %v1381
        %v2293 = vpop.permute.xlu0 %2292
        %2295 = vset.pattern.permute.xlu0 1
        %2296 = vperm.xlu0 %2295, %v1382
        %v2297 = vpop.permute.xlu0 %2296
        %2299 = vset.pattern.permute.xlu0 1
        %2300 = vperm.xlu0 %2299, %v1383
        %v2301 = vpop.permute.xlu0 %2300
        %2303 = vset.pattern.permute.xlu0 1
        %2304 = vperm.xlu0 %2303, %v1384
        %v2305 = vpop.permute.xlu0 %2304
        %2307 = vset.pattern.permute.xlu0 1
        %2308 = vperm.xlu0 %2307, %v1385
        %v2309 = vpop.permute.xlu0 %2308
        %2311 = vset.pattern.permute.xlu0 1
        %2312 = vperm.xlu0 %2311, %v1386
        %v2313 = vpop.permute.xlu0 %2312
        %2315 = vset.pattern.permute.xlu0 1
        %2316 = vperm.xlu0 %2315, %v1387
        %v2317 = vpop.permute.xlu0 %2316
        %2319 = vset.pattern.permute.xlu0 1
        %2320 = vperm.xlu0 %2319, %v1388
        %v2321 = vpop.permute.xlu0 %2320
        %2323 = vset.pattern.permute.xlu0 1
        %2324 = vperm.xlu0 %2323, %v1389
        %v2325 = vpop.permute.xlu0 %2324
        %2327 = vset.pattern.permute.xlu0 1
        %2328 = vperm.xlu0 %2327, %v1390
        %v2329 = vpop.permute.xlu0 %2328
        %2331 = vset.pattern.permute.xlu0 1
        %2332 = vperm.xlu0 %2331, %v1391
        %v2333 = vpop.permute.xlu0 %2332
        %2335 = vset.pattern.permute.xlu0 1
        %2336 = vperm.xlu0 %2335, %v1392
        %v2337 = vpop.permute.xlu0 %2336
        %2339 = vset.pattern.permute.xlu0 1
        %2340 = vperm.xlu0 %2339, %v1393
        %v2341 = vpop.permute.xlu0 %2340
        %2343 = vset.pattern.permute.xlu0 1
        %2344 = vperm.xlu0 %2343, %v1394
        %v2345 = vpop.permute.xlu0 %2344
        %2347 = vset.pattern.permute.xlu0 1
        %2348 = vperm.xlu0 %2347, %v1395
        %v2349 = vpop.permute.xlu0 %2348
        %2351 = vset.pattern.permute.xlu0 1
        %2352 = vperm.xlu0 %2351, %v1396
        %v2353 = vpop.permute.xlu0 %2352
        %2355 = vset.pattern.permute.xlu0 1
        %2356 = vperm.xlu0 %2355, %v1397
        %v2357 = vpop.permute.xlu0 %2356
        %2359 = vset.pattern.permute.xlu0 1
        %2360 = vperm.xlu0 %2359, %v1398
        %v2361 = vpop.permute.xlu0 %2360
        %2363 = vset.pattern.permute.xlu0 1
        %2364 = vperm.xlu0 %2363, %v1399
        %v2365 = vpop.permute.xlu0 %2364
        %2367 = vset.pattern.permute.xlu0 1
        %2368 = vperm.xlu0 %2367, %v1400
        %v2369 = vpop.permute.xlu0 %2368
        %2371 = vset.pattern.permute.xlu0 1
        %2372 = vperm.xlu0 %2371, %v1401
        %v2373 = vpop.permute.xlu0 %2372
        %2375 = vset.pattern.permute.xlu0 1
        %2376 = vperm.xlu0 %2375, %v1402
        %v2377 = vpop.permute.xlu0 %2376
        %2379 = vset.pattern.permute.xlu0 1
        %2380 = vperm.xlu0 %2379, %v1403
        %v2381 = vpop.permute.xlu0 %2380
        %2383 = vset.pattern.permute.xlu0 1
        %2384 = vperm.xlu0 %2383, %v1404
        %v2385 = vpop.permute.xlu0 %2384
        %2387 = vset.pattern.permute.xlu0 1
        %2388 = vperm.xlu0 %2387, %v1405
        %v2389 = vpop.permute.xlu0 %2388
        %2391 = vset.pattern.permute.xlu0 1
        %2392 = vperm.xlu0 %2391, %v1406
        %v2393 = vpop.permute.xlu0 %2392
        %2395 = vset.pattern.permute.xlu0 1
        %2396 = vperm.xlu0 %2395, %v1407
        %v2397 = vpop.permute.xlu0 %2396
        %2399 = vset.pattern.permute.xlu0 1
        %2400 = vperm.xlu0 %2399, %v1408
        %v2401 = vpop.permute.xlu0 %2400
        %v2403 = vmul.f32 %v2149, %v1956
        %v2404 = vmul.f32 %v2153, %v1959
        %v2405 = vmul.f32 %v2157, %v1962
        %v2406 = vmul.f32 %v2161, %v1965
        %v2407 = vmul.f32 %v2165, %v1968
        %v2408 = vmul.f32 %v2169, %v1971
        %v2409 = vmul.f32 %v2173, %v1974
        %v2410 = vmul.f32 %v2177, %v1977
        %v2411 = vmul.f32 %v2181, %v1980
        %v2412 = vmul.f32 %v2185, %v1983
        %v2413 = vmul.f32 %v2189, %v1986
        %v2414 = vmul.f32 %v2193, %v1989
        %v2415 = vmul.f32 %v2197, %v1992
        %v2416 = vmul.f32 %v2201, %v1995
        %v2417 = vmul.f32 %v2205, %v1998
        %v2418 = vmul.f32 %v2209, %v2001
        %v2419 = vmul.f32 %v2213, %v2004
        %v2420 = vmul.f32 %v2217, %v2007
        %v2421 = vmul.f32 %v2221, %v2010
        %v2422 = vmul.f32 %v2225, %v2013
        %v2423 = vmul.f32 %v2229, %v2016
        %v2424 = vmul.f32 %v2233, %v2019
        %v2425 = vmul.f32 %v2237, %v2022
        %v2426 = vmul.f32 %v2241, %v2025
        %v2427 = vmul.f32 %v2245, %v2028
        %v2428 = vmul.f32 %v2249, %v2031
        %v2429 = vmul.f32 %v2253, %v2034
        %v2430 = vmul.f32 %v2257, %v2037
        %v2431 = vmul.f32 %v2261, %v2040
        %v2432 = vmul.f32 %v2265, %v2043
        %v2433 = vmul.f32 %v2269, %v2046
        %v2434 = vmul.f32 %v2273, %v2049
        %v2435 = vmul.f32 %v2277, %v2052
        %v2436 = vmul.f32 %v2281, %v2055
        %v2437 = vmul.f32 %v2285, %v2058
        %v2438 = vmul.f32 %v2289, %v2061
        %v2439 = vmul.f32 %v2293, %v2064
        %v2440 = vmul.f32 %v2297, %v2067
        %v2441 = vmul.f32 %v2301, %v2070
        %v2442 = vmul.f32 %v2305, %v2073
        %v2443 = vmul.f32 %v2309, %v2076
        %v2444 = vmul.f32 %v2313, %v2079
        %v2445 = vmul.f32 %v2317, %v2082
        %v2446 = vmul.f32 %v2321, %v2085
        %v2447 = vmul.f32 %v2325, %v2088
        %v2448 = vmul.f32 %v2329, %v2091
        %v2449 = vmul.f32 %v2333, %v2094
        %v2450 = vmul.f32 %v2337, %v2097
        %v2451 = vmul.f32 %v2341, %v2100
        %v2452 = vmul.f32 %v2345, %v2103
        %v2453 = vmul.f32 %v2349, %v2106
        %v2454 = vmul.f32 %v2353, %v2109
        %v2455 = vmul.f32 %v2357, %v2112
        %v2456 = vmul.f32 %v2361, %v2115
        %v2457 = vmul.f32 %v2365, %v2118
        %v2458 = vmul.f32 %v2369, %v2121
        %v2459 = vmul.f32 %v2373, %v2124
        %v2460 = vmul.f32 %v2377, %v2127
        %v2461 = vmul.f32 %v2381, %v2130
        %v2462 = vmul.f32 %v2385, %v2133
        %v2463 = vmul.f32 %v2389, %v2136
        %v2464 = vmul.f32 %v2393, %v2139
        %v2465 = vmul.f32 %v2397, %v2142
        %v2466 = vmul.f32 %v2401, %v2145
        %v2467 = vadd.f32 %v1793, %v2403
        %v2468 = vadd.f32 %v1794, %v2404
        %v2469 = vadd.f32 %v1795, %v2405
        %v2470 = vadd.f32 %v1796, %v2406
        %v2471 = vadd.f32 %v1797, %v2407
        %v2472 = vadd.f32 %v1798, %v2408
        %v2473 = vadd.f32 %v1799, %v2409
        %v2474 = vadd.f32 %v1800, %v2410
        %v2475 = vadd.f32 %v1801, %v2411
        %v2476 = vadd.f32 %v1802, %v2412
        %v2477 = vadd.f32 %v1803, %v2413
        %v2478 = vadd.f32 %v1804, %v2414
        %v2479 = vadd.f32 %v1805, %v2415
        %v2480 = vadd.f32 %v1806, %v2416
        %v2481 = vadd.f32 %v1807, %v2417
        %v2482 = vadd.f32 %v1808, %v2418
        %v2483 = vadd.f32 %v1809, %v2419
        %v2484 = vadd.f32 %v1810, %v2420
        %v2485 = vadd.f32 %v1811, %v2421
        %v2486 = vadd.f32 %v1812, %v2422
        %v2487 = vadd.f32 %v1813, %v2423
        %v2488 = vadd.f32 %v1814, %v2424
        %v2489 = vadd.f32 %v1815, %v2425
        %v2490 = vadd.f32 %v1816, %v2426
        %v2491 = vadd.f32 %v1817, %v2427
        %v2492 = vadd.f32 %v1818, %v2428
        %v2493 = vadd.f32 %v1819, %v2429
        %v2494 = vadd.f32 %v1820, %v2430
        %v2495 = vadd.f32 %v1821, %v2431
        %v2496 = vadd.f32 %v1822, %v2432
        %v2497 = vadd.f32 %v1823, %v2433
        %v2498 = vadd.f32 %v1824, %v2434
        %v2499 = vadd.f32 %v1825, %v2435
        %v2500 = vadd.f32 %v1826, %v2436
        %v2501 = vadd.f32 %v1827, %v2437
        %v2502 = vadd.f32 %v1828, %v2438
        %v2503 = vadd.f32 %v1829, %v2439
        %v2504 = vadd.f32 %v1830, %v2440
        %v2505 = vadd.f32 %v1831, %v2441
        %v2506 = vadd.f32 %v1832, %v2442
        %v2507 = vadd.f32 %v1833, %v2443
        %v2508 = vadd.f32 %v1834, %v2444
        %v2509 = vadd.f32 %v1835, %v2445
        %v2510 = vadd.f32 %v1836, %v2446
        %v2511 = vadd.f32 %v1837, %v2447
        %v2512 = vadd.f32 %v1838, %v2448
        %v2513 = vadd.f32 %v1839, %v2449
        %v2514 = vadd.f32 %v1840, %v2450
        %v2515 = vadd.f32 %v1841, %v2451
        %v2516 = vadd.f32 %v1842, %v2452
        %v2517 = vadd.f32 %v1843, %v2453
        %v2518 = vadd.f32 %v1844, %v2454
        %v2519 = vadd.f32 %v1845, %v2455
        %v2520 = vadd.f32 %v1846, %v2456
        %v2521 = vadd.f32 %v1847, %v2457
        %v2522 = vadd.f32 %v1848, %v2458
        %v2523 = vadd.f32 %v1849, %v2459
        %v2524 = vadd.f32 %v1850, %v2460
        %v2525 = vadd.f32 %v1851, %v2461
        %v2526 = vadd.f32 %v1852, %v2462
        %v2527 = vadd.f32 %v1853, %v2463
        %v2528 = vadd.f32 %v1854, %v2464
        %v2529 = vadd.f32 %v1855, %v2465
        %v2530 = vadd.f32 %v1856, %v2466
        %v2531 = vld [vmem:[#allocation2 + $0x9] sm:$0xff]
        %v2532 = vld [vmem:[#allocation2 + $0x11] sm:$0xff]
        %v2533 = vld [vmem:[#allocation2 + $0x19] sm:$0xff]
        %v2534 = vld [vmem:[#allocation2 + $0x21] sm:$0xff]
        %v2535 = vld [vmem:[#allocation2 + $0x29] sm:$0xff]
        %v2536 = vld [vmem:[#allocation2 + $0x31] sm:$0xff]
        %v2537 = vld [vmem:[#allocation2 + $0x39] sm:$0xff]
        %v2538 = vld [vmem:[#allocation2 + $0x41] sm:$0xff]
        %v2539 = vld [vmem:[#allocation2 + $0x49] sm:$0xff]
        %v2540 = vld [vmem:[#allocation2 + $0x51] sm:$0xff]
        %v2541 = vld [vmem:[#allocation2 + $0x59] sm:$0xff]
        %v2542 = vld [vmem:[#allocation2 + $0x61] sm:$0xff]
        %v2543 = vld [vmem:[#allocation2 + $0x69] sm:$0xff]
        %v2544 = vld [vmem:[#allocation2 + $0x71] sm:$0xff]
        %v2545 = vld [vmem:[#allocation2 + $0x79] sm:$0xff]
        %v2546 = vld [vmem:[#allocation2 + $0x81] sm:$0xff]
        %v2547 = vld [vmem:[#allocation2 + $0x89] sm:$0xff]
        %v2548 = vld [vmem:[#allocation2 + $0x91] sm:$0xff]
        %v2549 = vld [vmem:[#allocation2 + $0x99] sm:$0xff]
        %v2550 = vld [vmem:[#allocation2 + $0xa1] sm:$0xff]
        %v2551 = vld [vmem:[#allocation2 + $0xa9] sm:$0xff]
        %v2552 = vld [vmem:[#allocation2 + $0xb1] sm:$0xff]
        %v2553 = vld [vmem:[#allocation2 + $0xb9] sm:$0xff]
        %v2554 = vld [vmem:[#allocation2 + $0xc1] sm:$0xff]
        %v2555 = vld [vmem:[#allocation2 + $0xc9] sm:$0xff]
        %v2556 = vld [vmem:[#allocation2 + $0xd1] sm:$0xff]
        %v2557 = vld [vmem:[#allocation2 + $0xd9] sm:$0xff]
        %v2558 = vld [vmem:[#allocation2 + $0xe1] sm:$0xff]
        %v2559 = vld [vmem:[#allocation2 + $0xe9] sm:$0xff]
        %v2560 = vld [vmem:[#allocation2 + $0xf1] sm:$0xff]
        %v2561 = vld [vmem:[#allocation2 + $0xf9] sm:$0xff]
        %v2562 = vld [vmem:[#allocation2 + $0x101] sm:$0xff]
        %v2563 = vld [vmem:[#allocation2 + $0x109] sm:$0xff]
        %v2564 = vld [vmem:[#allocation2 + $0x111] sm:$0xff]
        %v2565 = vld [vmem:[#allocation2 + $0x119] sm:$0xff]
        %v2566 = vld [vmem:[#allocation2 + $0x121] sm:$0xff]
        %v2567 = vld [vmem:[#allocation2 + $0x129] sm:$0xff]
        %v2568 = vld [vmem:[#allocation2 + $0x131] sm:$0xff]
        %v2569 = vld [vmem:[#allocation2 + $0x139] sm:$0xff]
        %v2570 = vld [vmem:[#allocation2 + $0x141] sm:$0xff]
        %v2571 = vld [vmem:[#allocation2 + $0x149] sm:$0xff]
        %v2572 = vld [vmem:[#allocation2 + $0x151] sm:$0xff]
        %v2573 = vld [vmem:[#allocation2 + $0x159] sm:$0xff]
        %v2574 = vld [vmem:[#allocation2 + $0x161] sm:$0xff]
        %v2575 = vld [vmem:[#allocation2 + $0x169] sm:$0xff]
        %v2576 = vld [vmem:[#allocation2 + $0x171] sm:$0xff]
        %v2577 = vld [vmem:[#allocation2 + $0x179] sm:$0xff]
        %v2578 = vld [vmem:[#allocation2 + $0x181] sm:$0xff]
        %v2579 = vld [vmem:[#allocation2 + $0x189] sm:$0xff]
        %v2580 = vld [vmem:[#allocation2 + $0x191] sm:$0xff]
        %v2581 = vld [vmem:[#allocation2 + $0x199] sm:$0xff]
        %v2582 = vld [vmem:[#allocation2 + $0x1a1] sm:$0xff]
        %v2583 = vld [vmem:[#allocation2 + $0x1a9] sm:$0xff]
        %v2584 = vld [vmem:[#allocation2 + $0x1b1] sm:$0xff]
        %v2585 = vld [vmem:[#allocation2 + $0x1b9] sm:$0xff]
        %v2586 = vld [vmem:[#allocation2 + $0x1c1] sm:$0xff]
        %v2587 = vld [vmem:[#allocation2 + $0x1c9] sm:$0xff]
        %v2588 = vld [vmem:[#allocation2 + $0x1d1] sm:$0xff]
        %v2589 = vld [vmem:[#allocation2 + $0x1d9] sm:$0xff]
        %v2590 = vld [vmem:[#allocation2 + $0x1e1] sm:$0xff]
        %v2591 = vld [vmem:[#allocation2 + $0x1e9] sm:$0xff]
        %v2592 = vld [vmem:[#allocation2 + $0x1f1] sm:$0xff]
        %v2593 = vld [vmem:[#allocation2 + $0x1f9] sm:$0xff]
        %v2594 = vld [vmem:[#allocation2 + $0x201] sm:$0xff]
        %s2595 = scalar_lea.vmem %s4, 256
        %v2596 = vld [vmem:[%s2595] sm:$0xff]
        %v2597 = vld [vmem:[%s2595 + $0x8] sm:$0xff]
        %v2598 = vld [vmem:[%s2595 + $0x10] sm:$0xff]
        %v2599 = vld [vmem:[%s2595 + $0x18] sm:$0xff]
        %v2600 = vld [vmem:[%s2595 + $0x20] sm:$0xff]
        %v2601 = vld [vmem:[%s2595 + $0x28] sm:$0xff]
        %v2602 = vld [vmem:[%s2595 + $0x30] sm:$0xff]
        %v2603 = vld [vmem:[%s2595 + $0x38] sm:$0xff]
        %v2604 = vld [vmem:[%s2595 + $0x40] sm:$0xff]
        %v2605 = vld [vmem:[%s2595 + $0x48] sm:$0xff]
        %v2606 = vld [vmem:[%s2595 + $0x50] sm:$0xff]
        %v2607 = vld [vmem:[%s2595 + $0x58] sm:$0xff]
        %v2608 = vld [vmem:[%s2595 + $0x60] sm:$0xff]
        %v2609 = vld [vmem:[%s2595 + $0x68] sm:$0xff]
        %v2610 = vld [vmem:[%s2595 + $0x70] sm:$0xff]
        %v2611 = vld [vmem:[%s2595 + $0x78] sm:$0xff]
        %2612 = vmatpush.msra.mxu0 %v2611
        %2613 = vmatpush.msra.mxu0 %v2610
        %2614 = vmatpush.msra.mxu0 %v2609
        %2615 = vmatpush.msra.mxu0 %v2608
        %2616 = vmatpush.msra.mxu0 %v2607
        %2617 = vmatpush.msra.mxu0 %v2606
        %2618 = vmatpush.msra.mxu0 %v2605
        %2619 = vmatpush.msra.mxu0 %v2604
        %2620 = vmatpush.msra.mxu0 %v2603
        %2621 = vmatpush.msra.mxu0 %v2602
        %2622 = vmatpush.msra.mxu0 %v2601
        %2623 = vmatpush.msra.mxu0 %v2600
        %2624 = vmatpush.msra.mxu0 %v2599
        %2625 = vmatpush.msra.mxu0 %v2598
        %2626 = vmatpush.msra.mxu0 %v2597
        %2627 = vmatpush.msra.mxu0 %v2596
        %2628 = vmatmul.f32.gmra.mxu0 %v2531
        %v2629 = vpop.f32.mrf.mxu0
        %v2630 = vadd.f32 0.0, %v2629
        %2631 = vmatmul.f32.gmra.mxu0 %v2532
        %v2632 = vpop.f32.mrf.mxu0
        %v2633 = vadd.f32 0.0, %v2632
        %2634 = vmatmul.f32.gmra.mxu0 %v2533
        %v2635 = vpop.f32.mrf.mxu0
        %v2636 = vadd.f32 0.0, %v2635
        %2637 = vmatmul.f32.gmra.mxu0 %v2534
        %v2638 = vpop.f32.mrf.mxu0
        %v2639 = vadd.f32 0.0, %v2638
        %2640 = vmatmul.f32.gmra.mxu0 %v2535
        %v2641 = vpop.f32.mrf.mxu0
        %v2642 = vadd.f32 0.0, %v2641
        %2643 = vmatmul.f32.gmra.mxu0 %v2536
        %v2644 = vpop.f32.mrf.mxu0
        %v2645 = vadd.f32 0.0, %v2644
        %2646 = vmatmul.f32.gmra.mxu0 %v2537
        %v2647 = vpop.f32.mrf.mxu0
        %v2648 = vadd.f32 0.0, %v2647
        %2649 = vmatmul.f32.gmra.mxu0 %v2538
        %v2650 = vpop.f32.mrf.mxu0
        %v2651 = vadd.f32 0.0, %v2650
        %2652 = vmatmul.f32.gmra.mxu0 %v2539
        %v2653 = vpop.f32.mrf.mxu0
        %v2654 = vadd.f32 0.0, %v2653
        %2655 = vmatmul.f32.gmra.mxu0 %v2540
        %v2656 = vpop.f32.mrf.mxu0
        %v2657 = vadd.f32 0.0, %v2656
        %2658 = vmatmul.f32.gmra.mxu0 %v2541
        %v2659 = vpop.f32.mrf.mxu0
        %v2660 = vadd.f32 0.0, %v2659
        %2661 = vmatmul.f32.gmra.mxu0 %v2542
        %v2662 = vpop.f32.mrf.mxu0
        %v2663 = vadd.f32 0.0, %v2662
        %2664 = vmatmul.f32.gmra.mxu0 %v2543
        %v2665 = vpop.f32.mrf.mxu0
        %v2666 = vadd.f32 0.0, %v2665
        %2667 = vmatmul.f32.gmra.mxu0 %v2544
        %v2668 = vpop.f32.mrf.mxu0
        %v2669 = vadd.f32 0.0, %v2668
        %2670 = vmatmul.f32.gmra.mxu0 %v2545
        %v2671 = vpop.f32.mrf.mxu0
        %v2672 = vadd.f32 0.0, %v2671
        %2673 = vmatmul.f32.gmra.mxu0 %v2546
        %v2674 = vpop.f32.mrf.mxu0
        %v2675 = vadd.f32 0.0, %v2674
        %2676 = vmatmul.f32.gmra.mxu0 %v2547
        %v2677 = vpop.f32.mrf.mxu0
        %v2678 = vadd.f32 0.0, %v2677
        %2679 = vmatmul.f32.gmra.mxu0 %v2548
        %v2680 = vpop.f32.mrf.mxu0
        %v2681 = vadd.f32 0.0, %v2680
        %2682 = vmatmul.f32.gmra.mxu0 %v2549
        %v2683 = vpop.f32.mrf.mxu0
        %v2684 = vadd.f32 0.0, %v2683
        %2685 = vmatmul.f32.gmra.mxu0 %v2550
        %v2686 = vpop.f32.mrf.mxu0
        %v2687 = vadd.f32 0.0, %v2686
        %2688 = vmatmul.f32.gmra.mxu0 %v2551
        %v2689 = vpop.f32.mrf.mxu0
        %v2690 = vadd.f32 0.0, %v2689
        %2691 = vmatmul.f32.gmra.mxu0 %v2552
        %v2692 = vpop.f32.mrf.mxu0
        %v2693 = vadd.f32 0.0, %v2692
        %2694 = vmatmul.f32.gmra.mxu0 %v2553
        %v2695 = vpop.f32.mrf.mxu0
        %v2696 = vadd.f32 0.0, %v2695
        %2697 = vmatmul.f32.gmra.mxu0 %v2554
        %v2698 = vpop.f32.mrf.mxu0
        %v2699 = vadd.f32 0.0, %v2698
        %2700 = vmatmul.f32.gmra.mxu0 %v2555
        %v2701 = vpop.f32.mrf.mxu0
        %v2702 = vadd.f32 0.0, %v2701
        %2703 = vmatmul.f32.gmra.mxu0 %v2556
        %v2704 = vpop.f32.mrf.mxu0
        %v2705 = vadd.f32 0.0, %v2704
        %2706 = vmatmul.f32.gmra.mxu0 %v2557
        %v2707 = vpop.f32.mrf.mxu0
        %v2708 = vadd.f32 0.0, %v2707
        %2709 = vmatmul.f32.gmra.mxu0 %v2558
        %v2710 = vpop.f32.mrf.mxu0
        %v2711 = vadd.f32 0.0, %v2710
        %2712 = vmatmul.f32.gmra.mxu0 %v2559
        %v2713 = vpop.f32.mrf.mxu0
        %v2714 = vadd.f32 0.0, %v2713
        %2715 = vmatmul.f32.gmra.mxu0 %v2560
        %v2716 = vpop.f32.mrf.mxu0
        %v2717 = vadd.f32 0.0, %v2716
        %2718 = vmatmul.f32.gmra.mxu0 %v2561
        %v2719 = vpop.f32.mrf.mxu0
        %v2720 = vadd.f32 0.0, %v2719
        %2721 = vmatmul.f32.gmra.mxu0 %v2562
        %v2722 = vpop.f32.mrf.mxu0
        %v2723 = vadd.f32 0.0, %v2722
        %2724 = vmatmul.f32.gmra.mxu0 %v2563
        %v2725 = vpop.f32.mrf.mxu0
        %v2726 = vadd.f32 0.0, %v2725
        %2727 = vmatmul.f32.gmra.mxu0 %v2564
        %v2728 = vpop.f32.mrf.mxu0
        %v2729 = vadd.f32 0.0, %v2728
        %2730 = vmatmul.f32.gmra.mxu0 %v2565
        %v2731 = vpop.f32.mrf.mxu0
        %v2732 = vadd.f32 0.0, %v2731
        %2733 = vmatmul.f32.gmra.mxu0 %v2566
        %v2734 = vpop.f32.mrf.mxu0
        %v2735 = vadd.f32 0.0, %v2734
        %2736 = vmatmul.f32.gmra.mxu0 %v2567
        %v2737 = vpop.f32.mrf.mxu0
        %v2738 = vadd.f32 0.0, %v2737
        %2739 = vmatmul.f32.gmra.mxu0 %v2568
        %v2740 = vpop.f32.mrf.mxu0
        %v2741 = vadd.f32 0.0, %v2740
        %2742 = vmatmul.f32.gmra.mxu0 %v2569
        %v2743 = vpop.f32.mrf.mxu0
        %v2744 = vadd.f32 0.0, %v2743
        %2745 = vmatmul.f32.gmra.mxu0 %v2570
        %v2746 = vpop.f32.mrf.mxu0
        %v2747 = vadd.f32 0.0, %v2746
        %2748 = vmatmul.f32.gmra.mxu0 %v2571
        %v2749 = vpop.f32.mrf.mxu0
        %v2750 = vadd.f32 0.0, %v2749
        %2751 = vmatmul.f32.gmra.mxu0 %v2572
        %v2752 = vpop.f32.mrf.mxu0
        %v2753 = vadd.f32 0.0, %v2752
        %2754 = vmatmul.f32.gmra.mxu0 %v2573
        %v2755 = vpop.f32.mrf.mxu0
        %v2756 = vadd.f32 0.0, %v2755
        %2757 = vmatmul.f32.gmra.mxu0 %v2574
        %v2758 = vpop.f32.mrf.mxu0
        %v2759 = vadd.f32 0.0, %v2758
        %2760 = vmatmul.f32.gmra.mxu0 %v2575
        %v2761 = vpop.f32.mrf.mxu0
        %v2762 = vadd.f32 0.0, %v2761
        %2763 = vmatmul.f32.gmra.mxu0 %v2576
        %v2764 = vpop.f32.mrf.mxu0
        %v2765 = vadd.f32 0.0, %v2764
        %2766 = vmatmul.f32.gmra.mxu0 %v2577
        %v2767 = vpop.f32.mrf.mxu0
        %v2768 = vadd.f32 0.0, %v2767
        %2769 = vmatmul.f32.gmra.mxu0 %v2578
        %v2770 = vpop.f32.mrf.mxu0
        %v2771 = vadd.f32 0.0, %v2770
        %2772 = vmatmul.f32.gmra.mxu0 %v2579
        %v2773 = vpop.f32.mrf.mxu0
        %v2774 = vadd.f32 0.0, %v2773
        %2775 = vmatmul.f32.gmra.mxu0 %v2580
        %v2776 = vpop.f32.mrf.mxu0
        %v2777 = vadd.f32 0.0, %v2776
        %2778 = vmatmul.f32.gmra.mxu0 %v2581
        %v2779 = vpop.f32.mrf.mxu0
        %v2780 = vadd.f32 0.0, %v2779
        %2781 = vmatmul.f32.gmra.mxu0 %v2582
        %v2782 = vpop.f32.mrf.mxu0
        %v2783 = vadd.f32 0.0, %v2782
        %2784 = vmatmul.f32.gmra.mxu0 %v2583
        %v2785 = vpop.f32.mrf.mxu0
        %v2786 = vadd.f32 0.0, %v2785
        %2787 = vmatmul.f32.gmra.mxu0 %v2584
        %v2788 = vpop.f32.mrf.mxu0
        %v2789 = vadd.f32 0.0, %v2788
        %2790 = vmatmul.f32.gmra.mxu0 %v2585
        %v2791 = vpop.f32.mrf.mxu0
        %v2792 = vadd.f32 0.0, %v2791
        %2793 = vmatmul.f32.gmra.mxu0 %v2586
        %v2794 = vpop.f32.mrf.mxu0
        %v2795 = vadd.f32 0.0, %v2794
        %2796 = vmatmul.f32.gmra.mxu0 %v2587
        %v2797 = vpop.f32.mrf.mxu0
        %v2798 = vadd.f32 0.0, %v2797
        %2799 = vmatmul.f32.gmra.mxu0 %v2588
        %v2800 = vpop.f32.mrf.mxu0
        %v2801 = vadd.f32 0.0, %v2800
        %2802 = vmatmul.f32.gmra.mxu0 %v2589
        %v2803 = vpop.f32.mrf.mxu0
        %v2804 = vadd.f32 0.0, %v2803
        %2805 = vmatmul.f32.gmra.mxu0 %v2590
        %v2806 = vpop.f32.mrf.mxu0
        %v2807 = vadd.f32 0.0, %v2806
        %2808 = vmatmul.f32.gmra.mxu0 %v2591
        %v2809 = vpop.f32.mrf.mxu0
        %v2810 = vadd.f32 0.0, %v2809
        %2811 = vmatmul.f32.gmra.mxu0 %v2592
        %v2812 = vpop.f32.mrf.mxu0
        %v2813 = vadd.f32 0.0, %v2812
        %2814 = vmatmul.f32.gmra.mxu0 %v2593
        %v2815 = vpop.f32.mrf.mxu0
        %v2816 = vadd.f32 0.0, %v2815
        %2817 = vmatmul.f32.gmra.mxu0 %v2594
        %v2818 = vpop.f32.mrf.mxu0
        %v2819 = vadd.f32 0.0, %v2818
        %2820 = vdwg.mxu0
        %2821 = vset.pattern.permute.xlu0 2
        %2822 = vperm.xlu0 %2821, %v1345
        %v2823 = vpop.permute.xlu0 %2822
        %2825 = vset.pattern.permute.xlu0 2
        %2826 = vperm.xlu0 %2825, %v1346
        %v2827 = vpop.permute.xlu0 %2826
        %2829 = vset.pattern.permute.xlu0 2
        %2830 = vperm.xlu0 %2829, %v1347
        %v2831 = vpop.permute.xlu0 %2830
        %2833 = vset.pattern.permute.xlu0 2
        %2834 = vperm.xlu0 %2833, %v1348
        %v2835 = vpop.permute.xlu0 %2834
        %2837 = vset.pattern.permute.xlu0 2
        %2838 = vperm.xlu0 %2837, %v1349
        %v2839 = vpop.permute.xlu0 %2838
        %2841 = vset.pattern.permute.xlu0 2
        %2842 = vperm.xlu0 %2841, %v1350
        %v2843 = vpop.permute.xlu0 %2842
        %2845 = vset.pattern.permute.xlu0 2
        %2846 = vperm.xlu0 %2845, %v1351
        %v2847 = vpop.permute.xlu0 %2846
        %2849 = vset.pattern.permute.xlu0 2
        %2850 = vperm.xlu0 %2849, %v1352
        %v2851 = vpop.permute.xlu0 %2850
        %2853 = vset.pattern.permute.xlu0 2
        %2854 = vperm.xlu0 %2853, %v1353
        %v2855 = vpop.permute.xlu0 %2854
        %2857 = vset.pattern.permute.xlu0 2
        %2858 = vperm.xlu0 %2857, %v1354
        %v2859 = vpop.permute.xlu0 %2858
        %2861 = vset.pattern.permute.xlu0 2
        %2862 = vperm.xlu0 %2861, %v1355
        %v2863 = vpop.permute.xlu0 %2862
        %2865 = vset.pattern.permute.xlu0 2
        %2866 = vperm.xlu0 %2865, %v1356
        %v2867 = vpop.permute.xlu0 %2866
        %2869 = vset.pattern.permute.xlu0 2
        %2870 = vperm.xlu0 %2869, %v1357
        %v2871 = vpop.permute.xlu0 %2870
        %2873 = vset.pattern.permute.xlu0 2
        %2874 = vperm.xlu0 %2873, %v1358
        %v2875 = vpop.permute.xlu0 %2874
        %2877 = vset.pattern.permute.xlu0 2
        %2878 = vperm.xlu0 %2877, %v1359
        %v2879 = vpop.permute.xlu0 %2878
        %2881 = vset.pattern.permute.xlu0 2
        %2882 = vperm.xlu0 %2881, %v1360
        %v2883 = vpop.permute.xlu0 %2882
        %2885 = vset.pattern.permute.xlu0 2
        %2886 = vperm.xlu0 %2885, %v1361
        %v2887 = vpop.permute.xlu0 %2886
        %2889 = vset.pattern.permute.xlu0 2
        %2890 = vperm.xlu0 %2889, %v1362
        %v2891 = vpop.permute.xlu0 %2890
        %2893 = vset.pattern.permute.xlu0 2
        %2894 = vperm.xlu0 %2893, %v1363
        %v2895 = vpop.permute.xlu0 %2894
        %2897 = vset.pattern.permute.xlu0 2
        %2898 = vperm.xlu0 %2897, %v1364
        %v2899 = vpop.permute.xlu0 %2898
        %2901 = vset.pattern.permute.xlu0 2
        %2902 = vperm.xlu0 %2901, %v1365
        %v2903 = vpop.permute.xlu0 %2902
        %2905 = vset.pattern.permute.xlu0 2
        %2906 = vperm.xlu0 %2905, %v1366
        %v2907 = vpop.permute.xlu0 %2906
        %2909 = vset.pattern.permute.xlu0 2
        %2910 = vperm.xlu0 %2909, %v1367
        %v2911 = vpop.permute.xlu0 %2910
        %2913 = vset.pattern.permute.xlu0 2
        %2914 = vperm.xlu0 %2913, %v1368
        %v2915 = vpop.permute.xlu0 %2914
        %2917 = vset.pattern.permute.xlu0 2
        %2918 = vperm.xlu0 %2917, %v1369
        %v2919 = vpop.permute.xlu0 %2918
        %2921 = vset.pattern.permute.xlu0 2
        %2922 = vperm.xlu0 %2921, %v1370
        %v2923 = vpop.permute.xlu0 %2922
        %2925 = vset.pattern.permute.xlu0 2
        %2926 = vperm.xlu0 %2925, %v1371
        %v2927 = vpop.permute.xlu0 %2926
        %2929 = vset.pattern.permute.xlu0 2
        %2930 = vperm.xlu0 %2929, %v1372
        %v2931 = vpop.permute.xlu0 %2930
        %2933 = vset.pattern.permute.xlu0 2
        %2934 = vperm.xlu0 %2933, %v1373
        %v2935 = vpop.permute.xlu0 %2934
        %2937 = vset.pattern.permute.xlu0 2
        %2938 = vperm.xlu0 %2937, %v1374
        %v2939 = vpop.permute.xlu0 %2938
        %2941 = vset.pattern.permute.xlu0 2
        %2942 = vperm.xlu0 %2941, %v1375
        %v2943 = vpop.permute.xlu0 %2942
        %2945 = vset.pattern.permute.xlu0 2
        %2946 = vperm.xlu0 %2945, %v1376
        %v2947 = vpop.permute.xlu0 %2946
        %2949 = vset.pattern.permute.xlu0 2
        %2950 = vperm.xlu0 %2949, %v1377
        %v2951 = vpop.permute.xlu0 %2950
        %2953 = vset.pattern.permute.xlu0 2
        %2954 = vperm.xlu0 %2953, %v1378
        %v2955 = vpop.permute.xlu0 %2954
        %2957 = vset.pattern.permute.xlu0 2
        %2958 = vperm.xlu0 %2957, %v1379
        %v2959 = vpop.permute.xlu0 %2958
        %2961 = vset.pattern.permute.xlu0 2
        %2962 = vperm.xlu0 %2961, %v1380
        %v2963 = vpop.permute.xlu0 %2962
        %2965 = vset.pattern.permute.xlu0 2
        %2966 = vperm.xlu0 %2965, %v1381
        %v2967 = vpop.permute.xlu0 %2966
        %2969 = vset.pattern.permute.xlu0 2
        %2970 = vperm.xlu0 %2969, %v1382
        %v2971 = vpop.permute.xlu0 %2970
        %2973 = vset.pattern.permute.xlu0 2
        %2974 = vperm.xlu0 %2973, %v1383
        %v2975 = vpop.permute.xlu0 %2974
        %2977 = vset.pattern.permute.xlu0 2
        %2978 = vperm.xlu0 %2977, %v1384
        %v2979 = vpop.permute.xlu0 %2978
        %2981 = vset.pattern.permute.xlu0 2
        %2982 = vperm.xlu0 %2981, %v1385
        %v2983 = vpop.permute.xlu0 %2982
        %2985 = vset.pattern.permute.xlu0 2
        %2986 = vperm.xlu0 %2985, %v1386
        %v2987 = vpop.permute.xlu0 %2986
        %2989 = vset.pattern.permute.xlu0 2
        %2990 = vperm.xlu0 %2989, %v1387
        %v2991 = vpop.permute.xlu0 %2990
        %2993 = vset.pattern.permute.xlu0 2
        %2994 = vperm.xlu0 %2993, %v1388
        %v2995 = vpop.permute.xlu0 %2994
        %2997 = vset.pattern.permute.xlu0 2
        %2998 = vperm.xlu0 %2997, %v1389
        %v2999 = vpop.permute.xlu0 %2998
        %3001 = vset.pattern.permute.xlu0 2
        %3002 = vperm.xlu0 %3001, %v1390
        %v3003 = vpop.permute.xlu0 %3002
        %3005 = vset.pattern.permute.xlu0 2
        %3006 = vperm.xlu0 %3005, %v1391
        %v3007 = vpop.permute.xlu0 %3006
        %3009 = vset.pattern.permute.xlu0 2
        %3010 = vperm.xlu0 %3009, %v1392
        %v3011 = vpop.permute.xlu0 %3010
        %3013 = vset.pattern.permute.xlu0 2
        %3014 = vperm.xlu0 %3013, %v1393
        %v3015 = vpop.permute.xlu0 %3014
        %3017 = vset.pattern.permute.xlu0 2
        %3018 = vperm.xlu0 %3017, %v1394
        %v3019 = vpop.permute.xlu0 %3018
        %3021 = vset.pattern.permute.xlu0 2
        %3022 = vperm.xlu0 %3021, %v1395
        %v3023 = vpop.permute.xlu0 %3022
        %3025 = vset.pattern.permute.xlu0 2
        %3026 = vperm.xlu0 %3025, %v1396
        %v3027 = vpop.permute.xlu0 %3026
        %3029 = vset.pattern.permute.xlu0 2
        %3030 = vperm.xlu0 %3029, %v1397
        %v3031 = vpop.permute.xlu0 %3030
        %3033 = vset.pattern.permute.xlu0 2
        %3034 = vperm.xlu0 %3033, %v1398
        %v3035 = vpop.permute.xlu0 %3034
        %3037 = vset.pattern.permute.xlu0 2
        %3038 = vperm.xlu0 %3037, %v1399
        %v3039 = vpop.permute.xlu0 %3038
        %3041 = vset.pattern.permute.xlu0 2
        %3042 = vperm.xlu0 %3041, %v1400
        %v3043 = vpop.permute.xlu0 %3042
        %3045 = vset.pattern.permute.xlu0 2
        %3046 = vperm.xlu0 %3045, %v1401
        %v3047 = vpop.permute.xlu0 %3046
        %3049 = vset.pattern.permute.xlu0 2
        %3050 = vperm.xlu0 %3049, %v1402
        %v3051 = vpop.permute.xlu0 %3050
        %3053 = vset.pattern.permute.xlu0 2
        %3054 = vperm.xlu0 %3053, %v1403
        %v3055 = vpop.permute.xlu0 %3054
        %3057 = vset.pattern.permute.xlu0 2
        %3058 = vperm.xlu0 %3057, %v1404
        %v3059 = vpop.permute.xlu0 %3058
        %3061 = vset.pattern.permute.xlu0 2
        %3062 = vperm.xlu0 %3061, %v1405
        %v3063 = vpop.permute.xlu0 %3062
        %3065 = vset.pattern.permute.xlu0 2
        %3066 = vperm.xlu0 %3065, %v1406
        %v3067 = vpop.permute.xlu0 %3066
        %3069 = vset.pattern.permute.xlu0 2
        %3070 = vperm.xlu0 %3069, %v1407
        %v3071 = vpop.permute.xlu0 %3070
        %3073 = vset.pattern.permute.xlu0 2
        %3074 = vperm.xlu0 %3073, %v1408
        %v3075 = vpop.permute.xlu0 %3074
        %v3077 = vmul.f32 %v2823, %v2630
        %v3078 = vmul.f32 %v2827, %v2633
        %v3079 = vmul.f32 %v2831, %v2636
        %v3080 = vmul.f32 %v2835, %v2639
        %v3081 = vmul.f32 %v2839, %v2642
        %v3082 = vmul.f32 %v2843, %v2645
        %v3083 = vmul.f32 %v2847, %v2648
        %v3084 = vmul.f32 %v2851, %v2651
        %v3085 = vmul.f32 %v2855, %v2654
        %v3086 = vmul.f32 %v2859, %v2657
        %v3087 = vmul.f32 %v2863, %v2660
        %v3088 = vmul.f32 %v2867, %v2663
        %v3089 = vmul.f32 %v2871, %v2666
        %v3090 = vmul.f32 %v2875, %v2669
        %v3091 = vmul.f32 %v2879, %v2672
        %v3092 = vmul.f32 %v2883, %v2675
        %v3093 = vmul.f32 %v2887, %v2678
        %v3094 = vmul.f32 %v2891, %v2681
        %v3095 = vmul.f32 %v2895, %v2684
        %v3096 = vmul.f32 %v2899, %v2687
        %v3097 = vmul.f32 %v2903, %v2690
        %v3098 = vmul.f32 %v2907, %v2693
        %v3099 = vmul.f32 %v2911, %v2696
        %v3100 = vmul.f32 %v2915, %v2699
        %v3101 = vmul.f32 %v2919, %v2702
        %v3102 = vmul.f32 %v2923, %v2705
        %v3103 = vmul.f32 %v2927, %v2708
        %v3104 = vmul.f32 %v2931, %v2711
        %v3105 = vmul.f32 %v2935, %v2714
        %v3106 = vmul.f32 %v2939, %v2717
        %v3107 = vmul.f32 %v2943, %v2720
        %v3108 = vmul.f32 %v2947, %v2723
        %v3109 = vmul.f32 %v2951, %v2726
        %v3110 = vmul.f32 %v2955, %v2729
        %v3111 = vmul.f32 %v2959, %v2732
        %v3112 = vmul.f32 %v2963, %v2735
        %v3113 = vmul.f32 %v2967, %v2738
        %v3114 = vmul.f32 %v2971, %v2741
        %v3115 = vmul.f32 %v2975, %v2744
        %v3116 = vmul.f32 %v2979, %v2747
        %v3117 = vmul.f32 %v2983, %v2750
        %v3118 = vmul.f32 %v2987, %v2753
        %v3119 = vmul.f32 %v2991, %v2756
        %v3120 = vmul.f32 %v2995, %v2759
        %v3121 = vmul.f32 %v2999, %v2762
        %v3122 = vmul.f32 %v3003, %v2765
        %v3123 = vmul.f32 %v3007, %v2768
        %v3124 = vmul.f32 %v3011, %v2771
        %v3125 = vmul.f32 %v3015, %v2774
        %v3126 = vmul.f32 %v3019, %v2777
        %v3127 = vmul.f32 %v3023, %v2780
        %v3128 = vmul.f32 %v3027, %v2783
        %v3129 = vmul.f32 %v3031, %v2786
        %v3130 = vmul.f32 %v3035, %v2789
        %v3131 = vmul.f32 %v3039, %v2792
        %v3132 = vmul.f32 %v3043, %v2795
        %v3133 = vmul.f32 %v3047, %v2798
        %v3134 = vmul.f32 %v3051, %v2801
        %v3135 = vmul.f32 %v3055, %v2804
        %v3136 = vmul.f32 %v3059, %v2807
        %v3137 = vmul.f32 %v3063, %v2810
        %v3138 = vmul.f32 %v3067, %v2813
        %v3139 = vmul.f32 %v3071, %v2816
        %v3140 = vmul.f32 %v3075, %v2819
        %v3141 = vadd.f32 %v2467, %v3077
        %v3142 = vadd.f32 %v2468, %v3078
        %v3143 = vadd.f32 %v2469, %v3079
        %v3144 = vadd.f32 %v2470, %v3080
        %v3145 = vadd.f32 %v2471, %v3081
        %v3146 = vadd.f32 %v2472, %v3082
        %v3147 = vadd.f32 %v2473, %v3083
        %v3148 = vadd.f32 %v2474, %v3084
        %v3149 = vadd.f32 %v2475, %v3085
        %v3150 = vadd.f32 %v2476, %v3086
        %v3151 = vadd.f32 %v2477, %v3087
        %v3152 = vadd.f32 %v2478, %v3088
        %v3153 = vadd.f32 %v2479, %v3089
        %v3154 = vadd.f32 %v2480, %v3090
        %v3155 = vadd.f32 %v2481, %v3091
        %v3156 = vadd.f32 %v2482, %v3092
        %v3157 = vadd.f32 %v2483, %v3093
        %v3158 = vadd.f32 %v2484, %v3094
        %v3159 = vadd.f32 %v2485, %v3095
        %v3160 = vadd.f32 %v2486, %v3096
        %v3161 = vadd.f32 %v2487, %v3097
        %v3162 = vadd.f32 %v2488, %v3098
        %v3163 = vadd.f32 %v2489, %v3099
        %v3164 = vadd.f32 %v2490, %v3100
        %v3165 = vadd.f32 %v2491, %v3101
        %v3166 = vadd.f32 %v2492, %v3102
        %v3167 = vadd.f32 %v2493, %v3103
        %v3168 = vadd.f32 %v2494, %v3104
        %v3169 = vadd.f32 %v2495, %v3105
        %v3170 = vadd.f32 %v2496, %v3106
        %v3171 = vadd.f32 %v2497, %v3107
        %v3172 = vadd.f32 %v2498, %v3108
        %v3173 = vadd.f32 %v2499, %v3109
        %v3174 = vadd.f32 %v2500, %v3110
        %v3175 = vadd.f32 %v2501, %v3111
        %v3176 = vadd.f32 %v2502, %v3112
        %v3177 = vadd.f32 %v2503, %v3113
        %v3178 = vadd.f32 %v2504, %v3114
        %v3179 = vadd.f32 %v2505, %v3115
        %v3180 = vadd.f32 %v2506, %v3116
        %v3181 = vadd.f32 %v2507, %v3117
        %v3182 = vadd.f32 %v2508, %v3118
        %v3183 = vadd.f32 %v2509, %v3119
        %v3184 = vadd.f32 %v2510, %v3120
        %v3185 = vadd.f32 %v2511, %v3121
        %v3186 = vadd.f32 %v2512, %v3122
        %v3187 = vadd.f32 %v2513, %v3123
        %v3188 = vadd.f32 %v2514, %v3124
        %v3189 = vadd.f32 %v2515, %v3125
        %v3190 = vadd.f32 %v2516, %v3126
        %v3191 = vadd.f32 %v2517, %v3127
        %v3192 = vadd.f32 %v2518, %v3128
        %v3193 = vadd.f32 %v2519, %v3129
        %v3194 = vadd.f32 %v2520, %v3130
        %v3195 = vadd.f32 %v2521, %v3131
        %v3196 = vadd.f32 %v2522, %v3132
        %v3197 = vadd.f32 %v2523, %v3133
        %v3198 = vadd.f32 %v2524, %v3134
        %v3199 = vadd.f32 %v2525, %v3135
        %v3200 = vadd.f32 %v2526, %v3136
        %v3201 = vadd.f32 %v2527, %v3137
        %v3202 = vadd.f32 %v2528, %v3138
        %v3203 = vadd.f32 %v2529, %v3139
        %v3204 = vadd.f32 %v2530, %v3140
        %v3205 = vld [vmem:[#allocation2 + $0x17] sm:$0xff]
        %v3206 = vld [vmem:[#allocation2 + $0x1f] sm:$0xff]
        %v3207 = vld [vmem:[#allocation2 + $0x27] sm:$0xff]
        %v3208 = vld [vmem:[#allocation2 + $0x2f] sm:$0xff]
        %v3209 = vld [vmem:[#allocation2 + $0x37] sm:$0xff]
        %v3210 = vld [vmem:[#allocation2 + $0x3f] sm:$0xff]
        %v3211 = vld [vmem:[#allocation2 + $0x47] sm:$0xff]
        %v3212 = vld [vmem:[#allocation2 + $0x4f] sm:$0xff]
        %v3213 = vld [vmem:[#allocation2 + $0x57] sm:$0xff]
        %v3214 = vld [vmem:[#allocation2 + $0x5f] sm:$0xff]
        %v3215 = vld [vmem:[#allocation2 + $0x67] sm:$0xff]
        %v3216 = vld [vmem:[#allocation2 + $0x6f] sm:$0xff]
        %v3217 = vld [vmem:[#allocation2 + $0x77] sm:$0xff]
        %v3218 = vld [vmem:[#allocation2 + $0x7f] sm:$0xff]
        %v3219 = vld [vmem:[#allocation2 + $0x87] sm:$0xff]
        %v3220 = vld [vmem:[#allocation2 + $0x8f] sm:$0xff]
        %v3221 = vld [vmem:[#allocation2 + $0x97] sm:$0xff]
        %v3222 = vld [vmem:[#allocation2 + $0x9f] sm:$0xff]
        %v3223 = vld [vmem:[#allocation2 + $0xa7] sm:$0xff]
        %v3224 = vld [vmem:[#allocation2 + $0xaf] sm:$0xff]
        %v3225 = vld [vmem:[#allocation2 + $0xb7] sm:$0xff]
        %v3226 = vld [vmem:[#allocation2 + $0xbf] sm:$0xff]
        %v3227 = vld [vmem:[#allocation2 + $0xc7] sm:$0xff]
        %v3228 = vld [vmem:[#allocation2 + $0xcf] sm:$0xff]
        %v3229 = vld [vmem:[#allocation2 + $0xd7] sm:$0xff]
        %v3230 = vld [vmem:[#allocation2 + $0xdf] sm:$0xff]
        %v3231 = vld [vmem:[#allocation2 + $0xe7] sm:$0xff]
        %v3232 = vld [vmem:[#allocation2 + $0xef] sm:$0xff]
        %v3233 = vld [vmem:[#allocation2 + $0xf7] sm:$0xff]
        %v3234 = vld [vmem:[#allocation2 + $0xff] sm:$0xff]
        %v3235 = vld [vmem:[#allocation2 + $0x107] sm:$0xff]
        %v3236 = vld [vmem:[#allocation2 + $0x10f] sm:$0xff]
        %v3237 = vld [vmem:[#allocation2 + $0x117] sm:$0xff]
        %v3238 = vld [vmem:[#allocation2 + $0x11f] sm:$0xff]
        %v3239 = vld [vmem:[#allocation2 + $0x127] sm:$0xff]
        %v3240 = vld [vmem:[#allocation2 + $0x12f] sm:$0xff]
        %v3241 = vld [vmem:[#allocation2 + $0x137] sm:$0xff]
        %v3242 = vld [vmem:[#allocation2 + $0x13f] sm:$0xff]
        %v3243 = vld [vmem:[#allocation2 + $0x147] sm:$0xff]
        %v3244 = vld [vmem:[#allocation2 + $0x14f] sm:$0xff]
        %v3245 = vld [vmem:[#allocation2 + $0x157] sm:$0xff]
        %v3246 = vld [vmem:[#allocation2 + $0x15f] sm:$0xff]
        %v3247 = vld [vmem:[#allocation2 + $0x167] sm:$0xff]
        %v3248 = vld [vmem:[#allocation2 + $0x16f] sm:$0xff]
        %v3249 = vld [vmem:[#allocation2 + $0x177] sm:$0xff]
        %v3250 = vld [vmem:[#allocation2 + $0x17f] sm:$0xff]
        %v3251 = vld [vmem:[#allocation2 + $0x187] sm:$0xff]
        %v3252 = vld [vmem:[#allocation2 + $0x18f] sm:$0xff]
        %v3253 = vld [vmem:[#allocation2 + $0x197] sm:$0xff]
        %v3254 = vld [vmem:[#allocation2 + $0x19f] sm:$0xff]
        %v3255 = vld [vmem:[#allocation2 + $0x1a7] sm:$0xff]
        %v3256 = vld [vmem:[#allocation2 + $0x1af] sm:$0xff]
        %v3257 = vld [vmem:[#allocation2 + $0x1b7] sm:$0xff]
        %v3258 = vld [vmem:[#allocation2 + $0x1bf] sm:$0xff]
        %v3259 = vld [vmem:[#allocation2 + $0x1c7] sm:$0xff]
        %v3260 = vld [vmem:[#allocation2 + $0x1cf] sm:$0xff]
        %v3261 = vld [vmem:[#allocation2 + $0x1d7] sm:$0xff]
        %v3262 = vld [vmem:[#allocation2 + $0x1df] sm:$0xff]
        %v3263 = vld [vmem:[#allocation2 + $0x1e7] sm:$0xff]
        %v3264 = vld [vmem:[#allocation2 + $0x1ef] sm:$0xff]
        %v3265 = vld [vmem:[#allocation2 + $0x1f7] sm:$0xff]
        %v3266 = vld [vmem:[#allocation2 + $0x1ff] sm:$0xff]
        %v3267 = vld [vmem:[#allocation2 + $0x207] sm:$0xff]
        %v3268 = vld [vmem:[#allocation2 + $0x20f] sm:$0xff]
        %s3269 = scalar_lea.vmem %s4, 384
        %v3270 = vld [vmem:[%s3269] sm:$0xff]
        %v3271 = vld [vmem:[%s3269 + $0x8] sm:$0xff]
        %v3272 = vld [vmem:[%s3269 + $0x10] sm:$0xff]
        %v3273 = vld [vmem:[%s3269 + $0x18] sm:$0xff]
        %v3274 = vld [vmem:[%s3269 + $0x20] sm:$0xff]
        %v3275 = vld [vmem:[%s3269 + $0x28] sm:$0xff]
        %v3276 = vld [vmem:[%s3269 + $0x30] sm:$0xff]
        %v3277 = vld [vmem:[%s3269 + $0x38] sm:$0xff]
        %v3278 = vld [vmem:[%s3269 + $0x40] sm:$0xff]
        %v3279 = vld [vmem:[%s3269 + $0x48] sm:$0xff]
        %v3280 = vld [vmem:[%s3269 + $0x50] sm:$0xff]
        %v3281 = vld [vmem:[%s3269 + $0x58] sm:$0xff]
        %v3282 = vld [vmem:[%s3269 + $0x60] sm:$0xff]
        %v3283 = vld [vmem:[%s3269 + $0x68] sm:$0xff]
        %v3284 = vld [vmem:[%s3269 + $0x70] sm:$0xff]
        %v3285 = vld [vmem:[%s3269 + $0x78] sm:$0xff]
        %3286 = vmatpush.msra.mxu0 %v3285
        %3287 = vmatpush.msra.mxu0 %v3284
        %3288 = vmatpush.msra.mxu0 %v3283
        %3289 = vmatpush.msra.mxu0 %v3282
        %3290 = vmatpush.msra.mxu0 %v3281
        %3291 = vmatpush.msra.mxu0 %v3280
        %3292 = vmatpush.msra.mxu0 %v3279
        %3293 = vmatpush.msra.mxu0 %v3278
        %3294 = vmatpush.msra.mxu0 %v3277
        %3295 = vmatpush.msra.mxu0 %v3276
        %3296 = vmatpush.msra.mxu0 %v3275
        %3297 = vmatpush.msra.mxu0 %v3274
        %3298 = vmatpush.msra.mxu0 %v3273
        %3299 = vmatpush.msra.mxu0 %v3272
        %3300 = vmatpush.msra.mxu0 %v3271
        %3301 = vmatpush.msra.mxu0 %v3270
        %3302 = vmatmul.f32.gmra.mxu0 %v3205
        %v3303 = vpop.f32.mrf.mxu0
        %v3304 = vadd.f32 0.0, %v3303
        %3305 = vmatmul.f32.gmra.mxu0 %v3206
        %v3306 = vpop.f32.mrf.mxu0
        %v3307 = vadd.f32 0.0, %v3306
        %3308 = vmatmul.f32.gmra.mxu0 %v3207
        %v3309 = vpop.f32.mrf.mxu0
        %v3310 = vadd.f32 0.0, %v3309
        %3311 = vmatmul.f32.gmra.mxu0 %v3208
        %v3312 = vpop.f32.mrf.mxu0
        %v3313 = vadd.f32 0.0, %v3312
        %3314 = vmatmul.f32.gmra.mxu0 %v3209
        %v3315 = vpop.f32.mrf.mxu0
        %v3316 = vadd.f32 0.0, %v3315
        %3317 = vmatmul.f32.gmra.mxu0 %v3210
        %v3318 = vpop.f32.mrf.mxu0
        %v3319 = vadd.f32 0.0, %v3318
        %3320 = vmatmul.f32.gmra.mxu0 %v3211
        %v3321 = vpop.f32.mrf.mxu0
        %v3322 = vadd.f32 0.0, %v3321
        %3323 = vmatmul.f32.gmra.mxu0 %v3212
        %v3324 = vpop.f32.mrf.mxu0
        %v3325 = vadd.f32 0.0, %v3324
        %3326 = vmatmul.f32.gmra.mxu0 %v3213
        %v3327 = vpop.f32.mrf.mxu0
        %v3328 = vadd.f32 0.0, %v3327
        %3329 = vmatmul.f32.gmra.mxu0 %v3214
        %v3330 = vpop.f32.mrf.mxu0
        %v3331 = vadd.f32 0.0, %v3330
        %3332 = vmatmul.f32.gmra.mxu0 %v3215
        %v3333 = vpop.f32.mrf.mxu0
        %v3334 = vadd.f32 0.0, %v3333
        %3335 = vmatmul.f32.gmra.mxu0 %v3216
        %v3336 = vpop.f32.mrf.mxu0
        %v3337 = vadd.f32 0.0, %v3336
        %3338 = vmatmul.f32.gmra.mxu0 %v3217
        %v3339 = vpop.f32.mrf.mxu0
        %v3340 = vadd.f32 0.0, %v3339
        %3341 = vmatmul.f32.gmra.mxu0 %v3218
        %v3342 = vpop.f32.mrf.mxu0
        %v3343 = vadd.f32 0.0, %v3342
        %3344 = vmatmul.f32.gmra.mxu0 %v3219
        %v3345 = vpop.f32.mrf.mxu0
        %v3346 = vadd.f32 0.0, %v3345
        %3347 = vmatmul.f32.gmra.mxu0 %v3220
        %v3348 = vpop.f32.mrf.mxu0
        %v3349 = vadd.f32 0.0, %v3348
        %3350 = vmatmul.f32.gmra.mxu0 %v3221
        %v3351 = vpop.f32.mrf.mxu0
        %v3352 = vadd.f32 0.0, %v3351
        %3353 = vmatmul.f32.gmra.mxu0 %v3222
        %v3354 = vpop.f32.mrf.mxu0
        %v3355 = vadd.f32 0.0, %v3354
        %3356 = vmatmul.f32.gmra.mxu0 %v3223
        %v3357 = vpop.f32.mrf.mxu0
        %v3358 = vadd.f32 0.0, %v3357
        %3359 = vmatmul.f32.gmra.mxu0 %v3224
        %v3360 = vpop.f32.mrf.mxu0
        %v3361 = vadd.f32 0.0, %v3360
        %3362 = vmatmul.f32.gmra.mxu0 %v3225
        %v3363 = vpop.f32.mrf.mxu0
        %v3364 = vadd.f32 0.0, %v3363
        %3365 = vmatmul.f32.gmra.mxu0 %v3226
        %v3366 = vpop.f32.mrf.mxu0
        %v3367 = vadd.f32 0.0, %v3366
        %3368 = vmatmul.f32.gmra.mxu0 %v3227
        %v3369 = vpop.f32.mrf.mxu0
        %v3370 = vadd.f32 0.0, %v3369
        %3371 = vmatmul.f32.gmra.mxu0 %v3228
        %v3372 = vpop.f32.mrf.mxu0
        %v3373 = vadd.f32 0.0, %v3372
        %3374 = vmatmul.f32.gmra.mxu0 %v3229
        %v3375 = vpop.f32.mrf.mxu0
        %v3376 = vadd.f32 0.0, %v3375
        %3377 = vmatmul.f32.gmra.mxu0 %v3230
        %v3378 = vpop.f32.mrf.mxu0
        %v3379 = vadd.f32 0.0, %v3378
        %3380 = vmatmul.f32.gmra.mxu0 %v3231
        %v3381 = vpop.f32.mrf.mxu0
        %v3382 = vadd.f32 0.0, %v3381
        %3383 = vmatmul.f32.gmra.mxu0 %v3232
        %v3384 = vpop.f32.mrf.mxu0
        %v3385 = vadd.f32 0.0, %v3384
        %3386 = vmatmul.f32.gmra.mxu0 %v3233
        %v3387 = vpop.f32.mrf.mxu0
        %v3388 = vadd.f32 0.0, %v3387
        %3389 = vmatmul.f32.gmra.mxu0 %v3234
        %v3390 = vpop.f32.mrf.mxu0
        %v3391 = vadd.f32 0.0, %v3390
        %3392 = vmatmul.f32.gmra.mxu0 %v3235
        %v3393 = vpop.f32.mrf.mxu0
        %v3394 = vadd.f32 0.0, %v3393
        %3395 = vmatmul.f32.gmra.mxu0 %v3236
        %v3396 = vpop.f32.mrf.mxu0
        %v3397 = vadd.f32 0.0, %v3396
        %3398 = vmatmul.f32.gmra.mxu0 %v3237
        %v3399 = vpop.f32.mrf.mxu0
        %v3400 = vadd.f32 0.0, %v3399
        %3401 = vmatmul.f32.gmra.mxu0 %v3238
        %v3402 = vpop.f32.mrf.mxu0
        %v3403 = vadd.f32 0.0, %v3402
        %3404 = vmatmul.f32.gmra.mxu0 %v3239
        %v3405 = vpop.f32.mrf.mxu0
        %v3406 = vadd.f32 0.0, %v3405
        %3407 = vmatmul.f32.gmra.mxu0 %v3240
        %v3408 = vpop.f32.mrf.mxu0
        %v3409 = vadd.f32 0.0, %v3408
        %3410 = vmatmul.f32.gmra.mxu0 %v3241
        %v3411 = vpop.f32.mrf.mxu0
        %v3412 = vadd.f32 0.0, %v3411
        %3413 = vmatmul.f32.gmra.mxu0 %v3242
        %v3414 = vpop.f32.mrf.mxu0
        %v3415 = vadd.f32 0.0, %v3414
        %3416 = vmatmul.f32.gmra.mxu0 %v3243
        %v3417 = vpop.f32.mrf.mxu0
        %v3418 = vadd.f32 0.0, %v3417
        %3419 = vmatmul.f32.gmra.mxu0 %v3244
        %v3420 = vpop.f32.mrf.mxu0
        %v3421 = vadd.f32 0.0, %v3420
        %3422 = vmatmul.f32.gmra.mxu0 %v3245
        %v3423 = vpop.f32.mrf.mxu0
        %v3424 = vadd.f32 0.0, %v3423
        %3425 = vmatmul.f32.gmra.mxu0 %v3246
        %v3426 = vpop.f32.mrf.mxu0
        %v3427 = vadd.f32 0.0, %v3426
        %3428 = vmatmul.f32.gmra.mxu0 %v3247
        %v3429 = vpop.f32.mrf.mxu0
        %v3430 = vadd.f32 0.0, %v3429
        %3431 = vmatmul.f32.gmra.mxu0 %v3248
        %v3432 = vpop.f32.mrf.mxu0
        %v3433 = vadd.f32 0.0, %v3432
        %3434 = vmatmul.f32.gmra.mxu0 %v3249
        %v3435 = vpop.f32.mrf.mxu0
        %v3436 = vadd.f32 0.0, %v3435
        %3437 = vmatmul.f32.gmra.mxu0 %v3250
        %v3438 = vpop.f32.mrf.mxu0
        %v3439 = vadd.f32 0.0, %v3438
        %3440 = vmatmul.f32.gmra.mxu0 %v3251
        %v3441 = vpop.f32.mrf.mxu0
        %v3442 = vadd.f32 0.0, %v3441
        %3443 = vmatmul.f32.gmra.mxu0 %v3252
        %v3444 = vpop.f32.mrf.mxu0
        %v3445 = vadd.f32 0.0, %v3444
        %3446 = vmatmul.f32.gmra.mxu0 %v3253
        %v3447 = vpop.f32.mrf.mxu0
        %v3448 = vadd.f32 0.0, %v3447
        %3449 = vmatmul.f32.gmra.mxu0 %v3254
        %v3450 = vpop.f32.mrf.mxu0
        %v3451 = vadd.f32 0.0, %v3450
        %3452 = vmatmul.f32.gmra.mxu0 %v3255
        %v3453 = vpop.f32.mrf.mxu0
        %v3454 = vadd.f32 0.0, %v3453
        %3455 = vmatmul.f32.gmra.mxu0 %v3256
        %v3456 = vpop.f32.mrf.mxu0
        %v3457 = vadd.f32 0.0, %v3456
        %3458 = vmatmul.f32.gmra.mxu0 %v3257
        %v3459 = vpop.f32.mrf.mxu0
        %v3460 = vadd.f32 0.0, %v3459
        %3461 = vmatmul.f32.gmra.mxu0 %v3258
        %v3462 = vpop.f32.mrf.mxu0
        %v3463 = vadd.f32 0.0, %v3462
        %3464 = vmatmul.f32.gmra.mxu0 %v3259
        %v3465 = vpop.f32.mrf.mxu0
        %v3466 = vadd.f32 0.0, %v3465
        %3467 = vmatmul.f32.gmra.mxu0 %v3260
        %v3468 = vpop.f32.mrf.mxu0
        %v3469 = vadd.f32 0.0, %v3468
        %3470 = vmatmul.f32.gmra.mxu0 %v3261
        %v3471 = vpop.f32.mrf.mxu0
        %v3472 = vadd.f32 0.0, %v3471
        %3473 = vmatmul.f32.gmra.mxu0 %v3262
        %v3474 = vpop.f32.mrf.mxu0
        %v3475 = vadd.f32 0.0, %v3474
        %3476 = vmatmul.f32.gmra.mxu0 %v3263
        %v3477 = vpop.f32.mrf.mxu0
        %v3478 = vadd.f32 0.0, %v3477
        %3479 = vmatmul.f32.gmra.mxu0 %v3264
        %v3480 = vpop.f32.mrf.mxu0
        %v3481 = vadd.f32 0.0, %v3480
        %3482 = vmatmul.f32.gmra.mxu0 %v3265
        %v3483 = vpop.f32.mrf.mxu0
        %v3484 = vadd.f32 0.0, %v3483
        %3485 = vmatmul.f32.gmra.mxu0 %v3266
        %v3486 = vpop.f32.mrf.mxu0
        %v3487 = vadd.f32 0.0, %v3486
        %3488 = vmatmul.f32.gmra.mxu0 %v3267
        %v3489 = vpop.f32.mrf.mxu0
        %v3490 = vadd.f32 0.0, %v3489
        %3491 = vmatmul.f32.gmra.mxu0 %v3268
        %v3492 = vpop.f32.mrf.mxu0
        %v3493 = vadd.f32 0.0, %v3492
        %3494 = vdwg.mxu0
        %3495 = vset.pattern.permute.xlu0 3
        %3496 = vperm.xlu0 %3495, %v1345
        %v3497 = vpop.permute.xlu0 %3496
        %3499 = vset.pattern.permute.xlu0 3
        %3500 = vperm.xlu0 %3499, %v1346
        %v3501 = vpop.permute.xlu0 %3500
        %3503 = vset.pattern.permute.xlu0 3
        %3504 = vperm.xlu0 %3503, %v1347
        %v3505 = vpop.permute.xlu0 %3504
        %3507 = vset.pattern.permute.xlu0 3
        %3508 = vperm.xlu0 %3507, %v1348
        %v3509 = vpop.permute.xlu0 %3508
        %3511 = vset.pattern.permute.xlu0 3
        %3512 = vperm.xlu0 %3511, %v1349
        %v3513 = vpop.permute.xlu0 %3512
        %3515 = vset.pattern.permute.xlu0 3
        %3516 = vperm.xlu0 %3515, %v1350
        %v3517 = vpop.permute.xlu0 %3516
        %3519 = vset.pattern.permute.xlu0 3
        %3520 = vperm.xlu0 %3519, %v1351
        %v3521 = vpop.permute.xlu0 %3520
        %3523 = vset.pattern.permute.xlu0 3
        %3524 = vperm.xlu0 %3523, %v1352
        %v3525 = vpop.permute.xlu0 %3524
        %3527 = vset.pattern.permute.xlu0 3
        %3528 = vperm.xlu0 %3527, %v1353
        %v3529 = vpop.permute.xlu0 %3528
        %3531 = vset.pattern.permute.xlu0 3
        %3532 = vperm.xlu0 %3531, %v1354
        %v3533 = vpop.permute.xlu0 %3532
        %3535 = vset.pattern.permute.xlu0 3
        %3536 = vperm.xlu0 %3535, %v1355
        %v3537 = vpop.permute.xlu0 %3536
        %3539 = vset.pattern.permute.xlu0 3
        %3540 = vperm.xlu0 %3539, %v1356
        %v3541 = vpop.permute.xlu0 %3540
        %3543 = vset.pattern.permute.xlu0 3
        %3544 = vperm.xlu0 %3543, %v1357
        %v3545 = vpop.permute.xlu0 %3544
        %3547 = vset.pattern.permute.xlu0 3
        %3548 = vperm.xlu0 %3547, %v1358
        %v3549 = vpop.permute.xlu0 %3548
        %3551 = vset.pattern.permute.xlu0 3
        %3552 = vperm.xlu0 %3551, %v1359
        %v3553 = vpop.permute.xlu0 %3552
        %3555 = vset.pattern.permute.xlu0 3
        %3556 = vperm.xlu0 %3555, %v1360
        %v3557 = vpop.permute.xlu0 %3556
        %3559 = vset.pattern.permute.xlu0 3
        %3560 = vperm.xlu0 %3559, %v1361
        %v3561 = vpop.permute.xlu0 %3560
        %3563 = vset.pattern.permute.xlu0 3
        %3564 = vperm.xlu0 %3563, %v1362
        %v3565 = vpop.permute.xlu0 %3564
        %3567 = vset.pattern.permute.xlu0 3
        %3568 = vperm.xlu0 %3567, %v1363
        %v3569 = vpop.permute.xlu0 %3568
        %3571 = vset.pattern.permute.xlu0 3
        %3572 = vperm.xlu0 %3571, %v1364
        %v3573 = vpop.permute.xlu0 %3572
        %3575 = vset.pattern.permute.xlu0 3
        %3576 = vperm.xlu0 %3575, %v1365
        %v3577 = vpop.permute.xlu0 %3576
        %3579 = vset.pattern.permute.xlu0 3
        %3580 = vperm.xlu0 %3579, %v1366
        %v3581 = vpop.permute.xlu0 %3580
        %3583 = vset.pattern.permute.xlu0 3
        %3584 = vperm.xlu0 %3583, %v1367
        %v3585 = vpop.permute.xlu0 %3584
        %3587 = vset.pattern.permute.xlu0 3
        %3588 = vperm.xlu0 %3587, %v1368
        %v3589 = vpop.permute.xlu0 %3588
        %3591 = vset.pattern.permute.xlu0 3
        %3592 = vperm.xlu0 %3591, %v1369
        %v3593 = vpop.permute.xlu0 %3592
        %3595 = vset.pattern.permute.xlu0 3
        %3596 = vperm.xlu0 %3595, %v1370
        %v3597 = vpop.permute.xlu0 %3596
        %3599 = vset.pattern.permute.xlu0 3
        %3600 = vperm.xlu0 %3599, %v1371
        %v3601 = vpop.permute.xlu0 %3600
        %3603 = vset.pattern.permute.xlu0 3
        %3604 = vperm.xlu0 %3603, %v1372
        %v3605 = vpop.permute.xlu0 %3604
        %3607 = vset.pattern.permute.xlu0 3
        %3608 = vperm.xlu0 %3607, %v1373
        %v3609 = vpop.permute.xlu0 %3608
        %3611 = vset.pattern.permute.xlu0 3
        %3612 = vperm.xlu0 %3611, %v1374
        %v3613 = vpop.permute.xlu0 %3612
        %3615 = vset.pattern.permute.xlu0 3
        %3616 = vperm.xlu0 %3615, %v1375
        %v3617 = vpop.permute.xlu0 %3616
        %3619 = vset.pattern.permute.xlu0 3
        %3620 = vperm.xlu0 %3619, %v1376
        %v3621 = vpop.permute.xlu0 %3620
        %3623 = vset.pattern.permute.xlu0 3
        %3624 = vperm.xlu0 %3623, %v1377
        %v3625 = vpop.permute.xlu0 %3624
        %3627 = vset.pattern.permute.xlu0 3
        %3628 = vperm.xlu0 %3627, %v1378
        %v3629 = vpop.permute.xlu0 %3628
        %3631 = vset.pattern.permute.xlu0 3
        %3632 = vperm.xlu0 %3631, %v1379
        %v3633 = vpop.permute.xlu0 %3632
        %3635 = vset.pattern.permute.xlu0 3
        %3636 = vperm.xlu0 %3635, %v1380
        %v3637 = vpop.permute.xlu0 %3636
        %3639 = vset.pattern.permute.xlu0 3
        %3640 = vperm.xlu0 %3639, %v1381
        %v3641 = vpop.permute.xlu0 %3640
        %3643 = vset.pattern.permute.xlu0 3
        %3644 = vperm.xlu0 %3643, %v1382
        %v3645 = vpop.permute.xlu0 %3644
        %3647 = vset.pattern.permute.xlu0 3
        %3648 = vperm.xlu0 %3647, %v1383
        %v3649 = vpop.permute.xlu0 %3648
        %3651 = vset.pattern.permute.xlu0 3
        %3652 = vperm.xlu0 %3651, %v1384
        %v3653 = vpop.permute.xlu0 %3652
        %3655 = vset.pattern.permute.xlu0 3
        %3656 = vperm.xlu0 %3655, %v1385
        %v3657 = vpop.permute.xlu0 %3656
        %3659 = vset.pattern.permute.xlu0 3
        %3660 = vperm.xlu0 %3659, %v1386
        %v3661 = vpop.permute.xlu0 %3660
        %3663 = vset.pattern.permute.xlu0 3
        %3664 = vperm.xlu0 %3663, %v1387
        %v3665 = vpop.permute.xlu0 %3664
        %3667 = vset.pattern.permute.xlu0 3
        %3668 = vperm.xlu0 %3667, %v1388
        %v3669 = vpop.permute.xlu0 %3668
        %3671 = vset.pattern.permute.xlu0 3
        %3672 = vperm.xlu0 %3671, %v1389
        %v3673 = vpop.permute.xlu0 %3672
        %3675 = vset.pattern.permute.xlu0 3
        %3676 = vperm.xlu0 %3675, %v1390
        %v3677 = vpop.permute.xlu0 %3676
        %3679 = vset.pattern.permute.xlu0 3
        %3680 = vperm.xlu0 %3679, %v1391
        %v3681 = vpop.permute.xlu0 %3680
        %3683 = vset.pattern.permute.xlu0 3
        %3684 = vperm.xlu0 %3683, %v1392
        %v3685 = vpop.permute.xlu0 %3684
        %3687 = vset.pattern.permute.xlu0 3
        %3688 = vperm.xlu0 %3687, %v1393
        %v3689 = vpop.permute.xlu0 %3688
        %3691 = vset.pattern.permute.xlu0 3
        %3692 = vperm.xlu0 %3691, %v1394
        %v3693 = vpop.permute.xlu0 %3692
        %3695 = vset.pattern.permute.xlu0 3
        %3696 = vperm.xlu0 %3695, %v1395
        %v3697 = vpop.permute.xlu0 %3696
        %3699 = vset.pattern.permute.xlu0 3
        %3700 = vperm.xlu0 %3699, %v1396
        %v3701 = vpop.permute.xlu0 %3700
        %3703 = vset.pattern.permute.xlu0 3
        %3704 = vperm.xlu0 %3703, %v1397
        %v3705 = vpop.permute.xlu0 %3704
        %3707 = vset.pattern.permute.xlu0 3
        %3708 = vperm.xlu0 %3707, %v1398
        %v3709 = vpop.permute.xlu0 %3708
        %3711 = vset.pattern.permute.xlu0 3
        %3712 = vperm.xlu0 %3711, %v1399
        %v3713 = vpop.permute.xlu0 %3712
        %3715 = vset.pattern.permute.xlu0 3
        %3716 = vperm.xlu0 %3715, %v1400
        %v3717 = vpop.permute.xlu0 %3716
        %3719 = vset.pattern.permute.xlu0 3
        %3720 = vperm.xlu0 %3719, %v1401
        %v3721 = vpop.permute.xlu0 %3720
        %3723 = vset.pattern.permute.xlu0 3
        %3724 = vperm.xlu0 %3723, %v1402
        %v3725 = vpop.permute.xlu0 %3724
        %3727 = vset.pattern.permute.xlu0 3
        %3728 = vperm.xlu0 %3727, %v1403
        %v3729 = vpop.permute.xlu0 %3728
        %3731 = vset.pattern.permute.xlu0 3
        %3732 = vperm.xlu0 %3731, %v1404
        %v3733 = vpop.permute.xlu0 %3732
        %3735 = vset.pattern.permute.xlu0 3
        %3736 = vperm.xlu0 %3735, %v1405
        %v3737 = vpop.permute.xlu0 %3736
        %3739 = vset.pattern.permute.xlu0 3
        %3740 = vperm.xlu0 %3739, %v1406
        %v3741 = vpop.permute.xlu0 %3740
        %3743 = vset.pattern.permute.xlu0 3
        %3744 = vperm.xlu0 %3743, %v1407
        %v3745 = vpop.permute.xlu0 %3744
        %3747 = vset.pattern.permute.xlu0 3
        %3748 = vperm.xlu0 %3747, %v1408
        %v3749 = vpop.permute.xlu0 %3748
        %v3751 = vmul.f32 %v3497, %v3304
        %v3752 = vmul.f32 %v3501, %v3307
        %v3753 = vmul.f32 %v3505, %v3310
        %v3754 = vmul.f32 %v3509, %v3313
        %v3755 = vmul.f32 %v3513, %v3316
        %v3756 = vmul.f32 %v3517, %v3319
        %v3757 = vmul.f32 %v3521, %v3322
        %v3758 = vmul.f32 %v3525, %v3325
        %v3759 = vmul.f32 %v3529, %v3328
        %v3760 = vmul.f32 %v3533, %v3331
        %v3761 = vmul.f32 %v3537, %v3334
        %v3762 = vmul.f32 %v3541, %v3337
        %v3763 = vmul.f32 %v3545, %v3340
        %v3764 = vmul.f32 %v3549, %v3343
        %v3765 = vmul.f32 %v3553, %v3346
        %v3766 = vmul.f32 %v3557, %v3349
        %v3767 = vmul.f32 %v3561, %v3352
        %v3768 = vmul.f32 %v3565, %v3355
        %v3769 = vmul.f32 %v3569, %v3358
        %v3770 = vmul.f32 %v3573, %v3361
        %v3771 = vmul.f32 %v3577, %v3364
        %v3772 = vmul.f32 %v3581, %v3367
        %v3773 = vmul.f32 %v3585, %v3370
        %v3774 = vmul.f32 %v3589, %v3373
        %v3775 = vmul.f32 %v3593, %v3376
        %v3776 = vmul.f32 %v3597, %v3379
        %v3777 = vmul.f32 %v3601, %v3382
        %v3778 = vmul.f32 %v3605, %v3385
        %v3779 = vmul.f32 %v3609, %v3388
        %v3780 = vmul.f32 %v3613, %v3391
        %v3781 = vmul.f32 %v3617, %v3394
        %v3782 = vmul.f32 %v3621, %v3397
        %v3783 = vmul.f32 %v3625, %v3400
        %v3784 = vmul.f32 %v3629, %v3403
        %v3785 = vmul.f32 %v3633, %v3406
        %v3786 = vmul.f32 %v3637, %v3409
        %v3787 = vmul.f32 %v3641, %v3412
        %v3788 = vmul.f32 %v3645, %v3415
        %v3789 = vmul.f32 %v3649, %v3418
        %v3790 = vmul.f32 %v3653, %v3421
        %v3791 = vmul.f32 %v3657, %v3424
        %v3792 = vmul.f32 %v3661, %v3427
        %v3793 = vmul.f32 %v3665, %v3430
        %v3794 = vmul.f32 %v3669, %v3433
        %v3795 = vmul.f32 %v3673, %v3436
        %v3796 = vmul.f32 %v3677, %v3439
        %v3797 = vmul.f32 %v3681, %v3442
        %v3798 = vmul.f32 %v3685, %v3445
        %v3799 = vmul.f32 %v3689, %v3448
        %v3800 = vmul.f32 %v3693, %v3451
        %v3801 = vmul.f32 %v3697, %v3454
        %v3802 = vmul.f32 %v3701, %v3457
        %v3803 = vmul.f32 %v3705, %v3460
        %v3804 = vmul.f32 %v3709, %v3463
        %v3805 = vmul.f32 %v3713, %v3466
        %v3806 = vmul.f32 %v3717, %v3469
        %v3807 = vmul.f32 %v3721, %v3472
        %v3808 = vmul.f32 %v3725, %v3475
        %v3809 = vmul.f32 %v3729, %v3478
        %v3810 = vmul.f32 %v3733, %v3481
        %v3811 = vmul.f32 %v3737, %v3484
        %v3812 = vmul.f32 %v3741, %v3487
        %v3813 = vmul.f32 %v3745, %v3490
        %v3814 = vmul.f32 %v3749, %v3493
        %v3815 = vadd.f32 %v3141, %v3751
        %v3816 = vadd.f32 %v3142, %v3752
        %v3817 = vadd.f32 %v3143, %v3753
        %v3818 = vadd.f32 %v3144, %v3754
        %v3819 = vadd.f32 %v3145, %v3755
        %v3820 = vadd.f32 %v3146, %v3756
        %v3821 = vadd.f32 %v3147, %v3757
        %v3822 = vadd.f32 %v3148, %v3758
        %v3823 = vadd.f32 %v3149, %v3759
        %v3824 = vadd.f32 %v3150, %v3760
        %v3825 = vadd.f32 %v3151, %v3761
        %v3826 = vadd.f32 %v3152, %v3762
        %v3827 = vadd.f32 %v3153, %v3763
        %v3828 = vadd.f32 %v3154, %v3764
        %v3829 = vadd.f32 %v3155, %v3765
        %v3830 = vadd.f32 %v3156, %v3766
        %v3831 = vadd.f32 %v3157, %v3767
        %v3832 = vadd.f32 %v3158, %v3768
        %v3833 = vadd.f32 %v3159, %v3769
        %v3834 = vadd.f32 %v3160, %v3770
        %v3835 = vadd.f32 %v3161, %v3771
        %v3836 = vadd.f32 %v3162, %v3772
        %v3837 = vadd.f32 %v3163, %v3773
        %v3838 = vadd.f32 %v3164, %v3774
        %v3839 = vadd.f32 %v3165, %v3775
        %v3840 = vadd.f32 %v3166, %v3776
        %v3841 = vadd.f32 %v3167, %v3777
        %v3842 = vadd.f32 %v3168, %v3778
        %v3843 = vadd.f32 %v3169, %v3779
        %v3844 = vadd.f32 %v3170, %v3780
        %v3845 = vadd.f32 %v3171, %v3781
        %v3846 = vadd.f32 %v3172, %v3782
        %v3847 = vadd.f32 %v3173, %v3783
        %v3848 = vadd.f32 %v3174, %v3784
        %v3849 = vadd.f32 %v3175, %v3785
        %v3850 = vadd.f32 %v3176, %v3786
        %v3851 = vadd.f32 %v3177, %v3787
        %v3852 = vadd.f32 %v3178, %v3788
        %v3853 = vadd.f32 %v3179, %v3789
        %v3854 = vadd.f32 %v3180, %v3790
        %v3855 = vadd.f32 %v3181, %v3791
        %v3856 = vadd.f32 %v3182, %v3792
        %v3857 = vadd.f32 %v3183, %v3793
        %v3858 = vadd.f32 %v3184, %v3794
        %v3859 = vadd.f32 %v3185, %v3795
        %v3860 = vadd.f32 %v3186, %v3796
        %v3861 = vadd.f32 %v3187, %v3797
        %v3862 = vadd.f32 %v3188, %v3798
        %v3863 = vadd.f32 %v3189, %v3799
        %v3864 = vadd.f32 %v3190, %v3800
        %v3865 = vadd.f32 %v3191, %v3801
        %v3866 = vadd.f32 %v3192, %v3802
        %v3867 = vadd.f32 %v3193, %v3803
        %v3868 = vadd.f32 %v3194, %v3804
        %v3869 = vadd.f32 %v3195, %v3805
        %v3870 = vadd.f32 %v3196, %v3806
        %v3871 = vadd.f32 %v3197, %v3807
        %v3872 = vadd.f32 %v3198, %v3808
        %v3873 = vadd.f32 %v3199, %v3809
        %v3874 = vadd.f32 %v3200, %v3810
        %v3875 = vadd.f32 %v3201, %v3811
        %v3876 = vadd.f32 %v3202, %v3812
        %v3877 = vadd.f32 %v3203, %v3813
        %v3878 = vadd.f32 %v3204, %v3814
        %v3879 = vld [vmem:[#allocation2 + $0x18] sm:$0xff]
        %v3880 = vld [vmem:[#allocation2 + $0x20] sm:$0xff]
        %v3881 = vld [vmem:[#allocation2 + $0x28] sm:$0xff]
        %v3882 = vld [vmem:[#allocation2 + $0x30] sm:$0xff]
        %v3883 = vld [vmem:[#allocation2 + $0x38] sm:$0xff]
        %v3884 = vld [vmem:[#allocation2 + $0x40] sm:$0xff]
        %v3885 = vld [vmem:[#allocation2 + $0x48] sm:$0xff]
        %v3886 = vld [vmem:[#allocation2 + $0x50] sm:$0xff]
        %v3887 = vld [vmem:[#allocation2 + $0x58] sm:$0xff]
        %v3888 = vld [vmem:[#allocation2 + $0x60] sm:$0xff]
        %v3889 = vld [vmem:[#allocation2 + $0x68] sm:$0xff]
        %v3890 = vld [vmem:[#allocation2 + $0x70] sm:$0xff]
        %v3891 = vld [vmem:[#allocation2 + $0x78] sm:$0xff]
        %v3892 = vld [vmem:[#allocation2 + $0x80] sm:$0xff]
        %v3893 = vld [vmem:[#allocation2 + $0x88] sm:$0xff]
        %v3894 = vld [vmem:[#allocation2 + $0x90] sm:$0xff]
        %v3895 = vld [vmem:[#allocation2 + $0x98] sm:$0xff]
        %v3896 = vld [vmem:[#allocation2 + $0xa0] sm:$0xff]
        %v3897 = vld [vmem:[#allocation2 + $0xa8] sm:$0xff]
        %v3898 = vld [vmem:[#allocation2 + $0xb0] sm:$0xff]
        %v3899 = vld [vmem:[#allocation2 + $0xb8] sm:$0xff]
        %v3900 = vld [vmem:[#allocation2 + $0xc0] sm:$0xff]
        %v3901 = vld [vmem:[#allocation2 + $0xc8] sm:$0xff]
        %v3902 = vld [vmem:[#allocation2 + $0xd0] sm:$0xff]
        %v3903 = vld [vmem:[#allocation2 + $0xd8] sm:$0xff]
        %v3904 = vld [vmem:[#allocation2 + $0xe0] sm:$0xff]
        %v3905 = vld [vmem:[#allocation2 + $0xe8] sm:$0xff]
        %v3906 = vld [vmem:[#allocation2 + $0xf0] sm:$0xff]
        %v3907 = vld [vmem:[#allocation2 + $0xf8] sm:$0xff]
        %v3908 = vld [vmem:[#allocation2 + $0x100] sm:$0xff]
        %v3909 = vld [vmem:[#allocation2 + $0x108] sm:$0xff]
        %v3910 = vld [vmem:[#allocation2 + $0x110] sm:$0xff]
        %v3911 = vld [vmem:[#allocation2 + $0x118] sm:$0xff]
        %v3912 = vld [vmem:[#allocation2 + $0x120] sm:$0xff]
        %v3913 = vld [vmem:[#allocation2 + $0x128] sm:$0xff]
        %v3914 = vld [vmem:[#allocation2 + $0x130] sm:$0xff]
        %v3915 = vld [vmem:[#allocation2 + $0x138] sm:$0xff]
        %v3916 = vld [vmem:[#allocation2 + $0x140] sm:$0xff]
        %v3917 = vld [vmem:[#allocation2 + $0x148] sm:$0xff]
        %v3918 = vld [vmem:[#allocation2 + $0x150] sm:$0xff]
        %v3919 = vld [vmem:[#allocation2 + $0x158] sm:$0xff]
        %v3920 = vld [vmem:[#allocation2 + $0x160] sm:$0xff]
        %v3921 = vld [vmem:[#allocation2 + $0x168] sm:$0xff]
        %v3922 = vld [vmem:[#allocation2 + $0x170] sm:$0xff]
        %v3923 = vld [vmem:[#allocation2 + $0x178] sm:$0xff]
        %v3924 = vld [vmem:[#allocation2 + $0x180] sm:$0xff]
        %v3925 = vld [vmem:[#allocation2 + $0x188] sm:$0xff]
        %v3926 = vld [vmem:[#allocation2 + $0x190] sm:$0xff]
        %v3927 = vld [vmem:[#allocation2 + $0x198] sm:$0xff]
        %v3928 = vld [vmem:[#allocation2 + $0x1a0] sm:$0xff]
        %v3929 = vld [vmem:[#allocation2 + $0x1a8] sm:$0xff]
        %v3930 = vld [vmem:[#allocation2 + $0x1b0] sm:$0xff]
        %v3931 = vld [vmem:[#allocation2 + $0x1b8] sm:$0xff]
        %v3932 = vld [vmem:[#allocation2 + $0x1c0] sm:$0xff]
        %v3933 = vld [vmem:[#allocation2 + $0x1c8] sm:$0xff]
        %v3934 = vld [vmem:[#allocation2 + $0x1d0] sm:$0xff]
        %v3935 = vld [vmem:[#allocation2 + $0x1d8] sm:$0xff]
        %v3936 = vld [vmem:[#allocation2 + $0x1e0] sm:$0xff]
        %v3937 = vld [vmem:[#allocation2 + $0x1e8] sm:$0xff]
        %v3938 = vld [vmem:[#allocation2 + $0x1f0] sm:$0xff]
        %v3939 = vld [vmem:[#allocation2 + $0x1f8] sm:$0xff]
        %v3940 = vld [vmem:[#allocation2 + $0x200] sm:$0xff]
        %v3941 = vld [vmem:[#allocation2 + $0x208] sm:$0xff]
        %v3942 = vld [vmem:[#allocation2 + $0x210] sm:$0xff]
        %s3943 = scalar_lea.vmem %s4, 512
        %v3944 = vld [vmem:[%s3943] sm:$0xff]
        %v3945 = vld [vmem:[%s3943 + $0x8] sm:$0xff]
        %v3946 = vld [vmem:[%s3943 + $0x10] sm:$0xff]
        %v3947 = vld [vmem:[%s3943 + $0x18] sm:$0xff]
        %v3948 = vld [vmem:[%s3943 + $0x20] sm:$0xff]
        %v3949 = vld [vmem:[%s3943 + $0x28] sm:$0xff]
        %v3950 = vld [vmem:[%s3943 + $0x30] sm:$0xff]
        %v3951 = vld [vmem:[%s3943 + $0x38] sm:$0xff]
        %v3952 = vld [vmem:[%s3943 + $0x40] sm:$0xff]
        %v3953 = vld [vmem:[%s3943 + $0x48] sm:$0xff]
        %v3954 = vld [vmem:[%s3943 + $0x50] sm:$0xff]
        %v3955 = vld [vmem:[%s3943 + $0x58] sm:$0xff]
        %v3956 = vld [vmem:[%s3943 + $0x60] sm:$0xff]
        %v3957 = vld [vmem:[%s3943 + $0x68] sm:$0xff]
        %v3958 = vld [vmem:[%s3943 + $0x70] sm:$0xff]
        %v3959 = vld [vmem:[%s3943 + $0x78] sm:$0xff]
        %3960 = vmatpush.msra.mxu0 %v3959
        %3961 = vmatpush.msra.mxu0 %v3958
        %3962 = vmatpush.msra.mxu0 %v3957
        %3963 = vmatpush.msra.mxu0 %v3956
        %3964 = vmatpush.msra.mxu0 %v3955
        %3965 = vmatpush.msra.mxu0 %v3954
        %3966 = vmatpush.msra.mxu0 %v3953
        %3967 = vmatpush.msra.mxu0 %v3952
        %3968 = vmatpush.msra.mxu0 %v3951
        %3969 = vmatpush.msra.mxu0 %v3950
        %3970 = vmatpush.msra.mxu0 %v3949
        %3971 = vmatpush.msra.mxu0 %v3948
        %3972 = vmatpush.msra.mxu0 %v3947
        %3973 = vmatpush.msra.mxu0 %v3946
        %3974 = vmatpush.msra.mxu0 %v3945
        %3975 = vmatpush.msra.mxu0 %v3944
        %3976 = vmatmul.f32.gmra.mxu0 %v3879
        %v3977 = vpop.f32.mrf.mxu0
        %v3978 = vadd.f32 0.0, %v3977
        %3979 = vmatmul.f32.gmra.mxu0 %v3880
        %v3980 = vpop.f32.mrf.mxu0
        %v3981 = vadd.f32 0.0, %v3980
        %3982 = vmatmul.f32.gmra.mxu0 %v3881
        %v3983 = vpop.f32.mrf.mxu0
        %v3984 = vadd.f32 0.0, %v3983
        %3985 = vmatmul.f32.gmra.mxu0 %v3882
        %v3986 = vpop.f32.mrf.mxu0
        %v3987 = vadd.f32 0.0, %v3986
        %3988 = vmatmul.f32.gmra.mxu0 %v3883
        %v3989 = vpop.f32.mrf.mxu0
        %v3990 = vadd.f32 0.0, %v3989
        %3991 = vmatmul.f32.gmra.mxu0 %v3884
        %v3992 = vpop.f32.mrf.mxu0
        %v3993 = vadd.f32 0.0, %v3992
        %3994 = vmatmul.f32.gmra.mxu0 %v3885
        %v3995 = vpop.f32.mrf.mxu0
        %v3996 = vadd.f32 0.0, %v3995
        %3997 = vmatmul.f32.gmra.mxu0 %v3886
        %v3998 = vpop.f32.mrf.mxu0
        %v3999 = vadd.f32 0.0, %v3998
        %4000 = vmatmul.f32.gmra.mxu0 %v3887
        %v4001 = vpop.f32.mrf.mxu0
        %v4002 = vadd.f32 0.0, %v4001
        %4003 = vmatmul.f32.gmra.mxu0 %v3888
        %v4004 = vpop.f32.mrf.mxu0
        %v4005 = vadd.f32 0.0, %v4004
        %4006 = vmatmul.f32.gmra.mxu0 %v3889
        %v4007 = vpop.f32.mrf.mxu0
        %v4008 = vadd.f32 0.0, %v4007
        %4009 = vmatmul.f32.gmra.mxu0 %v3890
        %v4010 = vpop.f32.mrf.mxu0
        %v4011 = vadd.f32 0.0, %v4010
        %4012 = vmatmul.f32.gmra.mxu0 %v3891
        %v4013 = vpop.f32.mrf.mxu0
        %v4014 = vadd.f32 0.0, %v4013
        %4015 = vmatmul.f32.gmra.mxu0 %v3892
        %v4016 = vpop.f32.mrf.mxu0
        %v4017 = vadd.f32 0.0, %v4016
        %4018 = vmatmul.f32.gmra.mxu0 %v3893
        %v4019 = vpop.f32.mrf.mxu0
        %v4020 = vadd.f32 0.0, %v4019
        %4021 = vmatmul.f32.gmra.mxu0 %v3894
        %v4022 = vpop.f32.mrf.mxu0
        %v4023 = vadd.f32 0.0, %v4022
        %4024 = vmatmul.f32.gmra.mxu0 %v3895
        %v4025 = vpop.f32.mrf.mxu0
        %v4026 = vadd.f32 0.0, %v4025
        %4027 = vmatmul.f32.gmra.mxu0 %v3896
        %v4028 = vpop.f32.mrf.mxu0
        %v4029 = vadd.f32 0.0, %v4028
        %4030 = vmatmul.f32.gmra.mxu0 %v3897
        %v4031 = vpop.f32.mrf.mxu0
        %v4032 = vadd.f32 0.0, %v4031
        %4033 = vmatmul.f32.gmra.mxu0 %v3898
        %v4034 = vpop.f32.mrf.mxu0
        %v4035 = vadd.f32 0.0, %v4034
        %4036 = vmatmul.f32.gmra.mxu0 %v3899
        %v4037 = vpop.f32.mrf.mxu0
        %v4038 = vadd.f32 0.0, %v4037
        %4039 = vmatmul.f32.gmra.mxu0 %v3900
        %v4040 = vpop.f32.mrf.mxu0
        %v4041 = vadd.f32 0.0, %v4040
        %4042 = vmatmul.f32.gmra.mxu0 %v3901
        %v4043 = vpop.f32.mrf.mxu0
        %v4044 = vadd.f32 0.0, %v4043
        %4045 = vmatmul.f32.gmra.mxu0 %v3902
        %v4046 = vpop.f32.mrf.mxu0
        %v4047 = vadd.f32 0.0, %v4046
        %4048 = vmatmul.f32.gmra.mxu0 %v3903
        %v4049 = vpop.f32.mrf.mxu0
        %v4050 = vadd.f32 0.0, %v4049
        %4051 = vmatmul.f32.gmra.mxu0 %v3904
        %v4052 = vpop.f32.mrf.mxu0
        %v4053 = vadd.f32 0.0, %v4052
        %4054 = vmatmul.f32.gmra.mxu0 %v3905
        %v4055 = vpop.f32.mrf.mxu0
        %v4056 = vadd.f32 0.0, %v4055
        %4057 = vmatmul.f32.gmra.mxu0 %v3906
        %v4058 = vpop.f32.mrf.mxu0
        %v4059 = vadd.f32 0.0, %v4058
        %4060 = vmatmul.f32.gmra.mxu0 %v3907
        %v4061 = vpop.f32.mrf.mxu0
        %v4062 = vadd.f32 0.0, %v4061
        %4063 = vmatmul.f32.gmra.mxu0 %v3908
        %v4064 = vpop.f32.mrf.mxu0
        %v4065 = vadd.f32 0.0, %v4064
        %4066 = vmatmul.f32.gmra.mxu0 %v3909
        %v4067 = vpop.f32.mrf.mxu0
        %v4068 = vadd.f32 0.0, %v4067
        %4069 = vmatmul.f32.gmra.mxu0 %v3910
        %v4070 = vpop.f32.mrf.mxu0
        %v4071 = vadd.f32 0.0, %v4070
        %4072 = vmatmul.f32.gmra.mxu0 %v3911
        %v4073 = vpop.f32.mrf.mxu0
        %v4074 = vadd.f32 0.0, %v4073
        %4075 = vmatmul.f32.gmra.mxu0 %v3912
        %v4076 = vpop.f32.mrf.mxu0
        %v4077 = vadd.f32 0.0, %v4076
        %4078 = vmatmul.f32.gmra.mxu0 %v3913
        %v4079 = vpop.f32.mrf.mxu0
        %v4080 = vadd.f32 0.0, %v4079
        %4081 = vmatmul.f32.gmra.mxu0 %v3914
        %v4082 = vpop.f32.mrf.mxu0
        %v4083 = vadd.f32 0.0, %v4082
        %4084 = vmatmul.f32.gmra.mxu0 %v3915
        %v4085 = vpop.f32.mrf.mxu0
        %v4086 = vadd.f32 0.0, %v4085
        %4087 = vmatmul.f32.gmra.mxu0 %v3916
        %v4088 = vpop.f32.mrf.mxu0
        %v4089 = vadd.f32 0.0, %v4088
        %4090 = vmatmul.f32.gmra.mxu0 %v3917
        %v4091 = vpop.f32.mrf.mxu0
        %v4092 = vadd.f32 0.0, %v4091
        %4093 = vmatmul.f32.gmra.mxu0 %v3918
        %v4094 = vpop.f32.mrf.mxu0
        %v4095 = vadd.f32 0.0, %v4094
        %4096 = vmatmul.f32.gmra.mxu0 %v3919
        %v4097 = vpop.f32.mrf.mxu0
        %v4098 = vadd.f32 0.0, %v4097
        %4099 = vmatmul.f32.gmra.mxu0 %v3920
        %v4100 = vpop.f32.mrf.mxu0
        %v4101 = vadd.f32 0.0, %v4100
        %4102 = vmatmul.f32.gmra.mxu0 %v3921
        %v4103 = vpop.f32.mrf.mxu0
        %v4104 = vadd.f32 0.0, %v4103
        %4105 = vmatmul.f32.gmra.mxu0 %v3922
        %v4106 = vpop.f32.mrf.mxu0
        %v4107 = vadd.f32 0.0, %v4106
        %4108 = vmatmul.f32.gmra.mxu0 %v3923
        %v4109 = vpop.f32.mrf.mxu0
        %v4110 = vadd.f32 0.0, %v4109
        %4111 = vmatmul.f32.gmra.mxu0 %v3924
        %v4112 = vpop.f32.mrf.mxu0
        %v4113 = vadd.f32 0.0, %v4112
        %4114 = vmatmul.f32.gmra.mxu0 %v3925
        %v4115 = vpop.f32.mrf.mxu0
        %v4116 = vadd.f32 0.0, %v4115
        %4117 = vmatmul.f32.gmra.mxu0 %v3926
        %v4118 = vpop.f32.mrf.mxu0
        %v4119 = vadd.f32 0.0, %v4118
        %4120 = vmatmul.f32.gmra.mxu0 %v3927
        %v4121 = vpop.f32.mrf.mxu0
        %v4122 = vadd.f32 0.0, %v4121
        %4123 = vmatmul.f32.gmra.mxu0 %v3928
        %v4124 = vpop.f32.mrf.mxu0
        %v4125 = vadd.f32 0.0, %v4124
        %4126 = vmatmul.f32.gmra.mxu0 %v3929
        %v4127 = vpop.f32.mrf.mxu0
        %v4128 = vadd.f32 0.0, %v4127
        %4129 = vmatmul.f32.gmra.mxu0 %v3930
        %v4130 = vpop.f32.mrf.mxu0
        %v4131 = vadd.f32 0.0, %v4130
        %4132 = vmatmul.f32.gmra.mxu0 %v3931
        %v4133 = vpop.f32.mrf.mxu0
        %v4134 = vadd.f32 0.0, %v4133
        %4135 = vmatmul.f32.gmra.mxu0 %v3932
        %v4136 = vpop.f32.mrf.mxu0
        %v4137 = vadd.f32 0.0, %v4136
        %4138 = vmatmul.f32.gmra.mxu0 %v3933
        %v4139 = vpop.f32.mrf.mxu0
        %v4140 = vadd.f32 0.0, %v4139
        %4141 = vmatmul.f32.gmra.mxu0 %v3934
        %v4142 = vpop.f32.mrf.mxu0
        %v4143 = vadd.f32 0.0, %v4142
        %4144 = vmatmul.f32.gmra.mxu0 %v3935
        %v4145 = vpop.f32.mrf.mxu0
        %v4146 = vadd.f32 0.0, %v4145
        %4147 = vmatmul.f32.gmra.mxu0 %v3936
        %v4148 = vpop.f32.mrf.mxu0
        %v4149 = vadd.f32 0.0, %v4148
        %4150 = vmatmul.f32.gmra.mxu0 %v3937
        %v4151 = vpop.f32.mrf.mxu0
        %v4152 = vadd.f32 0.0, %v4151
        %4153 = vmatmul.f32.gmra.mxu0 %v3938
        %v4154 = vpop.f32.mrf.mxu0
        %v4155 = vadd.f32 0.0, %v4154
        %4156 = vmatmul.f32.gmra.mxu0 %v3939
        %v4157 = vpop.f32.mrf.mxu0
        %v4158 = vadd.f32 0.0, %v4157
        %4159 = vmatmul.f32.gmra.mxu0 %v3940
        %v4160 = vpop.f32.mrf.mxu0
        %v4161 = vadd.f32 0.0, %v4160
        %4162 = vmatmul.f32.gmra.mxu0 %v3941
        %v4163 = vpop.f32.mrf.mxu0
        %v4164 = vadd.f32 0.0, %v4163
        %4165 = vmatmul.f32.gmra.mxu0 %v3942
        %v4166 = vpop.f32.mrf.mxu0
        %v4167 = vadd.f32 0.0, %v4166
        %4168 = vdwg.mxu0
        %4169 = vset.pattern.permute.xlu0 4
        %4170 = vperm.xlu0 %4169, %v1345
        %v4171 = vpop.permute.xlu0 %4170
        %4173 = vset.pattern.permute.xlu0 4
        %4174 = vperm.xlu0 %4173, %v1346
        %v4175 = vpop.permute.xlu0 %4174
        %4177 = vset.pattern.permute.xlu0 4
        %4178 = vperm.xlu0 %4177, %v1347
        %v4179 = vpop.permute.xlu0 %4178
        %4181 = vset.pattern.permute.xlu0 4
        %4182 = vperm.xlu0 %4181, %v1348
        %v4183 = vpop.permute.xlu0 %4182
        %4185 = vset.pattern.permute.xlu0 4
        %4186 = vperm.xlu0 %4185, %v1349
        %v4187 = vpop.permute.xlu0 %4186
        %4189 = vset.pattern.permute.xlu0 4
        %4190 = vperm.xlu0 %4189, %v1350
        %v4191 = vpop.permute.xlu0 %4190
        %4193 = vset.pattern.permute.xlu0 4
        %4194 = vperm.xlu0 %4193, %v1351
        %v4195 = vpop.permute.xlu0 %4194
        %4197 = vset.pattern.permute.xlu0 4
        %4198 = vperm.xlu0 %4197, %v1352
        %v4199 = vpop.permute.xlu0 %4198
        %4201 = vset.pattern.permute.xlu0 4
        %4202 = vperm.xlu0 %4201, %v1353
        %v4203 = vpop.permute.xlu0 %4202
        %4205 = vset.pattern.permute.xlu0 4
        %4206 = vperm.xlu0 %4205, %v1354
        %v4207 = vpop.permute.xlu0 %4206
        %4209 = vset.pattern.permute.xlu0 4
        %4210 = vperm.xlu0 %4209, %v1355
        %v4211 = vpop.permute.xlu0 %4210
        %4213 = vset.pattern.permute.xlu0 4
        %4214 = vperm.xlu0 %4213, %v1356
        %v4215 = vpop.permute.xlu0 %4214
        %4217 = vset.pattern.permute.xlu0 4
        %4218 = vperm.xlu0 %4217, %v1357
        %v4219 = vpop.permute.xlu0 %4218
        %4221 = vset.pattern.permute.xlu0 4
        %4222 = vperm.xlu0 %4221, %v1358
        %v4223 = vpop.permute.xlu0 %4222
        %4225 = vset.pattern.permute.xlu0 4
        %4226 = vperm.xlu0 %4225, %v1359
        %v4227 = vpop.permute.xlu0 %4226
        %4229 = vset.pattern.permute.xlu0 4
        %4230 = vperm.xlu0 %4229, %v1360
        %v4231 = vpop.permute.xlu0 %4230
        %4233 = vset.pattern.permute.xlu0 4
        %4234 = vperm.xlu0 %4233, %v1361
        %v4235 = vpop.permute.xlu0 %4234
        %4237 = vset.pattern.permute.xlu0 4
        %4238 = vperm.xlu0 %4237, %v1362
        %v4239 = vpop.permute.xlu0 %4238
        %4241 = vset.pattern.permute.xlu0 4
        %4242 = vperm.xlu0 %4241, %v1363
        %v4243 = vpop.permute.xlu0 %4242
        %4245 = vset.pattern.permute.xlu0 4
        %4246 = vperm.xlu0 %4245, %v1364
        %v4247 = vpop.permute.xlu0 %4246
        %4249 = vset.pattern.permute.xlu0 4
        %4250 = vperm.xlu0 %4249, %v1365
        %v4251 = vpop.permute.xlu0 %4250
        %4253 = vset.pattern.permute.xlu0 4
        %4254 = vperm.xlu0 %4253, %v1366
        %v4255 = vpop.permute.xlu0 %4254
        %4257 = vset.pattern.permute.xlu0 4
        %4258 = vperm.xlu0 %4257, %v1367
        %v4259 = vpop.permute.xlu0 %4258
        %4261 = vset.pattern.permute.xlu0 4
        %4262 = vperm.xlu0 %4261, %v1368
        %v4263 = vpop.permute.xlu0 %4262
        %4265 = vset.pattern.permute.xlu0 4
        %4266 = vperm.xlu0 %4265, %v1369
        %v4267 = vpop.permute.xlu0 %4266
        %4269 = vset.pattern.permute.xlu0 4
        %4270 = vperm.xlu0 %4269, %v1370
        %v4271 = vpop.permute.xlu0 %4270
        %4273 = vset.pattern.permute.xlu0 4
        %4274 = vperm.xlu0 %4273, %v1371
        %v4275 = vpop.permute.xlu0 %4274
        %4277 = vset.pattern.permute.xlu0 4
        %4278 = vperm.xlu0 %4277, %v1372
        %v4279 = vpop.permute.xlu0 %4278
        %4281 = vset.pattern.permute.xlu0 4
        %4282 = vperm.xlu0 %4281, %v1373
        %v4283 = vpop.permute.xlu0 %4282
        %4285 = vset.pattern.permute.xlu0 4
        %4286 = vperm.xlu0 %4285, %v1374
        %v4287 = vpop.permute.xlu0 %4286
        %4289 = vset.pattern.permute.xlu0 4
        %4290 = vperm.xlu0 %4289, %v1375
        %v4291 = vpop.permute.xlu0 %4290
        %4293 = vset.pattern.permute.xlu0 4
        %4294 = vperm.xlu0 %4293, %v1376
        %v4295 = vpop.permute.xlu0 %4294
        %4297 = vset.pattern.permute.xlu0 4
        %4298 = vperm.xlu0 %4297, %v1377
        %v4299 = vpop.permute.xlu0 %4298
        %4301 = vset.pattern.permute.xlu0 4
        %4302 = vperm.xlu0 %4301, %v1378
        %v4303 = vpop.permute.xlu0 %4302
        %4305 = vset.pattern.permute.xlu0 4
        %4306 = vperm.xlu0 %4305, %v1379
        %v4307 = vpop.permute.xlu0 %4306
        %4309 = vset.pattern.permute.xlu0 4
        %4310 = vperm.xlu0 %4309, %v1380
        %v4311 = vpop.permute.xlu0 %4310
        %4313 = vset.pattern.permute.xlu0 4
        %4314 = vperm.xlu0 %4313, %v1381
        %v4315 = vpop.permute.xlu0 %4314
        %4317 = vset.pattern.permute.xlu0 4
        %4318 = vperm.xlu0 %4317, %v1382
        %v4319 = vpop.permute.xlu0 %4318
        %4321 = vset.pattern.permute.xlu0 4
        %4322 = vperm.xlu0 %4321, %v1383
        %v4323 = vpop.permute.xlu0 %4322
        %4325 = vset.pattern.permute.xlu0 4
        %4326 = vperm.xlu0 %4325, %v1384
        %v4327 = vpop.permute.xlu0 %4326
        %4329 = vset.pattern.permute.xlu0 4
        %4330 = vperm.xlu0 %4329, %v1385
        %v4331 = vpop.permute.xlu0 %4330
        %4333 = vset.pattern.permute.xlu0 4
        %4334 = vperm.xlu0 %4333, %v1386
        %v4335 = vpop.permute.xlu0 %4334
        %4337 = vset.pattern.permute.xlu0 4
        %4338 = vperm.xlu0 %4337, %v1387
        %v4339 = vpop.permute.xlu0 %4338
        %4341 = vset.pattern.permute.xlu0 4
        %4342 = vperm.xlu0 %4341, %v1388
        %v4343 = vpop.permute.xlu0 %4342
        %4345 = vset.pattern.permute.xlu0 4
        %4346 = vperm.xlu0 %4345, %v1389
        %v4347 = vpop.permute.xlu0 %4346
        %4349 = vset.pattern.permute.xlu0 4
        %4350 = vperm.xlu0 %4349, %v1390
        %v4351 = vpop.permute.xlu0 %4350
        %4353 = vset.pattern.permute.xlu0 4
        %4354 = vperm.xlu0 %4353, %v1391
        %v4355 = vpop.permute.xlu0 %4354
        %4357 = vset.pattern.permute.xlu0 4
        %4358 = vperm.xlu0 %4357, %v1392
        %v4359 = vpop.permute.xlu0 %4358
        %4361 = vset.pattern.permute.xlu0 4
        %4362 = vperm.xlu0 %4361, %v1393
        %v4363 = vpop.permute.xlu0 %4362
        %4365 = vset.pattern.permute.xlu0 4
        %4366 = vperm.xlu0 %4365, %v1394
        %v4367 = vpop.permute.xlu0 %4366
        %4369 = vset.pattern.permute.xlu0 4
        %4370 = vperm.xlu0 %4369, %v1395
        %v4371 = vpop.permute.xlu0 %4370
        %4373 = vset.pattern.permute.xlu0 4
        %4374 = vperm.xlu0 %4373, %v1396
        %v4375 = vpop.permute.xlu0 %4374
        %4377 = vset.pattern.permute.xlu0 4
        %4378 = vperm.xlu0 %4377, %v1397
        %v4379 = vpop.permute.xlu0 %4378
        %4381 = vset.pattern.permute.xlu0 4
        %4382 = vperm.xlu0 %4381, %v1398
        %v4383 = vpop.permute.xlu0 %4382
        %4385 = vset.pattern.permute.xlu0 4
        %4386 = vperm.xlu0 %4385, %v1399
        %v4387 = vpop.permute.xlu0 %4386
        %4389 = vset.pattern.permute.xlu0 4
        %4390 = vperm.xlu0 %4389, %v1400
        %v4391 = vpop.permute.xlu0 %4390
        %4393 = vset.pattern.permute.xlu0 4
        %4394 = vperm.xlu0 %4393, %v1401
        %v4395 = vpop.permute.xlu0 %4394
        %4397 = vset.pattern.permute.xlu0 4
        %4398 = vperm.xlu0 %4397, %v1402
        %v4399 = vpop.permute.xlu0 %4398
        %4401 = vset.pattern.permute.xlu0 4
        %4402 = vperm.xlu0 %4401, %v1403
        %v4403 = vpop.permute.xlu0 %4402
        %4405 = vset.pattern.permute.xlu0 4
        %4406 = vperm.xlu0 %4405, %v1404
        %v4407 = vpop.permute.xlu0 %4406
        %4409 = vset.pattern.permute.xlu0 4
        %4410 = vperm.xlu0 %4409, %v1405
        %v4411 = vpop.permute.xlu0 %4410
        %4413 = vset.pattern.permute.xlu0 4
        %4414 = vperm.xlu0 %4413, %v1406
        %v4415 = vpop.permute.xlu0 %4414
        %4417 = vset.pattern.permute.xlu0 4
        %4418 = vperm.xlu0 %4417, %v1407
        %v4419 = vpop.permute.xlu0 %4418
        %4421 = vset.pattern.permute.xlu0 4
        %4422 = vperm.xlu0 %4421, %v1408
        %v4423 = vpop.permute.xlu0 %4422
        %v4425 = vmul.f32 %v4171, %v3978
        %v4426 = vmul.f32 %v4175, %v3981
        %v4427 = vmul.f32 %v4179, %v3984
        %v4428 = vmul.f32 %v4183, %v3987
        %v4429 = vmul.f32 %v4187, %v3990
        %v4430 = vmul.f32 %v4191, %v3993
        %v4431 = vmul.f32 %v4195, %v3996
        %v4432 = vmul.f32 %v4199, %v3999
        %v4433 = vmul.f32 %v4203, %v4002
        %v4434 = vmul.f32 %v4207, %v4005
        %v4435 = vmul.f32 %v4211, %v4008
        %v4436 = vmul.f32 %v4215, %v4011
        %v4437 = vmul.f32 %v4219, %v4014
        %v4438 = vmul.f32 %v4223, %v4017
        %v4439 = vmul.f32 %v4227, %v4020
        %v4440 = vmul.f32 %v4231, %v4023
        %v4441 = vmul.f32 %v4235, %v4026
        %v4442 = vmul.f32 %v4239, %v4029
        %v4443 = vmul.f32 %v4243, %v4032
        %v4444 = vmul.f32 %v4247, %v4035
        %v4445 = vmul.f32 %v4251, %v4038
        %v4446 = vmul.f32 %v4255, %v4041
        %v4447 = vmul.f32 %v4259, %v4044
        %v4448 = vmul.f32 %v4263, %v4047
        %v4449 = vmul.f32 %v4267, %v4050
        %v4450 = vmul.f32 %v4271, %v4053
        %v4451 = vmul.f32 %v4275, %v4056
        %v4452 = vmul.f32 %v4279, %v4059
        %v4453 = vmul.f32 %v4283, %v4062
        %v4454 = vmul.f32 %v4287, %v4065
        %v4455 = vmul.f32 %v4291, %v4068
        %v4456 = vmul.f32 %v4295, %v4071
        %v4457 = vmul.f32 %v4299, %v4074
        %v4458 = vmul.f32 %v4303, %v4077
        %v4459 = vmul.f32 %v4307, %v4080
        %v4460 = vmul.f32 %v4311, %v4083
        %v4461 = vmul.f32 %v4315, %v4086
        %v4462 = vmul.f32 %v4319, %v4089
        %v4463 = vmul.f32 %v4323, %v4092
        %v4464 = vmul.f32 %v4327, %v4095
        %v4465 = vmul.f32 %v4331, %v4098
        %v4466 = vmul.f32 %v4335, %v4101
        %v4467 = vmul.f32 %v4339, %v4104
        %v4468 = vmul.f32 %v4343, %v4107
        %v4469 = vmul.f32 %v4347, %v4110
        %v4470 = vmul.f32 %v4351, %v4113
        %v4471 = vmul.f32 %v4355, %v4116
        %v4472 = vmul.f32 %v4359, %v4119
        %v4473 = vmul.f32 %v4363, %v4122
        %v4474 = vmul.f32 %v4367, %v4125
        %v4475 = vmul.f32 %v4371, %v4128
        %v4476 = vmul.f32 %v4375, %v4131
        %v4477 = vmul.f32 %v4379, %v4134
        %v4478 = vmul.f32 %v4383, %v4137
        %v4479 = vmul.f32 %v4387, %v4140
        %v4480 = vmul.f32 %v4391, %v4143
        %v4481 = vmul.f32 %v4395, %v4146
        %v4482 = vmul.f32 %v4399, %v4149
        %v4483 = vmul.f32 %v4403, %v4152
        %v4484 = vmul.f32 %v4407, %v4155
        %v4485 = vmul.f32 %v4411, %v4158
        %v4486 = vmul.f32 %v4415, %v4161
        %v4487 = vmul.f32 %v4419, %v4164
        %v4488 = vmul.f32 %v4423, %v4167
        %v4489 = vadd.f32 %v3815, %v4425
        %v4490 = vadd.f32 %v3816, %v4426
        %v4491 = vadd.f32 %v3817, %v4427
        %v4492 = vadd.f32 %v3818, %v4428
        %v4493 = vadd.f32 %v3819, %v4429
        %v4494 = vadd.f32 %v3820, %v4430
        %v4495 = vadd.f32 %v3821, %v4431
        %v4496 = vadd.f32 %v3822, %v4432
        %v4497 = vadd.f32 %v3823, %v4433
        %v4498 = vadd.f32 %v3824, %v4434
        %v4499 = vadd.f32 %v3825, %v4435
        %v4500 = vadd.f32 %v3826, %v4436
        %v4501 = vadd.f32 %v3827, %v4437
        %v4502 = vadd.f32 %v3828, %v4438
        %v4503 = vadd.f32 %v3829, %v4439
        %v4504 = vadd.f32 %v3830, %v4440
        %v4505 = vadd.f32 %v3831, %v4441
        %v4506 = vadd.f32 %v3832, %v4442
        %v4507 = vadd.f32 %v3833, %v4443
        %v4508 = vadd.f32 %v3834, %v4444
        %v4509 = vadd.f32 %v3835, %v4445
        %v4510 = vadd.f32 %v3836, %v4446
        %v4511 = vadd.f32 %v3837, %v4447
        %v4512 = vadd.f32 %v3838, %v4448
        %v4513 = vadd.f32 %v3839, %v4449
        %v4514 = vadd.f32 %v3840, %v4450
        %v4515 = vadd.f32 %v3841, %v4451
        %v4516 = vadd.f32 %v3842, %v4452
        %v4517 = vadd.f32 %v3843, %v4453
        %v4518 = vadd.f32 %v3844, %v4454
        %v4519 = vadd.f32 %v3845, %v4455
        %v4520 = vadd.f32 %v3846, %v4456
        %v4521 = vadd.f32 %v3847, %v4457
        %v4522 = vadd.f32 %v3848, %v4458
        %v4523 = vadd.f32 %v3849, %v4459
        %v4524 = vadd.f32 %v3850, %v4460
        %v4525 = vadd.f32 %v3851, %v4461
        %v4526 = vadd.f32 %v3852, %v4462
        %v4527 = vadd.f32 %v3853, %v4463
        %v4528 = vadd.f32 %v3854, %v4464
        %v4529 = vadd.f32 %v3855, %v4465
        %v4530 = vadd.f32 %v3856, %v4466
        %v4531 = vadd.f32 %v3857, %v4467
        %v4532 = vadd.f32 %v3858, %v4468
        %v4533 = vadd.f32 %v3859, %v4469
        %v4534 = vadd.f32 %v3860, %v4470
        %v4535 = vadd.f32 %v3861, %v4471
        %v4536 = vadd.f32 %v3862, %v4472
        %v4537 = vadd.f32 %v3863, %v4473
        %v4538 = vadd.f32 %v3864, %v4474
        %v4539 = vadd.f32 %v3865, %v4475
        %v4540 = vadd.f32 %v3866, %v4476
        %v4541 = vadd.f32 %v3867, %v4477
        %v4542 = vadd.f32 %v3868, %v4478
        %v4543 = vadd.f32 %v3869, %v4479
        %v4544 = vadd.f32 %v3870, %v4480
        %v4545 = vadd.f32 %v3871, %v4481
        %v4546 = vadd.f32 %v3872, %v4482
        %v4547 = vadd.f32 %v3873, %v4483
        %v4548 = vadd.f32 %v3874, %v4484
        %v4549 = vadd.f32 %v3875, %v4485
        %v4550 = vadd.f32 %v3876, %v4486
        %v4551 = vadd.f32 %v3877, %v4487
        %v4552 = vadd.f32 %v3878, %v4488
        %v4553 = vld [vmem:[#allocation2 + $0x19] sm:$0xff]
        %v4554 = vld [vmem:[#allocation2 + $0x21] sm:$0xff]
        %v4555 = vld [vmem:[#allocation2 + $0x29] sm:$0xff]
        %v4556 = vld [vmem:[#allocation2 + $0x31] sm:$0xff]
        %v4557 = vld [vmem:[#allocation2 + $0x39] sm:$0xff]
        %v4558 = vld [vmem:[#allocation2 + $0x41] sm:$0xff]
        %v4559 = vld [vmem:[#allocation2 + $0x49] sm:$0xff]
        %v4560 = vld [vmem:[#allocation2 + $0x51] sm:$0xff]
        %v4561 = vld [vmem:[#allocation2 + $0x59] sm:$0xff]
        %v4562 = vld [vmem:[#allocation2 + $0x61] sm:$0xff]
        %v4563 = vld [vmem:[#allocation2 + $0x69] sm:$0xff]
        %v4564 = vld [vmem:[#allocation2 + $0x71] sm:$0xff]
        %v4565 = vld [vmem:[#allocation2 + $0x79] sm:$0xff]
        %v4566 = vld [vmem:[#allocation2 + $0x81] sm:$0xff]
        %v4567 = vld [vmem:[#allocation2 + $0x89] sm:$0xff]
        %v4568 = vld [vmem:[#allocation2 + $0x91] sm:$0xff]
        %v4569 = vld [vmem:[#allocation2 + $0x99] sm:$0xff]
        %v4570 = vld [vmem:[#allocation2 + $0xa1] sm:$0xff]
        %v4571 = vld [vmem:[#allocation2 + $0xa9] sm:$0xff]
        %v4572 = vld [vmem:[#allocation2 + $0xb1] sm:$0xff]
        %v4573 = vld [vmem:[#allocation2 + $0xb9] sm:$0xff]
        %v4574 = vld [vmem:[#allocation2 + $0xc1] sm:$0xff]
        %v4575 = vld [vmem:[#allocation2 + $0xc9] sm:$0xff]
        %v4576 = vld [vmem:[#allocation2 + $0xd1] sm:$0xff]
        %v4577 = vld [vmem:[#allocation2 + $0xd9] sm:$0xff]
        %v4578 = vld [vmem:[#allocation2 + $0xe1] sm:$0xff]
        %v4579 = vld [vmem:[#allocation2 + $0xe9] sm:$0xff]
        %v4580 = vld [vmem:[#allocation2 + $0xf1] sm:$0xff]
        %v4581 = vld [vmem:[#allocation2 + $0xf9] sm:$0xff]
        %v4582 = vld [vmem:[#allocation2 + $0x101] sm:$0xff]
        %v4583 = vld [vmem:[#allocation2 + $0x109] sm:$0xff]
        %v4584 = vld [vmem:[#allocation2 + $0x111] sm:$0xff]
        %v4585 = vld [vmem:[#allocation2 + $0x119] sm:$0xff]
        %v4586 = vld [vmem:[#allocation2 + $0x121] sm:$0xff]
        %v4587 = vld [vmem:[#allocation2 + $0x129] sm:$0xff]
        %v4588 = vld [vmem:[#allocation2 + $0x131] sm:$0xff]
        %v4589 = vld [vmem:[#allocation2 + $0x139] sm:$0xff]
        %v4590 = vld [vmem:[#allocation2 + $0x141] sm:$0xff]
        %v4591 = vld [vmem:[#allocation2 + $0x149] sm:$0xff]
        %v4592 = vld [vmem:[#allocation2 + $0x151] sm:$0xff]
        %v4593 = vld [vmem:[#allocation2 + $0x159] sm:$0xff]
        %v4594 = vld [vmem:[#allocation2 + $0x161] sm:$0xff]
        %v4595 = vld [vmem:[#allocation2 + $0x169] sm:$0xff]
        %v4596 = vld [vmem:[#allocation2 + $0x171] sm:$0xff]
        %v4597 = vld [vmem:[#allocation2 + $0x179] sm:$0xff]
        %v4598 = vld [vmem:[#allocation2 + $0x181] sm:$0xff]
        %v4599 = vld [vmem:[#allocation2 + $0x189] sm:$0xff]
        %v4600 = vld [vmem:[#allocation2 + $0x191] sm:$0xff]
        %v4601 = vld [vmem:[#allocation2 + $0x199] sm:$0xff]
        %v4602 = vld [vmem:[#allocation2 + $0x1a1] sm:$0xff]
        %v4603 = vld [vmem:[#allocation2 + $0x1a9] sm:$0xff]
        %v4604 = vld [vmem:[#allocation2 + $0x1b1] sm:$0xff]
        %v4605 = vld [vmem:[#allocation2 + $0x1b9] sm:$0xff]
        %v4606 = vld [vmem:[#allocation2 + $0x1c1] sm:$0xff]
        %v4607 = vld [vmem:[#allocation2 + $0x1c9] sm:$0xff]
        %v4608 = vld [vmem:[#allocation2 + $0x1d1] sm:$0xff]
        %v4609 = vld [vmem:[#allocation2 + $0x1d9] sm:$0xff]
        %v4610 = vld [vmem:[#allocation2 + $0x1e1] sm:$0xff]
        %v4611 = vld [vmem:[#allocation2 + $0x1e9] sm:$0xff]
        %v4612 = vld [vmem:[#allocation2 + $0x1f1] sm:$0xff]
        %v4613 = vld [vmem:[#allocation2 + $0x1f9] sm:$0xff]
        %v4614 = vld [vmem:[#allocation2 + $0x201] sm:$0xff]
        %v4615 = vld [vmem:[#allocation2 + $0x209] sm:$0xff]
        %v4616 = vld [vmem:[#allocation2 + $0x211] sm:$0xff]
        %s4617 = scalar_lea.vmem %s4, 640
        %v4618 = vld [vmem:[%s4617] sm:$0xff]
        %v4619 = vld [vmem:[%s4617 + $0x8] sm:$0xff]
        %v4620 = vld [vmem:[%s4617 + $0x10] sm:$0xff]
        %v4621 = vld [vmem:[%s4617 + $0x18] sm:$0xff]
        %v4622 = vld [vmem:[%s4617 + $0x20] sm:$0xff]
        %v4623 = vld [vmem:[%s4617 + $0x28] sm:$0xff]
        %v4624 = vld [vmem:[%s4617 + $0x30] sm:$0xff]
        %v4625 = vld [vmem:[%s4617 + $0x38] sm:$0xff]
        %v4626 = vld [vmem:[%s4617 + $0x40] sm:$0xff]
        %v4627 = vld [vmem:[%s4617 + $0x48] sm:$0xff]
        %v4628 = vld [vmem:[%s4617 + $0x50] sm:$0xff]
        %v4629 = vld [vmem:[%s4617 + $0x58] sm:$0xff]
        %v4630 = vld [vmem:[%s4617 + $0x60] sm:$0xff]
        %v4631 = vld [vmem:[%s4617 + $0x68] sm:$0xff]
        %v4632 = vld [vmem:[%s4617 + $0x70] sm:$0xff]
        %v4633 = vld [vmem:[%s4617 + $0x78] sm:$0xff]
        %4634 = vmatpush.msra.mxu0 %v4633
        %4635 = vmatpush.msra.mxu0 %v4632
        %4636 = vmatpush.msra.mxu0 %v4631
        %4637 = vmatpush.msra.mxu0 %v4630
        %4638 = vmatpush.msra.mxu0 %v4629
        %4639 = vmatpush.msra.mxu0 %v4628
        %4640 = vmatpush.msra.mxu0 %v4627
        %4641 = vmatpush.msra.mxu0 %v4626
        %4642 = vmatpush.msra.mxu0 %v4625
        %4643 = vmatpush.msra.mxu0 %v4624
        %4644 = vmatpush.msra.mxu0 %v4623
        %4645 = vmatpush.msra.mxu0 %v4622
        %4646 = vmatpush.msra.mxu0 %v4621
        %4647 = vmatpush.msra.mxu0 %v4620
        %4648 = vmatpush.msra.mxu0 %v4619
        %4649 = vmatpush.msra.mxu0 %v4618
        %4650 = vmatmul.f32.gmra.mxu0 %v4553
        %v4651 = vpop.f32.mrf.mxu0
        %v4652 = vadd.f32 0.0, %v4651
        %4653 = vmatmul.f32.gmra.mxu0 %v4554
        %v4654 = vpop.f32.mrf.mxu0
        %v4655 = vadd.f32 0.0, %v4654
        %4656 = vmatmul.f32.gmra.mxu0 %v4555
        %v4657 = vpop.f32.mrf.mxu0
        %v4658 = vadd.f32 0.0, %v4657
        %4659 = vmatmul.f32.gmra.mxu0 %v4556
        %v4660 = vpop.f32.mrf.mxu0
        %v4661 = vadd.f32 0.0, %v4660
        %4662 = vmatmul.f32.gmra.mxu0 %v4557
        %v4663 = vpop.f32.mrf.mxu0
        %v4664 = vadd.f32 0.0, %v4663
        %4665 = vmatmul.f32.gmra.mxu0 %v4558
        %v4666 = vpop.f32.mrf.mxu0
        %v4667 = vadd.f32 0.0, %v4666
        %4668 = vmatmul.f32.gmra.mxu0 %v4559
        %v4669 = vpop.f32.mrf.mxu0
        %v4670 = vadd.f32 0.0, %v4669
        %4671 = vmatmul.f32.gmra.mxu0 %v4560
        %v4672 = vpop.f32.mrf.mxu0
        %v4673 = vadd.f32 0.0, %v4672
        %4674 = vmatmul.f32.gmra.mxu0 %v4561
        %v4675 = vpop.f32.mrf.mxu0
        %v4676 = vadd.f32 0.0, %v4675
        %4677 = vmatmul.f32.gmra.mxu0 %v4562
        %v4678 = vpop.f32.mrf.mxu0
        %v4679 = vadd.f32 0.0, %v4678
        %4680 = vmatmul.f32.gmra.mxu0 %v4563
        %v4681 = vpop.f32.mrf.mxu0
        %v4682 = vadd.f32 0.0, %v4681
        %4683 = vmatmul.f32.gmra.mxu0 %v4564
        %v4684 = vpop.f32.mrf.mxu0
        %v4685 = vadd.f32 0.0, %v4684
        %4686 = vmatmul.f32.gmra.mxu0 %v4565
        %v4687 = vpop.f32.mrf.mxu0
        %v4688 = vadd.f32 0.0, %v4687
        %4689 = vmatmul.f32.gmra.mxu0 %v4566
        %v4690 = vpop.f32.mrf.mxu0
        %v4691 = vadd.f32 0.0, %v4690
        %4692 = vmatmul.f32.gmra.mxu0 %v4567
        %v4693 = vpop.f32.mrf.mxu0
        %v4694 = vadd.f32 0.0, %v4693
        %4695 = vmatmul.f32.gmra.mxu0 %v4568
        %v4696 = vpop.f32.mrf.mxu0
        %v4697 = vadd.f32 0.0, %v4696
        %4698 = vmatmul.f32.gmra.mxu0 %v4569
        %v4699 = vpop.f32.mrf.mxu0
        %v4700 = vadd.f32 0.0, %v4699
        %4701 = vmatmul.f32.gmra.mxu0 %v4570
        %v4702 = vpop.f32.mrf.mxu0
        %v4703 = vadd.f32 0.0, %v4702
        %4704 = vmatmul.f32.gmra.mxu0 %v4571
        %v4705 = vpop.f32.mrf.mxu0
        %v4706 = vadd.f32 0.0, %v4705
        %4707 = vmatmul.f32.gmra.mxu0 %v4572
        %v4708 = vpop.f32.mrf.mxu0
        %v4709 = vadd.f32 0.0, %v4708
        %4710 = vmatmul.f32.gmra.mxu0 %v4573
        %v4711 = vpop.f32.mrf.mxu0
        %v4712 = vadd.f32 0.0, %v4711
        %4713 = vmatmul.f32.gmra.mxu0 %v4574
        %v4714 = vpop.f32.mrf.mxu0
        %v4715 = vadd.f32 0.0, %v4714
        %4716 = vmatmul.f32.gmra.mxu0 %v4575
        %v4717 = vpop.f32.mrf.mxu0
        %v4718 = vadd.f32 0.0, %v4717
        %4719 = vmatmul.f32.gmra.mxu0 %v4576
        %v4720 = vpop.f32.mrf.mxu0
        %v4721 = vadd.f32 0.0, %v4720
        %4722 = vmatmul.f32.gmra.mxu0 %v4577
        %v4723 = vpop.f32.mrf.mxu0
        %v4724 = vadd.f32 0.0, %v4723
        %4725 = vmatmul.f32.gmra.mxu0 %v4578
        %v4726 = vpop.f32.mrf.mxu0
        %v4727 = vadd.f32 0.0, %v4726
        %4728 = vmatmul.f32.gmra.mxu0 %v4579
        %v4729 = vpop.f32.mrf.mxu0
        %v4730 = vadd.f32 0.0, %v4729
        %4731 = vmatmul.f32.gmra.mxu0 %v4580
        %v4732 = vpop.f32.mrf.mxu0
        %v4733 = vadd.f32 0.0, %v4732
        %4734 = vmatmul.f32.gmra.mxu0 %v4581
        %v4735 = vpop.f32.mrf.mxu0
        %v4736 = vadd.f32 0.0, %v4735
        %4737 = vmatmul.f32.gmra.mxu0 %v4582
        %v4738 = vpop.f32.mrf.mxu0
        %v4739 = vadd.f32 0.0, %v4738
        %4740 = vmatmul.f32.gmra.mxu0 %v4583
        %v4741 = vpop.f32.mrf.mxu0
        %v4742 = vadd.f32 0.0, %v4741
        %4743 = vmatmul.f32.gmra.mxu0 %v4584
        %v4744 = vpop.f32.mrf.mxu0
        %v4745 = vadd.f32 0.0, %v4744
        %4746 = vmatmul.f32.gmra.mxu0 %v4585
        %v4747 = vpop.f32.mrf.mxu0
        %v4748 = vadd.f32 0.0, %v4747
        %4749 = vmatmul.f32.gmra.mxu0 %v4586
        %v4750 = vpop.f32.mrf.mxu0
        %v4751 = vadd.f32 0.0, %v4750
        %4752 = vmatmul.f32.gmra.mxu0 %v4587
        %v4753 = vpop.f32.mrf.mxu0
        %v4754 = vadd.f32 0.0, %v4753
        %4755 = vmatmul.f32.gmra.mxu0 %v4588
        %v4756 = vpop.f32.mrf.mxu0
        %v4757 = vadd.f32 0.0, %v4756
        %4758 = vmatmul.f32.gmra.mxu0 %v4589
        %v4759 = vpop.f32.mrf.mxu0
        %v4760 = vadd.f32 0.0, %v4759
        %4761 = vmatmul.f32.gmra.mxu0 %v4590
        %v4762 = vpop.f32.mrf.mxu0
        %v4763 = vadd.f32 0.0, %v4762
        %4764 = vmatmul.f32.gmra.mxu0 %v4591
        %v4765 = vpop.f32.mrf.mxu0
        %v4766 = vadd.f32 0.0, %v4765
        %4767 = vmatmul.f32.gmra.mxu0 %v4592
        %v4768 = vpop.f32.mrf.mxu0
        %v4769 = vadd.f32 0.0, %v4768
        %4770 = vmatmul.f32.gmra.mxu0 %v4593
        %v4771 = vpop.f32.mrf.mxu0
        %v4772 = vadd.f32 0.0, %v4771
        %4773 = vmatmul.f32.gmra.mxu0 %v4594
        %v4774 = vpop.f32.mrf.mxu0
        %v4775 = vadd.f32 0.0, %v4774
        %4776 = vmatmul.f32.gmra.mxu0 %v4595
        %v4777 = vpop.f32.mrf.mxu0
        %v4778 = vadd.f32 0.0, %v4777
        %4779 = vmatmul.f32.gmra.mxu0 %v4596
        %v4780 = vpop.f32.mrf.mxu0
        %v4781 = vadd.f32 0.0, %v4780
        %4782 = vmatmul.f32.gmra.mxu0 %v4597
        %v4783 = vpop.f32.mrf.mxu0
        %v4784 = vadd.f32 0.0, %v4783
        %4785 = vmatmul.f32.gmra.mxu0 %v4598
        %v4786 = vpop.f32.mrf.mxu0
        %v4787 = vadd.f32 0.0, %v4786
        %4788 = vmatmul.f32.gmra.mxu0 %v4599
        %v4789 = vpop.f32.mrf.mxu0
        %v4790 = vadd.f32 0.0, %v4789
        %4791 = vmatmul.f32.gmra.mxu0 %v4600
        %v4792 = vpop.f32.mrf.mxu0
        %v4793 = vadd.f32 0.0, %v4792
        %4794 = vmatmul.f32.gmra.mxu0 %v4601
        %v4795 = vpop.f32.mrf.mxu0
        %v4796 = vadd.f32 0.0, %v4795
        %4797 = vmatmul.f32.gmra.mxu0 %v4602
        %v4798 = vpop.f32.mrf.mxu0
        %v4799 = vadd.f32 0.0, %v4798
        %4800 = vmatmul.f32.gmra.mxu0 %v4603
        %v4801 = vpop.f32.mrf.mxu0
        %v4802 = vadd.f32 0.0, %v4801
        %4803 = vmatmul.f32.gmra.mxu0 %v4604
        %v4804 = vpop.f32.mrf.mxu0
        %v4805 = vadd.f32 0.0, %v4804
        %4806 = vmatmul.f32.gmra.mxu0 %v4605
        %v4807 = vpop.f32.mrf.mxu0
        %v4808 = vadd.f32 0.0, %v4807
        %4809 = vmatmul.f32.gmra.mxu0 %v4606
        %v4810 = vpop.f32.mrf.mxu0
        %v4811 = vadd.f32 0.0, %v4810
        %4812 = vmatmul.f32.gmra.mxu0 %v4607
        %v4813 = vpop.f32.mrf.mxu0
        %v4814 = vadd.f32 0.0, %v4813
        %4815 = vmatmul.f32.gmra.mxu0 %v4608
        %v4816 = vpop.f32.mrf.mxu0
        %v4817 = vadd.f32 0.0, %v4816
        %4818 = vmatmul.f32.gmra.mxu0 %v4609
        %v4819 = vpop.f32.mrf.mxu0
        %v4820 = vadd.f32 0.0, %v4819
        %4821 = vmatmul.f32.gmra.mxu0 %v4610
        %v4822 = vpop.f32.mrf.mxu0
        %v4823 = vadd.f32 0.0, %v4822
        %4824 = vmatmul.f32.gmra.mxu0 %v4611
        %v4825 = vpop.f32.mrf.mxu0
        %v4826 = vadd.f32 0.0, %v4825
        %4827 = vmatmul.f32.gmra.mxu0 %v4612
        %v4828 = vpop.f32.mrf.mxu0
        %v4829 = vadd.f32 0.0, %v4828
        %4830 = vmatmul.f32.gmra.mxu0 %v4613
        %v4831 = vpop.f32.mrf.mxu0
        %v4832 = vadd.f32 0.0, %v4831
        %4833 = vmatmul.f32.gmra.mxu0 %v4614
        %v4834 = vpop.f32.mrf.mxu0
        %v4835 = vadd.f32 0.0, %v4834
        %4836 = vmatmul.f32.gmra.mxu0 %v4615
        %v4837 = vpop.f32.mrf.mxu0
        %v4838 = vadd.f32 0.0, %v4837
        %4839 = vmatmul.f32.gmra.mxu0 %v4616
        %v4840 = vpop.f32.mrf.mxu0
        %v4841 = vadd.f32 0.0, %v4840
        %4842 = vdwg.mxu0
        %4843 = vset.pattern.permute.xlu0 5
        %4844 = vperm.xlu0 %4843, %v1345
        %v4845 = vpop.permute.xlu0 %4844
        %4847 = vset.pattern.permute.xlu0 5
        %4848 = vperm.xlu0 %4847, %v1346
        %v4849 = vpop.permute.xlu0 %4848
        %4851 = vset.pattern.permute.xlu0 5
        %4852 = vperm.xlu0 %4851, %v1347
        %v4853 = vpop.permute.xlu0 %4852
        %4855 = vset.pattern.permute.xlu0 5
        %4856 = vperm.xlu0 %4855, %v1348
        %v4857 = vpop.permute.xlu0 %4856
        %4859 = vset.pattern.permute.xlu0 5
        %4860 = vperm.xlu0 %4859, %v1349
        %v4861 = vpop.permute.xlu0 %4860
        %4863 = vset.pattern.permute.xlu0 5
        %4864 = vperm.xlu0 %4863, %v1350
        %v4865 = vpop.permute.xlu0 %4864
        %4867 = vset.pattern.permute.xlu0 5
        %4868 = vperm.xlu0 %4867, %v1351
        %v4869 = vpop.permute.xlu0 %4868
        %4871 = vset.pattern.permute.xlu0 5
        %4872 = vperm.xlu0 %4871, %v1352
        %v4873 = vpop.permute.xlu0 %4872
        %4875 = vset.pattern.permute.xlu0 5
        %4876 = vperm.xlu0 %4875, %v1353
        %v4877 = vpop.permute.xlu0 %4876
        %4879 = vset.pattern.permute.xlu0 5
        %4880 = vperm.xlu0 %4879, %v1354
        %v4881 = vpop.permute.xlu0 %4880
        %4883 = vset.pattern.permute.xlu0 5
        %4884 = vperm.xlu0 %4883, %v1355
        %v4885 = vpop.permute.xlu0 %4884
        %4887 = vset.pattern.permute.xlu0 5
        %4888 = vperm.xlu0 %4887, %v1356
        %v4889 = vpop.permute.xlu0 %4888
        %4891 = vset.pattern.permute.xlu0 5
        %4892 = vperm.xlu0 %4891, %v1357
        %v4893 = vpop.permute.xlu0 %4892
        %4895 = vset.pattern.permute.xlu0 5
        %4896 = vperm.xlu0 %4895, %v1358
        %v4897 = vpop.permute.xlu0 %4896
        %4899 = vset.pattern.permute.xlu0 5
        %4900 = vperm.xlu0 %4899, %v1359
        %v4901 = vpop.permute.xlu0 %4900
        %4903 = vset.pattern.permute.xlu0 5
        %4904 = vperm.xlu0 %4903, %v1360
        %v4905 = vpop.permute.xlu0 %4904
        %4907 = vset.pattern.permute.xlu0 5
        %4908 = vperm.xlu0 %4907, %v1361
        %v4909 = vpop.permute.xlu0 %4908
        %4911 = vset.pattern.permute.xlu0 5
        %4912 = vperm.xlu0 %4911, %v1362
        %v4913 = vpop.permute.xlu0 %4912
        %4915 = vset.pattern.permute.xlu0 5
        %4916 = vperm.xlu0 %4915, %v1363
        %v4917 = vpop.permute.xlu0 %4916
        %4919 = vset.pattern.permute.xlu0 5
        %4920 = vperm.xlu0 %4919, %v1364
        %v4921 = vpop.permute.xlu0 %4920
        %4923 = vset.pattern.permute.xlu0 5
        %4924 = vperm.xlu0 %4923, %v1365
        %v4925 = vpop.permute.xlu0 %4924
        %4927 = vset.pattern.permute.xlu0 5
        %4928 = vperm.xlu0 %4927, %v1366
        %v4929 = vpop.permute.xlu0 %4928
        %4931 = vset.pattern.permute.xlu0 5
        %4932 = vperm.xlu0 %4931, %v1367
        %v4933 = vpop.permute.xlu0 %4932
        %4935 = vset.pattern.permute.xlu0 5
        %4936 = vperm.xlu0 %4935, %v1368
        %v4937 = vpop.permute.xlu0 %4936
        %4939 = vset.pattern.permute.xlu0 5
        %4940 = vperm.xlu0 %4939, %v1369
        %v4941 = vpop.permute.xlu0 %4940
        %4943 = vset.pattern.permute.xlu0 5
        %4944 = vperm.xlu0 %4943, %v1370
        %v4945 = vpop.permute.xlu0 %4944
        %4947 = vset.pattern.permute.xlu0 5
        %4948 = vperm.xlu0 %4947, %v1371
        %v4949 = vpop.permute.xlu0 %4948
        %4951 = vset.pattern.permute.xlu0 5
        %4952 = vperm.xlu0 %4951, %v1372
        %v4953 = vpop.permute.xlu0 %4952
        %4955 = vset.pattern.permute.xlu0 5
        %4956 = vperm.xlu0 %4955, %v1373
        %v4957 = vpop.permute.xlu0 %4956
        %4959 = vset.pattern.permute.xlu0 5
        %4960 = vperm.xlu0 %4959, %v1374
        %v4961 = vpop.permute.xlu0 %4960
        %4963 = vset.pattern.permute.xlu0 5
        %4964 = vperm.xlu0 %4963, %v1375
        %v4965 = vpop.permute.xlu0 %4964
        %4967 = vset.pattern.permute.xlu0 5
        %4968 = vperm.xlu0 %4967, %v1376
        %v4969 = vpop.permute.xlu0 %4968
        %4971 = vset.pattern.permute.xlu0 5
        %4972 = vperm.xlu0 %4971, %v1377
        %v4973 = vpop.permute.xlu0 %4972
        %4975 = vset.pattern.permute.xlu0 5
        %4976 = vperm.xlu0 %4975, %v1378
        %v4977 = vpop.permute.xlu0 %4976
        %4979 = vset.pattern.permute.xlu0 5
        %4980 = vperm.xlu0 %4979, %v1379
        %v4981 = vpop.permute.xlu0 %4980
        %4983 = vset.pattern.permute.xlu0 5
        %4984 = vperm.xlu0 %4983, %v1380
        %v4985 = vpop.permute.xlu0 %4984
        %4987 = vset.pattern.permute.xlu0 5
        %4988 = vperm.xlu0 %4987, %v1381
        %v4989 = vpop.permute.xlu0 %4988
        %4991 = vset.pattern.permute.xlu0 5
        %4992 = vperm.xlu0 %4991, %v1382
        %v4993 = vpop.permute.xlu0 %4992
        %4995 = vset.pattern.permute.xlu0 5
        %4996 = vperm.xlu0 %4995, %v1383
        %v4997 = vpop.permute.xlu0 %4996
        %4999 = vset.pattern.permute.xlu0 5
        %5000 = vperm.xlu0 %4999, %v1384
        %v5001 = vpop.permute.xlu0 %5000
        %5003 = vset.pattern.permute.xlu0 5
        %5004 = vperm.xlu0 %5003, %v1385
        %v5005 = vpop.permute.xlu0 %5004
        %5007 = vset.pattern.permute.xlu0 5
        %5008 = vperm.xlu0 %5007, %v1386
        %v5009 = vpop.permute.xlu0 %5008
        %5011 = vset.pattern.permute.xlu0 5
        %5012 = vperm.xlu0 %5011, %v1387
        %v5013 = vpop.permute.xlu0 %5012
        %5015 = vset.pattern.permute.xlu0 5
        %5016 = vperm.xlu0 %5015, %v1388
        %v5017 = vpop.permute.xlu0 %5016
        %5019 = vset.pattern.permute.xlu0 5
        %5020 = vperm.xlu0 %5019, %v1389
        %v5021 = vpop.permute.xlu0 %5020
        %5023 = vset.pattern.permute.xlu0 5
        %5024 = vperm.xlu0 %5023, %v1390
        %v5025 = vpop.permute.xlu0 %5024
        %5027 = vset.pattern.permute.xlu0 5
        %5028 = vperm.xlu0 %5027, %v1391
        %v5029 = vpop.permute.xlu0 %5028
        %5031 = vset.pattern.permute.xlu0 5
        %5032 = vperm.xlu0 %5031, %v1392
        %v5033 = vpop.permute.xlu0 %5032
        %5035 = vset.pattern.permute.xlu0 5
        %5036 = vperm.xlu0 %5035, %v1393
        %v5037 = vpop.permute.xlu0 %5036
        %5039 = vset.pattern.permute.xlu0 5
        %5040 = vperm.xlu0 %5039, %v1394
        %v5041 = vpop.permute.xlu0 %5040
        %5043 = vset.pattern.permute.xlu0 5
        %5044 = vperm.xlu0 %5043, %v1395
        %v5045 = vpop.permute.xlu0 %5044
        %5047 = vset.pattern.permute.xlu0 5
        %5048 = vperm.xlu0 %5047, %v1396
        %v5049 = vpop.permute.xlu0 %5048
        %5051 = vset.pattern.permute.xlu0 5
        %5052 = vperm.xlu0 %5051, %v1397
        %v5053 = vpop.permute.xlu0 %5052
        %5055 = vset.pattern.permute.xlu0 5
        %5056 = vperm.xlu0 %5055, %v1398
        %v5057 = vpop.permute.xlu0 %5056
        %5059 = vset.pattern.permute.xlu0 5
        %5060 = vperm.xlu0 %5059, %v1399
        %v5061 = vpop.permute.xlu0 %5060
        %5063 = vset.pattern.permute.xlu0 5
        %5064 = vperm.xlu0 %5063, %v1400
        %v5065 = vpop.permute.xlu0 %5064
        %5067 = vset.pattern.permute.xlu0 5
        %5068 = vperm.xlu0 %5067, %v1401
        %v5069 = vpop.permute.xlu0 %5068
        %5071 = vset.pattern.permute.xlu0 5
        %5072 = vperm.xlu0 %5071, %v1402
        %v5073 = vpop.permute.xlu0 %5072
        %5075 = vset.pattern.permute.xlu0 5
        %5076 = vperm.xlu0 %5075, %v1403
        %v5077 = vpop.permute.xlu0 %5076
        %5079 = vset.pattern.permute.xlu0 5
        %5080 = vperm.xlu0 %5079, %v1404
        %v5081 = vpop.permute.xlu0 %5080
        %5083 = vset.pattern.permute.xlu0 5
        %5084 = vperm.xlu0 %5083, %v1405
        %v5085 = vpop.permute.xlu0 %5084
        %5087 = vset.pattern.permute.xlu0 5
        %5088 = vperm.xlu0 %5087, %v1406
        %v5089 = vpop.permute.xlu0 %5088
        %5091 = vset.pattern.permute.xlu0 5
        %5092 = vperm.xlu0 %5091, %v1407
        %v5093 = vpop.permute.xlu0 %5092
        %5095 = vset.pattern.permute.xlu0 5
        %5096 = vperm.xlu0 %5095, %v1408
        %v5097 = vpop.permute.xlu0 %5096
        %v5099 = vmul.f32 %v4845, %v4652
        %v5100 = vmul.f32 %v4849, %v4655
        %v5101 = vmul.f32 %v4853, %v4658
        %v5102 = vmul.f32 %v4857, %v4661
        %v5103 = vmul.f32 %v4861, %v4664
        %v5104 = vmul.f32 %v4865, %v4667
        %v5105 = vmul.f32 %v4869, %v4670
        %v5106 = vmul.f32 %v4873, %v4673
        %v5107 = vmul.f32 %v4877, %v4676
        %v5108 = vmul.f32 %v4881, %v4679
        %v5109 = vmul.f32 %v4885, %v4682
        %v5110 = vmul.f32 %v4889, %v4685
        %v5111 = vmul.f32 %v4893, %v4688
        %v5112 = vmul.f32 %v4897, %v4691
        %v5113 = vmul.f32 %v4901, %v4694
        %v5114 = vmul.f32 %v4905, %v4697
        %v5115 = vmul.f32 %v4909, %v4700
        %v5116 = vmul.f32 %v4913, %v4703
        %v5117 = vmul.f32 %v4917, %v4706
        %v5118 = vmul.f32 %v4921, %v4709
        %v5119 = vmul.f32 %v4925, %v4712
        %v5120 = vmul.f32 %v4929, %v4715
        %v5121 = vmul.f32 %v4933, %v4718
        %v5122 = vmul.f32 %v4937, %v4721
        %v5123 = vmul.f32 %v4941, %v4724
        %v5124 = vmul.f32 %v4945, %v4727
        %v5125 = vmul.f32 %v4949, %v4730
        %v5126 = vmul.f32 %v4953, %v4733
        %v5127 = vmul.f32 %v4957, %v4736
        %v5128 = vmul.f32 %v4961, %v4739
        %v5129 = vmul.f32 %v4965, %v4742
        %v5130 = vmul.f32 %v4969, %v4745
        %v5131 = vmul.f32 %v4973, %v4748
        %v5132 = vmul.f32 %v4977, %v4751
        %v5133 = vmul.f32 %v4981, %v4754
        %v5134 = vmul.f32 %v4985, %v4757
        %v5135 = vmul.f32 %v4989, %v4760
        %v5136 = vmul.f32 %v4993, %v4763
        %v5137 = vmul.f32 %v4997, %v4766
        %v5138 = vmul.f32 %v5001, %v4769
        %v5139 = vmul.f32 %v5005, %v4772
        %v5140 = vmul.f32 %v5009, %v4775
        %v5141 = vmul.f32 %v5013, %v4778
        %v5142 = vmul.f32 %v5017, %v4781
        %v5143 = vmul.f32 %v5021, %v4784
        %v5144 = vmul.f32 %v5025, %v4787
        %v5145 = vmul.f32 %v5029, %v4790
        %v5146 = vmul.f32 %v5033, %v4793
        %v5147 = vmul.f32 %v5037, %v4796
        %v5148 = vmul.f32 %v5041, %v4799
        %v5149 = vmul.f32 %v5045, %v4802
        %v5150 = vmul.f32 %v5049, %v4805
        %v5151 = vmul.f32 %v5053, %v4808
        %v5152 = vmul.f32 %v5057, %v4811
        %v5153 = vmul.f32 %v5061, %v4814
        %v5154 = vmul.f32 %v5065, %v4817
        %v5155 = vmul.f32 %v5069, %v4820
        %v5156 = vmul.f32 %v5073, %v4823
        %v5157 = vmul.f32 %v5077, %v4826
        %v5158 = vmul.f32 %v5081, %v4829
        %v5159 = vmul.f32 %v5085, %v4832
        %v5160 = vmul.f32 %v5089, %v4835
        %v5161 = vmul.f32 %v5093, %v4838
        %v5162 = vmul.f32 %v5097, %v4841
        %v5163 = vadd.f32 %v4489, %v5099
        %v5164 = vadd.f32 %v4490, %v5100
        %v5165 = vadd.f32 %v4491, %v5101
        %v5166 = vadd.f32 %v4492, %v5102
        %v5167 = vadd.f32 %v4493, %v5103
        %v5168 = vadd.f32 %v4494, %v5104
        %v5169 = vadd.f32 %v4495, %v5105
        %v5170 = vadd.f32 %v4496, %v5106
        %v5171 = vadd.f32 %v4497, %v5107
        %v5172 = vadd.f32 %v4498, %v5108
        %v5173 = vadd.f32 %v4499, %v5109
        %v5174 = vadd.f32 %v4500, %v5110
        %v5175 = vadd.f32 %v4501, %v5111
        %v5176 = vadd.f32 %v4502, %v5112
        %v5177 = vadd.f32 %v4503, %v5113
        %v5178 = vadd.f32 %v4504, %v5114
        %v5179 = vadd.f32 %v4505, %v5115
        %v5180 = vadd.f32 %v4506, %v5116
        %v5181 = vadd.f32 %v4507, %v5117
        %v5182 = vadd.f32 %v4508, %v5118
        %v5183 = vadd.f32 %v4509, %v5119
        %v5184 = vadd.f32 %v4510, %v5120
        %v5185 = vadd.f32 %v4511, %v5121
        %v5186 = vadd.f32 %v4512, %v5122
        %v5187 = vadd.f32 %v4513, %v5123
        %v5188 = vadd.f32 %v4514, %v5124
        %v5189 = vadd.f32 %v4515, %v5125
        %v5190 = vadd.f32 %v4516, %v5126
        %v5191 = vadd.f32 %v4517, %v5127
        %v5192 = vadd.f32 %v4518, %v5128
        %v5193 = vadd.f32 %v4519, %v5129
        %v5194 = vadd.f32 %v4520, %v5130
        %v5195 = vadd.f32 %v4521, %v5131
        %v5196 = vadd.f32 %v4522, %v5132
        %v5197 = vadd.f32 %v4523, %v5133
        %v5198 = vadd.f32 %v4524, %v5134
        %v5199 = vadd.f32 %v4525, %v5135
        %v5200 = vadd.f32 %v4526, %v5136
        %v5201 = vadd.f32 %v4527, %v5137
        %v5202 = vadd.f32 %v4528, %v5138
        %v5203 = vadd.f32 %v4529, %v5139
        %v5204 = vadd.f32 %v4530, %v5140
        %v5205 = vadd.f32 %v4531, %v5141
        %v5206 = vadd.f32 %v4532, %v5142
        %v5207 = vadd.f32 %v4533, %v5143
        %v5208 = vadd.f32 %v4534, %v5144
        %v5209 = vadd.f32 %v4535, %v5145
        %v5210 = vadd.f32 %v4536, %v5146
        %v5211 = vadd.f32 %v4537, %v5147
        %v5212 = vadd.f32 %v4538, %v5148
        %v5213 = vadd.f32 %v4539, %v5149
        %v5214 = vadd.f32 %v4540, %v5150
        %v5215 = vadd.f32 %v4541, %v5151
        %v5216 = vadd.f32 %v4542, %v5152
        %v5217 = vadd.f32 %v4543, %v5153
        %v5218 = vadd.f32 %v4544, %v5154
        %v5219 = vadd.f32 %v4545, %v5155
        %v5220 = vadd.f32 %v4546, %v5156
        %v5221 = vadd.f32 %v4547, %v5157
        %v5222 = vadd.f32 %v4548, %v5158
        %v5223 = vadd.f32 %v4549, %v5159
        %v5224 = vadd.f32 %v4550, %v5160
        %v5225 = vadd.f32 %v4551, %v5161
        %v5226 = vadd.f32 %v4552, %v5162
        %v5227 = vld [vmem:[#allocation2 + $0x27] sm:$0xff]
        %v5228 = vld [vmem:[#allocation2 + $0x2f] sm:$0xff]
        %v5229 = vld [vmem:[#allocation2 + $0x37] sm:$0xff]
        %v5230 = vld [vmem:[#allocation2 + $0x3f] sm:$0xff]
        %v5231 = vld [vmem:[#allocation2 + $0x47] sm:$0xff]
        %v5232 = vld [vmem:[#allocation2 + $0x4f] sm:$0xff]
        %v5233 = vld [vmem:[#allocation2 + $0x57] sm:$0xff]
        %v5234 = vld [vmem:[#allocation2 + $0x5f] sm:$0xff]
        %v5235 = vld [vmem:[#allocation2 + $0x67] sm:$0xff]
        %v5236 = vld [vmem:[#allocation2 + $0x6f] sm:$0xff]
        %v5237 = vld [vmem:[#allocation2 + $0x77] sm:$0xff]
        %v5238 = vld [vmem:[#allocation2 + $0x7f] sm:$0xff]
        %v5239 = vld [vmem:[#allocation2 + $0x87] sm:$0xff]
        %v5240 = vld [vmem:[#allocation2 + $0x8f] sm:$0xff]
        %v5241 = vld [vmem:[#allocation2 + $0x97] sm:$0xff]
        %v5242 = vld [vmem:[#allocation2 + $0x9f] sm:$0xff]
        %v5243 = vld [vmem:[#allocation2 + $0xa7] sm:$0xff]
        %v5244 = vld [vmem:[#allocation2 + $0xaf] sm:$0xff]
        %v5245 = vld [vmem:[#allocation2 + $0xb7] sm:$0xff]
        %v5246 = vld [vmem:[#allocation2 + $0xbf] sm:$0xff]
        %v5247 = vld [vmem:[#allocation2 + $0xc7] sm:$0xff]
        %v5248 = vld [vmem:[#allocation2 + $0xcf] sm:$0xff]
        %v5249 = vld [vmem:[#allocation2 + $0xd7] sm:$0xff]
        %v5250 = vld [vmem:[#allocation2 + $0xdf] sm:$0xff]
        %v5251 = vld [vmem:[#allocation2 + $0xe7] sm:$0xff]
        %v5252 = vld [vmem:[#allocation2 + $0xef] sm:$0xff]
        %v5253 = vld [vmem:[#allocation2 + $0xf7] sm:$0xff]
        %v5254 = vld [vmem:[#allocation2 + $0xff] sm:$0xff]
        %v5255 = vld [vmem:[#allocation2 + $0x107] sm:$0xff]
        %v5256 = vld [vmem:[#allocation2 + $0x10f] sm:$0xff]
        %v5257 = vld [vmem:[#allocation2 + $0x117] sm:$0xff]
        %v5258 = vld [vmem:[#allocation2 + $0x11f] sm:$0xff]
        %v5259 = vld [vmem:[#allocation2 + $0x127] sm:$0xff]
        %v5260 = vld [vmem:[#allocation2 + $0x12f] sm:$0xff]
        %v5261 = vld [vmem:[#allocation2 + $0x137] sm:$0xff]
        %v5262 = vld [vmem:[#allocation2 + $0x13f] sm:$0xff]
        %v5263 = vld [vmem:[#allocation2 + $0x147] sm:$0xff]
        %v5264 = vld [vmem:[#allocation2 + $0x14f] sm:$0xff]
        %v5265 = vld [vmem:[#allocation2 + $0x157] sm:$0xff]
        %v5266 = vld [vmem:[#allocation2 + $0x15f] sm:$0xff]
        %v5267 = vld [vmem:[#allocation2 + $0x167] sm:$0xff]
        %v5268 = vld [vmem:[#allocation2 + $0x16f] sm:$0xff]
        %v5269 = vld [vmem:[#allocation2 + $0x177] sm:$0xff]
        %v5270 = vld [vmem:[#allocation2 + $0x17f] sm:$0xff]
        %v5271 = vld [vmem:[#allocation2 + $0x187] sm:$0xff]
        %v5272 = vld [vmem:[#allocation2 + $0x18f] sm:$0xff]
        %v5273 = vld [vmem:[#allocation2 + $0x197] sm:$0xff]
        %v5274 = vld [vmem:[#allocation2 + $0x19f] sm:$0xff]
        %v5275 = vld [vmem:[#allocation2 + $0x1a7] sm:$0xff]
        %v5276 = vld [vmem:[#allocation2 + $0x1af] sm:$0xff]
        %v5277 = vld [vmem:[#allocation2 + $0x1b7] sm:$0xff]
        %v5278 = vld [vmem:[#allocation2 + $0x1bf] sm:$0xff]
        %v5279 = vld [vmem:[#allocation2 + $0x1c7] sm:$0xff]
        %v5280 = vld [vmem:[#allocation2 + $0x1cf] sm:$0xff]
        %v5281 = vld [vmem:[#allocation2 + $0x1d7] sm:$0xff]
        %v5282 = vld [vmem:[#allocation2 + $0x1df] sm:$0xff]
        %v5283 = vld [vmem:[#allocation2 + $0x1e7] sm:$0xff]
        %v5284 = vld [vmem:[#allocation2 + $0x1ef] sm:$0xff]
        %v5285 = vld [vmem:[#allocation2 + $0x1f7] sm:$0xff]
        %v5286 = vld [vmem:[#allocation2 + $0x1ff] sm:$0xff]
        %v5287 = vld [vmem:[#allocation2 + $0x207] sm:$0xff]
        %v5288 = vld [vmem:[#allocation2 + $0x20f] sm:$0xff]
        %v5289 = vld [vmem:[#allocation2 + $0x217] sm:$0xff]
        %v5290 = vld [vmem:[#allocation2 + $0x21f] sm:$0xff]
        %s5291 = scalar_lea.vmem %s4, 768
        %v5292 = vld [vmem:[%s5291] sm:$0xff]
        %v5293 = vld [vmem:[%s5291 + $0x8] sm:$0xff]
        %v5294 = vld [vmem:[%s5291 + $0x10] sm:$0xff]
        %v5295 = vld [vmem:[%s5291 + $0x18] sm:$0xff]
        %v5296 = vld [vmem:[%s5291 + $0x20] sm:$0xff]
        %v5297 = vld [vmem:[%s5291 + $0x28] sm:$0xff]
        %v5298 = vld [vmem:[%s5291 + $0x30] sm:$0xff]
        %v5299 = vld [vmem:[%s5291 + $0x38] sm:$0xff]
        %v5300 = vld [vmem:[%s5291 + $0x40] sm:$0xff]
        %v5301 = vld [vmem:[%s5291 + $0x48] sm:$0xff]
        %v5302 = vld [vmem:[%s5291 + $0x50] sm:$0xff]
        %v5303 = vld [vmem:[%s5291 + $0x58] sm:$0xff]
        %v5304 = vld [vmem:[%s5291 + $0x60] sm:$0xff]
        %v5305 = vld [vmem:[%s5291 + $0x68] sm:$0xff]
        %v5306 = vld [vmem:[%s5291 + $0x70] sm:$0xff]
        %v5307 = vld [vmem:[%s5291 + $0x78] sm:$0xff]
        %5308 = vmatpush.msra.mxu0 %v5307
        %5309 = vmatpush.msra.mxu0 %v5306
        %5310 = vmatpush.msra.mxu0 %v5305
        %5311 = vmatpush.msra.mxu0 %v5304
        %5312 = vmatpush.msra.mxu0 %v5303
        %5313 = vmatpush.msra.mxu0 %v5302
        %5314 = vmatpush.msra.mxu0 %v5301
        %5315 = vmatpush.msra.mxu0 %v5300
        %5316 = vmatpush.msra.mxu0 %v5299
        %5317 = vmatpush.msra.mxu0 %v5298
        %5318 = vmatpush.msra.mxu0 %v5297
        %5319 = vmatpush.msra.mxu0 %v5296
        %5320 = vmatpush.msra.mxu0 %v5295
        %5321 = vmatpush.msra.mxu0 %v5294
        %5322 = vmatpush.msra.mxu0 %v5293
        %5323 = vmatpush.msra.mxu0 %v5292
        %5324 = vmatmul.f32.gmra.mxu0 %v5227
        %v5325 = vpop.f32.mrf.mxu0
        %v5326 = vadd.f32 0.0, %v5325
        %5327 = vmatmul.f32.gmra.mxu0 %v5228
        %v5328 = vpop.f32.mrf.mxu0
        %v5329 = vadd.f32 0.0, %v5328
        %5330 = vmatmul.f32.gmra.mxu0 %v5229
        %v5331 = vpop.f32.mrf.mxu0
        %v5332 = vadd.f32 0.0, %v5331
        %5333 = vmatmul.f32.gmra.mxu0 %v5230
        %v5334 = vpop.f32.mrf.mxu0
        %v5335 = vadd.f32 0.0, %v5334
        %5336 = vmatmul.f32.gmra.mxu0 %v5231
        %v5337 = vpop.f32.mrf.mxu0
        %v5338 = vadd.f32 0.0, %v5337
        %5339 = vmatmul.f32.gmra.mxu0 %v5232
        %v5340 = vpop.f32.mrf.mxu0
        %v5341 = vadd.f32 0.0, %v5340
        %5342 = vmatmul.f32.gmra.mxu0 %v5233
        %v5343 = vpop.f32.mrf.mxu0
        %v5344 = vadd.f32 0.0, %v5343
        %5345 = vmatmul.f32.gmra.mxu0 %v5234
        %v5346 = vpop.f32.mrf.mxu0
        %v5347 = vadd.f32 0.0, %v5346
        %5348 = vmatmul.f32.gmra.mxu0 %v5235
        %v5349 = vpop.f32.mrf.mxu0
        %v5350 = vadd.f32 0.0, %v5349
        %5351 = vmatmul.f32.gmra.mxu0 %v5236
        %v5352 = vpop.f32.mrf.mxu0
        %v5353 = vadd.f32 0.0, %v5352
        %5354 = vmatmul.f32.gmra.mxu0 %v5237
        %v5355 = vpop.f32.mrf.mxu0
        %v5356 = vadd.f32 0.0, %v5355
        %5357 = vmatmul.f32.gmra.mxu0 %v5238
        %v5358 = vpop.f32.mrf.mxu0
        %v5359 = vadd.f32 0.0, %v5358
        %5360 = vmatmul.f32.gmra.mxu0 %v5239
        %v5361 = vpop.f32.mrf.mxu0
        %v5362 = vadd.f32 0.0, %v5361
        %5363 = vmatmul.f32.gmra.mxu0 %v5240
        %v5364 = vpop.f32.mrf.mxu0
        %v5365 = vadd.f32 0.0, %v5364
        %5366 = vmatmul.f32.gmra.mxu0 %v5241
        %v5367 = vpop.f32.mrf.mxu0
        %v5368 = vadd.f32 0.0, %v5367
        %5369 = vmatmul.f32.gmra.mxu0 %v5242
        %v5370 = vpop.f32.mrf.mxu0
        %v5371 = vadd.f32 0.0, %v5370
        %5372 = vmatmul.f32.gmra.mxu0 %v5243
        %v5373 = vpop.f32.mrf.mxu0
        %v5374 = vadd.f32 0.0, %v5373
        %5375 = vmatmul.f32.gmra.mxu0 %v5244
        %v5376 = vpop.f32.mrf.mxu0
        %v5377 = vadd.f32 0.0, %v5376
        %5378 = vmatmul.f32.gmra.mxu0 %v5245
        %v5379 = vpop.f32.mrf.mxu0
        %v5380 = vadd.f32 0.0, %v5379
        %5381 = vmatmul.f32.gmra.mxu0 %v5246
        %v5382 = vpop.f32.mrf.mxu0
        %v5383 = vadd.f32 0.0, %v5382
        %5384 = vmatmul.f32.gmra.mxu0 %v5247
        %v5385 = vpop.f32.mrf.mxu0
        %v5386 = vadd.f32 0.0, %v5385
        %5387 = vmatmul.f32.gmra.mxu0 %v5248
        %v5388 = vpop.f32.mrf.mxu0
        %v5389 = vadd.f32 0.0, %v5388
        %5390 = vmatmul.f32.gmra.mxu0 %v5249
        %v5391 = vpop.f32.mrf.mxu0
        %v5392 = vadd.f32 0.0, %v5391
        %5393 = vmatmul.f32.gmra.mxu0 %v5250
        %v5394 = vpop.f32.mrf.mxu0
        %v5395 = vadd.f32 0.0, %v5394
        %5396 = vmatmul.f32.gmra.mxu0 %v5251
        %v5397 = vpop.f32.mrf.mxu0
        %v5398 = vadd.f32 0.0, %v5397
        %5399 = vmatmul.f32.gmra.mxu0 %v5252
        %v5400 = vpop.f32.mrf.mxu0
        %v5401 = vadd.f32 0.0, %v5400
        %5402 = vmatmul.f32.gmra.mxu0 %v5253
        %v5403 = vpop.f32.mrf.mxu0
        %v5404 = vadd.f32 0.0, %v5403
        %5405 = vmatmul.f32.gmra.mxu0 %v5254
        %v5406 = vpop.f32.mrf.mxu0
        %v5407 = vadd.f32 0.0, %v5406
        %5408 = vmatmul.f32.gmra.mxu0 %v5255
        %v5409 = vpop.f32.mrf.mxu0
        %v5410 = vadd.f32 0.0, %v5409
        %5411 = vmatmul.f32.gmra.mxu0 %v5256
        %v5412 = vpop.f32.mrf.mxu0
        %v5413 = vadd.f32 0.0, %v5412
        %5414 = vmatmul.f32.gmra.mxu0 %v5257
        %v5415 = vpop.f32.mrf.mxu0
        %v5416 = vadd.f32 0.0, %v5415
        %5417 = vmatmul.f32.gmra.mxu0 %v5258
        %v5418 = vpop.f32.mrf.mxu0
        %v5419 = vadd.f32 0.0, %v5418
        %5420 = vmatmul.f32.gmra.mxu0 %v5259
        %v5421 = vpop.f32.mrf.mxu0
        %v5422 = vadd.f32 0.0, %v5421
        %5423 = vmatmul.f32.gmra.mxu0 %v5260
        %v5424 = vpop.f32.mrf.mxu0
        %v5425 = vadd.f32 0.0, %v5424
        %5426 = vmatmul.f32.gmra.mxu0 %v5261
        %v5427 = vpop.f32.mrf.mxu0
        %v5428 = vadd.f32 0.0, %v5427
        %5429 = vmatmul.f32.gmra.mxu0 %v5262
        %v5430 = vpop.f32.mrf.mxu0
        %v5431 = vadd.f32 0.0, %v5430
        %5432 = vmatmul.f32.gmra.mxu0 %v5263
        %v5433 = vpop.f32.mrf.mxu0
        %v5434 = vadd.f32 0.0, %v5433
        %5435 = vmatmul.f32.gmra.mxu0 %v5264
        %v5436 = vpop.f32.mrf.mxu0
        %v5437 = vadd.f32 0.0, %v5436
        %5438 = vmatmul.f32.gmra.mxu0 %v5265
        %v5439 = vpop.f32.mrf.mxu0
        %v5440 = vadd.f32 0.0, %v5439
        %5441 = vmatmul.f32.gmra.mxu0 %v5266
        %v5442 = vpop.f32.mrf.mxu0
        %v5443 = vadd.f32 0.0, %v5442
        %5444 = vmatmul.f32.gmra.mxu0 %v5267
        %v5445 = vpop.f32.mrf.mxu0
        %v5446 = vadd.f32 0.0, %v5445
        %5447 = vmatmul.f32.gmra.mxu0 %v5268
        %v5448 = vpop.f32.mrf.mxu0
        %v5449 = vadd.f32 0.0, %v5448
        %5450 = vmatmul.f32.gmra.mxu0 %v5269
        %v5451 = vpop.f32.mrf.mxu0
        %v5452 = vadd.f32 0.0, %v5451
        %5453 = vmatmul.f32.gmra.mxu0 %v5270
        %v5454 = vpop.f32.mrf.mxu0
        %v5455 = vadd.f32 0.0, %v5454
        %5456 = vmatmul.f32.gmra.mxu0 %v5271
        %v5457 = vpop.f32.mrf.mxu0
        %v5458 = vadd.f32 0.0, %v5457
        %5459 = vmatmul.f32.gmra.mxu0 %v5272
        %v5460 = vpop.f32.mrf.mxu0
        %v5461 = vadd.f32 0.0, %v5460
        %5462 = vmatmul.f32.gmra.mxu0 %v5273
        %v5463 = vpop.f32.mrf.mxu0
        %v5464 = vadd.f32 0.0, %v5463
        %5465 = vmatmul.f32.gmra.mxu0 %v5274
        %v5466 = vpop.f32.mrf.mxu0
        %v5467 = vadd.f32 0.0, %v5466
        %5468 = vmatmul.f32.gmra.mxu0 %v5275
        %v5469 = vpop.f32.mrf.mxu0
        %v5470 = vadd.f32 0.0, %v5469
        %5471 = vmatmul.f32.gmra.mxu0 %v5276
        %v5472 = vpop.f32.mrf.mxu0
        %v5473 = vadd.f32 0.0, %v5472
        %5474 = vmatmul.f32.gmra.mxu0 %v5277
        %v5475 = vpop.f32.mrf.mxu0
        %v5476 = vadd.f32 0.0, %v5475
        %5477 = vmatmul.f32.gmra.mxu0 %v5278
        %v5478 = vpop.f32.mrf.mxu0
        %v5479 = vadd.f32 0.0, %v5478
        %5480 = vmatmul.f32.gmra.mxu0 %v5279
        %v5481 = vpop.f32.mrf.mxu0
        %v5482 = vadd.f32 0.0, %v5481
        %5483 = vmatmul.f32.gmra.mxu0 %v5280
        %v5484 = vpop.f32.mrf.mxu0
        %v5485 = vadd.f32 0.0, %v5484
        %5486 = vmatmul.f32.gmra.mxu0 %v5281
        %v5487 = vpop.f32.mrf.mxu0
        %v5488 = vadd.f32 0.0, %v5487
        %5489 = vmatmul.f32.gmra.mxu0 %v5282
        %v5490 = vpop.f32.mrf.mxu0
        %v5491 = vadd.f32 0.0, %v5490
        %5492 = vmatmul.f32.gmra.mxu0 %v5283
        %v5493 = vpop.f32.mrf.mxu0
        %v5494 = vadd.f32 0.0, %v5493
        %5495 = vmatmul.f32.gmra.mxu0 %v5284
        %v5496 = vpop.f32.mrf.mxu0
        %v5497 = vadd.f32 0.0, %v5496
        %5498 = vmatmul.f32.gmra.mxu0 %v5285
        %v5499 = vpop.f32.mrf.mxu0
        %v5500 = vadd.f32 0.0, %v5499
        %5501 = vmatmul.f32.gmra.mxu0 %v5286
        %v5502 = vpop.f32.mrf.mxu0
        %v5503 = vadd.f32 0.0, %v5502
        %5504 = vmatmul.f32.gmra.mxu0 %v5287
        %v5505 = vpop.f32.mrf.mxu0
        %v5506 = vadd.f32 0.0, %v5505
        %5507 = vmatmul.f32.gmra.mxu0 %v5288
        %v5508 = vpop.f32.mrf.mxu0
        %v5509 = vadd.f32 0.0, %v5508
        %5510 = vmatmul.f32.gmra.mxu0 %v5289
        %v5511 = vpop.f32.mrf.mxu0
        %v5512 = vadd.f32 0.0, %v5511
        %5513 = vmatmul.f32.gmra.mxu0 %v5290
        %v5514 = vpop.f32.mrf.mxu0
        %v5515 = vadd.f32 0.0, %v5514
        %5516 = vdwg.mxu0
        %5517 = vset.pattern.permute.xlu0 6
        %5518 = vperm.xlu0 %5517, %v1345
        %v5519 = vpop.permute.xlu0 %5518
        %5521 = vset.pattern.permute.xlu0 6
        %5522 = vperm.xlu0 %5521, %v1346
        %v5523 = vpop.permute.xlu0 %5522
        %5525 = vset.pattern.permute.xlu0 6
        %5526 = vperm.xlu0 %5525, %v1347
        %v5527 = vpop.permute.xlu0 %5526
        %5529 = vset.pattern.permute.xlu0 6
        %5530 = vperm.xlu0 %5529, %v1348
        %v5531 = vpop.permute.xlu0 %5530
        %5533 = vset.pattern.permute.xlu0 6
        %5534 = vperm.xlu0 %5533, %v1349
        %v5535 = vpop.permute.xlu0 %5534
        %5537 = vset.pattern.permute.xlu0 6
        %5538 = vperm.xlu0 %5537, %v1350
        %v5539 = vpop.permute.xlu0 %5538
        %5541 = vset.pattern.permute.xlu0 6
        %5542 = vperm.xlu0 %5541, %v1351
        %v5543 = vpop.permute.xlu0 %5542
        %5545 = vset.pattern.permute.xlu0 6
        %5546 = vperm.xlu0 %5545, %v1352
        %v5547 = vpop.permute.xlu0 %5546
        %5549 = vset.pattern.permute.xlu0 6
        %5550 = vperm.xlu0 %5549, %v1353
        %v5551 = vpop.permute.xlu0 %5550
        %5553 = vset.pattern.permute.xlu0 6
        %5554 = vperm.xlu0 %5553, %v1354
        %v5555 = vpop.permute.xlu0 %5554
        %5557 = vset.pattern.permute.xlu0 6
        %5558 = vperm.xlu0 %5557, %v1355
        %v5559 = vpop.permute.xlu0 %5558
        %5561 = vset.pattern.permute.xlu0 6
        %5562 = vperm.xlu0 %5561, %v1356
        %v5563 = vpop.permute.xlu0 %5562
        %5565 = vset.pattern.permute.xlu0 6
        %5566 = vperm.xlu0 %5565, %v1357
        %v5567 = vpop.permute.xlu0 %5566
        %5569 = vset.pattern.permute.xlu0 6
        %5570 = vperm.xlu0 %5569, %v1358
        %v5571 = vpop.permute.xlu0 %5570
        %5573 = vset.pattern.permute.xlu0 6
        %5574 = vperm.xlu0 %5573, %v1359
        %v5575 = vpop.permute.xlu0 %5574
        %5577 = vset.pattern.permute.xlu0 6
        %5578 = vperm.xlu0 %5577, %v1360
        %v5579 = vpop.permute.xlu0 %5578
        %5581 = vset.pattern.permute.xlu0 6
        %5582 = vperm.xlu0 %5581, %v1361
        %v5583 = vpop.permute.xlu0 %5582
        %5585 = vset.pattern.permute.xlu0 6
        %5586 = vperm.xlu0 %5585, %v1362
        %v5587 = vpop.permute.xlu0 %5586
        %5589 = vset.pattern.permute.xlu0 6
        %5590 = vperm.xlu0 %5589, %v1363
        %v5591 = vpop.permute.xlu0 %5590
        %5593 = vset.pattern.permute.xlu0 6
        %5594 = vperm.xlu0 %5593, %v1364
        %v5595 = vpop.permute.xlu0 %5594
        %5597 = vset.pattern.permute.xlu0 6
        %5598 = vperm.xlu0 %5597, %v1365
        %v5599 = vpop.permute.xlu0 %5598
        %5601 = vset.pattern.permute.xlu0 6
        %5602 = vperm.xlu0 %5601, %v1366
        %v5603 = vpop.permute.xlu0 %5602
        %5605 = vset.pattern.permute.xlu0 6
        %5606 = vperm.xlu0 %5605, %v1367
        %v5607 = vpop.permute.xlu0 %5606
        %5609 = vset.pattern.permute.xlu0 6
        %5610 = vperm.xlu0 %5609, %v1368
        %v5611 = vpop.permute.xlu0 %5610
        %5613 = vset.pattern.permute.xlu0 6
        %5614 = vperm.xlu0 %5613, %v1369
        %v5615 = vpop.permute.xlu0 %5614
        %5617 = vset.pattern.permute.xlu0 6
        %5618 = vperm.xlu0 %5617, %v1370
        %v5619 = vpop.permute.xlu0 %5618
        %5621 = vset.pattern.permute.xlu0 6
        %5622 = vperm.xlu0 %5621, %v1371
        %v5623 = vpop.permute.xlu0 %5622
        %5625 = vset.pattern.permute.xlu0 6
        %5626 = vperm.xlu0 %5625, %v1372
        %v5627 = vpop.permute.xlu0 %5626
        %5629 = vset.pattern.permute.xlu0 6
        %5630 = vperm.xlu0 %5629, %v1373
        %v5631 = vpop.permute.xlu0 %5630
        %5633 = vset.pattern.permute.xlu0 6
        %5634 = vperm.xlu0 %5633, %v1374
        %v5635 = vpop.permute.xlu0 %5634
        %5637 = vset.pattern.permute.xlu0 6
        %5638 = vperm.xlu0 %5637, %v1375
        %v5639 = vpop.permute.xlu0 %5638
        %5641 = vset.pattern.permute.xlu0 6
        %5642 = vperm.xlu0 %5641, %v1376
        %v5643 = vpop.permute.xlu0 %5642
        %5645 = vset.pattern.permute.xlu0 6
        %5646 = vperm.xlu0 %5645, %v1377
        %v5647 = vpop.permute.xlu0 %5646
        %5649 = vset.pattern.permute.xlu0 6
        %5650 = vperm.xlu0 %5649, %v1378
        %v5651 = vpop.permute.xlu0 %5650
        %5653 = vset.pattern.permute.xlu0 6
        %5654 = vperm.xlu0 %5653, %v1379
        %v5655 = vpop.permute.xlu0 %5654
        %5657 = vset.pattern.permute.xlu0 6
        %5658 = vperm.xlu0 %5657, %v1380
        %v5659 = vpop.permute.xlu0 %5658
        %5661 = vset.pattern.permute.xlu0 6
        %5662 = vperm.xlu0 %5661, %v1381
        %v5663 = vpop.permute.xlu0 %5662
        %5665 = vset.pattern.permute.xlu0 6
        %5666 = vperm.xlu0 %5665, %v1382
        %v5667 = vpop.permute.xlu0 %5666
        %5669 = vset.pattern.permute.xlu0 6
        %5670 = vperm.xlu0 %5669, %v1383
        %v5671 = vpop.permute.xlu0 %5670
        %5673 = vset.pattern.permute.xlu0 6
        %5674 = vperm.xlu0 %5673, %v1384
        %v5675 = vpop.permute.xlu0 %5674
        %5677 = vset.pattern.permute.xlu0 6
        %5678 = vperm.xlu0 %5677, %v1385
        %v5679 = vpop.permute.xlu0 %5678
        %5681 = vset.pattern.permute.xlu0 6
        %5682 = vperm.xlu0 %5681, %v1386
        %v5683 = vpop.permute.xlu0 %5682
        %5685 = vset.pattern.permute.xlu0 6
        %5686 = vperm.xlu0 %5685, %v1387
        %v5687 = vpop.permute.xlu0 %5686
        %5689 = vset.pattern.permute.xlu0 6
        %5690 = vperm.xlu0 %5689, %v1388
        %v5691 = vpop.permute.xlu0 %5690
        %5693 = vset.pattern.permute.xlu0 6
        %5694 = vperm.xlu0 %5693, %v1389
        %v5695 = vpop.permute.xlu0 %5694
        %5697 = vset.pattern.permute.xlu0 6
        %5698 = vperm.xlu0 %5697, %v1390
        %v5699 = vpop.permute.xlu0 %5698
        %5701 = vset.pattern.permute.xlu0 6
        %5702 = vperm.xlu0 %5701, %v1391
        %v5703 = vpop.permute.xlu0 %5702
        %5705 = vset.pattern.permute.xlu0 6
        %5706 = vperm.xlu0 %5705, %v1392
        %v5707 = vpop.permute.xlu0 %5706
        %5709 = vset.pattern.permute.xlu0 6
        %5710 = vperm.xlu0 %5709, %v1393
        %v5711 = vpop.permute.xlu0 %5710
        %5713 = vset.pattern.permute.xlu0 6
        %5714 = vperm.xlu0 %5713, %v1394
        %v5715 = vpop.permute.xlu0 %5714
        %5717 = vset.pattern.permute.xlu0 6
        %5718 = vperm.xlu0 %5717, %v1395
        %v5719 = vpop.permute.xlu0 %5718
        %5721 = vset.pattern.permute.xlu0 6
        %5722 = vperm.xlu0 %5721, %v1396
        %v5723 = vpop.permute.xlu0 %5722
        %5725 = vset.pattern.permute.xlu0 6
        %5726 = vperm.xlu0 %5725, %v1397
        %v5727 = vpop.permute.xlu0 %5726
        %5729 = vset.pattern.permute.xlu0 6
        %5730 = vperm.xlu0 %5729, %v1398
        %v5731 = vpop.permute.xlu0 %5730
        %5733 = vset.pattern.permute.xlu0 6
        %5734 = vperm.xlu0 %5733, %v1399
        %v5735 = vpop.permute.xlu0 %5734
        %5737 = vset.pattern.permute.xlu0 6
        %5738 = vperm.xlu0 %5737, %v1400
        %v5739 = vpop.permute.xlu0 %5738
        %5741 = vset.pattern.permute.xlu0 6
        %5742 = vperm.xlu0 %5741, %v1401
        %v5743 = vpop.permute.xlu0 %5742
        %5745 = vset.pattern.permute.xlu0 6
        %5746 = vperm.xlu0 %5745, %v1402
        %v5747 = vpop.permute.xlu0 %5746
        %5749 = vset.pattern.permute.xlu0 6
        %5750 = vperm.xlu0 %5749, %v1403
        %v5751 = vpop.permute.xlu0 %5750
        %5753 = vset.pattern.permute.xlu0 6
        %5754 = vperm.xlu0 %5753, %v1404
        %v5755 = vpop.permute.xlu0 %5754
        %5757 = vset.pattern.permute.xlu0 6
        %5758 = vperm.xlu0 %5757, %v1405
        %v5759 = vpop.permute.xlu0 %5758
        %5761 = vset.pattern.permute.xlu0 6
        %5762 = vperm.xlu0 %5761, %v1406
        %v5763 = vpop.permute.xlu0 %5762
        %5765 = vset.pattern.permute.xlu0 6
        %5766 = vperm.xlu0 %5765, %v1407
        %v5767 = vpop.permute.xlu0 %5766
        %5769 = vset.pattern.permute.xlu0 6
        %5770 = vperm.xlu0 %5769, %v1408
        %v5771 = vpop.permute.xlu0 %5770
        %v5773 = vmul.f32 %v5519, %v5326
        %v5774 = vmul.f32 %v5523, %v5329
        %v5775 = vmul.f32 %v5527, %v5332
        %v5776 = vmul.f32 %v5531, %v5335
        %v5777 = vmul.f32 %v5535, %v5338
        %v5778 = vmul.f32 %v5539, %v5341
        %v5779 = vmul.f32 %v5543, %v5344
        %v5780 = vmul.f32 %v5547, %v5347
        %v5781 = vmul.f32 %v5551, %v5350
        %v5782 = vmul.f32 %v5555, %v5353
        %v5783 = vmul.f32 %v5559, %v5356
        %v5784 = vmul.f32 %v5563, %v5359
        %v5785 = vmul.f32 %v5567, %v5362
        %v5786 = vmul.f32 %v5571, %v5365
        %v5787 = vmul.f32 %v5575, %v5368
        %v5788 = vmul.f32 %v5579, %v5371
        %v5789 = vmul.f32 %v5583, %v5374
        %v5790 = vmul.f32 %v5587, %v5377
        %v5791 = vmul.f32 %v5591, %v5380
        %v5792 = vmul.f32 %v5595, %v5383
        %v5793 = vmul.f32 %v5599, %v5386
        %v5794 = vmul.f32 %v5603, %v5389
        %v5795 = vmul.f32 %v5607, %v5392
        %v5796 = vmul.f32 %v5611, %v5395
        %v5797 = vmul.f32 %v5615, %v5398
        %v5798 = vmul.f32 %v5619, %v5401
        %v5799 = vmul.f32 %v5623, %v5404
        %v5800 = vmul.f32 %v5627, %v5407
        %v5801 = vmul.f32 %v5631, %v5410
        %v5802 = vmul.f32 %v5635, %v5413
        %v5803 = vmul.f32 %v5639, %v5416
        %v5804 = vmul.f32 %v5643, %v5419
        %v5805 = vmul.f32 %v5647, %v5422
        %v5806 = vmul.f32 %v5651, %v5425
        %v5807 = vmul.f32 %v5655, %v5428
        %v5808 = vmul.f32 %v5659, %v5431
        %v5809 = vmul.f32 %v5663, %v5434
        %v5810 = vmul.f32 %v5667, %v5437
        %v5811 = vmul.f32 %v5671, %v5440
        %v5812 = vmul.f32 %v5675, %v5443
        %v5813 = vmul.f32 %v5679, %v5446
        %v5814 = vmul.f32 %v5683, %v5449
        %v5815 = vmul.f32 %v5687, %v5452
        %v5816 = vmul.f32 %v5691, %v5455
        %v5817 = vmul.f32 %v5695, %v5458
        %v5818 = vmul.f32 %v5699, %v5461
        %v5819 = vmul.f32 %v5703, %v5464
        %v5820 = vmul.f32 %v5707, %v5467
        %v5821 = vmul.f32 %v5711, %v5470
        %v5822 = vmul.f32 %v5715, %v5473
        %v5823 = vmul.f32 %v5719, %v5476
        %v5824 = vmul.f32 %v5723, %v5479
        %v5825 = vmul.f32 %v5727, %v5482
        %v5826 = vmul.f32 %v5731, %v5485
        %v5827 = vmul.f32 %v5735, %v5488
        %v5828 = vmul.f32 %v5739, %v5491
        %v5829 = vmul.f32 %v5743, %v5494
        %v5830 = vmul.f32 %v5747, %v5497
        %v5831 = vmul.f32 %v5751, %v5500
        %v5832 = vmul.f32 %v5755, %v5503
        %v5833 = vmul.f32 %v5759, %v5506
        %v5834 = vmul.f32 %v5763, %v5509
        %v5835 = vmul.f32 %v5767, %v5512
        %v5836 = vmul.f32 %v5771, %v5515
        %v5837 = vadd.f32 %v5163, %v5773
        %v5838 = vadd.f32 %v5164, %v5774
        %v5839 = vadd.f32 %v5165, %v5775
        %v5840 = vadd.f32 %v5166, %v5776
        %v5841 = vadd.f32 %v5167, %v5777
        %v5842 = vadd.f32 %v5168, %v5778
        %v5843 = vadd.f32 %v5169, %v5779
        %v5844 = vadd.f32 %v5170, %v5780
        %v5845 = vadd.f32 %v5171, %v5781
        %v5846 = vadd.f32 %v5172, %v5782
        %v5847 = vadd.f32 %v5173, %v5783
        %v5848 = vadd.f32 %v5174, %v5784
        %v5849 = vadd.f32 %v5175, %v5785
        %v5850 = vadd.f32 %v5176, %v5786
        %v5851 = vadd.f32 %v5177, %v5787
        %v5852 = vadd.f32 %v5178, %v5788
        %v5853 = vadd.f32 %v5179, %v5789
        %v5854 = vadd.f32 %v5180, %v5790
        %v5855 = vadd.f32 %v5181, %v5791
        %v5856 = vadd.f32 %v5182, %v5792
        %v5857 = vadd.f32 %v5183, %v5793
        %v5858 = vadd.f32 %v5184, %v5794
        %v5859 = vadd.f32 %v5185, %v5795
        %v5860 = vadd.f32 %v5186, %v5796
        %v5861 = vadd.f32 %v5187, %v5797
        %v5862 = vadd.f32 %v5188, %v5798
        %v5863 = vadd.f32 %v5189, %v5799
        %v5864 = vadd.f32 %v5190, %v5800
        %v5865 = vadd.f32 %v5191, %v5801
        %v5866 = vadd.f32 %v5192, %v5802
        %v5867 = vadd.f32 %v5193, %v5803
        %v5868 = vadd.f32 %v5194, %v5804
        %v5869 = vadd.f32 %v5195, %v5805
        %v5870 = vadd.f32 %v5196, %v5806
        %v5871 = vadd.f32 %v5197, %v5807
        %v5872 = vadd.f32 %v5198, %v5808
        %v5873 = vadd.f32 %v5199, %v5809
        %v5874 = vadd.f32 %v5200, %v5810
        %v5875 = vadd.f32 %v5201, %v5811
        %v5876 = vadd.f32 %v5202, %v5812
        %v5877 = vadd.f32 %v5203, %v5813
        %v5878 = vadd.f32 %v5204, %v5814
        %v5879 = vadd.f32 %v5205, %v5815
        %v5880 = vadd.f32 %v5206, %v5816
        %v5881 = vadd.f32 %v5207, %v5817
        %v5882 = vadd.f32 %v5208, %v5818
        %v5883 = vadd.f32 %v5209, %v5819
        %v5884 = vadd.f32 %v5210, %v5820
        %v5885 = vadd.f32 %v5211, %v5821
        %v5886 = vadd.f32 %v5212, %v5822
        %v5887 = vadd.f32 %v5213, %v5823
        %v5888 = vadd.f32 %v5214, %v5824
        %v5889 = vadd.f32 %v5215, %v5825
        %v5890 = vadd.f32 %v5216, %v5826
        %v5891 = vadd.f32 %v5217, %v5827
        %v5892 = vadd.f32 %v5218, %v5828
        %v5893 = vadd.f32 %v5219, %v5829
        %v5894 = vadd.f32 %v5220, %v5830
        %v5895 = vadd.f32 %v5221, %v5831
        %v5896 = vadd.f32 %v5222, %v5832
        %v5897 = vadd.f32 %v5223, %v5833
        %v5898 = vadd.f32 %v5224, %v5834
        %v5899 = vadd.f32 %v5225, %v5835
        %v5900 = vadd.f32 %v5226, %v5836
        %v5901 = vld [vmem:[#allocation2 + $0x28] sm:$0xff]
        %v5902 = vld [vmem:[#allocation2 + $0x30] sm:$0xff]
        %v5903 = vld [vmem:[#allocation2 + $0x38] sm:$0xff]
        %v5904 = vld [vmem:[#allocation2 + $0x40] sm:$0xff]
        %v5905 = vld [vmem:[#allocation2 + $0x48] sm:$0xff]
        %v5906 = vld [vmem:[#allocation2 + $0x50] sm:$0xff]
        %v5907 = vld [vmem:[#allocation2 + $0x58] sm:$0xff]
        %v5908 = vld [vmem:[#allocation2 + $0x60] sm:$0xff]
        %v5909 = vld [vmem:[#allocation2 + $0x68] sm:$0xff]
        %v5910 = vld [vmem:[#allocation2 + $0x70] sm:$0xff]
        %v5911 = vld [vmem:[#allocation2 + $0x78] sm:$0xff]
        %v5912 = vld [vmem:[#allocation2 + $0x80] sm:$0xff]
        %v5913 = vld [vmem:[#allocation2 + $0x88] sm:$0xff]
        %v5914 = vld [vmem:[#allocation2 + $0x90] sm:$0xff]
        %v5915 = vld [vmem:[#allocation2 + $0x98] sm:$0xff]
        %v5916 = vld [vmem:[#allocation2 + $0xa0] sm:$0xff]
        %v5917 = vld [vmem:[#allocation2 + $0xa8] sm:$0xff]
        %v5918 = vld [vmem:[#allocation2 + $0xb0] sm:$0xff]
        %v5919 = vld [vmem:[#allocation2 + $0xb8] sm:$0xff]
        %v5920 = vld [vmem:[#allocation2 + $0xc0] sm:$0xff]
        %v5921 = vld [vmem:[#allocation2 + $0xc8] sm:$0xff]
        %v5922 = vld [vmem:[#allocation2 + $0xd0] sm:$0xff]
        %v5923 = vld [vmem:[#allocation2 + $0xd8] sm:$0xff]
        %v5924 = vld [vmem:[#allocation2 + $0xe0] sm:$0xff]
        %v5925 = vld [vmem:[#allocation2 + $0xe8] sm:$0xff]
        %v5926 = vld [vmem:[#allocation2 + $0xf0] sm:$0xff]
        %v5927 = vld [vmem:[#allocation2 + $0xf8] sm:$0xff]
        %v5928 = vld [vmem:[#allocation2 + $0x100] sm:$0xff]
        %v5929 = vld [vmem:[#allocation2 + $0x108] sm:$0xff]
        %v5930 = vld [vmem:[#allocation2 + $0x110] sm:$0xff]
        %v5931 = vld [vmem:[#allocation2 + $0x118] sm:$0xff]
        %v5932 = vld [vmem:[#allocation2 + $0x120] sm:$0xff]
        %v5933 = vld [vmem:[#allocation2 + $0x128] sm:$0xff]
        %v5934 = vld [vmem:[#allocation2 + $0x130] sm:$0xff]
        %v5935 = vld [vmem:[#allocation2 + $0x138] sm:$0xff]
        %v5936 = vld [vmem:[#allocation2 + $0x140] sm:$0xff]
        %v5937 = vld [vmem:[#allocation2 + $0x148] sm:$0xff]
        %v5938 = vld [vmem:[#allocation2 + $0x150] sm:$0xff]
        %v5939 = vld [vmem:[#allocation2 + $0x158] sm:$0xff]
        %v5940 = vld [vmem:[#allocation2 + $0x160] sm:$0xff]
        %v5941 = vld [vmem:[#allocation2 + $0x168] sm:$0xff]
        %v5942 = vld [vmem:[#allocation2 + $0x170] sm:$0xff]
        %v5943 = vld [vmem:[#allocation2 + $0x178] sm:$0xff]
        %v5944 = vld [vmem:[#allocation2 + $0x180] sm:$0xff]
        %v5945 = vld [vmem:[#allocation2 + $0x188] sm:$0xff]
        %v5946 = vld [vmem:[#allocation2 + $0x190] sm:$0xff]
        %v5947 = vld [vmem:[#allocation2 + $0x198] sm:$0xff]
        %v5948 = vld [vmem:[#allocation2 + $0x1a0] sm:$0xff]
        %v5949 = vld [vmem:[#allocation2 + $0x1a8] sm:$0xff]
        %v5950 = vld [vmem:[#allocation2 + $0x1b0] sm:$0xff]
        %v5951 = vld [vmem:[#allocation2 + $0x1b8] sm:$0xff]
        %v5952 = vld [vmem:[#allocation2 + $0x1c0] sm:$0xff]
        %v5953 = vld [vmem:[#allocation2 + $0x1c8] sm:$0xff]
        %v5954 = vld [vmem:[#allocation2 + $0x1d0] sm:$0xff]
        %v5955 = vld [vmem:[#allocation2 + $0x1d8] sm:$0xff]
        %v5956 = vld [vmem:[#allocation2 + $0x1e0] sm:$0xff]
        %v5957 = vld [vmem:[#allocation2 + $0x1e8] sm:$0xff]
        %v5958 = vld [vmem:[#allocation2 + $0x1f0] sm:$0xff]
        %v5959 = vld [vmem:[#allocation2 + $0x1f8] sm:$0xff]
        %v5960 = vld [vmem:[#allocation2 + $0x200] sm:$0xff]
        %v5961 = vld [vmem:[#allocation2 + $0x208] sm:$0xff]
        %v5962 = vld [vmem:[#allocation2 + $0x210] sm:$0xff]
        %v5963 = vld [vmem:[#allocation2 + $0x218] sm:$0xff]
        %v5964 = vld [vmem:[#allocation2 + $0x220] sm:$0xff]
        %s5965 = scalar_lea.vmem %s4, 896
        %v5966 = vld [vmem:[%s5965] sm:$0xff]
        %v5967 = vld [vmem:[%s5965 + $0x8] sm:$0xff]
        %v5968 = vld [vmem:[%s5965 + $0x10] sm:$0xff]
        %v5969 = vld [vmem:[%s5965 + $0x18] sm:$0xff]
        %v5970 = vld [vmem:[%s5965 + $0x20] sm:$0xff]
        %v5971 = vld [vmem:[%s5965 + $0x28] sm:$0xff]
        %v5972 = vld [vmem:[%s5965 + $0x30] sm:$0xff]
        %v5973 = vld [vmem:[%s5965 + $0x38] sm:$0xff]
        %v5974 = vld [vmem:[%s5965 + $0x40] sm:$0xff]
        %v5975 = vld [vmem:[%s5965 + $0x48] sm:$0xff]
        %v5976 = vld [vmem:[%s5965 + $0x50] sm:$0xff]
        %v5977 = vld [vmem:[%s5965 + $0x58] sm:$0xff]
        %v5978 = vld [vmem:[%s5965 + $0x60] sm:$0xff]
        %v5979 = vld [vmem:[%s5965 + $0x68] sm:$0xff]
        %v5980 = vld [vmem:[%s5965 + $0x70] sm:$0xff]
        %v5981 = vld [vmem:[%s5965 + $0x78] sm:$0xff]
        %5982 = vmatpush.msra.mxu0 %v5981
        %5983 = vmatpush.msra.mxu0 %v5980
        %5984 = vmatpush.msra.mxu0 %v5979
        %5985 = vmatpush.msra.mxu0 %v5978
        %5986 = vmatpush.msra.mxu0 %v5977
        %5987 = vmatpush.msra.mxu0 %v5976
        %5988 = vmatpush.msra.mxu0 %v5975
        %5989 = vmatpush.msra.mxu0 %v5974
        %5990 = vmatpush.msra.mxu0 %v5973
        %5991 = vmatpush.msra.mxu0 %v5972
        %5992 = vmatpush.msra.mxu0 %v5971
        %5993 = vmatpush.msra.mxu0 %v5970
        %5994 = vmatpush.msra.mxu0 %v5969
        %5995 = vmatpush.msra.mxu0 %v5968
        %5996 = vmatpush.msra.mxu0 %v5967
        %5997 = vmatpush.msra.mxu0 %v5966
        %5998 = vmatmul.f32.gmra.mxu0 %v5901
        %v5999 = vpop.f32.mrf.mxu0
        %v6000 = vadd.f32 0.0, %v5999
        %6001 = vmatmul.f32.gmra.mxu0 %v5902
        %v6002 = vpop.f32.mrf.mxu0
        %v6003 = vadd.f32 0.0, %v6002
        %6004 = vmatmul.f32.gmra.mxu0 %v5903
        %v6005 = vpop.f32.mrf.mxu0
        %v6006 = vadd.f32 0.0, %v6005
        %6007 = vmatmul.f32.gmra.mxu0 %v5904
        %v6008 = vpop.f32.mrf.mxu0
        %v6009 = vadd.f32 0.0, %v6008
        %6010 = vmatmul.f32.gmra.mxu0 %v5905
        %v6011 = vpop.f32.mrf.mxu0
        %v6012 = vadd.f32 0.0, %v6011
        %6013 = vmatmul.f32.gmra.mxu0 %v5906
        %v6014 = vpop.f32.mrf.mxu0
        %v6015 = vadd.f32 0.0, %v6014
        %6016 = vmatmul.f32.gmra.mxu0 %v5907
        %v6017 = vpop.f32.mrf.mxu0
        %v6018 = vadd.f32 0.0, %v6017
        %6019 = vmatmul.f32.gmra.mxu0 %v5908
        %v6020 = vpop.f32.mrf.mxu0
        %v6021 = vadd.f32 0.0, %v6020
        %6022 = vmatmul.f32.gmra.mxu0 %v5909
        %v6023 = vpop.f32.mrf.mxu0
        %v6024 = vadd.f32 0.0, %v6023
        %6025 = vmatmul.f32.gmra.mxu0 %v5910
        %v6026 = vpop.f32.mrf.mxu0
        %v6027 = vadd.f32 0.0, %v6026
        %6028 = vmatmul.f32.gmra.mxu0 %v5911
        %v6029 = vpop.f32.mrf.mxu0
        %v6030 = vadd.f32 0.0, %v6029
        %6031 = vmatmul.f32.gmra.mxu0 %v5912
        %v6032 = vpop.f32.mrf.mxu0
        %v6033 = vadd.f32 0.0, %v6032
        %6034 = vmatmul.f32.gmra.mxu0 %v5913
        %v6035 = vpop.f32.mrf.mxu0
        %v6036 = vadd.f32 0.0, %v6035
        %6037 = vmatmul.f32.gmra.mxu0 %v5914
        %v6038 = vpop.f32.mrf.mxu0
        %v6039 = vadd.f32 0.0, %v6038
        %6040 = vmatmul.f32.gmra.mxu0 %v5915
        %v6041 = vpop.f32.mrf.mxu0
        %v6042 = vadd.f32 0.0, %v6041
        %6043 = vmatmul.f32.gmra.mxu0 %v5916
        %v6044 = vpop.f32.mrf.mxu0
        %v6045 = vadd.f32 0.0, %v6044
        %6046 = vmatmul.f32.gmra.mxu0 %v5917
        %v6047 = vpop.f32.mrf.mxu0
        %v6048 = vadd.f32 0.0, %v6047
        %6049 = vmatmul.f32.gmra.mxu0 %v5918
        %v6050 = vpop.f32.mrf.mxu0
        %v6051 = vadd.f32 0.0, %v6050
        %6052 = vmatmul.f32.gmra.mxu0 %v5919
        %v6053 = vpop.f32.mrf.mxu0
        %v6054 = vadd.f32 0.0, %v6053
        %6055 = vmatmul.f32.gmra.mxu0 %v5920
        %v6056 = vpop.f32.mrf.mxu0
        %v6057 = vadd.f32 0.0, %v6056
        %6058 = vmatmul.f32.gmra.mxu0 %v5921
        %v6059 = vpop.f32.mrf.mxu0
        %v6060 = vadd.f32 0.0, %v6059
        %6061 = vmatmul.f32.gmra.mxu0 %v5922
        %v6062 = vpop.f32.mrf.mxu0
        %v6063 = vadd.f32 0.0, %v6062
        %6064 = vmatmul.f32.gmra.mxu0 %v5923
        %v6065 = vpop.f32.mrf.mxu0
        %v6066 = vadd.f32 0.0, %v6065
        %6067 = vmatmul.f32.gmra.mxu0 %v5924
        %v6068 = vpop.f32.mrf.mxu0
        %v6069 = vadd.f32 0.0, %v6068
        %6070 = vmatmul.f32.gmra.mxu0 %v5925
        %v6071 = vpop.f32.mrf.mxu0
        %v6072 = vadd.f32 0.0, %v6071
        %6073 = vmatmul.f32.gmra.mxu0 %v5926
        %v6074 = vpop.f32.mrf.mxu0
        %v6075 = vadd.f32 0.0, %v6074
        %6076 = vmatmul.f32.gmra.mxu0 %v5927
        %v6077 = vpop.f32.mrf.mxu0
        %v6078 = vadd.f32 0.0, %v6077
        %6079 = vmatmul.f32.gmra.mxu0 %v5928
        %v6080 = vpop.f32.mrf.mxu0
        %v6081 = vadd.f32 0.0, %v6080
        %6082 = vmatmul.f32.gmra.mxu0 %v5929
        %v6083 = vpop.f32.mrf.mxu0
        %v6084 = vadd.f32 0.0, %v6083
        %6085 = vmatmul.f32.gmra.mxu0 %v5930
        %v6086 = vpop.f32.mrf.mxu0
        %v6087 = vadd.f32 0.0, %v6086
        %6088 = vmatmul.f32.gmra.mxu0 %v5931
        %v6089 = vpop.f32.mrf.mxu0
        %v6090 = vadd.f32 0.0, %v6089
        %6091 = vmatmul.f32.gmra.mxu0 %v5932
        %v6092 = vpop.f32.mrf.mxu0
        %v6093 = vadd.f32 0.0, %v6092
        %6094 = vmatmul.f32.gmra.mxu0 %v5933
        %v6095 = vpop.f32.mrf.mxu0
        %v6096 = vadd.f32 0.0, %v6095
        %6097 = vmatmul.f32.gmra.mxu0 %v5934
        %v6098 = vpop.f32.mrf.mxu0
        %v6099 = vadd.f32 0.0, %v6098
        %6100 = vmatmul.f32.gmra.mxu0 %v5935
        %v6101 = vpop.f32.mrf.mxu0
        %v6102 = vadd.f32 0.0, %v6101
        %6103 = vmatmul.f32.gmra.mxu0 %v5936
        %v6104 = vpop.f32.mrf.mxu0
        %v6105 = vadd.f32 0.0, %v6104
        %6106 = vmatmul.f32.gmra.mxu0 %v5937
        %v6107 = vpop.f32.mrf.mxu0
        %v6108 = vadd.f32 0.0, %v6107
        %6109 = vmatmul.f32.gmra.mxu0 %v5938
        %v6110 = vpop.f32.mrf.mxu0
        %v6111 = vadd.f32 0.0, %v6110
        %6112 = vmatmul.f32.gmra.mxu0 %v5939
        %v6113 = vpop.f32.mrf.mxu0
        %v6114 = vadd.f32 0.0, %v6113
        %6115 = vmatmul.f32.gmra.mxu0 %v5940
        %v6116 = vpop.f32.mrf.mxu0
        %v6117 = vadd.f32 0.0, %v6116
        %6118 = vmatmul.f32.gmra.mxu0 %v5941
        %v6119 = vpop.f32.mrf.mxu0
        %v6120 = vadd.f32 0.0, %v6119
        %6121 = vmatmul.f32.gmra.mxu0 %v5942
        %v6122 = vpop.f32.mrf.mxu0
        %v6123 = vadd.f32 0.0, %v6122
        %6124 = vmatmul.f32.gmra.mxu0 %v5943
        %v6125 = vpop.f32.mrf.mxu0
        %v6126 = vadd.f32 0.0, %v6125
        %6127 = vmatmul.f32.gmra.mxu0 %v5944
        %v6128 = vpop.f32.mrf.mxu0
        %v6129 = vadd.f32 0.0, %v6128
        %6130 = vmatmul.f32.gmra.mxu0 %v5945
        %v6131 = vpop.f32.mrf.mxu0
        %v6132 = vadd.f32 0.0, %v6131
        %6133 = vmatmul.f32.gmra.mxu0 %v5946
        %v6134 = vpop.f32.mrf.mxu0
        %v6135 = vadd.f32 0.0, %v6134
        %6136 = vmatmul.f32.gmra.mxu0 %v5947
        %v6137 = vpop.f32.mrf.mxu0
        %v6138 = vadd.f32 0.0, %v6137
        %6139 = vmatmul.f32.gmra.mxu0 %v5948
        %v6140 = vpop.f32.mrf.mxu0
        %v6141 = vadd.f32 0.0, %v6140
        %6142 = vmatmul.f32.gmra.mxu0 %v5949
        %v6143 = vpop.f32.mrf.mxu0
        %v6144 = vadd.f32 0.0, %v6143
        %6145 = vmatmul.f32.gmra.mxu0 %v5950
        %v6146 = vpop.f32.mrf.mxu0
        %v6147 = vadd.f32 0.0, %v6146
        %6148 = vmatmul.f32.gmra.mxu0 %v5951
        %v6149 = vpop.f32.mrf.mxu0
        %v6150 = vadd.f32 0.0, %v6149
        %6151 = vmatmul.f32.gmra.mxu0 %v5952
        %v6152 = vpop.f32.mrf.mxu0
        %v6153 = vadd.f32 0.0, %v6152
        %6154 = vmatmul.f32.gmra.mxu0 %v5953
        %v6155 = vpop.f32.mrf.mxu0
        %v6156 = vadd.f32 0.0, %v6155
        %6157 = vmatmul.f32.gmra.mxu0 %v5954
        %v6158 = vpop.f32.mrf.mxu0
        %v6159 = vadd.f32 0.0, %v6158
        %6160 = vmatmul.f32.gmra.mxu0 %v5955
        %v6161 = vpop.f32.mrf.mxu0
        %v6162 = vadd.f32 0.0, %v6161
        %6163 = vmatmul.f32.gmra.mxu0 %v5956
        %v6164 = vpop.f32.mrf.mxu0
        %v6165 = vadd.f32 0.0, %v6164
        %6166 = vmatmul.f32.gmra.mxu0 %v5957
        %v6167 = vpop.f32.mrf.mxu0
        %v6168 = vadd.f32 0.0, %v6167
        %6169 = vmatmul.f32.gmra.mxu0 %v5958
        %v6170 = vpop.f32.mrf.mxu0
        %v6171 = vadd.f32 0.0, %v6170
        %6172 = vmatmul.f32.gmra.mxu0 %v5959
        %v6173 = vpop.f32.mrf.mxu0
        %v6174 = vadd.f32 0.0, %v6173
        %6175 = vmatmul.f32.gmra.mxu0 %v5960
        %v6176 = vpop.f32.mrf.mxu0
        %v6177 = vadd.f32 0.0, %v6176
        %6178 = vmatmul.f32.gmra.mxu0 %v5961
        %v6179 = vpop.f32.mrf.mxu0
        %v6180 = vadd.f32 0.0, %v6179
        %6181 = vmatmul.f32.gmra.mxu0 %v5962
        %v6182 = vpop.f32.mrf.mxu0
        %v6183 = vadd.f32 0.0, %v6182
        %6184 = vmatmul.f32.gmra.mxu0 %v5963
        %v6185 = vpop.f32.mrf.mxu0
        %v6186 = vadd.f32 0.0, %v6185
        %6187 = vmatmul.f32.gmra.mxu0 %v5964
        %v6188 = vpop.f32.mrf.mxu0
        %v6189 = vadd.f32 0.0, %v6188
        %6190 = vdwg.mxu0
        %6191 = vset.pattern.permute.xlu0 7
        %6192 = vperm.xlu0 %6191, %v1345
        %v6193 = vpop.permute.xlu0 %6192
        %6195 = vset.pattern.permute.xlu0 7
        %6196 = vperm.xlu0 %6195, %v1346
        %v6197 = vpop.permute.xlu0 %6196
        %6199 = vset.pattern.permute.xlu0 7
        %6200 = vperm.xlu0 %6199, %v1347
        %v6201 = vpop.permute.xlu0 %6200
        %6203 = vset.pattern.permute.xlu0 7
        %6204 = vperm.xlu0 %6203, %v1348
        %v6205 = vpop.permute.xlu0 %6204
        %6207 = vset.pattern.permute.xlu0 7
        %6208 = vperm.xlu0 %6207, %v1349
        %v6209 = vpop.permute.xlu0 %6208
        %6211 = vset.pattern.permute.xlu0 7
        %6212 = vperm.xlu0 %6211, %v1350
        %v6213 = vpop.permute.xlu0 %6212
        %6215 = vset.pattern.permute.xlu0 7
        %6216 = vperm.xlu0 %6215, %v1351
        %v6217 = vpop.permute.xlu0 %6216
        %6219 = vset.pattern.permute.xlu0 7
        %6220 = vperm.xlu0 %6219, %v1352
        %v6221 = vpop.permute.xlu0 %6220
        %6223 = vset.pattern.permute.xlu0 7
        %6224 = vperm.xlu0 %6223, %v1353
        %v6225 = vpop.permute.xlu0 %6224
        %6227 = vset.pattern.permute.xlu0 7
        %6228 = vperm.xlu0 %6227, %v1354
        %v6229 = vpop.permute.xlu0 %6228
        %6231 = vset.pattern.permute.xlu0 7
        %6232 = vperm.xlu0 %6231, %v1355
        %v6233 = vpop.permute.xlu0 %6232
        %6235 = vset.pattern.permute.xlu0 7
        %6236 = vperm.xlu0 %6235, %v1356
        %v6237 = vpop.permute.xlu0 %6236
        %6239 = vset.pattern.permute.xlu0 7
        %6240 = vperm.xlu0 %6239, %v1357
        %v6241 = vpop.permute.xlu0 %6240
        %6243 = vset.pattern.permute.xlu0 7
        %6244 = vperm.xlu0 %6243, %v1358
        %v6245 = vpop.permute.xlu0 %6244
        %6247 = vset.pattern.permute.xlu0 7
        %6248 = vperm.xlu0 %6247, %v1359
        %v6249 = vpop.permute.xlu0 %6248
        %6251 = vset.pattern.permute.xlu0 7
        %6252 = vperm.xlu0 %6251, %v1360
        %v6253 = vpop.permute.xlu0 %6252
        %6255 = vset.pattern.permute.xlu0 7
        %6256 = vperm.xlu0 %6255, %v1361
        %v6257 = vpop.permute.xlu0 %6256
        %6259 = vset.pattern.permute.xlu0 7
        %6260 = vperm.xlu0 %6259, %v1362
        %v6261 = vpop.permute.xlu0 %6260
        %6263 = vset.pattern.permute.xlu0 7
        %6264 = vperm.xlu0 %6263, %v1363
        %v6265 = vpop.permute.xlu0 %6264
        %6267 = vset.pattern.permute.xlu0 7
        %6268 = vperm.xlu0 %6267, %v1364
        %v6269 = vpop.permute.xlu0 %6268
        %6271 = vset.pattern.permute.xlu0 7
        %6272 = vperm.xlu0 %6271, %v1365
        %v6273 = vpop.permute.xlu0 %6272
        %6275 = vset.pattern.permute.xlu0 7
        %6276 = vperm.xlu0 %6275, %v1366
        %v6277 = vpop.permute.xlu0 %6276
        %6279 = vset.pattern.permute.xlu0 7
        %6280 = vperm.xlu0 %6279, %v1367
        %v6281 = vpop.permute.xlu0 %6280
        %6283 = vset.pattern.permute.xlu0 7
        %6284 = vperm.xlu0 %6283, %v1368
        %v6285 = vpop.permute.xlu0 %6284
        %6287 = vset.pattern.permute.xlu0 7
        %6288 = vperm.xlu0 %6287, %v1369
        %v6289 = vpop.permute.xlu0 %6288
        %6291 = vset.pattern.permute.xlu0 7
        %6292 = vperm.xlu0 %6291, %v1370
        %v6293 = vpop.permute.xlu0 %6292
        %6295 = vset.pattern.permute.xlu0 7
        %6296 = vperm.xlu0 %6295, %v1371
        %v6297 = vpop.permute.xlu0 %6296
        %6299 = vset.pattern.permute.xlu0 7
        %6300 = vperm.xlu0 %6299, %v1372
        %v6301 = vpop.permute.xlu0 %6300
        %6303 = vset.pattern.permute.xlu0 7
        %6304 = vperm.xlu0 %6303, %v1373
        %v6305 = vpop.permute.xlu0 %6304
        %6307 = vset.pattern.permute.xlu0 7
        %6308 = vperm.xlu0 %6307, %v1374
        %v6309 = vpop.permute.xlu0 %6308
        %6311 = vset.pattern.permute.xlu0 7
        %6312 = vperm.xlu0 %6311, %v1375
        %v6313 = vpop.permute.xlu0 %6312
        %6315 = vset.pattern.permute.xlu0 7
        %6316 = vperm.xlu0 %6315, %v1376
        %v6317 = vpop.permute.xlu0 %6316
        %6319 = vset.pattern.permute.xlu0 7
        %6320 = vperm.xlu0 %6319, %v1377
        %v6321 = vpop.permute.xlu0 %6320
        %6323 = vset.pattern.permute.xlu0 7
        %6324 = vperm.xlu0 %6323, %v1378
        %v6325 = vpop.permute.xlu0 %6324
        %6327 = vset.pattern.permute.xlu0 7
        %6328 = vperm.xlu0 %6327, %v1379
        %v6329 = vpop.permute.xlu0 %6328
        %6331 = vset.pattern.permute.xlu0 7
        %6332 = vperm.xlu0 %6331, %v1380
        %v6333 = vpop.permute.xlu0 %6332
        %6335 = vset.pattern.permute.xlu0 7
        %6336 = vperm.xlu0 %6335, %v1381
        %v6337 = vpop.permute.xlu0 %6336
        %6339 = vset.pattern.permute.xlu0 7
        %6340 = vperm.xlu0 %6339, %v1382
        %v6341 = vpop.permute.xlu0 %6340
        %6343 = vset.pattern.permute.xlu0 7
        %6344 = vperm.xlu0 %6343, %v1383
        %v6345 = vpop.permute.xlu0 %6344
        %6347 = vset.pattern.permute.xlu0 7
        %6348 = vperm.xlu0 %6347, %v1384
        %v6349 = vpop.permute.xlu0 %6348
        %6351 = vset.pattern.permute.xlu0 7
        %6352 = vperm.xlu0 %6351, %v1385
        %v6353 = vpop.permute.xlu0 %6352
        %6355 = vset.pattern.permute.xlu0 7
        %6356 = vperm.xlu0 %6355, %v1386
        %v6357 = vpop.permute.xlu0 %6356
        %6359 = vset.pattern.permute.xlu0 7
        %6360 = vperm.xlu0 %6359, %v1387
        %v6361 = vpop.permute.xlu0 %6360
        %6363 = vset.pattern.permute.xlu0 7
        %6364 = vperm.xlu0 %6363, %v1388
        %v6365 = vpop.permute.xlu0 %6364
        %6367 = vset.pattern.permute.xlu0 7
        %6368 = vperm.xlu0 %6367, %v1389
        %v6369 = vpop.permute.xlu0 %6368
        %6371 = vset.pattern.permute.xlu0 7
        %6372 = vperm.xlu0 %6371, %v1390
        %v6373 = vpop.permute.xlu0 %6372
        %6375 = vset.pattern.permute.xlu0 7
        %6376 = vperm.xlu0 %6375, %v1391
        %v6377 = vpop.permute.xlu0 %6376
        %6379 = vset.pattern.permute.xlu0 7
        %6380 = vperm.xlu0 %6379, %v1392
        %v6381 = vpop.permute.xlu0 %6380
        %6383 = vset.pattern.permute.xlu0 7
        %6384 = vperm.xlu0 %6383, %v1393
        %v6385 = vpop.permute.xlu0 %6384
        %6387 = vset.pattern.permute.xlu0 7
        %6388 = vperm.xlu0 %6387, %v1394
        %v6389 = vpop.permute.xlu0 %6388
        %6391 = vset.pattern.permute.xlu0 7
        %6392 = vperm.xlu0 %6391, %v1395
        %v6393 = vpop.permute.xlu0 %6392
        %6395 = vset.pattern.permute.xlu0 7
        %6396 = vperm.xlu0 %6395, %v1396
        %v6397 = vpop.permute.xlu0 %6396
        %6399 = vset.pattern.permute.xlu0 7
        %6400 = vperm.xlu0 %6399, %v1397
        %v6401 = vpop.permute.xlu0 %6400
        %6403 = vset.pattern.permute.xlu0 7
        %6404 = vperm.xlu0 %6403, %v1398
        %v6405 = vpop.permute.xlu0 %6404
        %6407 = vset.pattern.permute.xlu0 7
        %6408 = vperm.xlu0 %6407, %v1399
        %v6409 = vpop.permute.xlu0 %6408
        %6411 = vset.pattern.permute.xlu0 7
        %6412 = vperm.xlu0 %6411, %v1400
        %v6413 = vpop.permute.xlu0 %6412
        %6415 = vset.pattern.permute.xlu0 7
        %6416 = vperm.xlu0 %6415, %v1401
        %v6417 = vpop.permute.xlu0 %6416
        %6419 = vset.pattern.permute.xlu0 7
        %6420 = vperm.xlu0 %6419, %v1402
        %v6421 = vpop.permute.xlu0 %6420
        %6423 = vset.pattern.permute.xlu0 7
        %6424 = vperm.xlu0 %6423, %v1403
        %v6425 = vpop.permute.xlu0 %6424
        %6427 = vset.pattern.permute.xlu0 7
        %6428 = vperm.xlu0 %6427, %v1404
        %v6429 = vpop.permute.xlu0 %6428
        %6431 = vset.pattern.permute.xlu0 7
        %6432 = vperm.xlu0 %6431, %v1405
        %v6433 = vpop.permute.xlu0 %6432
        %6435 = vset.pattern.permute.xlu0 7
        %6436 = vperm.xlu0 %6435, %v1406
        %v6437 = vpop.permute.xlu0 %6436
        %6439 = vset.pattern.permute.xlu0 7
        %6440 = vperm.xlu0 %6439, %v1407
        %v6441 = vpop.permute.xlu0 %6440
        %6443 = vset.pattern.permute.xlu0 7
        %6444 = vperm.xlu0 %6443, %v1408
        %v6445 = vpop.permute.xlu0 %6444
        %v6447 = vmul.f32 %v6193, %v6000
        %v6448 = vmul.f32 %v6197, %v6003
        %v6449 = vmul.f32 %v6201, %v6006
        %v6450 = vmul.f32 %v6205, %v6009
        %v6451 = vmul.f32 %v6209, %v6012
        %v6452 = vmul.f32 %v6213, %v6015
        %v6453 = vmul.f32 %v6217, %v6018
        %v6454 = vmul.f32 %v6221, %v6021
        %v6455 = vmul.f32 %v6225, %v6024
        %v6456 = vmul.f32 %v6229, %v6027
        %v6457 = vmul.f32 %v6233, %v6030
        %v6458 = vmul.f32 %v6237, %v6033
        %v6459 = vmul.f32 %v6241, %v6036
        %v6460 = vmul.f32 %v6245, %v6039
        %v6461 = vmul.f32 %v6249, %v6042
        %v6462 = vmul.f32 %v6253, %v6045
        %v6463 = vmul.f32 %v6257, %v6048
        %v6464 = vmul.f32 %v6261, %v6051
        %v6465 = vmul.f32 %v6265, %v6054
        %v6466 = vmul.f32 %v6269, %v6057
        %v6467 = vmul.f32 %v6273, %v6060
        %v6468 = vmul.f32 %v6277, %v6063
        %v6469 = vmul.f32 %v6281, %v6066
        %v6470 = vmul.f32 %v6285, %v6069
        %v6471 = vmul.f32 %v6289, %v6072
        %v6472 = vmul.f32 %v6293, %v6075
        %v6473 = vmul.f32 %v6297, %v6078
        %v6474 = vmul.f32 %v6301, %v6081
        %v6475 = vmul.f32 %v6305, %v6084
        %v6476 = vmul.f32 %v6309, %v6087
        %v6477 = vmul.f32 %v6313, %v6090
        %v6478 = vmul.f32 %v6317, %v6093
        %v6479 = vmul.f32 %v6321, %v6096
        %v6480 = vmul.f32 %v6325, %v6099
        %v6481 = vmul.f32 %v6329, %v6102
        %v6482 = vmul.f32 %v6333, %v6105
        %v6483 = vmul.f32 %v6337, %v6108
        %v6484 = vmul.f32 %v6341, %v6111
        %v6485 = vmul.f32 %v6345, %v6114
        %v6486 = vmul.f32 %v6349, %v6117
        %v6487 = vmul.f32 %v6353, %v6120
        %v6488 = vmul.f32 %v6357, %v6123
        %v6489 = vmul.f32 %v6361, %v6126
        %v6490 = vmul.f32 %v6365, %v6129
        %v6491 = vmul.f32 %v6369, %v6132
        %v6492 = vmul.f32 %v6373, %v6135
        %v6493 = vmul.f32 %v6377, %v6138
        %v6494 = vmul.f32 %v6381, %v6141
        %v6495 = vmul.f32 %v6385, %v6144
        %v6496 = vmul.f32 %v6389, %v6147
        %v6497 = vmul.f32 %v6393, %v6150
        %v6498 = vmul.f32 %v6397, %v6153
        %v6499 = vmul.f32 %v6401, %v6156
        %v6500 = vmul.f32 %v6405, %v6159
        %v6501 = vmul.f32 %v6409, %v6162
        %v6502 = vmul.f32 %v6413, %v6165
        %v6503 = vmul.f32 %v6417, %v6168
        %v6504 = vmul.f32 %v6421, %v6171
        %v6505 = vmul.f32 %v6425, %v6174
        %v6506 = vmul.f32 %v6429, %v6177
        %v6507 = vmul.f32 %v6433, %v6180
        %v6508 = vmul.f32 %v6437, %v6183
        %v6509 = vmul.f32 %v6441, %v6186
        %v6510 = vmul.f32 %v6445, %v6189
        %v6511 = vadd.f32 %v5837, %v6447
        %v6512 = vadd.f32 %v5838, %v6448
        %v6513 = vadd.f32 %v5839, %v6449
        %v6514 = vadd.f32 %v5840, %v6450
        %v6515 = vadd.f32 %v5841, %v6451
        %v6516 = vadd.f32 %v5842, %v6452
        %v6517 = vadd.f32 %v5843, %v6453
        %v6518 = vadd.f32 %v5844, %v6454
        %v6519 = vadd.f32 %v5845, %v6455
        %v6520 = vadd.f32 %v5846, %v6456
        %v6521 = vadd.f32 %v5847, %v6457
        %v6522 = vadd.f32 %v5848, %v6458
        %v6523 = vadd.f32 %v5849, %v6459
        %v6524 = vadd.f32 %v5850, %v6460
        %v6525 = vadd.f32 %v5851, %v6461
        %v6526 = vadd.f32 %v5852, %v6462
        %v6527 = vadd.f32 %v5853, %v6463
        %v6528 = vadd.f32 %v5854, %v6464
        %v6529 = vadd.f32 %v5855, %v6465
        %v6530 = vadd.f32 %v5856, %v6466
        %v6531 = vadd.f32 %v5857, %v6467
        %v6532 = vadd.f32 %v5858, %v6468
        %v6533 = vadd.f32 %v5859, %v6469
        %v6534 = vadd.f32 %v5860, %v6470
        %v6535 = vadd.f32 %v5861, %v6471
        %v6536 = vadd.f32 %v5862, %v6472
        %v6537 = vadd.f32 %v5863, %v6473
        %v6538 = vadd.f32 %v5864, %v6474
        %v6539 = vadd.f32 %v5865, %v6475
        %v6540 = vadd.f32 %v5866, %v6476
        %v6541 = vadd.f32 %v5867, %v6477
        %v6542 = vadd.f32 %v5868, %v6478
        %v6543 = vadd.f32 %v5869, %v6479
        %v6544 = vadd.f32 %v5870, %v6480
        %v6545 = vadd.f32 %v5871, %v6481
        %v6546 = vadd.f32 %v5872, %v6482
        %v6547 = vadd.f32 %v5873, %v6483
        %v6548 = vadd.f32 %v5874, %v6484
        %v6549 = vadd.f32 %v5875, %v6485
        %v6550 = vadd.f32 %v5876, %v6486
        %v6551 = vadd.f32 %v5877, %v6487
        %v6552 = vadd.f32 %v5878, %v6488
        %v6553 = vadd.f32 %v5879, %v6489
        %v6554 = vadd.f32 %v5880, %v6490
        %v6555 = vadd.f32 %v5881, %v6491
        %v6556 = vadd.f32 %v5882, %v6492
        %v6557 = vadd.f32 %v5883, %v6493
        %v6558 = vadd.f32 %v5884, %v6494
        %v6559 = vadd.f32 %v5885, %v6495
        %v6560 = vadd.f32 %v5886, %v6496
        %v6561 = vadd.f32 %v5887, %v6497
        %v6562 = vadd.f32 %v5888, %v6498
        %v6563 = vadd.f32 %v5889, %v6499
        %v6564 = vadd.f32 %v5890, %v6500
        %v6565 = vadd.f32 %v5891, %v6501
        %v6566 = vadd.f32 %v5892, %v6502
        %v6567 = vadd.f32 %v5893, %v6503
        %v6568 = vadd.f32 %v5894, %v6504
        %v6569 = vadd.f32 %v5895, %v6505
        %v6570 = vadd.f32 %v5896, %v6506
        %v6571 = vadd.f32 %v5897, %v6507
        %v6572 = vadd.f32 %v5898, %v6508
        %v6573 = vadd.f32 %v5899, %v6509
        %v6574 = vadd.f32 %v5900, %v6510
        %v6575 = vld [vmem:[#allocation2 + $0x29] sm:$0xff]
        %v6576 = vld [vmem:[#allocation2 + $0x31] sm:$0xff]
        %v6577 = vld [vmem:[#allocation2 + $0x39] sm:$0xff]
        %v6578 = vld [vmem:[#allocation2 + $0x41] sm:$0xff]
        %v6579 = vld [vmem:[#allocation2 + $0x49] sm:$0xff]
        %v6580 = vld [vmem:[#allocation2 + $0x51] sm:$0xff]
        %v6581 = vld [vmem:[#allocation2 + $0x59] sm:$0xff]
        %v6582 = vld [vmem:[#allocation2 + $0x61] sm:$0xff]
        %v6583 = vld [vmem:[#allocation2 + $0x69] sm:$0xff]
        %v6584 = vld [vmem:[#allocation2 + $0x71] sm:$0xff]
        %v6585 = vld [vmem:[#allocation2 + $0x79] sm:$0xff]
        %v6586 = vld [vmem:[#allocation2 + $0x81] sm:$0xff]
        %v6587 = vld [vmem:[#allocation2 + $0x89] sm:$0xff]
        %v6588 = vld [vmem:[#allocation2 + $0x91] sm:$0xff]
        %v6589 = vld [vmem:[#allocation2 + $0x99] sm:$0xff]
        %v6590 = vld [vmem:[#allocation2 + $0xa1] sm:$0xff]
        %v6591 = vld [vmem:[#allocation2 + $0xa9] sm:$0xff]
        %v6592 = vld [vmem:[#allocation2 + $0xb1] sm:$0xff]
        %v6593 = vld [vmem:[#allocation2 + $0xb9] sm:$0xff]
        %v6594 = vld [vmem:[#allocation2 + $0xc1] sm:$0xff]
        %v6595 = vld [vmem:[#allocation2 + $0xc9] sm:$0xff]
        %v6596 = vld [vmem:[#allocation2 + $0xd1] sm:$0xff]
        %v6597 = vld [vmem:[#allocation2 + $0xd9] sm:$0xff]
        %v6598 = vld [vmem:[#allocation2 + $0xe1] sm:$0xff]
        %v6599 = vld [vmem:[#allocation2 + $0xe9] sm:$0xff]
        %v6600 = vld [vmem:[#allocation2 + $0xf1] sm:$0xff]
        %v6601 = vld [vmem:[#allocation2 + $0xf9] sm:$0xff]
        %v6602 = vld [vmem:[#allocation2 + $0x101] sm:$0xff]
        %v6603 = vld [vmem:[#allocation2 + $0x109] sm:$0xff]
        %v6604 = vld [vmem:[#allocation2 + $0x111] sm:$0xff]
        %v6605 = vld [vmem:[#allocation2 + $0x119] sm:$0xff]
        %v6606 = vld [vmem:[#allocation2 + $0x121] sm:$0xff]
        %v6607 = vld [vmem:[#allocation2 + $0x129] sm:$0xff]
        %v6608 = vld [vmem:[#allocation2 + $0x131] sm:$0xff]
        %v6609 = vld [vmem:[#allocation2 + $0x139] sm:$0xff]
        %v6610 = vld [vmem:[#allocation2 + $0x141] sm:$0xff]
        %v6611 = vld [vmem:[#allocation2 + $0x149] sm:$0xff]
        %v6612 = vld [vmem:[#allocation2 + $0x151] sm:$0xff]
        %v6613 = vld [vmem:[#allocation2 + $0x159] sm:$0xff]
        %v6614 = vld [vmem:[#allocation2 + $0x161] sm:$0xff]
        %v6615 = vld [vmem:[#allocation2 + $0x169] sm:$0xff]
        %v6616 = vld [vmem:[#allocation2 + $0x171] sm:$0xff]
        %v6617 = vld [vmem:[#allocation2 + $0x179] sm:$0xff]
        %v6618 = vld [vmem:[#allocation2 + $0x181] sm:$0xff]
        %v6619 = vld [vmem:[#allocation2 + $0x189] sm:$0xff]
        %v6620 = vld [vmem:[#allocation2 + $0x191] sm:$0xff]
        %v6621 = vld [vmem:[#allocation2 + $0x199] sm:$0xff]
        %v6622 = vld [vmem:[#allocation2 + $0x1a1] sm:$0xff]
        %v6623 = vld [vmem:[#allocation2 + $0x1a9] sm:$0xff]
        %v6624 = vld [vmem:[#allocation2 + $0x1b1] sm:$0xff]
        %v6625 = vld [vmem:[#allocation2 + $0x1b9] sm:$0xff]
        %v6626 = vld [vmem:[#allocation2 + $0x1c1] sm:$0xff]
        %v6627 = vld [vmem:[#allocation2 + $0x1c9] sm:$0xff]
        %v6628 = vld [vmem:[#allocation2 + $0x1d1] sm:$0xff]
        %v6629 = vld [vmem:[#allocation2 + $0x1d9] sm:$0xff]
        %v6630 = vld [vmem:[#allocation2 + $0x1e1] sm:$0xff]
        %v6631 = vld [vmem:[#allocation2 + $0x1e9] sm:$0xff]
        %v6632 = vld [vmem:[#allocation2 + $0x1f1] sm:$0xff]
        %v6633 = vld [vmem:[#allocation2 + $0x1f9] sm:$0xff]
        %v6634 = vld [vmem:[#allocation2 + $0x201] sm:$0xff]
        %v6635 = vld [vmem:[#allocation2 + $0x209] sm:$0xff]
        %v6636 = vld [vmem:[#allocation2 + $0x211] sm:$0xff]
        %v6637 = vld [vmem:[#allocation2 + $0x219] sm:$0xff]
        %v6638 = vld [vmem:[#allocation2 + $0x221] sm:$0xff]
        %s6639 = scalar_lea.vmem %s4, 1024
        %v6640 = vld [vmem:[%s6639] sm:$0xff]
        %v6641 = vld [vmem:[%s6639 + $0x8] sm:$0xff]
        %v6642 = vld [vmem:[%s6639 + $0x10] sm:$0xff]
        %v6643 = vld [vmem:[%s6639 + $0x18] sm:$0xff]
        %v6644 = vld [vmem:[%s6639 + $0x20] sm:$0xff]
        %v6645 = vld [vmem:[%s6639 + $0x28] sm:$0xff]
        %v6646 = vld [vmem:[%s6639 + $0x30] sm:$0xff]
        %v6647 = vld [vmem:[%s6639 + $0x38] sm:$0xff]
        %v6648 = vld [vmem:[%s6639 + $0x40] sm:$0xff]
        %v6649 = vld [vmem:[%s6639 + $0x48] sm:$0xff]
        %v6650 = vld [vmem:[%s6639 + $0x50] sm:$0xff]
        %v6651 = vld [vmem:[%s6639 + $0x58] sm:$0xff]
        %v6652 = vld [vmem:[%s6639 + $0x60] sm:$0xff]
        %v6653 = vld [vmem:[%s6639 + $0x68] sm:$0xff]
        %v6654 = vld [vmem:[%s6639 + $0x70] sm:$0xff]
        %v6655 = vld [vmem:[%s6639 + $0x78] sm:$0xff]
        %6656 = vmatpush.msra.mxu0 %v6655
        %6657 = vmatpush.msra.mxu0 %v6654
        %6658 = vmatpush.msra.mxu0 %v6653
        %6659 = vmatpush.msra.mxu0 %v6652
        %6660 = vmatpush.msra.mxu0 %v6651
        %6661 = vmatpush.msra.mxu0 %v6650
        %6662 = vmatpush.msra.mxu0 %v6649
        %6663 = vmatpush.msra.mxu0 %v6648
        %6664 = vmatpush.msra.mxu0 %v6647
        %6665 = vmatpush.msra.mxu0 %v6646
        %6666 = vmatpush.msra.mxu0 %v6645
        %6667 = vmatpush.msra.mxu0 %v6644
        %6668 = vmatpush.msra.mxu0 %v6643
        %6669 = vmatpush.msra.mxu0 %v6642
        %6670 = vmatpush.msra.mxu0 %v6641
        %6671 = vmatpush.msra.mxu0 %v6640
        %6672 = vmatmul.f32.gmra.mxu0 %v6575
        %v6673 = vpop.f32.mrf.mxu0
        %v6674 = vadd.f32 0.0, %v6673
        %6675 = vmatmul.f32.gmra.mxu0 %v6576
        %v6676 = vpop.f32.mrf.mxu0
        %v6677 = vadd.f32 0.0, %v6676
        %6678 = vmatmul.f32.gmra.mxu0 %v6577
        %v6679 = vpop.f32.mrf.mxu0
        %v6680 = vadd.f32 0.0, %v6679
        %6681 = vmatmul.f32.gmra.mxu0 %v6578
        %v6682 = vpop.f32.mrf.mxu0
        %v6683 = vadd.f32 0.0, %v6682
        %6684 = vmatmul.f32.gmra.mxu0 %v6579
        %v6685 = vpop.f32.mrf.mxu0
        %v6686 = vadd.f32 0.0, %v6685
        %6687 = vmatmul.f32.gmra.mxu0 %v6580
        %v6688 = vpop.f32.mrf.mxu0
        %v6689 = vadd.f32 0.0, %v6688
        %6690 = vmatmul.f32.gmra.mxu0 %v6581
        %v6691 = vpop.f32.mrf.mxu0
        %v6692 = vadd.f32 0.0, %v6691
        %6693 = vmatmul.f32.gmra.mxu0 %v6582
        %v6694 = vpop.f32.mrf.mxu0
        %v6695 = vadd.f32 0.0, %v6694
        %6696 = vmatmul.f32.gmra.mxu0 %v6583
        %v6697 = vpop.f32.mrf.mxu0
        %v6698 = vadd.f32 0.0, %v6697
        %6699 = vmatmul.f32.gmra.mxu0 %v6584
        %v6700 = vpop.f32.mrf.mxu0
        %v6701 = vadd.f32 0.0, %v6700
        %6702 = vmatmul.f32.gmra.mxu0 %v6585
        %v6703 = vpop.f32.mrf.mxu0
        %v6704 = vadd.f32 0.0, %v6703
        %6705 = vmatmul.f32.gmra.mxu0 %v6586
        %v6706 = vpop.f32.mrf.mxu0
        %v6707 = vadd.f32 0.0, %v6706
        %6708 = vmatmul.f32.gmra.mxu0 %v6587
        %v6709 = vpop.f32.mrf.mxu0
        %v6710 = vadd.f32 0.0, %v6709
        %6711 = vmatmul.f32.gmra.mxu0 %v6588
        %v6712 = vpop.f32.mrf.mxu0
        %v6713 = vadd.f32 0.0, %v6712
        %6714 = vmatmul.f32.gmra.mxu0 %v6589
        %v6715 = vpop.f32.mrf.mxu0
        %v6716 = vadd.f32 0.0, %v6715
        %6717 = vmatmul.f32.gmra.mxu0 %v6590
        %v6718 = vpop.f32.mrf.mxu0
        %v6719 = vadd.f32 0.0, %v6718
        %6720 = vmatmul.f32.gmra.mxu0 %v6591
        %v6721 = vpop.f32.mrf.mxu0
        %v6722 = vadd.f32 0.0, %v6721
        %6723 = vmatmul.f32.gmra.mxu0 %v6592
        %v6724 = vpop.f32.mrf.mxu0
        %v6725 = vadd.f32 0.0, %v6724
        %6726 = vmatmul.f32.gmra.mxu0 %v6593
        %v6727 = vpop.f32.mrf.mxu0
        %v6728 = vadd.f32 0.0, %v6727
        %6729 = vmatmul.f32.gmra.mxu0 %v6594
        %v6730 = vpop.f32.mrf.mxu0
        %v6731 = vadd.f32 0.0, %v6730
        %6732 = vmatmul.f32.gmra.mxu0 %v6595
        %v6733 = vpop.f32.mrf.mxu0
        %v6734 = vadd.f32 0.0, %v6733
        %6735 = vmatmul.f32.gmra.mxu0 %v6596
        %v6736 = vpop.f32.mrf.mxu0
        %v6737 = vadd.f32 0.0, %v6736
        %6738 = vmatmul.f32.gmra.mxu0 %v6597
        %v6739 = vpop.f32.mrf.mxu0
        %v6740 = vadd.f32 0.0, %v6739
        %6741 = vmatmul.f32.gmra.mxu0 %v6598
        %v6742 = vpop.f32.mrf.mxu0
        %v6743 = vadd.f32 0.0, %v6742
        %6744 = vmatmul.f32.gmra.mxu0 %v6599
        %v6745 = vpop.f32.mrf.mxu0
        %v6746 = vadd.f32 0.0, %v6745
        %6747 = vmatmul.f32.gmra.mxu0 %v6600
        %v6748 = vpop.f32.mrf.mxu0
        %v6749 = vadd.f32 0.0, %v6748
        %6750 = vmatmul.f32.gmra.mxu0 %v6601
        %v6751 = vpop.f32.mrf.mxu0
        %v6752 = vadd.f32 0.0, %v6751
        %6753 = vmatmul.f32.gmra.mxu0 %v6602
        %v6754 = vpop.f32.mrf.mxu0
        %v6755 = vadd.f32 0.0, %v6754
        %6756 = vmatmul.f32.gmra.mxu0 %v6603
        %v6757 = vpop.f32.mrf.mxu0
        %v6758 = vadd.f32 0.0, %v6757
        %6759 = vmatmul.f32.gmra.mxu0 %v6604
        %v6760 = vpop.f32.mrf.mxu0
        %v6761 = vadd.f32 0.0, %v6760
        %6762 = vmatmul.f32.gmra.mxu0 %v6605
        %v6763 = vpop.f32.mrf.mxu0
        %v6764 = vadd.f32 0.0, %v6763
        %6765 = vmatmul.f32.gmra.mxu0 %v6606
        %v6766 = vpop.f32.mrf.mxu0
        %v6767 = vadd.f32 0.0, %v6766
        %6768 = vmatmul.f32.gmra.mxu0 %v6607
        %v6769 = vpop.f32.mrf.mxu0
        %v6770 = vadd.f32 0.0, %v6769
        %6771 = vmatmul.f32.gmra.mxu0 %v6608
        %v6772 = vpop.f32.mrf.mxu0
        %v6773 = vadd.f32 0.0, %v6772
        %6774 = vmatmul.f32.gmra.mxu0 %v6609
        %v6775 = vpop.f32.mrf.mxu0
        %v6776 = vadd.f32 0.0, %v6775
        %6777 = vmatmul.f32.gmra.mxu0 %v6610
        %v6778 = vpop.f32.mrf.mxu0
        %v6779 = vadd.f32 0.0, %v6778
        %6780 = vmatmul.f32.gmra.mxu0 %v6611
        %v6781 = vpop.f32.mrf.mxu0
        %v6782 = vadd.f32 0.0, %v6781
        %6783 = vmatmul.f32.gmra.mxu0 %v6612
        %v6784 = vpop.f32.mrf.mxu0
        %v6785 = vadd.f32 0.0, %v6784
        %6786 = vmatmul.f32.gmra.mxu0 %v6613
        %v6787 = vpop.f32.mrf.mxu0
        %v6788 = vadd.f32 0.0, %v6787
        %6789 = vmatmul.f32.gmra.mxu0 %v6614
        %v6790 = vpop.f32.mrf.mxu0
        %v6791 = vadd.f32 0.0, %v6790
        %6792 = vmatmul.f32.gmra.mxu0 %v6615
        %v6793 = vpop.f32.mrf.mxu0
        %v6794 = vadd.f32 0.0, %v6793
        %6795 = vmatmul.f32.gmra.mxu0 %v6616
        %v6796 = vpop.f32.mrf.mxu0
        %v6797 = vadd.f32 0.0, %v6796
        %6798 = vmatmul.f32.gmra.mxu0 %v6617
        %v6799 = vpop.f32.mrf.mxu0
        %v6800 = vadd.f32 0.0, %v6799
        %6801 = vmatmul.f32.gmra.mxu0 %v6618
        %v6802 = vpop.f32.mrf.mxu0
        %v6803 = vadd.f32 0.0, %v6802
        %6804 = vmatmul.f32.gmra.mxu0 %v6619
        %v6805 = vpop.f32.mrf.mxu0
        %v6806 = vadd.f32 0.0, %v6805
        %6807 = vmatmul.f32.gmra.mxu0 %v6620
        %v6808 = vpop.f32.mrf.mxu0
        %v6809 = vadd.f32 0.0, %v6808
        %6810 = vmatmul.f32.gmra.mxu0 %v6621
        %v6811 = vpop.f32.mrf.mxu0
        %v6812 = vadd.f32 0.0, %v6811
        %6813 = vmatmul.f32.gmra.mxu0 %v6622
        %v6814 = vpop.f32.mrf.mxu0
        %v6815 = vadd.f32 0.0, %v6814
        %6816 = vmatmul.f32.gmra.mxu0 %v6623
        %v6817 = vpop.f32.mrf.mxu0
        %v6818 = vadd.f32 0.0, %v6817
        %6819 = vmatmul.f32.gmra.mxu0 %v6624
        %v6820 = vpop.f32.mrf.mxu0
        %v6821 = vadd.f32 0.0, %v6820
        %6822 = vmatmul.f32.gmra.mxu0 %v6625
        %v6823 = vpop.f32.mrf.mxu0
        %v6824 = vadd.f32 0.0, %v6823
        %6825 = vmatmul.f32.gmra.mxu0 %v6626
        %v6826 = vpop.f32.mrf.mxu0
        %v6827 = vadd.f32 0.0, %v6826
        %6828 = vmatmul.f32.gmra.mxu0 %v6627
        %v6829 = vpop.f32.mrf.mxu0
        %v6830 = vadd.f32 0.0, %v6829
        %6831 = vmatmul.f32.gmra.mxu0 %v6628
        %v6832 = vpop.f32.mrf.mxu0
        %v6833 = vadd.f32 0.0, %v6832
        %6834 = vmatmul.f32.gmra.mxu0 %v6629
        %v6835 = vpop.f32.mrf.mxu0
        %v6836 = vadd.f32 0.0, %v6835
        %6837 = vmatmul.f32.gmra.mxu0 %v6630
        %v6838 = vpop.f32.mrf.mxu0
        %v6839 = vadd.f32 0.0, %v6838
        %6840 = vmatmul.f32.gmra.mxu0 %v6631
        %v6841 = vpop.f32.mrf.mxu0
        %v6842 = vadd.f32 0.0, %v6841
        %6843 = vmatmul.f32.gmra.mxu0 %v6632
        %v6844 = vpop.f32.mrf.mxu0
        %v6845 = vadd.f32 0.0, %v6844
        %6846 = vmatmul.f32.gmra.mxu0 %v6633
        %v6847 = vpop.f32.mrf.mxu0
        %v6848 = vadd.f32 0.0, %v6847
        %6849 = vmatmul.f32.gmra.mxu0 %v6634
        %v6850 = vpop.f32.mrf.mxu0
        %v6851 = vadd.f32 0.0, %v6850
        %6852 = vmatmul.f32.gmra.mxu0 %v6635
        %v6853 = vpop.f32.mrf.mxu0
        %v6854 = vadd.f32 0.0, %v6853
        %6855 = vmatmul.f32.gmra.mxu0 %v6636
        %v6856 = vpop.f32.mrf.mxu0
        %v6857 = vadd.f32 0.0, %v6856
        %6858 = vmatmul.f32.gmra.mxu0 %v6637
        %v6859 = vpop.f32.mrf.mxu0
        %v6860 = vadd.f32 0.0, %v6859
        %6861 = vmatmul.f32.gmra.mxu0 %v6638
        %v6862 = vpop.f32.mrf.mxu0
        %v6863 = vadd.f32 0.0, %v6862
        %6864 = vdwg.mxu0
        %6865 = vset.pattern.permute.xlu0 8
        %6866 = vperm.xlu0 %6865, %v1345
        %v6867 = vpop.permute.xlu0 %6866
        %6869 = vset.pattern.permute.xlu0 8
        %6870 = vperm.xlu0 %6869, %v1346
        %v6871 = vpop.permute.xlu0 %6870
        %6873 = vset.pattern.permute.xlu0 8
        %6874 = vperm.xlu0 %6873, %v1347
        %v6875 = vpop.permute.xlu0 %6874
        %6877 = vset.pattern.permute.xlu0 8
        %6878 = vperm.xlu0 %6877, %v1348
        %v6879 = vpop.permute.xlu0 %6878
        %6881 = vset.pattern.permute.xlu0 8
        %6882 = vperm.xlu0 %6881, %v1349
        %v6883 = vpop.permute.xlu0 %6882
        %6885 = vset.pattern.permute.xlu0 8
        %6886 = vperm.xlu0 %6885, %v1350
        %v6887 = vpop.permute.xlu0 %6886
        %6889 = vset.pattern.permute.xlu0 8
        %6890 = vperm.xlu0 %6889, %v1351
        %v6891 = vpop.permute.xlu0 %6890
        %6893 = vset.pattern.permute.xlu0 8
        %6894 = vperm.xlu0 %6893, %v1352
        %v6895 = vpop.permute.xlu0 %6894
        %6897 = vset.pattern.permute.xlu0 8
        %6898 = vperm.xlu0 %6897, %v1353
        %v6899 = vpop.permute.xlu0 %6898
        %6901 = vset.pattern.permute.xlu0 8
        %6902 = vperm.xlu0 %6901, %v1354
        %v6903 = vpop.permute.xlu0 %6902
        %6905 = vset.pattern.permute.xlu0 8
        %6906 = vperm.xlu0 %6905, %v1355
        %v6907 = vpop.permute.xlu0 %6906
        %6909 = vset.pattern.permute.xlu0 8
        %6910 = vperm.xlu0 %6909, %v1356
        %v6911 = vpop.permute.xlu0 %6910
        %6913 = vset.pattern.permute.xlu0 8
        %6914 = vperm.xlu0 %6913, %v1357
        %v6915 = vpop.permute.xlu0 %6914
        %6917 = vset.pattern.permute.xlu0 8
        %6918 = vperm.xlu0 %6917, %v1358
        %v6919 = vpop.permute.xlu0 %6918
        %6921 = vset.pattern.permute.xlu0 8
        %6922 = vperm.xlu0 %6921, %v1359
        %v6923 = vpop.permute.xlu0 %6922
        %6925 = vset.pattern.permute.xlu0 8
        %6926 = vperm.xlu0 %6925, %v1360
        %v6927 = vpop.permute.xlu0 %6926
        %6929 = vset.pattern.permute.xlu0 8
        %6930 = vperm.xlu0 %6929, %v1361
        %v6931 = vpop.permute.xlu0 %6930
        %6933 = vset.pattern.permute.xlu0 8
        %6934 = vperm.xlu0 %6933, %v1362
        %v6935 = vpop.permute.xlu0 %6934
        %6937 = vset.pattern.permute.xlu0 8
        %6938 = vperm.xlu0 %6937, %v1363
        %v6939 = vpop.permute.xlu0 %6938
        %6941 = vset.pattern.permute.xlu0 8
        %6942 = vperm.xlu0 %6941, %v1364
        %v6943 = vpop.permute.xlu0 %6942
        %6945 = vset.pattern.permute.xlu0 8
        %6946 = vperm.xlu0 %6945, %v1365
        %v6947 = vpop.permute.xlu0 %6946
        %6949 = vset.pattern.permute.xlu0 8
        %6950 = vperm.xlu0 %6949, %v1366
        %v6951 = vpop.permute.xlu0 %6950
        %6953 = vset.pattern.permute.xlu0 8
        %6954 = vperm.xlu0 %6953, %v1367
        %v6955 = vpop.permute.xlu0 %6954
        %6957 = vset.pattern.permute.xlu0 8
        %6958 = vperm.xlu0 %6957, %v1368
        %v6959 = vpop.permute.xlu0 %6958
        %6961 = vset.pattern.permute.xlu0 8
        %6962 = vperm.xlu0 %6961, %v1369
        %v6963 = vpop.permute.xlu0 %6962
        %6965 = vset.pattern.permute.xlu0 8
        %6966 = vperm.xlu0 %6965, %v1370
        %v6967 = vpop.permute.xlu0 %6966
        %6969 = vset.pattern.permute.xlu0 8
        %6970 = vperm.xlu0 %6969, %v1371
        %v6971 = vpop.permute.xlu0 %6970
        %6973 = vset.pattern.permute.xlu0 8
        %6974 = vperm.xlu0 %6973, %v1372
        %v6975 = vpop.permute.xlu0 %6974
        %6977 = vset.pattern.permute.xlu0 8
        %6978 = vperm.xlu0 %6977, %v1373
        %v6979 = vpop.permute.xlu0 %6978
        %6981 = vset.pattern.permute.xlu0 8
        %6982 = vperm.xlu0 %6981, %v1374
        %v6983 = vpop.permute.xlu0 %6982
        %6985 = vset.pattern.permute.xlu0 8
        %6986 = vperm.xlu0 %6985, %v1375
        %v6987 = vpop.permute.xlu0 %6986
        %6989 = vset.pattern.permute.xlu0 8
        %6990 = vperm.xlu0 %6989, %v1376
        %v6991 = vpop.permute.xlu0 %6990
        %6993 = vset.pattern.permute.xlu0 8
        %6994 = vperm.xlu0 %6993, %v1377
        %v6995 = vpop.permute.xlu0 %6994
        %6997 = vset.pattern.permute.xlu0 8
        %6998 = vperm.xlu0 %6997, %v1378
        %v6999 = vpop.permute.xlu0 %6998
        %7001 = vset.pattern.permute.xlu0 8
        %7002 = vperm.xlu0 %7001, %v1379
        %v7003 = vpop.permute.xlu0 %7002
        %7005 = vset.pattern.permute.xlu0 8
        %7006 = vperm.xlu0 %7005, %v1380
        %v7007 = vpop.permute.xlu0 %7006
        %7009 = vset.pattern.permute.xlu0 8
        %7010 = vperm.xlu0 %7009, %v1381
        %v7011 = vpop.permute.xlu0 %7010
        %7013 = vset.pattern.permute.xlu0 8
        %7014 = vperm.xlu0 %7013, %v1382
        %v7015 = vpop.permute.xlu0 %7014
        %7017 = vset.pattern.permute.xlu0 8
        %7018 = vperm.xlu0 %7017, %v1383
        %v7019 = vpop.permute.xlu0 %7018
        %7021 = vset.pattern.permute.xlu0 8
        %7022 = vperm.xlu0 %7021, %v1384
        %v7023 = vpop.permute.xlu0 %7022
        %7025 = vset.pattern.permute.xlu0 8
        %7026 = vperm.xlu0 %7025, %v1385
        %v7027 = vpop.permute.xlu0 %7026
        %7029 = vset.pattern.permute.xlu0 8
        %7030 = vperm.xlu0 %7029, %v1386
        %v7031 = vpop.permute.xlu0 %7030
        %7033 = vset.pattern.permute.xlu0 8
        %7034 = vperm.xlu0 %7033, %v1387
        %v7035 = vpop.permute.xlu0 %7034
        %7037 = vset.pattern.permute.xlu0 8
        %7038 = vperm.xlu0 %7037, %v1388
        %v7039 = vpop.permute.xlu0 %7038
        %7041 = vset.pattern.permute.xlu0 8
        %7042 = vperm.xlu0 %7041, %v1389
        %v7043 = vpop.permute.xlu0 %7042
        %7045 = vset.pattern.permute.xlu0 8
        %7046 = vperm.xlu0 %7045, %v1390
        %v7047 = vpop.permute.xlu0 %7046
        %7049 = vset.pattern.permute.xlu0 8
        %7050 = vperm.xlu0 %7049, %v1391
        %v7051 = vpop.permute.xlu0 %7050
        %7053 = vset.pattern.permute.xlu0 8
        %7054 = vperm.xlu0 %7053, %v1392
        %v7055 = vpop.permute.xlu0 %7054
        %7057 = vset.pattern.permute.xlu0 8
        %7058 = vperm.xlu0 %7057, %v1393
        %v7059 = vpop.permute.xlu0 %7058
        %7061 = vset.pattern.permute.xlu0 8
        %7062 = vperm.xlu0 %7061, %v1394
        %v7063 = vpop.permute.xlu0 %7062
        %7065 = vset.pattern.permute.xlu0 8
        %7066 = vperm.xlu0 %7065, %v1395
        %v7067 = vpop.permute.xlu0 %7066
        %7069 = vset.pattern.permute.xlu0 8
        %7070 = vperm.xlu0 %7069, %v1396
        %v7071 = vpop.permute.xlu0 %7070
        %7073 = vset.pattern.permute.xlu0 8
        %7074 = vperm.xlu0 %7073, %v1397
        %v7075 = vpop.permute.xlu0 %7074
        %7077 = vset.pattern.permute.xlu0 8
        %7078 = vperm.xlu0 %7077, %v1398
        %v7079 = vpop.permute.xlu0 %7078
        %7081 = vset.pattern.permute.xlu0 8
        %7082 = vperm.xlu0 %7081, %v1399
        %v7083 = vpop.permute.xlu0 %7082
        %7085 = vset.pattern.permute.xlu0 8
        %7086 = vperm.xlu0 %7085, %v1400
        %v7087 = vpop.permute.xlu0 %7086
        %7089 = vset.pattern.permute.xlu0 8
        %7090 = vperm.xlu0 %7089, %v1401
        %v7091 = vpop.permute.xlu0 %7090
        %7093 = vset.pattern.permute.xlu0 8
        %7094 = vperm.xlu0 %7093, %v1402
        %v7095 = vpop.permute.xlu0 %7094
        %7097 = vset.pattern.permute.xlu0 8
        %7098 = vperm.xlu0 %7097, %v1403
        %v7099 = vpop.permute.xlu0 %7098
        %7101 = vset.pattern.permute.xlu0 8
        %7102 = vperm.xlu0 %7101, %v1404
        %v7103 = vpop.permute.xlu0 %7102
        %7105 = vset.pattern.permute.xlu0 8
        %7106 = vperm.xlu0 %7105, %v1405
        %v7107 = vpop.permute.xlu0 %7106
        %7109 = vset.pattern.permute.xlu0 8
        %7110 = vperm.xlu0 %7109, %v1406
        %v7111 = vpop.permute.xlu0 %7110
        %7113 = vset.pattern.permute.xlu0 8
        %7114 = vperm.xlu0 %7113, %v1407
        %v7115 = vpop.permute.xlu0 %7114
        %7117 = vset.pattern.permute.xlu0 8
        %7118 = vperm.xlu0 %7117, %v1408
        %v7119 = vpop.permute.xlu0 %7118
        %v7121 = vmul.f32 %v6867, %v6674
        %v7122 = vmul.f32 %v6871, %v6677
        %v7123 = vmul.f32 %v6875, %v6680
        %v7124 = vmul.f32 %v6879, %v6683
        %v7125 = vmul.f32 %v6883, %v6686
        %v7126 = vmul.f32 %v6887, %v6689
        %v7127 = vmul.f32 %v6891, %v6692
        %v7128 = vmul.f32 %v6895, %v6695
        %v7129 = vmul.f32 %v6899, %v6698
        %v7130 = vmul.f32 %v6903, %v6701
        %v7131 = vmul.f32 %v6907, %v6704
        %v7132 = vmul.f32 %v6911, %v6707
        %v7133 = vmul.f32 %v6915, %v6710
        %v7134 = vmul.f32 %v6919, %v6713
        %v7135 = vmul.f32 %v6923, %v6716
        %v7136 = vmul.f32 %v6927, %v6719
        %v7137 = vmul.f32 %v6931, %v6722
        %v7138 = vmul.f32 %v6935, %v6725
        %v7139 = vmul.f32 %v6939, %v6728
        %v7140 = vmul.f32 %v6943, %v6731
        %v7141 = vmul.f32 %v6947, %v6734
        %v7142 = vmul.f32 %v6951, %v6737
        %v7143 = vmul.f32 %v6955, %v6740
        %v7144 = vmul.f32 %v6959, %v6743
        %v7145 = vmul.f32 %v6963, %v6746
        %v7146 = vmul.f32 %v6967, %v6749
        %v7147 = vmul.f32 %v6971, %v6752
        %v7148 = vmul.f32 %v6975, %v6755
        %v7149 = vmul.f32 %v6979, %v6758
        %v7150 = vmul.f32 %v6983, %v6761
        %v7151 = vmul.f32 %v6987, %v6764
        %v7152 = vmul.f32 %v6991, %v6767
        %v7153 = vmul.f32 %v6995, %v6770
        %v7154 = vmul.f32 %v6999, %v6773
        %v7155 = vmul.f32 %v7003, %v6776
        %v7156 = vmul.f32 %v7007, %v6779
        %v7157 = vmul.f32 %v7011, %v6782
        %v7158 = vmul.f32 %v7015, %v6785
        %v7159 = vmul.f32 %v7019, %v6788
        %v7160 = vmul.f32 %v7023, %v6791
        %v7161 = vmul.f32 %v7027, %v6794
        %v7162 = vmul.f32 %v7031, %v6797
        %v7163 = vmul.f32 %v7035, %v6800
        %v7164 = vmul.f32 %v7039, %v6803
        %v7165 = vmul.f32 %v7043, %v6806
        %v7166 = vmul.f32 %v7047, %v6809
        %v7167 = vmul.f32 %v7051, %v6812
        %v7168 = vmul.f32 %v7055, %v6815
        %v7169 = vmul.f32 %v7059, %v6818
        %v7170 = vmul.f32 %v7063, %v6821
        %v7171 = vmul.f32 %v7067, %v6824
        %v7172 = vmul.f32 %v7071, %v6827
        %v7173 = vmul.f32 %v7075, %v6830
        %v7174 = vmul.f32 %v7079, %v6833
        %v7175 = vmul.f32 %v7083, %v6836
        %v7176 = vmul.f32 %v7087, %v6839
        %v7177 = vmul.f32 %v7091, %v6842
        %v7178 = vmul.f32 %v7095, %v6845
        %v7179 = vmul.f32 %v7099, %v6848
        %v7180 = vmul.f32 %v7103, %v6851
        %v7181 = vmul.f32 %v7107, %v6854
        %v7182 = vmul.f32 %v7111, %v6857
        %v7183 = vmul.f32 %v7115, %v6860
        %v7184 = vmul.f32 %v7119, %v6863
        %v7185 = vadd.f32 %v6511, %v7121
        %v7186 = vadd.f32 %v6512, %v7122
        %v7187 = vadd.f32 %v6513, %v7123
        %v7188 = vadd.f32 %v6514, %v7124
        %v7189 = vadd.f32 %v6515, %v7125
        %v7190 = vadd.f32 %v6516, %v7126
        %v7191 = vadd.f32 %v6517, %v7127
        %v7192 = vadd.f32 %v6518, %v7128
        %v7193 = vadd.f32 %v6519, %v7129
        %v7194 = vadd.f32 %v6520, %v7130
        %v7195 = vadd.f32 %v6521, %v7131
        %v7196 = vadd.f32 %v6522, %v7132
        %v7197 = vadd.f32 %v6523, %v7133
        %v7198 = vadd.f32 %v6524, %v7134
        %v7199 = vadd.f32 %v6525, %v7135
        %v7200 = vadd.f32 %v6526, %v7136
        %v7201 = vadd.f32 %v6527, %v7137
        %v7202 = vadd.f32 %v6528, %v7138
        %v7203 = vadd.f32 %v6529, %v7139
        %v7204 = vadd.f32 %v6530, %v7140
        %v7205 = vadd.f32 %v6531, %v7141
        %v7206 = vadd.f32 %v6532, %v7142
        %v7207 = vadd.f32 %v6533, %v7143
        %v7208 = vadd.f32 %v6534, %v7144
        %v7209 = vadd.f32 %v6535, %v7145
        %v7210 = vadd.f32 %v6536, %v7146
        %v7211 = vadd.f32 %v6537, %v7147
        %v7212 = vadd.f32 %v6538, %v7148
        %v7213 = vadd.f32 %v6539, %v7149
        %v7214 = vadd.f32 %v6540, %v7150
        %v7215 = vadd.f32 %v6541, %v7151
        %v7216 = vadd.f32 %v6542, %v7152
        %v7217 = vadd.f32 %v6543, %v7153
        %v7218 = vadd.f32 %v6544, %v7154
        %v7219 = vadd.f32 %v6545, %v7155
        %v7220 = vadd.f32 %v6546, %v7156
        %v7221 = vadd.f32 %v6547, %v7157
        %v7222 = vadd.f32 %v6548, %v7158
        %v7223 = vadd.f32 %v6549, %v7159
        %v7224 = vadd.f32 %v6550, %v7160
        %v7225 = vadd.f32 %v6551, %v7161
        %v7226 = vadd.f32 %v6552, %v7162
        %v7227 = vadd.f32 %v6553, %v7163
        %v7228 = vadd.f32 %v6554, %v7164
        %v7229 = vadd.f32 %v6555, %v7165
        %v7230 = vadd.f32 %v6556, %v7166
        %v7231 = vadd.f32 %v6557, %v7167
        %v7232 = vadd.f32 %v6558, %v7168
        %v7233 = vadd.f32 %v6559, %v7169
        %v7234 = vadd.f32 %v6560, %v7170
        %v7235 = vadd.f32 %v6561, %v7171
        %v7236 = vadd.f32 %v6562, %v7172
        %v7237 = vadd.f32 %v6563, %v7173
        %v7238 = vadd.f32 %v6564, %v7174
        %v7239 = vadd.f32 %v6565, %v7175
        %v7240 = vadd.f32 %v6566, %v7176
        %v7241 = vadd.f32 %v6567, %v7177
        %v7242 = vadd.f32 %v6568, %v7178
        %v7243 = vadd.f32 %v6569, %v7179
        %v7244 = vadd.f32 %v6570, %v7180
        %v7245 = vadd.f32 %v6571, %v7181
        %v7246 = vadd.f32 %v6572, %v7182
        %v7247 = vadd.f32 %v6573, %v7183
        %v7248 = vadd.f32 %v6574, %v7184
        %v7249 = vadd.f32 %v7185, %v7186
        %v7250 = vadd.f32 %v7249, %v7187
        %v7251 = vadd.f32 %v7250, %v7188
        %v7252 = vadd.f32 %v7251, %v7189
        %v7253 = vadd.f32 %v7252, %v7190
        %v7254 = vadd.f32 %v7253, %v7191
        %v7255 = vadd.f32 %v7254, %v7192
        %v7256 = vadd.f32 %v7255, %v7193
        %v7257 = vadd.f32 %v7256, %v7194
        %v7258 = vadd.f32 %v7257, %v7195
        %v7259 = vadd.f32 %v7258, %v7196
        %v7260 = vadd.f32 %v7259, %v7197
        %v7261 = vadd.f32 %v7260, %v7198
        %v7262 = vadd.f32 %v7261, %v7199
        %v7263 = vadd.f32 %v7262, %v7200
        %v7264 = vadd.f32 %v7263, %v7201
        %v7265 = vadd.f32 %v7264, %v7202
        %v7266 = vadd.f32 %v7265, %v7203
        %v7267 = vadd.f32 %v7266, %v7204
        %v7268 = vadd.f32 %v7267, %v7205
        %v7269 = vadd.f32 %v7268, %v7206
        %v7270 = vadd.f32 %v7269, %v7207
        %v7271 = vadd.f32 %v7270, %v7208
        %v7272 = vadd.f32 %v7271, %v7209
        %v7273 = vadd.f32 %v7272, %v7210
        %v7274 = vadd.f32 %v7273, %v7211
        %v7275 = vadd.f32 %v7274, %v7212
        %v7276 = vadd.f32 %v7275, %v7213
        %v7277 = vadd.f32 %v7276, %v7214
        %v7278 = vadd.f32 %v7277, %v7215
        %v7279 = vadd.f32 %v7278, %v7216
        %v7280 = vadd.f32 %v7279, %v7217
        %v7281 = vadd.f32 %v7280, %v7218
        %v7282 = vadd.f32 %v7281, %v7219
        %v7283 = vadd.f32 %v7282, %v7220
        %v7284 = vadd.f32 %v7283, %v7221
        %v7285 = vadd.f32 %v7284, %v7222
        %v7286 = vadd.f32 %v7285, %v7223
        %v7287 = vadd.f32 %v7286, %v7224
        %v7288 = vadd.f32 %v7287, %v7225
        %v7289 = vadd.f32 %v7288, %v7226
        %v7290 = vadd.f32 %v7289, %v7227
        %v7291 = vadd.f32 %v7290, %v7228
        %v7292 = vadd.f32 %v7291, %v7229
        %v7293 = vadd.f32 %v7292, %v7230
        %v7294 = vadd.f32 %v7293, %v7231
        %v7295 = vadd.f32 %v7294, %v7232
        %v7296 = vadd.f32 %v7295, %v7233
        %v7297 = vadd.f32 %v7296, %v7234
        %v7298 = vadd.f32 %v7297, %v7235
        %v7299 = vadd.f32 %v7298, %v7236
        %v7300 = vadd.f32 %v7299, %v7237
        %v7301 = vadd.f32 %v7300, %v7238
        %v7302 = vadd.f32 %v7301, %v7239
        %v7303 = vadd.f32 %v7302, %v7240
        %v7304 = vadd.f32 %v7303, %v7241
        %v7305 = vadd.f32 %v7304, %v7242
        %v7306 = vadd.f32 %v7305, %v7243
        %v7307 = vadd.f32 %v7306, %v7244
        %v7308 = vadd.f32 %v7307, %v7245
        %v7309 = vadd.f32 %v7308, %v7246
        %v7310 = vadd.f32 %v7309, %v7247
        %v7311 = vadd.f32 %v7310, %v7248
        %v7312 = vrot.slane %v7311, 4
        %v7313 = vadd.f32 %v7311, %v7312
        %v7314 = vrot.slane %v7313, 2
        %v7315 = vadd.f32 %v7313, %v7314
        %v7316 = vrot.slane %v7315, 1
        %v7317 = vadd.f32 %v7315, %v7316
        %v7318 = vrcp.pop 512.0
        %v7319 = vmul.f32 512.0, %v7318
        %v7320 = vsub.f32 1.0, %v7319
        %v7321 = vmul.f32 %v7318, %v7320
        %v7322 = vadd.f32 %v7318, %v7321
        %vm7323 = vweird.f32 %v7318
        %v7324 = vsel %vm7323, %v7318, %v7322
        %v7325 = vmul.f32 %v7317, %v7324
        %v7326 = vsub.f32 %v7185, %v7325
        %v7327 = vsub.f32 %v7186, %v7325
        %v7328 = vsub.f32 %v7187, %v7325
        %v7329 = vsub.f32 %v7188, %v7325
        %v7330 = vsub.f32 %v7189, %v7325
        %v7331 = vsub.f32 %v7190, %v7325
        %v7332 = vsub.f32 %v7191, %v7325
        %v7333 = vsub.f32 %v7192, %v7325
        %v7334 = vsub.f32 %v7193, %v7325
        %v7335 = vsub.f32 %v7194, %v7325
        %v7336 = vsub.f32 %v7195, %v7325
        %v7337 = vsub.f32 %v7196, %v7325
        %v7338 = vsub.f32 %v7197, %v7325
        %v7339 = vsub.f32 %v7198, %v7325
        %v7340 = vsub.f32 %v7199, %v7325
        %v7341 = vsub.f32 %v7200, %v7325
        %v7342 = vsub.f32 %v7201, %v7325
        %v7343 = vsub.f32 %v7202, %v7325
        %v7344 = vsub.f32 %v7203, %v7325
        %v7345 = vsub.f32 %v7204, %v7325
        %v7346 = vsub.f32 %v7205, %v7325
        %v7347 = vsub.f32 %v7206, %v7325
        %v7348 = vsub.f32 %v7207, %v7325
        %v7349 = vsub.f32 %v7208, %v7325
        %v7350 = vsub.f32 %v7209, %v7325
        %v7351 = vsub.f32 %v7210, %v7325
        %v7352 = vsub.f32 %v7211, %v7325
        %v7353 = vsub.f32 %v7212, %v7325
        %v7354 = vsub.f32 %v7213, %v7325
        %v7355 = vsub.f32 %v7214, %v7325
        %v7356 = vsub.f32 %v7215, %v7325
        %v7357 = vsub.f32 %v7216, %v7325
        %v7358 = vsub.f32 %v7217, %v7325
        %v7359 = vsub.f32 %v7218, %v7325
        %v7360 = vsub.f32 %v7219, %v7325
        %v7361 = vsub.f32 %v7220, %v7325
        %v7362 = vsub.f32 %v7221, %v7325
        %v7363 = vsub.f32 %v7222, %v7325
        %v7364 = vsub.f32 %v7223, %v7325
        %v7365 = vsub.f32 %v7224, %v7325
        %v7366 = vsub.f32 %v7225, %v7325
        %v7367 = vsub.f32 %v7226, %v7325
        %v7368 = vsub.f32 %v7227, %v7325
        %v7369 = vsub.f32 %v7228, %v7325
        %v7370 = vsub.f32 %v7229, %v7325
        %v7371 = vsub.f32 %v7230, %v7325
        %v7372 = vsub.f32 %v7231, %v7325
        %v7373 = vsub.f32 %v7232, %v7325
        %v7374 = vsub.f32 %v7233, %v7325
        %v7375 = vsub.f32 %v7234, %v7325
        %v7376 = vsub.f32 %v7235, %v7325
        %v7377 = vsub.f32 %v7236, %v7325
        %v7378 = vsub.f32 %v7237, %v7325
        %v7379 = vsub.f32 %v7238, %v7325
        %v7380 = vsub.f32 %v7239, %v7325
        %v7381 = vsub.f32 %v7240, %v7325
        %v7382 = vsub.f32 %v7241, %v7325
        %v7383 = vsub.f32 %v7242, %v7325
        %v7384 = vsub.f32 %v7243, %v7325
        %v7385 = vsub.f32 %v7244, %v7325
        %v7386 = vsub.f32 %v7245, %v7325
        %v7387 = vsub.f32 %v7246, %v7325
        %v7388 = vsub.f32 %v7247, %v7325
        %v7389 = vsub.f32 %v7248, %v7325
        %v7390 = vmul.f32 %v7326, %v7326
        %v7391 = vmul.f32 %v7327, %v7327
        %v7392 = vmul.f32 %v7328, %v7328
        %v7393 = vmul.f32 %v7329, %v7329
        %v7394 = vmul.f32 %v7330, %v7330
        %v7395 = vmul.f32 %v7331, %v7331
        %v7396 = vmul.f32 %v7332, %v7332
        %v7397 = vmul.f32 %v7333, %v7333
        %v7398 = vmul.f32 %v7334, %v7334
        %v7399 = vmul.f32 %v7335, %v7335
        %v7400 = vmul.f32 %v7336, %v7336
        %v7401 = vmul.f32 %v7337, %v7337
        %v7402 = vmul.f32 %v7338, %v7338
        %v7403 = vmul.f32 %v7339, %v7339
        %v7404 = vmul.f32 %v7340, %v7340
        %v7405 = vmul.f32 %v7341, %v7341
        %v7406 = vmul.f32 %v7342, %v7342
        %v7407 = vmul.f32 %v7343, %v7343
        %v7408 = vmul.f32 %v7344, %v7344
        %v7409 = vmul.f32 %v7345, %v7345
        %v7410 = vmul.f32 %v7346, %v7346
        %v7411 = vmul.f32 %v7347, %v7347
        %v7412 = vmul.f32 %v7348, %v7348
        %v7413 = vmul.f32 %v7349, %v7349
        %v7414 = vmul.f32 %v7350, %v7350
        %v7415 = vmul.f32 %v7351, %v7351
        %v7416 = vmul.f32 %v7352, %v7352
        %v7417 = vmul.f32 %v7353, %v7353
        %v7418 = vmul.f32 %v7354, %v7354
        %v7419 = vmul.f32 %v7355, %v7355
        %v7420 = vmul.f32 %v7356, %v7356
        %v7421 = vmul.f32 %v7357, %v7357
        %v7422 = vmul.f32 %v7358, %v7358
        %v7423 = vmul.f32 %v7359, %v7359
        %v7424 = vmul.f32 %v7360, %v7360
        %v7425 = vmul.f32 %v7361, %v7361
        %v7426 = vmul.f32 %v7362, %v7362
        %v7427 = vmul.f32 %v7363, %v7363
        %v7428 = vmul.f32 %v7364, %v7364
        %v7429 = vmul.f32 %v7365, %v7365
        %v7430 = vmul.f32 %v7366, %v7366
        %v7431 = vmul.f32 %v7367, %v7367
        %v7432 = vmul.f32 %v7368, %v7368
        %v7433 = vmul.f32 %v7369, %v7369
        %v7434 = vmul.f32 %v7370, %v7370
        %v7435 = vmul.f32 %v7371, %v7371
        %v7436 = vmul.f32 %v7372, %v7372
        %v7437 = vmul.f32 %v7373, %v7373
        %v7438 = vmul.f32 %v7374, %v7374
        %v7439 = vmul.f32 %v7375, %v7375
        %v7440 = vmul.f32 %v7376, %v7376
        %v7441 = vmul.f32 %v7377, %v7377
        %v7442 = vmul.f32 %v7378, %v7378
        %v7443 = vmul.f32 %v7379, %v7379
        %v7444 = vmul.f32 %v7380, %v7380
        %v7445 = vmul.f32 %v7381, %v7381
        %v7446 = vmul.f32 %v7382, %v7382
        %v7447 = vmul.f32 %v7383, %v7383
        %v7448 = vmul.f32 %v7384, %v7384
        %v7449 = vmul.f32 %v7385, %v7385
        %v7450 = vmul.f32 %v7386, %v7386
        %v7451 = vmul.f32 %v7387, %v7387
        %v7452 = vmul.f32 %v7388, %v7388
        %v7453 = vmul.f32 %v7389, %v7389
        %v7454 = vadd.f32 %v7390, %v7391
        %v7455 = vadd.f32 %v7454, %v7392
        %v7456 = vadd.f32 %v7455, %v7393
        %v7457 = vadd.f32 %v7456, %v7394
        %v7458 = vadd.f32 %v7457, %v7395
        %v7459 = vadd.f32 %v7458, %v7396
        %v7460 = vadd.f32 %v7459, %v7397
        %v7461 = vadd.f32 %v7460, %v7398
        %v7462 = vadd.f32 %v7461, %v7399
        %v7463 = vadd.f32 %v7462, %v7400
        %v7464 = vadd.f32 %v7463, %v7401
        %v7465 = vadd.f32 %v7464, %v7402
        %v7466 = vadd.f32 %v7465, %v7403
        %v7467 = vadd.f32 %v7466, %v7404
        %v7468 = vadd.f32 %v7467, %v7405
        %v7469 = vadd.f32 %v7468, %v7406
        %v7470 = vadd.f32 %v7469, %v7407
        %v7471 = vadd.f32 %v7470, %v7408
        %v7472 = vadd.f32 %v7471, %v7409
        %v7473 = vadd.f32 %v7472, %v7410
        %v7474 = vadd.f32 %v7473, %v7411
        %v7475 = vadd.f32 %v7474, %v7412
        %v7476 = vadd.f32 %v7475, %v7413
        %v7477 = vadd.f32 %v7476, %v7414
        %v7478 = vadd.f32 %v7477, %v7415
        %v7479 = vadd.f32 %v7478, %v7416
        %v7480 = vadd.f32 %v7479, %v7417
        %v7481 = vadd.f32 %v7480, %v7418
        %v7482 = vadd.f32 %v7481, %v7419
        %v7483 = vadd.f32 %v7482, %v7420
        %v7484 = vadd.f32 %v7483, %v7421
        %v7485 = vadd.f32 %v7484, %v7422
        %v7486 = vadd.f32 %v7485, %v7423
        %v7487 = vadd.f32 %v7486, %v7424
        %v7488 = vadd.f32 %v7487, %v7425
        %v7489 = vadd.f32 %v7488, %v7426
        %v7490 = vadd.f32 %v7489, %v7427
        %v7491 = vadd.f32 %v7490, %v7428
        %v7492 = vadd.f32 %v7491, %v7429
        %v7493 = vadd.f32 %v7492, %v7430
        %v7494 = vadd.f32 %v7493, %v7431
        %v7495 = vadd.f32 %v7494, %v7432
        %v7496 = vadd.f32 %v7495, %v7433
        %v7497 = vadd.f32 %v7496, %v7434
        %v7498 = vadd.f32 %v7497, %v7435
        %v7499 = vadd.f32 %v7498, %v7436
        %v7500 = vadd.f32 %v7499, %v7437
        %v7501 = vadd.f32 %v7500, %v7438
        %v7502 = vadd.f32 %v7501, %v7439
        %v7503 = vadd.f32 %v7502, %v7440
        %v7504 = vadd.f32 %v7503, %v7441
        %v7505 = vadd.f32 %v7504, %v7442
        %v7506 = vadd.f32 %v7505, %v7443
        %v7507 = vadd.f32 %v7506, %v7444
        %v7508 = vadd.f32 %v7507, %v7445
        %v7509 = vadd.f32 %v7508, %v7446
        %v7510 = vadd.f32 %v7509, %v7447
        %v7511 = vadd.f32 %v7510, %v7448
        %v7512 = vadd.f32 %v7511, %v7449
        %v7513 = vadd.f32 %v7512, %v7450
        %v7514 = vadd.f32 %v7513, %v7451
        %v7515 = vadd.f32 %v7514, %v7452
        %v7516 = vadd.f32 %v7515, %v7453
        %v7517 = vrot.slane %v7516, 4
        %v7518 = vadd.f32 %v7516, %v7517
        %v7519 = vrot.slane %v7518, 2
        %v7520 = vadd.f32 %v7518, %v7519
        %v7521 = vrot.slane %v7520, 1
        %v7522 = vadd.f32 %v7520, %v7521
        %v7523 = vmul.f32 %v7522, %v7324
        %v7524 = vld [vmem:[%s5] sm:$0x1]
        %v7525 = vadd.f32 %v7523, 1e-05
        %v7526 = vrsqrt.pop %v7525
        %v7527 = vmul.f32 %v7526, %v7525
        %v7528 = vmul.f32 %v7527, %v7526
        %v7529 = vmul.f32 0.5, %v7528
        %v7530 = vsub.f32 1.5, %v7529
        %v7531 = vmul.f32 %v7526, %v7530
        %vm7532 = vweird.f32 %v7525
        %vm7533 = vweird.f32 %v7526
        %vm7534 = vmor %vm7532, %vm7533
        %v7535 = vsel %vm7534, %v7526, %v7531
        %v7536 = vmul.f32 %v7524, %v7535
        %v7538 = vperm.slane %v7536, 0
        %v7540 = vmul.f32 %v7326, %v7538
        %v7541 = vmul.f32 %v7327, %v7538
        %v7542 = vmul.f32 %v7328, %v7538
        %v7543 = vmul.f32 %v7329, %v7538
        %v7544 = vmul.f32 %v7330, %v7538
        %v7545 = vmul.f32 %v7331, %v7538
        %v7546 = vmul.f32 %v7332, %v7538
        %v7547 = vmul.f32 %v7333, %v7538
        %v7548 = vmul.f32 %v7334, %v7538
        %v7549 = vmul.f32 %v7335, %v7538
        %v7550 = vmul.f32 %v7336, %v7538
        %v7551 = vmul.f32 %v7337, %v7538
        %v7552 = vmul.f32 %v7338, %v7538
        %v7553 = vmul.f32 %v7339, %v7538
        %v7554 = vmul.f32 %v7340, %v7538
        %v7555 = vmul.f32 %v7341, %v7538
        %v7556 = vmul.f32 %v7342, %v7538
        %v7557 = vmul.f32 %v7343, %v7538
        %v7558 = vmul.f32 %v7344, %v7538
        %v7559 = vmul.f32 %v7345, %v7538
        %v7560 = vmul.f32 %v7346, %v7538
        %v7561 = vmul.f32 %v7347, %v7538
        %v7562 = vmul.f32 %v7348, %v7538
        %v7563 = vmul.f32 %v7349, %v7538
        %v7564 = vmul.f32 %v7350, %v7538
        %v7565 = vmul.f32 %v7351, %v7538
        %v7566 = vmul.f32 %v7352, %v7538
        %v7567 = vmul.f32 %v7353, %v7538
        %v7568 = vmul.f32 %v7354, %v7538
        %v7569 = vmul.f32 %v7355, %v7538
        %v7570 = vmul.f32 %v7356, %v7538
        %v7571 = vmul.f32 %v7357, %v7538
        %v7572 = vmul.f32 %v7358, %v7538
        %v7573 = vmul.f32 %v7359, %v7538
        %v7574 = vmul.f32 %v7360, %v7538
        %v7575 = vmul.f32 %v7361, %v7538
        %v7576 = vmul.f32 %v7362, %v7538
        %v7577 = vmul.f32 %v7363, %v7538
        %v7578 = vmul.f32 %v7364, %v7538
        %v7579 = vmul.f32 %v7365, %v7538
        %v7580 = vmul.f32 %v7366, %v7538
        %v7581 = vmul.f32 %v7367, %v7538
        %v7582 = vmul.f32 %v7368, %v7538
        %v7583 = vmul.f32 %v7369, %v7538
        %v7584 = vmul.f32 %v7370, %v7538
        %v7585 = vmul.f32 %v7371, %v7538
        %v7586 = vmul.f32 %v7372, %v7538
        %v7587 = vmul.f32 %v7373, %v7538
        %v7588 = vmul.f32 %v7374, %v7538
        %v7589 = vmul.f32 %v7375, %v7538
        %v7590 = vmul.f32 %v7376, %v7538
        %v7591 = vmul.f32 %v7377, %v7538
        %v7592 = vmul.f32 %v7378, %v7538
        %v7593 = vmul.f32 %v7379, %v7538
        %v7594 = vmul.f32 %v7380, %v7538
        %v7595 = vmul.f32 %v7381, %v7538
        %v7596 = vmul.f32 %v7382, %v7538
        %v7597 = vmul.f32 %v7383, %v7538
        %v7598 = vmul.f32 %v7384, %v7538
        %v7599 = vmul.f32 %v7385, %v7538
        %v7600 = vmul.f32 %v7386, %v7538
        %v7601 = vmul.f32 %v7387, %v7538
        %v7602 = vmul.f32 %v7388, %v7538
        %v7603 = vmul.f32 %v7389, %v7538
        %v7604 = vld [vmem:[%s6] sm:$0x1]
        %v7606 = vperm.slane %v7604, 0
        %v7608 = vadd.f32 %v7540, %v7606
        %v7609 = vadd.f32 %v7541, %v7606
        %v7610 = vadd.f32 %v7542, %v7606
        %v7611 = vadd.f32 %v7543, %v7606
        %v7612 = vadd.f32 %v7544, %v7606
        %v7613 = vadd.f32 %v7545, %v7606
        %v7614 = vadd.f32 %v7546, %v7606
        %v7615 = vadd.f32 %v7547, %v7606
        %v7616 = vadd.f32 %v7548, %v7606
        %v7617 = vadd.f32 %v7549, %v7606
        %v7618 = vadd.f32 %v7550, %v7606
        %v7619 = vadd.f32 %v7551, %v7606
        %v7620 = vadd.f32 %v7552, %v7606
        %v7621 = vadd.f32 %v7553, %v7606
        %v7622 = vadd.f32 %v7554, %v7606
        %v7623 = vadd.f32 %v7555, %v7606
        %v7624 = vadd.f32 %v7556, %v7606
        %v7625 = vadd.f32 %v7557, %v7606
        %v7626 = vadd.f32 %v7558, %v7606
        %v7627 = vadd.f32 %v7559, %v7606
        %v7628 = vadd.f32 %v7560, %v7606
        %v7629 = vadd.f32 %v7561, %v7606
        %v7630 = vadd.f32 %v7562, %v7606
        %v7631 = vadd.f32 %v7563, %v7606
        %v7632 = vadd.f32 %v7564, %v7606
        %v7633 = vadd.f32 %v7565, %v7606
        %v7634 = vadd.f32 %v7566, %v7606
        %v7635 = vadd.f32 %v7567, %v7606
        %v7636 = vadd.f32 %v7568, %v7606
        %v7637 = vadd.f32 %v7569, %v7606
        %v7638 = vadd.f32 %v7570, %v7606
        %v7639 = vadd.f32 %v7571, %v7606
        %v7640 = vadd.f32 %v7572, %v7606
        %v7641 = vadd.f32 %v7573, %v7606
        %v7642 = vadd.f32 %v7574, %v7606
        %v7643 = vadd.f32 %v7575, %v7606
        %v7644 = vadd.f32 %v7576, %v7606
        %v7645 = vadd.f32 %v7577, %v7606
        %v7646 = vadd.f32 %v7578, %v7606
        %v7647 = vadd.f32 %v7579, %v7606
        %v7648 = vadd.f32 %v7580, %v7606
        %v7649 = vadd.f32 %v7581, %v7606
        %v7650 = vadd.f32 %v7582, %v7606
        %v7651 = vadd.f32 %v7583, %v7606
        %v7652 = vadd.f32 %v7584, %v7606
        %v7653 = vadd.f32 %v7585, %v7606
        %v7654 = vadd.f32 %v7586, %v7606
        %v7655 = vadd.f32 %v7587, %v7606
        %v7656 = vadd.f32 %v7588, %v7606
        %v7657 = vadd.f32 %v7589, %v7606
        %v7658 = vadd.f32 %v7590, %v7606
        %v7659 = vadd.f32 %v7591, %v7606
        %v7660 = vadd.f32 %v7592, %v7606
        %v7661 = vadd.f32 %v7593, %v7606
        %v7662 = vadd.f32 %v7594, %v7606
        %v7663 = vadd.f32 %v7595, %v7606
        %v7664 = vadd.f32 %v7596, %v7606
        %v7665 = vadd.f32 %v7597, %v7606
        %v7666 = vadd.f32 %v7598, %v7606
        %v7667 = vadd.f32 %v7599, %v7606
        %v7668 = vadd.f32 %v7600, %v7606
        %v7669 = vadd.f32 %v7601, %v7606
        %v7670 = vadd.f32 %v7602, %v7606
        %v7671 = vadd.f32 %v7603, %v7606
        %v7672 = vmax.f32 %v7608, 0.0
        %v7673 = vmax.f32 %v7609, 0.0
        %v7674 = vmax.f32 %v7610, 0.0
        %v7675 = vmax.f32 %v7611, 0.0
        %v7676 = vmax.f32 %v7612, 0.0
        %v7677 = vmax.f32 %v7613, 0.0
        %v7678 = vmax.f32 %v7614, 0.0
        %v7679 = vmax.f32 %v7615, 0.0
        %v7680 = vmax.f32 %v7616, 0.0
        %v7681 = vmax.f32 %v7617, 0.0
        %v7682 = vmax.f32 %v7618, 0.0
        %v7683 = vmax.f32 %v7619, 0.0
        %v7684 = vmax.f32 %v7620, 0.0
        %v7685 = vmax.f32 %v7621, 0.0
        %v7686 = vmax.f32 %v7622, 0.0
        %v7687 = vmax.f32 %v7623, 0.0
        %v7688 = vmax.f32 %v7624, 0.0
        %v7689 = vmax.f32 %v7625, 0.0
        %v7690 = vmax.f32 %v7626, 0.0
        %v7691 = vmax.f32 %v7627, 0.0
        %v7692 = vmax.f32 %v7628, 0.0
        %v7693 = vmax.f32 %v7629, 0.0
        %v7694 = vmax.f32 %v7630, 0.0
        %v7695 = vmax.f32 %v7631, 0.0
        %v7696 = vmax.f32 %v7632, 0.0
        %v7697 = vmax.f32 %v7633, 0.0
        %v7698 = vmax.f32 %v7634, 0.0
        %v7699 = vmax.f32 %v7635, 0.0
        %v7700 = vmax.f32 %v7636, 0.0
        %v7701 = vmax.f32 %v7637, 0.0
        %v7702 = vmax.f32 %v7638, 0.0
        %v7703 = vmax.f32 %v7639, 0.0
        %v7704 = vmax.f32 %v7640, 0.0
        %v7705 = vmax.f32 %v7641, 0.0
        %v7706 = vmax.f32 %v7642, 0.0
        %v7707 = vmax.f32 %v7643, 0.0
        %v7708 = vmax.f32 %v7644, 0.0
        %v7709 = vmax.f32 %v7645, 0.0
        %v7710 = vmax.f32 %v7646, 0.0
        %v7711 = vmax.f32 %v7647, 0.0
        %v7712 = vmax.f32 %v7648, 0.0
        %v7713 = vmax.f32 %v7649, 0.0
        %v7714 = vmax.f32 %v7650, 0.0
        %v7715 = vmax.f32 %v7651, 0.0
        %v7716 = vmax.f32 %v7652, 0.0
        %v7717 = vmax.f32 %v7653, 0.0
        %v7718 = vmax.f32 %v7654, 0.0
        %v7719 = vmax.f32 %v7655, 0.0
        %v7720 = vmax.f32 %v7656, 0.0
        %v7721 = vmax.f32 %v7657, 0.0
        %v7722 = vmax.f32 %v7658, 0.0
        %v7723 = vmax.f32 %v7659, 0.0
        %v7724 = vmax.f32 %v7660, 0.0
        %v7725 = vmax.f32 %v7661, 0.0
        %v7726 = vmax.f32 %v7662, 0.0
        %v7727 = vmax.f32 %v7663, 0.0
        %v7728 = vmax.f32 %v7664, 0.0
        %v7729 = vmax.f32 %v7665, 0.0
        %v7730 = vmax.f32 %v7666, 0.0
        %v7731 = vmax.f32 %v7667, 0.0
        %v7732 = vmax.f32 %v7668, 0.0
        %v7733 = vmax.f32 %v7669, 0.0
        %v7734 = vmax.f32 %v7670, 0.0
        %v7735 = vmax.f32 %v7671, 0.0
        %v7736 = vld [vmem:[%s8] sm:$0xff]
        %v7737 = vld [vmem:[%s8 + $0x8] sm:$0xff]
        %v7738 = vld [vmem:[%s8 + $0x10] sm:$0xff]
        %v7739 = vld [vmem:[%s8 + $0x18] sm:$0xff]
        %v7740 = vld [vmem:[%s8 + $0x20] sm:$0xff]
        %v7741 = vld [vmem:[%s8 + $0x28] sm:$0xff]
        %v7742 = vld [vmem:[%s8 + $0x30] sm:$0xff]
        %v7743 = vld [vmem:[%s8 + $0x38] sm:$0xff]
        %v7744 = vld [vmem:[%s8 + $0x40] sm:$0xff]
        %v7745 = vld [vmem:[%s8 + $0x48] sm:$0xff]
        %v7746 = vld [vmem:[%s8 + $0x50] sm:$0xff]
        %v7747 = vld [vmem:[%s8 + $0x58] sm:$0xff]
        %v7748 = vld [vmem:[%s8 + $0x60] sm:$0xff]
        %v7749 = vld [vmem:[%s8 + $0x68] sm:$0xff]
        %v7750 = vld [vmem:[%s8 + $0x70] sm:$0xff]
        %v7751 = vld [vmem:[%s8 + $0x78] sm:$0xff]
        %v7752 = vld [vmem:[%s8 + $0x80] sm:$0xff]
        %v7753 = vld [vmem:[%s8 + $0x88] sm:$0xff]
        %v7754 = vld [vmem:[%s8 + $0x90] sm:$0xff]
        %v7755 = vld [vmem:[%s8 + $0x98] sm:$0xff]
        %v7756 = vld [vmem:[%s8 + $0xa0] sm:$0xff]
        %v7757 = vld [vmem:[%s8 + $0xa8] sm:$0xff]
        %v7758 = vld [vmem:[%s8 + $0xb0] sm:$0xff]
        %v7759 = vld [vmem:[%s8 + $0xb8] sm:$0xff]
        %v7760 = vld [vmem:[%s8 + $0xc0] sm:$0xff]
        %v7761 = vld [vmem:[%s8 + $0xc8] sm:$0xff]
        %v7762 = vld [vmem:[%s8 + $0xd0] sm:$0xff]
        %v7763 = vld [vmem:[%s8 + $0xd8] sm:$0xff]
        %v7764 = vld [vmem:[%s8 + $0xe0] sm:$0xff]
        %v7765 = vld [vmem:[%s8 + $0xe8] sm:$0xff]
        %v7766 = vld [vmem:[%s8 + $0xf0] sm:$0xff]
        %v7767 = vld [vmem:[%s8 + $0xf8] sm:$0xff]
        %v7768 = vld [vmem:[%s8 + $0x100] sm:$0xff]
        %v7769 = vld [vmem:[%s8 + $0x108] sm:$0xff]
        %v7770 = vld [vmem:[%s8 + $0x110] sm:$0xff]
        %v7771 = vld [vmem:[%s8 + $0x118] sm:$0xff]
        %v7772 = vld [vmem:[%s8 + $0x120] sm:$0xff]
        %v7773 = vld [vmem:[%s8 + $0x128] sm:$0xff]
        %v7774 = vld [vmem:[%s8 + $0x130] sm:$0xff]
        %v7775 = vld [vmem:[%s8 + $0x138] sm:$0xff]
        %v7776 = vld [vmem:[%s8 + $0x140] sm:$0xff]
        %v7777 = vld [vmem:[%s8 + $0x148] sm:$0xff]
        %v7778 = vld [vmem:[%s8 + $0x150] sm:$0xff]
        %v7779 = vld [vmem:[%s8 + $0x158] sm:$0xff]
        %v7780 = vld [vmem:[%s8 + $0x160] sm:$0xff]
        %v7781 = vld [vmem:[%s8 + $0x168] sm:$0xff]
        %v7782 = vld [vmem:[%s8 + $0x170] sm:$0xff]
        %v7783 = vld [vmem:[%s8 + $0x178] sm:$0xff]
        %v7784 = vld [vmem:[%s8 + $0x180] sm:$0xff]
        %v7785 = vld [vmem:[%s8 + $0x188] sm:$0xff]
        %v7786 = vld [vmem:[%s8 + $0x190] sm:$0xff]
        %v7787 = vld [vmem:[%s8 + $0x198] sm:$0xff]
        %v7788 = vld [vmem:[%s8 + $0x1a0] sm:$0xff]
        %v7789 = vld [vmem:[%s8 + $0x1a8] sm:$0xff]
        %v7790 = vld [vmem:[%s8 + $0x1b0] sm:$0xff]
        %v7791 = vld [vmem:[%s8 + $0x1b8] sm:$0xff]
        %v7792 = vld [vmem:[%s8 + $0x1c0] sm:$0xff]
        %v7793 = vld [vmem:[%s8 + $0x1c8] sm:$0xff]
        %v7794 = vld [vmem:[%s8 + $0x1d0] sm:$0xff]
        %v7795 = vld [vmem:[%s8 + $0x1d8] sm:$0xff]
        %v7796 = vld [vmem:[%s8 + $0x1e0] sm:$0xff]
        %v7797 = vld [vmem:[%s8 + $0x1e8] sm:$0xff]
        %v7798 = vld [vmem:[%s8 + $0x1f0] sm:$0xff]
        %v7799 = vld [vmem:[%s8 + $0x1f8] sm:$0xff]
        %v7800 = vadd.f32 %v7672, %v7736
        %v7801 = vadd.f32 %v7673, %v7737
        %v7802 = vadd.f32 %v7674, %v7738
        %v7803 = vadd.f32 %v7675, %v7739
        %v7804 = vadd.f32 %v7676, %v7740
        %v7805 = vadd.f32 %v7677, %v7741
        %v7806 = vadd.f32 %v7678, %v7742
        %v7807 = vadd.f32 %v7679, %v7743
        %v7808 = vadd.f32 %v7680, %v7744
        %v7809 = vadd.f32 %v7681, %v7745
        %v7810 = vadd.f32 %v7682, %v7746
        %v7811 = vadd.f32 %v7683, %v7747
        %v7812 = vadd.f32 %v7684, %v7748
        %v7813 = vadd.f32 %v7685, %v7749
        %v7814 = vadd.f32 %v7686, %v7750
        %v7815 = vadd.f32 %v7687, %v7751
        %v7816 = vadd.f32 %v7688, %v7752
        %v7817 = vadd.f32 %v7689, %v7753
        %v7818 = vadd.f32 %v7690, %v7754
        %v7819 = vadd.f32 %v7691, %v7755
        %v7820 = vadd.f32 %v7692, %v7756
        %v7821 = vadd.f32 %v7693, %v7757
        %v7822 = vadd.f32 %v7694, %v7758
        %v7823 = vadd.f32 %v7695, %v7759
        %v7824 = vadd.f32 %v7696, %v7760
        %v7825 = vadd.f32 %v7697, %v7761
        %v7826 = vadd.f32 %v7698, %v7762
        %v7827 = vadd.f32 %v7699, %v7763
        %v7828 = vadd.f32 %v7700, %v7764
        %v7829 = vadd.f32 %v7701, %v7765
        %v7830 = vadd.f32 %v7702, %v7766
        %v7831 = vadd.f32 %v7703, %v7767
        %v7832 = vadd.f32 %v7704, %v7768
        %v7833 = vadd.f32 %v7705, %v7769
        %v7834 = vadd.f32 %v7706, %v7770
        %v7835 = vadd.f32 %v7707, %v7771
        %v7836 = vadd.f32 %v7708, %v7772
        %v7837 = vadd.f32 %v7709, %v7773
        %v7838 = vadd.f32 %v7710, %v7774
        %v7839 = vadd.f32 %v7711, %v7775
        %v7840 = vadd.f32 %v7712, %v7776
        %v7841 = vadd.f32 %v7713, %v7777
        %v7842 = vadd.f32 %v7714, %v7778
        %v7843 = vadd.f32 %v7715, %v7779
        %v7844 = vadd.f32 %v7716, %v7780
        %v7845 = vadd.f32 %v7717, %v7781
        %v7846 = vadd.f32 %v7718, %v7782
        %v7847 = vadd.f32 %v7719, %v7783
        %v7848 = vadd.f32 %v7720, %v7784
        %v7849 = vadd.f32 %v7721, %v7785
        %v7850 = vadd.f32 %v7722, %v7786
        %v7851 = vadd.f32 %v7723, %v7787
        %v7852 = vadd.f32 %v7724, %v7788
        %v7853 = vadd.f32 %v7725, %v7789
        %v7854 = vadd.f32 %v7726, %v7790
        %v7855 = vadd.f32 %v7727, %v7791
        %v7856 = vadd.f32 %v7728, %v7792
        %v7857 = vadd.f32 %v7729, %v7793
        %v7858 = vadd.f32 %v7730, %v7794
        %v7859 = vadd.f32 %v7731, %v7795
        %v7860 = vadd.f32 %v7732, %v7796
        %v7861 = vadd.f32 %v7733, %v7797
        %v7862 = vadd.f32 %v7734, %v7798
        %v7863 = vadd.f32 %v7735, %v7799
        %v7864 = vmax.f32 %v7800, 0.0
        %v7865 = vmax.f32 %v7801, 0.0
        %v7866 = vmax.f32 %v7802, 0.0
        %v7867 = vmax.f32 %v7803, 0.0
        %v7868 = vmax.f32 %v7804, 0.0
        %v7869 = vmax.f32 %v7805, 0.0
        %v7870 = vmax.f32 %v7806, 0.0
        %v7871 = vmax.f32 %v7807, 0.0
        %v7872 = vmax.f32 %v7808, 0.0
        %v7873 = vmax.f32 %v7809, 0.0
        %v7874 = vmax.f32 %v7810, 0.0
        %v7875 = vmax.f32 %v7811, 0.0
        %v7876 = vmax.f32 %v7812, 0.0
        %v7877 = vmax.f32 %v7813, 0.0
        %v7878 = vmax.f32 %v7814, 0.0
        %v7879 = vmax.f32 %v7815, 0.0
        %v7880 = vmax.f32 %v7816, 0.0
        %v7881 = vmax.f32 %v7817, 0.0
        %v7882 = vmax.f32 %v7818, 0.0
        %v7883 = vmax.f32 %v7819, 0.0
        %v7884 = vmax.f32 %v7820, 0.0
        %v7885 = vmax.f32 %v7821, 0.0
        %v7886 = vmax.f32 %v7822, 0.0
        %v7887 = vmax.f32 %v7823, 0.0
        %v7888 = vmax.f32 %v7824, 0.0
        %v7889 = vmax.f32 %v7825, 0.0
        %v7890 = vmax.f32 %v7826, 0.0
        %v7891 = vmax.f32 %v7827, 0.0
        %v7892 = vmax.f32 %v7828, 0.0
        %v7893 = vmax.f32 %v7829, 0.0
        %v7894 = vmax.f32 %v7830, 0.0
        %v7895 = vmax.f32 %v7831, 0.0
        %v7896 = vmax.f32 %v7832, 0.0
        %v7897 = vmax.f32 %v7833, 0.0
        %v7898 = vmax.f32 %v7834, 0.0
        %v7899 = vmax.f32 %v7835, 0.0
        %v7900 = vmax.f32 %v7836, 0.0
        %v7901 = vmax.f32 %v7837, 0.0
        %v7902 = vmax.f32 %v7838, 0.0
        %v7903 = vmax.f32 %v7839, 0.0
        %v7904 = vmax.f32 %v7840, 0.0
        %v7905 = vmax.f32 %v7841, 0.0
        %v7906 = vmax.f32 %v7842, 0.0
        %v7907 = vmax.f32 %v7843, 0.0
        %v7908 = vmax.f32 %v7844, 0.0
        %v7909 = vmax.f32 %v7845, 0.0
        %v7910 = vmax.f32 %v7846, 0.0
        %v7911 = vmax.f32 %v7847, 0.0
        %v7912 = vmax.f32 %v7848, 0.0
        %v7913 = vmax.f32 %v7849, 0.0
        %v7914 = vmax.f32 %v7850, 0.0
        %v7915 = vmax.f32 %v7851, 0.0
        %v7916 = vmax.f32 %v7852, 0.0
        %v7917 = vmax.f32 %v7853, 0.0
        %v7918 = vmax.f32 %v7854, 0.0
        %v7919 = vmax.f32 %v7855, 0.0
        %v7920 = vmax.f32 %v7856, 0.0
        %v7921 = vmax.f32 %v7857, 0.0
        %v7922 = vmax.f32 %v7858, 0.0
        %v7923 = vmax.f32 %v7859, 0.0
        %v7924 = vmax.f32 %v7860, 0.0
        %v7925 = vmax.f32 %v7861, 0.0
        %v7926 = vmax.f32 %v7862, 0.0
        %v7927 = vmax.f32 %v7863, 0.0
        %7928 = vst [vmem:[%s9] sm:$0xff] %v7864
        %7929 = vst [vmem:[%s9 + $0x8] sm:$0xff] %v7865
        %7930 = vst [vmem:[%s9 + $0x10] sm:$0xff] %v7866
        %7931 = vst [vmem:[%s9 + $0x18] sm:$0xff] %v7867
        %7932 = vst [vmem:[%s9 + $0x20] sm:$0xff] %v7868
        %7933 = vst [vmem:[%s9 + $0x28] sm:$0xff] %v7869
        %7934 = vst [vmem:[%s9 + $0x30] sm:$0xff] %v7870
        %7935 = vst [vmem:[%s9 + $0x38] sm:$0xff] %v7871
        %7936 = vst [vmem:[%s9 + $0x40] sm:$0xff] %v7872
        %7937 = vst [vmem:[%s9 + $0x48] sm:$0xff] %v7873
        %7938 = vst [vmem:[%s9 + $0x50] sm:$0xff] %v7874
        %7939 = vst [vmem:[%s9 + $0x58] sm:$0xff] %v7875
        %7940 = vst [vmem:[%s9 + $0x60] sm:$0xff] %v7876
        %7941 = vst [vmem:[%s9 + $0x68] sm:$0xff] %v7877
        %7942 = vst [vmem:[%s9 + $0x70] sm:$0xff] %v7878
        %7943 = vst [vmem:[%s9 + $0x78] sm:$0xff] %v7879
        %7944 = vst [vmem:[%s9 + $0x80] sm:$0xff] %v7880
        %7945 = vst [vmem:[%s9 + $0x88] sm:$0xff] %v7881
        %7946 = vst [vmem:[%s9 + $0x90] sm:$0xff] %v7882
        %7947 = vst [vmem:[%s9 + $0x98] sm:$0xff] %v7883
        %7948 = vst [vmem:[%s9 + $0xa0] sm:$0xff] %v7884
        %7949 = vst [vmem:[%s9 + $0xa8] sm:$0xff] %v7885
        %7950 = vst [vmem:[%s9 + $0xb0] sm:$0xff] %v7886
        %7951 = vst [vmem:[%s9 + $0xb8] sm:$0xff] %v7887
        %7952 = vst [vmem:[%s9 + $0xc0] sm:$0xff] %v7888
        %7953 = vst [vmem:[%s9 + $0xc8] sm:$0xff] %v7889
        %7954 = vst [vmem:[%s9 + $0xd0] sm:$0xff] %v7890
        %7955 = vst [vmem:[%s9 + $0xd8] sm:$0xff] %v7891
        %7956 = vst [vmem:[%s9 + $0xe0] sm:$0xff] %v7892
        %7957 = vst [vmem:[%s9 + $0xe8] sm:$0xff] %v7893
        %7958 = vst [vmem:[%s9 + $0xf0] sm:$0xff] %v7894
        %7959 = vst [vmem:[%s9 + $0xf8] sm:$0xff] %v7895
        %7960 = vst [vmem:[%s9 + $0x100] sm:$0xff] %v7896
        %7961 = vst [vmem:[%s9 + $0x108] sm:$0xff] %v7897
        %7962 = vst [vmem:[%s9 + $0x110] sm:$0xff] %v7898
        %7963 = vst [vmem:[%s9 + $0x118] sm:$0xff] %v7899
        %7964 = vst [vmem:[%s9 + $0x120] sm:$0xff] %v7900
        %7965 = vst [vmem:[%s9 + $0x128] sm:$0xff] %v7901
        %7966 = vst [vmem:[%s9 + $0x130] sm:$0xff] %v7902
        %7967 = vst [vmem:[%s9 + $0x138] sm:$0xff] %v7903
        %7968 = vst [vmem:[%s9 + $0x140] sm:$0xff] %v7904
        %7969 = vst [vmem:[%s9 + $0x148] sm:$0xff] %v7905
        %7970 = vst [vmem:[%s9 + $0x150] sm:$0xff] %v7906
        %7971 = vst [vmem:[%s9 + $0x158] sm:$0xff] %v7907
        %7972 = vst [vmem:[%s9 + $0x160] sm:$0xff] %v7908
        %7973 = vst [vmem:[%s9 + $0x168] sm:$0xff] %v7909
        %7974 = vst [vmem:[%s9 + $0x170] sm:$0xff] %v7910
        %7975 = vst [vmem:[%s9 + $0x178] sm:$0xff] %v7911
        %7976 = vst [vmem:[%s9 + $0x180] sm:$0xff] %v7912
        %7977 = vst [vmem:[%s9 + $0x188] sm:$0xff] %v7913
        %7978 = vst [vmem:[%s9 + $0x190] sm:$0xff] %v7914
        %7979 = vst [vmem:[%s9 + $0x198] sm:$0xff] %v7915
        %7980 = vst [vmem:[%s9 + $0x1a0] sm:$0xff] %v7916
        %7981 = vst [vmem:[%s9 + $0x1a8] sm:$0xff] %v7917
        %7982 = vst [vmem:[%s9 + $0x1b0] sm:$0xff] %v7918
        %7983 = vst [vmem:[%s9 + $0x1b8] sm:$0xff] %v7919
        %7984 = vst [vmem:[%s9 + $0x1c0] sm:$0xff] %v7920
        %7985 = vst [vmem:[%s9 + $0x1c8] sm:$0xff] %v7921
        %7986 = vst [vmem:[%s9 + $0x1d0] sm:$0xff] %v7922
        %7987 = vst [vmem:[%s9 + $0x1d8] sm:$0xff] %v7923
        %7988 = vst [vmem:[%s9 + $0x1e0] sm:$0xff] %v7924
        %7989 = vst [vmem:[%s9 + $0x1e8] sm:$0xff] %v7925
        %7990 = vst [vmem:[%s9 + $0x1f0] sm:$0xff] %v7926
        %7991 = vst [vmem:[%s9 + $0x1f8] sm:$0xff] %v7927
      $region64: #{basic_block_bn_forward.1} parent=55 // pred_fallthru
        _
      // Predicated region
      $region65: #{basic_block_bn_forward.1} parent=55 // pred_check
        %p7992 = pneg %p227
      $region66: #{basic_block_bn_forward.1} parent=55 // pred_check_branch
        %7994 = sbr.rel (%p7992) target = $region68
      $region67: #{basic_block_bn_forward.1} parent=55 // pred_region
        _
      $region68: #{basic_block_bn_forward.1} parent=55 // pred_fallthru
        _
      // Predicated region
      $region69: #{basic_block_bn_forward.1} parent=55 // pred_check
        %p7995 = pneg %p227
      $region70: #{basic_block_bn_forward.1} parent=55 // pred_check_branch
        %7997 = sbr.rel (%p7995) target = $region72
      $region71: #{basic_block_bn_forward.1} parent=55 // pred_region
        _
      $region72: #{basic_block_bn_forward.1} parent=55 // pred_fallthru
        _
    $region56: #{basic_block_bn_forward.1} parent=5 // pred_fallthru
      _
    %p7998 = scmp.le.s32.totalorder 2, %s15
    // Predicated region
    $region73: #{basic_block_bn_forward.1} parent=5 // pred_check
      %p7999 = pneg %p7998
    $region74: #{basic_block_bn_forward.1} parent=5 // pred_check_branch
      %8001 = sbr.rel (%p7999) target = $region76
    $region75: #{basic_block_bn_forward.1} parent=5 // pred_region
      %s8002 = ssub.s32 %s15, 2
    $region76: #{basic_block_bn_forward.1} parent=5 // pred_fallthru
      _
  $region6: #{basic_block_bn_forward.1} parent=0 // loop_footer
    %s19 = sadd.s32 1, %s15
  $region7: #{basic_block_bn_forward.1} parent=0 // loop_footer_branch
    %14 = sbr.rel target = $region3
  $region8: #{basic_block_bn_forward.1} parent=0 // loop_exit
    _

</llo_original>
